<compile_context>
chip_gen: v7x
topology: tpu7x:2x2x1
jax: 0.10.0
libtpu: 0.0.40
codegen_flags: <defaults>
</compile_context>

<pallas_src>
import jax
import jax.numpy as jnp
from jax import lax
from jax.experimental import pallas as pl
from jax.experimental.pallas import tpu as pltpu

C_IN = 2048     # fixed by nn.Linear(2048, 128) in the module
HIDDEN = 128
KSIZE = 7
PAD = 3
BN_EPS = 1e-5


def _lane_chunk(HW, C, max_bytes=128 * 1024):
    """Largest lane-chunk (multiple of 128 dividing C) whose (HW, ck) f32 slab
    stays under ~max_bytes (~32 vregs), so streamed pooling passes don't spill."""
    ck = C
    while ck > 128 and ck % 2 == 0 and HW * ck * 4 > max_bytes:
        ck //= 2
    if C % ck or ck % 128:
        ck = C
    return ck


def cbam_kernel(x_ref, w1_ref, b1_ref, w2_ref, b2_ref,
                ka_ref, km_ref, bsp_ref, o_ref, avg_ref, max_ref):
    """One block of BB batch elements per grid step.

    x_ref   : (BB, HW, C)  input block (f32)
    w1/b1   : (C, 128) / (1, 128)   first MLP layer (weight already transposed)
    w2/b2   : (128, C) / (1, C)     second MLP layer
    ka/km   : (HW, HW)     7x7 conv (avg / max channel) folded with BN scale
    bsp     : (1, 1) SMEM  conv bias folded with BN shift
    o_ref   : (BB, HW, C)  output block
    avg/max : (BB, C) VMEM scratch for the pooled channel-attention rows
    """
    BB, HW, C = x_ref.shape
    CK = _lane_chunk(HW, C)
    nck = C // CK

    # ---------------- Channel attention ----------------
    # Pass 1 (one streamed pass per sample): fused avg + max pooling over HW,
    # lane-chunked so each (HW, CK) slab is loaded once and feeds both reductions.
    for b in range(BB):
        for ck in range(nck):
            lo = ck * CK
            xc = x_ref[b, :, lo:lo + CK]                                   # (HW, CK)
            avg_ref[b:b + 1, lo:lo + CK] = jnp.mean(xc, axis=0, keepdims=True)
            max_ref[b:b + 1, lo:lo + CK] = jnp.max(xc, axis=0, keepdims=True)

    # Shared MLP batched over all BB pooled rows (MXU matmuls, K = 2048).
    # mlp(avg) + mlp(max) == (relu(avg@w1+b1) + relu(max@w1+b1)) @ w2 + 2*b2.
    ha = jnp.maximum(
        jnp.dot(avg_ref[...], w1_ref[...], preferred_element_type=jnp.float32)
        + b1_ref[...], 0.0)                                                # (BB, 128)
    hm = jnp.maximum(
        jnp.dot(max_ref[...], w1_ref[...], preferred_element_type=jnp.float32)
        + b1_ref[...], 0.0)                                                # (BB, 128)
    att_c = jax.nn.sigmoid(
        jnp.dot(ha + hm, w2_ref[...], preferred_element_type=jnp.float32)
        + 2.0 * b2_ref[...])                                               # (BB, C)

    # ---------------- Spatial attention (per sample; BB is kept small) ----------------
    bsp = bsp_ref[0, 0]
    inv_c = 1.0 / C
    for b in range(BB):
        acol = att_c[b:b + 1, :]                                           # (1, C)

        # Pass 2: single streamed pass over x*att_c producing BOTH the channel
        # mean and the channel max, without materializing the (HW, C) temp.
        s_acc = jnp.zeros((HW, 1), jnp.float32)
        m_acc = jnp.full((HW, 1), -jnp.inf, jnp.float32)
        for ck in range(nck):
            lo = ck * CK
            zc = x_ref[b, :, lo:lo + CK] * acol[:, lo:lo + CK]             # (HW, CK)
            s_acc = s_acc + jnp.sum(zc, axis=1, keepdims=True)
            m_acc = jnp.maximum(m_acc, jnp.max(zc, axis=1, keepdims=True))

        # 7x7 conv (2->1 ch) + BN folded into two (HW, HW) matvecs + scalar shift.
        logits = (jnp.dot(ka_ref[...], s_acc * inv_c, preferred_element_type=jnp.float32)
                  + jnp.dot(km_ref[...], m_acc, preferred_element_type=jnp.float32)
                  + bsp)
        att_s = jax.nn.sigmoid(logits)                                     # (HW, 1)

        # Pass 3: single final write (one load pass + one store).
        o_ref[b] = (x_ref[b] * acol) * att_s


def build_conv_matrices(w_conv, bn_scale, H, W):
    """Reindex a (1, 2, 7, 7) conv weight into two (HW, HW) dense matrices.

    Rows index the output position p, columns the input position q; the BN scale
    is folded in.  ka uses w_conv[0, 0] (avg channel), km uses w_conv[0, 1]
    (max channel)."""
    HW = H * W
    idx = jnp.arange(HW)
    ph, pw = idx // W, idx % W
    kh = ph[None, :] - ph[:, None] + PAD          # tap index of input q for output p
    kw = pw[None, :] - pw[:, None] + PAD
    valid = (kh >= 0) & (kh < KSIZE) & (kw >= 0) & (kw < KSIZE)
    flat = jnp.clip(kh, 0, KSIZE - 1) * KSIZE + jnp.clip(kw, 0, KSIZE - 1)
    ka = jnp.where(valid, w_conv[0, 0].reshape(-1)[flat], 0.0) * bn_scale
    km = jnp.where(valid, w_conv[0, 1].reshape(-1)[flat], 0.0) * bn_scale
    return ka.astype(jnp.float32), km.astype(jnp.float32)


def prepare_spatial_params(params, H, W):
    """Fold conv + BN (eval mode) into (ka, km, b_sp).  Hoisted: call once per
    (H, W, params) instead of rebuilding the O(HW^2) matrices on every forward."""
    bn_scale = params["bn_gamma"] / jnp.sqrt(params["bn_var"] + BN_EPS)
    ka, km = build_conv_matrices(params["w_conv"], bn_scale, H, W)
    b_sp = ((params["b_conv"] - params["bn_mean"]) * bn_scale
            + params["bn_beta"]).reshape(1, 1).astype(jnp.float32)
    return ka, km, b_sp


def pick_batch_block(B, HW, C, invariant_bytes=0,
                     block_budget_bytes=24 * 1024 * 1024, max_bb=8):
    """Largest divisor of B such that the double-buffered (in + out) batch blocks
    plus the single-buffered invariant operands fit the VMEM block budget, capped
    so the grid keeps >= 2 steps when B >= 2 (v7x has 2 TCs sharded via
    dimension_semantics=("parallel",)) and BB stays small enough that the
    unrolled per-sample loops don't bloat the kernel."""
    bytes_per_sample = HW * C * 4                               # f32
    avail = max(block_budget_bytes - invariant_bytes, 4 * bytes_per_sample)
    cap_vmem = max(1, avail // (4 * bytes_per_sample))          # 2x in + 2x out
    cap_cores = max(1, (B + 1) // 2)
    bb = int(min(B, cap_vmem, cap_cores, max_bb))
    while B % bb:
        bb -= 1
    return bb


def cbam_forward(x_nchw, params, spatial=None, batch_block=None):
    B, C, H, W = x_nchw.shape
    assert C == C_IN
    HW = H * W
    # TODO(synk): fold this NCHW <-> (B, HW, C) transpose pair into the
    # surrounding model (each is a full HBM round trip of the activation).
    x = x_nchw.reshape(B, C, HW).transpose(0, 2, 1)             # (B, HW, C)

    if spatial is None:
        spatial = prepare_spatial_params(params, H, W)
    k_avg, k_max, b_sp = spatial

    # Account for the single-buffered invariants (w1, w2, biases, ka, km) when
    # sizing the batch block (matters on v7x once HW grows).
    invariant_bytes = 4 * (2 * C * HIDDEN + HIDDEN + C + 2 * HW * HW + 1)
    BB = (batch_block if batch_block is not None
          else pick_batch_block(B, HW, C, invariant_bytes))

    # Grid-invariant operands: single-buffered (their index_map is constant).
    invariant = dict(pipeline_mode=pl.Buffered(1))

    out = pl.pallas_call(
        cbam_kernel,
        out_shape=jax.ShapeDtypeStruct((B, HW, C), jnp.float32),
        grid_spec=pltpu.PrefetchScalarGridSpec(
            num_scalar_prefetch=0,
            grid=(B // BB,),
            in_specs=[
                pl.BlockSpec((BB, HW, C), lambda b: (b, 0, 0)),                 # x block
                pl.BlockSpec((C, HIDDEN), lambda b: (0, 0), **invariant),       # w1
                pl.BlockSpec((1, HIDDEN), lambda b: (0, 0), **invariant),       # b1
                pl.BlockSpec((HIDDEN, C), lambda b: (0, 0), **invariant),       # w2
                pl.BlockSpec((1, C), lambda b: (0, 0), **invariant),            # b2
                pl.BlockSpec((HW, HW), lambda b: (0, 0), **invariant),          # conv avg
                pl.BlockSpec((HW, HW), lambda b: (0, 0), **invariant),          # conv max
                pl.BlockSpec(memory_space=pltpu.MemorySpace.SMEM),              # folded bias
            ],
            out_specs=pl.BlockSpec((BB, HW, C), lambda b: (b, 0, 0)),
            scratch_shapes=[pltpu.VMEM((BB, C), jnp.float32),                   # avg rows
                            pltpu.VMEM((BB, C), jnp.float32)],                  # max rows
        ),
        compiler_params=pltpu.CompilerParams(
            dimension_semantics=("parallel",),
            # Conservative for v7x (64 MiB physical / TC); v5e/v6e could raise.
            vmem_limit_bytes=48 * 1024 * 1024,
        ),
    )(x,
      params["w1"], params["b1"].reshape(1, -1),
      params["w2"], params["b2"].reshape(1, -1),
      k_avg, k_max, b_sp)

    return out.transpose(0, 2, 1).reshape(B, C, H, W)


def cbam_reference(x, params):
    """Plain-JAX reference (eval-mode dropout/BN), NCHW."""
    avg = x.mean(axis=(2, 3))
    mx = x.max(axis=(2, 3))

    def mlp(v):
        return jnp.maximum(v @ params["w1"] + params["b1"], 0.0) @ params["w2"] + params["b2"]

    att_c = jax.nn.sigmoid(mlp(avg) + mlp(mx))
    y = x * att_c[:, :, None, None]

    avg_s = y.mean(axis=1, keepdims=True)
    max_s = y.max(axis=1, keepdims=True)
    concat = jnp.concatenate([avg_s, max_s], axis=1)
    conv = lax.conv_general_dilated(
        concat, params["w_conv"], (1, 1), [(PAD, PAD), (PAD, PAD)],
        dimension_numbers=("NCHW", "OIHW", "NCHW"))
    conv = conv + params["b_conv"].reshape(1, 1, 1, 1)
    bn = ((conv - params["bn_mean"].reshape(1, 1, 1, 1))
          / jnp.sqrt(params["bn_var"].reshape(1, 1, 1, 1) + BN_EPS)
          * params["bn_gamma"].reshape(1, 1, 1, 1)
          + params["bn_beta"].reshape(1, 1, 1, 1))
    return y * jax.nn.sigmoid(bn)


def init_params(key):
    ks = jax.random.split(key, 6)
    return dict(
        # Linear weights stored as (in, out) == torch weight transposed.
        w1=jax.random.normal(ks[0], (C_IN, HIDDEN), jnp.float32) * 0.02,
        b1=jax.random.normal(ks[1], (HIDDEN,), jnp.float32) * 0.01,
        w2=jax.random.normal(ks[2], (HIDDEN, C_IN), jnp.float32) * 0.02,
        b2=jax.random.normal(ks[3], (C_IN,), jnp.float32) * 0.01,
        w_conv=jax.random.normal(ks[4], (1, 2, KSIZE, KSIZE), jnp.float32) * 0.1,
        b_conv=jax.random.normal(ks[5], (1,), jnp.float32) * 0.01,
        bn_gamma=jnp.ones((1,), jnp.float32),
        bn_beta=jnp.zeros((1,), jnp.float32),
        bn_mean=jnp.zeros((1,), jnp.float32),
        bn_var=jnp.ones((1,), jnp.float32),
    )


if __name__ == "__main__":
    key = jax.random.PRNGKey(0)
    kx, kp = jax.random.split(key)
    params = init_params(kp)

    # Small batch/spatial; channels are fixed at 2048 by the module's MLP.
    # B = 4 exercises the batched (BB = 2) grid blocks and a 2-step grid.
    x = jax.random.normal(kx, (4, C_IN, 8, 8), jnp.float32)

    spatial = prepare_spatial_params(params, 8, 8)      # hoisted conv/BN folding
    out = jax.block_until_ready(cbam_forward(x, params, spatial=spatial))
    ref = cbam_reference(x, params)

    assert out.shape == x.shape
    err = float(jnp.max(jnp.abs(out - ref)))
    if not err < 1e-3:
        raise AssertionError(f"kernel/reference mismatch, max abs err = {err}")
    print("KERNEL_OK")
</pallas_src>

<mosaic_0001>
module attributes {stable_mosaic.version = 11 : i64} {
  func.func @cbam_kernel(%arg0: i32, %arg1: memref<2x64x2048xf32, #tpu.memory_space<vmem>>, %arg2: memref<2048x128xf32, #tpu.memory_space<vmem>>, %arg3: memref<1x128xf32, #tpu.memory_space<vmem>>, %arg4: memref<128x2048xf32, #tpu.memory_space<vmem>>, %arg5: memref<1x2048xf32, #tpu.memory_space<vmem>>, %arg6: memref<64x64xf32, #tpu.memory_space<vmem>>, %arg7: memref<64x64xf32, #tpu.memory_space<vmem>>, %arg8: memref<1x1xf32, #tpu.memory_space<smem>>, %arg9: memref<2x64x2048xf32, #tpu.memory_space<vmem>>, %arg10: memref<2x2048xf32, #tpu.memory_space<vmem>>, %arg11: memref<2x2048xf32, #tpu.memory_space<vmem>>) attributes {dimension_semantics = [#tpu.dimension_semantics<parallel>], iteration_bounds = array<i64: 2>, scalar_prefetch = 0 : i64, scratch_operands = 2 : i64, tpu.core_type = #tpu.core_type<tc>, window_params = [{transform_indices = @transform_0, window_bounds = array<i64: 2, 64, 2048>}, {pipeline_mode = #tpu.pipeline_mode<synchronous>, transform_indices = @transform_1, window_bounds = array<i64: 2048, 128>}, {pipeline_mode = #tpu.pipeline_mode<synchronous>, transform_indices = @transform_2, window_bounds = array<i64: 1, 128>}, {pipeline_mode = #tpu.pipeline_mode<synchronous>, transform_indices = @transform_3, window_bounds = array<i64: 128, 2048>}, {pipeline_mode = #tpu.pipeline_mode<synchronous>, transform_indices = @transform_4, window_bounds = array<i64: 1, 2048>}, {pipeline_mode = #tpu.pipeline_mode<synchronous>, transform_indices = @transform_5, window_bounds = array<i64: 64, 64>}, {pipeline_mode = #tpu.pipeline_mode<synchronous>, transform_indices = @transform_6, window_bounds = array<i64: 64, 64>}, {transform_indices = @transform_7, window_bounds = array<i64: 1, 1>}, {transform_indices = @transform_8, window_bounds = array<i64: 2, 64, 2048>}]} {
    %c0 = arith.constant 0 : index
    %c0_0 = arith.constant 0 : index
    %c0_1 = arith.constant 0 : index
    %0 = vector.load %arg1[%c0, %c0_0, %c0_1] : memref<2x64x2048xf32, #tpu.memory_space<vmem>>, vector<1x64x512xf32>
    %1 = vector.shape_cast %0 : vector<1x64x512xf32> to vector<64x512xf32>
    %cst = arith.constant dense<0.000000e+00> : vector<512xf32>
    %2 = vector.multi_reduction <add>, %1, %cst [0] : vector<64x512xf32> to vector<512xf32>
    %3 = vector.shape_cast %2 : vector<512xf32> to vector<1x512xf32>
    %cst_2 = arith.constant 6.400000e+01 : f32
    %4 = vector.broadcast %cst_2 : f32 to vector<1x512xf32>
    %5 = arith.divf %3, %4 : vector<1x512xf32>
    %c0_3 = arith.constant 0 : index
    %c0_4 = arith.constant 0 : index
    %6 = vector.load %arg10[%c0_3, %c0_4] : memref<2x2048xf32, #tpu.memory_space<vmem>>, vector<1x512xf32>
    tpu.vector_store %arg10[%c0_3, %c0_4], %5 {strides = array<i32>} : memref<2x2048xf32, #tpu.memory_space<vmem>>, vector<1x512xf32>,
    %cst_5 = arith.constant dense<0xFF800000> : vector<512xf32>
    %7 = vector.multi_reduction <maximumf>, %1, %cst_5 [0] : vector<64x512xf32> to vector<512xf32>
    %8 = vector.shape_cast %7 : vector<512xf32> to vector<1x512xf32>
    %c0_6 = arith.constant 0 : index
    %c0_7 = arith.constant 0 : index
    %9 = vector.load %arg11[%c0_6, %c0_7] : memref<2x2048xf32, #tpu.memory_space<vmem>>, vector<1x512xf32>
    tpu.vector_store %arg11[%c0_6, %c0_7], %8 {strides = array<i32>} : memref<2x2048xf32, #tpu.memory_space<vmem>>, vector<1x512xf32>,
    %c0_8 = arith.constant 0 : index
    %c0_9 = arith.constant 0 : index
    %c512 = arith.constant 512 : index
    %10 = vector.load %arg1[%c0_8, %c0_9, %c512] : memref<2x64x2048xf32, #tpu.memory_space<vmem>>, vector<1x64x512xf32>
    %11 = vector.shape_cast %10 : vector<1x64x512xf32> to vector<64x512xf32>
    %cst_10 = arith.constant dense<0.000000e+00> : vector<512xf32>
    %12 = vector.multi_reduction <add>, %11, %cst_10 [0] : vector<64x512xf32> to vector<512xf32>
    %13 = vector.shape_cast %12 : vector<512xf32> to vector<1x512xf32>
    %cst_11 = arith.constant 6.400000e+01 : f32
    %14 = vector.broadcast %cst_11 : f32 to vector<1x512xf32>
    %15 = arith.divf %13, %14 : vector<1x512xf32>
    %c0_12 = arith.constant 0 : index
    %c512_13 = arith.constant 512 : index
    %16 = vector.load %arg10[%c0_12, %c512_13] : memref<2x2048xf32, #tpu.memory_space<vmem>>, vector<1x512xf32>
    tpu.vector_store %arg10[%c0_12, %c512_13], %15 {strides = array<i32>} : memref<2x2048xf32, #tpu.memory_space<vmem>>, vector<1x512xf32>,
    %cst_14 = arith.constant dense<0xFF800000> : vector<512xf32>
    %17 = vector.multi_reduction <maximumf>, %11, %cst_14 [0] : vector<64x512xf32> to vector<512xf32>
    %18 = vector.shape_cast %17 : vector<512xf32> to vector<1x512xf32>
    %c0_15 = arith.constant 0 : index
    %c512_16 = arith.constant 512 : index
    %19 = vector.load %arg11[%c0_15, %c512_16] : memref<2x2048xf32, #tpu.memory_space<vmem>>, vector<1x512xf32>
    tpu.vector_store %arg11[%c0_15, %c512_16], %18 {strides = array<i32>} : memref<2x2048xf32, #tpu.memory_space<vmem>>, vector<1x512xf32>,
    %c0_17 = arith.constant 0 : index
    %c0_18 = arith.constant 0 : index
    %c1024 = arith.constant 1024 : index
    %20 = vector.load %arg1[%c0_17, %c0_18, %c1024] : memref<2x64x2048xf32, #tpu.memory_space<vmem>>, vector<1x64x512xf32>
    %21 = vector.shape_cast %20 : vector<1x64x512xf32> to vector<64x512xf32>
    %cst_19 = arith.constant dense<0.000000e+00> : vector<512xf32>
    %22 = vector.multi_reduction <add>, %21, %cst_19 [0] : vector<64x512xf32> to vector<512xf32>
    %23 = vector.shape_cast %22 : vector<512xf32> to vector<1x512xf32>
    %cst_20 = arith.constant 6.400000e+01 : f32
    %24 = vector.broadcast %cst_20 : f32 to vector<1x512xf32>
    %25 = arith.divf %23, %24 : vector<1x512xf32>
    %c0_21 = arith.constant 0 : index
    %c1024_22 = arith.constant 1024 : index
    %26 = vector.load %arg10[%c0_21, %c1024_22] : memref<2x2048xf32, #tpu.memory_space<vmem>>, vector<1x512xf32>
    tpu.vector_store %arg10[%c0_21, %c1024_22], %25 {strides = array<i32>} : memref<2x2048xf32, #tpu.memory_space<vmem>>, vector<1x512xf32>,
    %cst_23 = arith.constant dense<0xFF800000> : vector<512xf32>
    %27 = vector.multi_reduction <maximumf>, %21, %cst_23 [0] : vector<64x512xf32> to vector<512xf32>
    %28 = vector.shape_cast %27 : vector<512xf32> to vector<1x512xf32>
    %c0_24 = arith.constant 0 : index
    %c1024_25 = arith.constant 1024 : index
    %29 = vector.load %arg11[%c0_24, %c1024_25] : memref<2x2048xf32, #tpu.memory_space<vmem>>, vector<1x512xf32>
    tpu.vector_store %arg11[%c0_24, %c1024_25], %28 {strides = array<i32>} : memref<2x2048xf32, #tpu.memory_space<vmem>>, vector<1x512xf32>,
    %c0_26 = arith.constant 0 : index
    %c0_27 = arith.constant 0 : index
    %c1536 = arith.constant 1536 : index
    %30 = vector.load %arg1[%c0_26, %c0_27, %c1536] : memref<2x64x2048xf32, #tpu.memory_space<vmem>>, vector<1x64x512xf32>
    %31 = vector.shape_cast %30 : vector<1x64x512xf32> to vector<64x512xf32>
    %cst_28 = arith.constant dense<0.000000e+00> : vector<512xf32>
    %32 = vector.multi_reduction <add>, %31, %cst_28 [0] : vector<64x512xf32> to vector<512xf32>
    %33 = vector.shape_cast %32 : vector<512xf32> to vector<1x512xf32>
    %cst_29 = arith.constant 6.400000e+01 : f32
    %34 = vector.broadcast %cst_29 : f32 to vector<1x512xf32>
    %35 = arith.divf %33, %34 : vector<1x512xf32>
    %c0_30 = arith.constant 0 : index
    %c1536_31 = arith.constant 1536 : index
    %36 = vector.load %arg10[%c0_30, %c1536_31] : memref<2x2048xf32, #tpu.memory_space<vmem>>, vector<1x512xf32>
    tpu.vector_store %arg10[%c0_30, %c1536_31], %35 {strides = array<i32>} : memref<2x2048xf32, #tpu.memory_space<vmem>>, vector<1x512xf32>,
    %cst_32 = arith.constant dense<0xFF800000> : vector<512xf32>
    %37 = vector.multi_reduction <maximumf>, %31, %cst_32 [0] : vector<64x512xf32> to vector<512xf32>
    %38 = vector.shape_cast %37 : vector<512xf32> to vector<1x512xf32>
    %c0_33 = arith.constant 0 : index
    %c1536_34 = arith.constant 1536 : index
    %39 = vector.load %arg11[%c0_33, %c1536_34] : memref<2x2048xf32, #tpu.memory_space<vmem>>, vector<1x512xf32>
    tpu.vector_store %arg11[%c0_33, %c1536_34], %38 {strides = array<i32>} : memref<2x2048xf32, #tpu.memory_space<vmem>>, vector<1x512xf32>,
    %c1 = arith.constant 1 : index
    %c0_35 = arith.constant 0 : index
    %c0_36 = arith.constant 0 : index
    %40 = vector.load %arg1[%c1, %c0_35, %c0_36] : memref<2x64x2048xf32, #tpu.memory_space<vmem>>, vector<1x64x512xf32>
    %41 = vector.shape_cast %40 : vector<1x64x512xf32> to vector<64x512xf32>
    %cst_37 = arith.constant dense<0.000000e+00> : vector<512xf32>
    %42 = vector.multi_reduction <add>, %41, %cst_37 [0] : vector<64x512xf32> to vector<512xf32>
    %43 = vector.shape_cast %42 : vector<512xf32> to vector<1x512xf32>
    %cst_38 = arith.constant 6.400000e+01 : f32
    %44 = vector.broadcast %cst_38 : f32 to vector<1x512xf32>
    %45 = arith.divf %43, %44 : vector<1x512xf32>
    %c1_39 = arith.constant 1 : index
    %c0_40 = arith.constant 0 : index
    %46 = vector.load %arg10[%c1_39, %c0_40] : memref<2x2048xf32, #tpu.memory_space<vmem>>, vector<1x512xf32>
    tpu.vector_store %arg10[%c1_39, %c0_40], %45 {strides = array<i32>} : memref<2x2048xf32, #tpu.memory_space<vmem>>, vector<1x512xf32>,
    %cst_41 = arith.constant dense<0xFF800000> : vector<512xf32>
    %47 = vector.multi_reduction <maximumf>, %41, %cst_41 [0] : vector<64x512xf32> to vector<512xf32>
    %48 = vector.shape_cast %47 : vector<512xf32> to vector<1x512xf32>
    %c1_42 = arith.constant 1 : index
    %c0_43 = arith.constant 0 : index
    %49 = vector.load %arg11[%c1_42, %c0_43] : memref<2x2048xf32, #tpu.memory_space<vmem>>, vector<1x512xf32>
    tpu.vector_store %arg11[%c1_42, %c0_43], %48 {strides = array<i32>} : memref<2x2048xf32, #tpu.memory_space<vmem>>, vector<1x512xf32>,
    %c1_44 = arith.constant 1 : index
    %c0_45 = arith.constant 0 : index
    %c512_46 = arith.constant 512 : index
    %50 = vector.load %arg1[%c1_44, %c0_45, %c512_46] : memref<2x64x2048xf32, #tpu.memory_space<vmem>>, vector<1x64x512xf32>
    %51 = vector.shape_cast %50 : vector<1x64x512xf32> to vector<64x512xf32>
    %cst_47 = arith.constant dense<0.000000e+00> : vector<512xf32>
    %52 = vector.multi_reduction <add>, %51, %cst_47 [0] : vector<64x512xf32> to vector<512xf32>
    %53 = vector.shape_cast %52 : vector<512xf32> to vector<1x512xf32>
    %cst_48 = arith.constant 6.400000e+01 : f32
    %54 = vector.broadcast %cst_48 : f32 to vector<1x512xf32>
    %55 = arith.divf %53, %54 : vector<1x512xf32>
    %c1_49 = arith.constant 1 : index
    %c512_50 = arith.constant 512 : index
    %56 = vector.load %arg10[%c1_49, %c512_50] : memref<2x2048xf32, #tpu.memory_space<vmem>>, vector<1x512xf32>
    tpu.vector_store %arg10[%c1_49, %c512_50], %55 {strides = array<i32>} : memref<2x2048xf32, #tpu.memory_space<vmem>>, vector<1x512xf32>,
    %cst_51 = arith.constant dense<0xFF800000> : vector<512xf32>
    %57 = vector.multi_reduction <maximumf>, %51, %cst_51 [0] : vector<64x512xf32> to vector<512xf32>
    %58 = vector.shape_cast %57 : vector<512xf32> to vector<1x512xf32>
    %c1_52 = arith.constant 1 : index
    %c512_53 = arith.constant 512 : index
    %59 = vector.load %arg11[%c1_52, %c512_53] : memref<2x2048xf32, #tpu.memory_space<vmem>>, vector<1x512xf32>
    tpu.vector_store %arg11[%c1_52, %c512_53], %58 {strides = array<i32>} : memref<2x2048xf32, #tpu.memory_space<vmem>>, vector<1x512xf32>,
    %c1_54 = arith.constant 1 : index
    %c0_55 = arith.constant 0 : index
    %c1024_56 = arith.constant 1024 : index
    %60 = vector.load %arg1[%c1_54, %c0_55, %c1024_56] : memref<2x64x2048xf32, #tpu.memory_space<vmem>>, vector<1x64x512xf32>
    %61 = vector.shape_cast %60 : vector<1x64x512xf32> to vector<64x512xf32>
    %cst_57 = arith.constant dense<0.000000e+00> : vector<512xf32>
    %62 = vector.multi_reduction <add>, %61, %cst_57 [0] : vector<64x512xf32> to vector<512xf32>
    %63 = vector.shape_cast %62 : vector<512xf32> to vector<1x512xf32>
    %cst_58 = arith.constant 6.400000e+01 : f32
    %64 = vector.broadcast %cst_58 : f32 to vector<1x512xf32>
    %65 = arith.divf %63, %64 : vector<1x512xf32>
    %c1_59 = arith.constant 1 : index
    %c1024_60 = arith.constant 1024 : index
    %66 = vector.load %arg10[%c1_59, %c1024_60] : memref<2x2048xf32, #tpu.memory_space<vmem>>, vector<1x512xf32>
    tpu.vector_store %arg10[%c1_59, %c1024_60], %65 {strides = array<i32>} : memref<2x2048xf32, #tpu.memory_space<vmem>>, vector<1x512xf32>,
    %cst_61 = arith.constant dense<0xFF800000> : vector<512xf32>
    %67 = vector.multi_reduction <maximumf>, %61, %cst_61 [0] : vector<64x512xf32> to vector<512xf32>
    %68 = vector.shape_cast %67 : vector<512xf32> to vector<1x512xf32>
    %c1_62 = arith.constant 1 : index
    %c1024_63 = arith.constant 1024 : index
    %69 = vector.load %arg11[%c1_62, %c1024_63] : memref<2x2048xf32, #tpu.memory_space<vmem>>, vector<1x512xf32>
    tpu.vector_store %arg11[%c1_62, %c1024_63], %68 {strides = array<i32>} : memref<2x2048xf32, #tpu.memory_space<vmem>>, vector<1x512xf32>,
    %c1_64 = arith.constant 1 : index
    %c0_65 = arith.constant 0 : index
    %c1536_66 = arith.constant 1536 : index
    %70 = vector.load %arg1[%c1_64, %c0_65, %c1536_66] : memref<2x64x2048xf32, #tpu.memory_space<vmem>>, vector<1x64x512xf32>
    %71 = vector.shape_cast %70 : vector<1x64x512xf32> to vector<64x512xf32>
    %cst_67 = arith.constant dense<0.000000e+00> : vector<512xf32>
    %72 = vector.multi_reduction <add>, %71, %cst_67 [0] : vector<64x512xf32> to vector<512xf32>
    %73 = vector.shape_cast %72 : vector<512xf32> to vector<1x512xf32>
    %cst_68 = arith.constant 6.400000e+01 : f32
    %74 = vector.broadcast %cst_68 : f32 to vector<1x512xf32>
    %75 = arith.divf %73, %74 : vector<1x512xf32>
    %c1_69 = arith.constant 1 : index
    %c1536_70 = arith.constant 1536 : index
    %76 = vector.load %arg10[%c1_69, %c1536_70] : memref<2x2048xf32, #tpu.memory_space<vmem>>, vector<1x512xf32>
    tpu.vector_store %arg10[%c1_69, %c1536_70], %75 {strides = array<i32>} : memref<2x2048xf32, #tpu.memory_space<vmem>>, vector<1x512xf32>,
    %cst_71 = arith.constant dense<0xFF800000> : vector<512xf32>
    %77 = vector.multi_reduction <maximumf>, %71, %cst_71 [0] : vector<64x512xf32> to vector<512xf32>
    %78 = vector.shape_cast %77 : vector<512xf32> to vector<1x512xf32>
    %c1_72 = arith.constant 1 : index
    %c1536_73 = arith.constant 1536 : index
    %79 = vector.load %arg11[%c1_72, %c1536_73] : memref<2x2048xf32, #tpu.memory_space<vmem>>, vector<1x512xf32>
    tpu.vector_store %arg11[%c1_72, %c1536_73], %78 {strides = array<i32>} : memref<2x2048xf32, #tpu.memory_space<vmem>>, vector<1x512xf32>,
    %c0_74 = arith.constant 0 : index
    %c0_75 = arith.constant 0 : index
    %80 = vector.load %arg10[%c0_74, %c0_75] : memref<2x2048xf32, #tpu.memory_space<vmem>>, vector<2x2048xf32>
    %c0_76 = arith.constant 0 : index
    %c0_77 = arith.constant 0 : index
    %81 = vector.load %arg2[%c0_76, %c0_77] : memref<2048x128xf32, #tpu.memory_space<vmem>>, vector<2048x128xf32>
    %cst_78 = arith.constant dense<0.000000e+00> : vector<2x128xf32>
    %82 = tpu.matmul %80, %81, %cst_78 {dimension_numbers = #tpu.dot_dimension_numbers<[1], [0], [0], [1], [0, 0, 1, 1], [], []>} : vector<2x2048xf32>, vector<2048x128xf32>, vector<2x128xf32> -> vector<2x128xf32>
    %c0_79 = arith.constant 0 : index
    %c0_80 = arith.constant 0 : index
    %83 = vector.load %arg3[%c0_79, %c0_80] : memref<1x128xf32, #tpu.memory_space<vmem>>, vector<1x128xf32>
    %84 = vector.broadcast %83 : vector<1x128xf32> to vector<2x128xf32>
    %85 = arith.addf %82, %84 : vector<2x128xf32>
    %cst_81 = arith.constant 0.000000e+00 : f32
    %86 = vector.broadcast %cst_81 : f32 to vector<2x128xf32>
    %87 = arith.maximumf %85, %86 : vector<2x128xf32>
    %c0_82 = arith.constant 0 : index
    %c0_83 = arith.constant 0 : index
    %88 = vector.load %arg11[%c0_82, %c0_83] : memref<2x2048xf32, #tpu.memory_space<vmem>>, vector<2x2048xf32>
    %c0_84 = arith.constant 0 : index
    %c0_85 = arith.constant 0 : index
    %89 = vector.load %arg2[%c0_84, %c0_85] : memref<2048x128xf32, #tpu.memory_space<vmem>>, vector<2048x128xf32>
    %cst_86 = arith.constant dense<0.000000e+00> : vector<2x128xf32>
    %90 = tpu.matmul %88, %89, %cst_86 {dimension_numbers = #tpu.dot_dimension_numbers<[1], [0], [0], [1], [0, 0, 1, 1], [], []>} : vector<2x2048xf32>, vector<2048x128xf32>, vector<2x128xf32> -> vector<2x128xf32>
    %c0_87 = arith.constant 0 : index
    %c0_88 = arith.constant 0 : index
    %91 = vector.load %arg3[%c0_87, %c0_88] : memref<1x128xf32, #tpu.memory_space<vmem>>, vector<1x128xf32>
    %92 = vector.broadcast %91 : vector<1x128xf32> to vector<2x128xf32>
    %93 = arith.addf %90, %92 : vector<2x128xf32>
    %cst_89 = arith.constant 0.000000e+00 : f32
    %94 = vector.broadcast %cst_89 : f32 to vector<2x128xf32>
    %95 = arith.maximumf %93, %94 : vector<2x128xf32>
    %96 = arith.addf %87, %95 : vector<2x128xf32>
    %c0_90 = arith.constant 0 : index
    %c0_91 = arith.constant 0 : index
    %97 = vector.load %arg4[%c0_90, %c0_91] : memref<128x2048xf32, #tpu.memory_space<vmem>>, vector<128x2048xf32>
    %cst_92 = arith.constant dense<0.000000e+00> : vector<2x2048xf32>
    %98 = tpu.matmul %96, %97, %cst_92 {dimension_numbers = #tpu.dot_dimension_numbers<[1], [0], [0], [1], [0, 0, 1, 1], [], []>} : vector<2x128xf32>, vector<128x2048xf32>, vector<2x2048xf32> -> vector<2x2048xf32>
    %c0_93 = arith.constant 0 : index
    %c0_94 = arith.constant 0 : index
    %99 = vector.load %arg5[%c0_93, %c0_94] : memref<1x2048xf32, #tpu.memory_space<vmem>>, vector<1x2048xf32>
    %cst_95 = arith.constant 2.000000e+00 : f32
    %100 = vector.broadcast %cst_95 : f32 to vector<1x2048xf32>
    %101 = arith.mulf %100, %99 : vector<1x2048xf32>
    %102 = vector.broadcast %101 : vector<1x2048xf32> to vector<2x2048xf32>
    %103 = arith.addf %98, %102 : vector<2x2048xf32>
    %104 = arith.negf %103 : vector<2x2048xf32>
    %105 = math.exp %104 : vector<2x2048xf32>
    %cst_96 = arith.constant 1.000000e+00 : f32
    %106 = vector.broadcast %cst_96 : f32 to vector<2x2048xf32>
    %107 = arith.addf %106, %105 : vector<2x2048xf32>
    %108 = arith.divf %106, %107 : vector<2x2048xf32>
    %c0_97 = arith.constant 0 : index
    %c0_98 = arith.constant 0 : index
    %109 = memref.load %arg8[%c0_97, %c0_98] : memref<1x1xf32, #tpu.memory_space<smem>>
    %110 = vector.extract_strided_slice %108 {offsets = [0, 0], sizes = [1, 2048], strides = [1, 1]} : vector<2x2048xf32> to vector<1x2048xf32>
    %cst_99 = arith.constant 0.000000e+00 : f32
    %111 = vector.broadcast %cst_99 : f32 to vector<64x1xf32>
    %cst_100 = arith.constant 0xFF800000 : f32
    %112 = vector.broadcast %cst_100 : f32 to vector<64x1xf32>
    %c0_101 = arith.constant 0 : index
    %c0_102 = arith.constant 0 : index
    %c0_103 = arith.constant 0 : index
    %113 = vector.load %arg1[%c0_101, %c0_102, %c0_103] : memref<2x64x2048xf32, #tpu.memory_space<vmem>>, vector<1x64x512xf32>
    %114 = vector.shape_cast %113 : vector<1x64x512xf32> to vector<64x512xf32>
    %115 = vector.extract_strided_slice %110 {offsets = [0, 0], sizes = [1, 512], strides = [1, 1]} : vector<1x2048xf32> to vector<1x512xf32>
    %116 = vector.broadcast %115 : vector<1x512xf32> to vector<64x512xf32>
    %117 = arith.mulf %114, %116 : vector<64x512xf32>
    %cst_104 = arith.constant dense<0.000000e+00> : vector<64xf32>
    %118 = vector.multi_reduction <add>, %117, %cst_104 [1] : vector<64x512xf32> to vector<64xf32>
    %119 = vector.shape_cast %118 : vector<64xf32> to vector<64x1xf32>
    %120 = arith.addf %111, %119 : vector<64x1xf32>
    %cst_105 = arith.constant dense<0xFF800000> : vector<64xf32>
    %121 = vector.multi_reduction <maximumf>, %117, %cst_105 [1] : vector<64x512xf32> to vector<64xf32>
    %122 = vector.shape_cast %121 : vector<64xf32> to vector<64x1xf32>
    %123 = arith.maximumf %112, %122 : vector<64x1xf32>
    %c0_106 = arith.constant 0 : index
    %c0_107 = arith.constant 0 : index
    %c512_108 = arith.constant 512 : index
    %124 = vector.load %arg1[%c0_106, %c0_107, %c512_108] : memref<2x64x2048xf32, #tpu.memory_space<vmem>>, vector<1x64x512xf32>
    %125 = vector.shape_cast %124 : vector<1x64x512xf32> to vector<64x512xf32>
    %126 = vector.extract_strided_slice %110 {offsets = [0, 512], sizes = [1, 512], strides = [1, 1]} : vector<1x2048xf32> to vector<1x512xf32>
    %127 = vector.broadcast %126 : vector<1x512xf32> to vector<64x512xf32>
    %128 = arith.mulf %125, %127 : vector<64x512xf32>
    %cst_109 = arith.constant dense<0.000000e+00> : vector<64xf32>
    %129 = vector.multi_reduction <add>, %128, %cst_109 [1] : vector<64x512xf32> to vector<64xf32>
    %130 = vector.shape_cast %129 : vector<64xf32> to vector<64x1xf32>
    %131 = arith.addf %120, %130 : vector<64x1xf32>
    %cst_110 = arith.constant dense<0xFF800000> : vector<64xf32>
    %132 = vector.multi_reduction <maximumf>, %128, %cst_110 [1] : vector<64x512xf32> to vector<64xf32>
    %133 = vector.shape_cast %132 : vector<64xf32> to vector<64x1xf32>
    %134 = arith.maximumf %123, %133 : vector<64x1xf32>
    %c0_111 = arith.constant 0 : index
    %c0_112 = arith.constant 0 : index
    %c1024_113 = arith.constant 1024 : index
    %135 = vector.load %arg1[%c0_111, %c0_112, %c1024_113] : memref<2x64x2048xf32, #tpu.memory_space<vmem>>, vector<1x64x512xf32>
    %136 = vector.shape_cast %135 : vector<1x64x512xf32> to vector<64x512xf32>
    %137 = vector.extract_strided_slice %110 {offsets = [0, 1024], sizes = [1, 512], strides = [1, 1]} : vector<1x2048xf32> to vector<1x512xf32>
    %138 = vector.broadcast %137 : vector<1x512xf32> to vector<64x512xf32>
    %139 = arith.mulf %136, %138 : vector<64x512xf32>
    %cst_114 = arith.constant dense<0.000000e+00> : vector<64xf32>
    %140 = vector.multi_reduction <add>, %139, %cst_114 [1] : vector<64x512xf32> to vector<64xf32>
    %141 = vector.shape_cast %140 : vector<64xf32> to vector<64x1xf32>
    %142 = arith.addf %131, %141 : vector<64x1xf32>
    %cst_115 = arith.constant dense<0xFF800000> : vector<64xf32>
    %143 = vector.multi_reduction <maximumf>, %139, %cst_115 [1] : vector<64x512xf32> to vector<64xf32>
    %144 = vector.shape_cast %143 : vector<64xf32> to vector<64x1xf32>
    %145 = arith.maximumf %134, %144 : vector<64x1xf32>
    %c0_116 = arith.constant 0 : index
    %c0_117 = arith.constant 0 : index
    %c1536_118 = arith.constant 1536 : index
    %146 = vector.load %arg1[%c0_116, %c0_117, %c1536_118] : memref<2x64x2048xf32, #tpu.memory_space<vmem>>, vector<1x64x512xf32>
    %147 = vector.shape_cast %146 : vector<1x64x512xf32> to vector<64x512xf32>
    %148 = vector.extract_strided_slice %110 {offsets = [0, 1536], sizes = [1, 512], strides = [1, 1]} : vector<1x2048xf32> to vector<1x512xf32>
    %149 = vector.broadcast %148 : vector<1x512xf32> to vector<64x512xf32>
    %150 = arith.mulf %147, %149 : vector<64x512xf32>
    %cst_119 = arith.constant dense<0.000000e+00> : vector<64xf32>
    %151 = vector.multi_reduction <add>, %150, %cst_119 [1] : vector<64x512xf32> to vector<64xf32>
    %152 = vector.shape_cast %151 : vector<64xf32> to vector<64x1xf32>
    %153 = arith.addf %142, %152 : vector<64x1xf32>
    %cst_120 = arith.constant dense<0xFF800000> : vector<64xf32>
    %154 = vector.multi_reduction <maximumf>, %150, %cst_120 [1] : vector<64x512xf32> to vector<64xf32>
    %155 = vector.shape_cast %154 : vector<64xf32> to vector<64x1xf32>
    %156 = arith.maximumf %145, %155 : vector<64x1xf32>
    %c0_121 = arith.constant 0 : index
    %c0_122 = arith.constant 0 : index
    %157 = vector.load %arg6[%c0_121, %c0_122] : memref<64x64xf32, #tpu.memory_space<vmem>>, vector<64x64xf32>
    %cst_123 = arith.constant 4.8828125E-4 : f32
    %158 = vector.broadcast %cst_123 : f32 to vector<64x1xf32>
    %159 = arith.mulf %153, %158 : vector<64x1xf32>
    %cst_124 = arith.constant dense<0.000000e+00> : vector<64x1xf32>
    %160 = tpu.matmul %157, %159, %cst_124 {dimension_numbers = #tpu.dot_dimension_numbers<[1], [0], [0], [1], [0, 0, 1, 1], [], []>} : vector<64x64xf32>, vector<64x1xf32>, vector<64x1xf32> -> vector<64x1xf32>
    %c0_125 = arith.constant 0 : index
    %c0_126 = arith.constant 0 : index
    %161 = vector.load %arg7[%c0_125, %c0_126] : memref<64x64xf32, #tpu.memory_space<vmem>>, vector<64x64xf32>
    %cst_127 = arith.constant dense<0.000000e+00> : vector<64x1xf32>
    %162 = tpu.matmul %161, %156, %cst_127 {dimension_numbers = #tpu.dot_dimension_numbers<[1], [0], [0], [1], [0, 0, 1, 1], [], []>} : vector<64x64xf32>, vector<64x1xf32>, vector<64x1xf32> -> vector<64x1xf32>
    %163 = arith.addf %160, %162 : vector<64x1xf32>
    %164 = vector.broadcast %109 : f32 to vector<64x1xf32>
    %165 = arith.addf %163, %164 : vector<64x1xf32>
    %166 = arith.negf %165 : vector<64x1xf32>
    %167 = math.exp %166 : vector<64x1xf32>
    %cst_128 = arith.constant 1.000000e+00 : f32
    %168 = vector.broadcast %cst_128 : f32 to vector<64x1xf32>
    %169 = arith.addf %168, %167 : vector<64x1xf32>
    %170 = arith.divf %168, %169 : vector<64x1xf32>
    %c0_129 = arith.constant 0 : index
    %c0_130 = arith.constant 0 : index
    %c0_131 = arith.constant 0 : index
    %171 = vector.load %arg1[%c0_129, %c0_130, %c0_131] : memref<2x64x2048xf32, #tpu.memory_space<vmem>>, vector<1x64x2048xf32>
    %172 = vector.shape_cast %171 : vector<1x64x2048xf32> to vector<64x2048xf32>
    %173 = vector.broadcast %110 : vector<1x2048xf32> to vector<64x2048xf32>
    %174 = arith.mulf %172, %173 : vector<64x2048xf32>
    %175 = vector.broadcast %170 : vector<64x1xf32> to vector<64x2048xf32>
    %176 = arith.mulf %174, %175 : vector<64x2048xf32>
    %c0_132 = arith.constant 0 : index
    %c0_133 = arith.constant 0 : index
    %c0_134 = arith.constant 0 : index
    %177 = vector.load %arg9[%c0_132, %c0_133, %c0_134] : memref<2x64x2048xf32, #tpu.memory_space<vmem>>, vector<1x64x2048xf32>
    %178 = vector.shape_cast %177 : vector<1x64x2048xf32> to vector<64x2048xf32>
    %179 = vector.shape_cast %176 : vector<64x2048xf32> to vector<1x64x2048xf32>
    tpu.vector_store %arg9[%c0_132, %c0_133, %c0_134], %179 {strides = array<i32>} : memref<2x64x2048xf32, #tpu.memory_space<vmem>>, vector<1x64x2048xf32>,
    %180 = vector.extract_strided_slice %108 {offsets = [1, 0], sizes = [1, 2048], strides = [1, 1]} : vector<2x2048xf32> to vector<1x2048xf32>
    %cst_135 = arith.constant 0.000000e+00 : f32
    %181 = vector.broadcast %cst_135 : f32 to vector<64x1xf32>
    %cst_136 = arith.constant 0xFF800000 : f32
    %182 = vector.broadcast %cst_136 : f32 to vector<64x1xf32>
    %c1_137 = arith.constant 1 : index
    %c0_138 = arith.constant 0 : index
    %c0_139 = arith.constant 0 : index
    %183 = vector.load %arg1[%c1_137, %c0_138, %c0_139] : memref<2x64x2048xf32, #tpu.memory_space<vmem>>, vector<1x64x512xf32>
    %184 = vector.shape_cast %183 : vector<1x64x512xf32> to vector<64x512xf32>
    %185 = vector.extract_strided_slice %180 {offsets = [0, 0], sizes = [1, 512], strides = [1, 1]} : vector<1x2048xf32> to vector<1x512xf32>
    %186 = vector.broadcast %185 : vector<1x512xf32> to vector<64x512xf32>
    %187 = arith.mulf %184, %186 : vector<64x512xf32>
    %cst_140 = arith.constant dense<0.000000e+00> : vector<64xf32>
    %188 = vector.multi_reduction <add>, %187, %cst_140 [1] : vector<64x512xf32> to vector<64xf32>
    %189 = vector.shape_cast %188 : vector<64xf32> to vector<64x1xf32>
    %190 = arith.addf %181, %189 : vector<64x1xf32>
    %cst_141 = arith.constant dense<0xFF800000> : vector<64xf32>
    %191 = vector.multi_reduction <maximumf>, %187, %cst_141 [1] : vector<64x512xf32> to vector<64xf32>
    %192 = vector.shape_cast %191 : vector<64xf32> to vector<64x1xf32>
    %193 = arith.maximumf %182, %192 : vector<64x1xf32>
    %c1_142 = arith.constant 1 : index
    %c0_143 = arith.constant 0 : index
    %c512_144 = arith.constant 512 : index
    %194 = vector.load %arg1[%c1_142, %c0_143, %c512_144] : memref<2x64x2048xf32, #tpu.memory_space<vmem>>, vector<1x64x512xf32>
    %195 = vector.shape_cast %194 : vector<1x64x512xf32> to vector<64x512xf32>
    %196 = vector.extract_strided_slice %180 {offsets = [0, 512], sizes = [1, 512], strides = [1, 1]} : vector<1x2048xf32> to vector<1x512xf32>
    %197 = vector.broadcast %196 : vector<1x512xf32> to vector<64x512xf32>
    %198 = arith.mulf %195, %197 : vector<64x512xf32>
    %cst_145 = arith.constant dense<0.000000e+00> : vector<64xf32>
    %199 = vector.multi_reduction <add>, %198, %cst_145 [1] : vector<64x512xf32> to vector<64xf32>
    %200 = vector.shape_cast %199 : vector<64xf32> to vector<64x1xf32>
    %201 = arith.addf %190, %200 : vector<64x1xf32>
    %cst_146 = arith.constant dense<0xFF800000> : vector<64xf32>
    %202 = vector.multi_reduction <maximumf>, %198, %cst_146 [1] : vector<64x512xf32> to vector<64xf32>
    %203 = vector.shape_cast %202 : vector<64xf32> to vector<64x1xf32>
    %204 = arith.maximumf %193, %203 : vector<64x1xf32>
    %c1_147 = arith.constant 1 : index
    %c0_148 = arith.constant 0 : index
    %c1024_149 = arith.constant 1024 : index
    %205 = vector.load %arg1[%c1_147, %c0_148, %c1024_149] : memref<2x64x2048xf32, #tpu.memory_space<vmem>>, vector<1x64x512xf32>
    %206 = vector.shape_cast %205 : vector<1x64x512xf32> to vector<64x512xf32>
    %207 = vector.extract_strided_slice %180 {offsets = [0, 1024], sizes = [1, 512], strides = [1, 1]} : vector<1x2048xf32> to vector<1x512xf32>
    %208 = vector.broadcast %207 : vector<1x512xf32> to vector<64x512xf32>
    %209 = arith.mulf %206, %208 : vector<64x512xf32>
    %cst_150 = arith.constant dense<0.000000e+00> : vector<64xf32>
    %210 = vector.multi_reduction <add>, %209, %cst_150 [1] : vector<64x512xf32> to vector<64xf32>
    %211 = vector.shape_cast %210 : vector<64xf32> to vector<64x1xf32>
    %212 = arith.addf %201, %211 : vector<64x1xf32>
    %cst_151 = arith.constant dense<0xFF800000> : vector<64xf32>
    %213 = vector.multi_reduction <maximumf>, %209, %cst_151 [1] : vector<64x512xf32> to vector<64xf32>
    %214 = vector.shape_cast %213 : vector<64xf32> to vector<64x1xf32>
    %215 = arith.maximumf %204, %214 : vector<64x1xf32>
    %c1_152 = arith.constant 1 : index
    %c0_153 = arith.constant 0 : index
    %c1536_154 = arith.constant 1536 : index
    %216 = vector.load %arg1[%c1_152, %c0_153, %c1536_154] : memref<2x64x2048xf32, #tpu.memory_space<vmem>>, vector<1x64x512xf32>
    %217 = vector.shape_cast %216 : vector<1x64x512xf32> to vector<64x512xf32>
    %218 = vector.extract_strided_slice %180 {offsets = [0, 1536], sizes = [1, 512], strides = [1, 1]} : vector<1x2048xf32> to vector<1x512xf32>
    %219 = vector.broadcast %218 : vector<1x512xf32> to vector<64x512xf32>
    %220 = arith.mulf %217, %219 : vector<64x512xf32>
    %cst_155 = arith.constant dense<0.000000e+00> : vector<64xf32>
    %221 = vector.multi_reduction <add>, %220, %cst_155 [1] : vector<64x512xf32> to vector<64xf32>
    %222 = vector.shape_cast %221 : vector<64xf32> to vector<64x1xf32>
    %223 = arith.addf %212, %222 : vector<64x1xf32>
    %cst_156 = arith.constant dense<0xFF800000> : vector<64xf32>
    %224 = vector.multi_reduction <maximumf>, %220, %cst_156 [1] : vector<64x512xf32> to vector<64xf32>
    %225 = vector.shape_cast %224 : vector<64xf32> to vector<64x1xf32>
    %226 = arith.maximumf %215, %225 : vector<64x1xf32>
    %c0_157 = arith.constant 0 : index
    %c0_158 = arith.constant 0 : index
    %227 = vector.load %arg6[%c0_157, %c0_158] : memref<64x64xf32, #tpu.memory_space<vmem>>, vector<64x64xf32>
    %cst_159 = arith.constant 4.8828125E-4 : f32
    %228 = vector.broadcast %cst_159 : f32 to vector<64x1xf32>
    %229 = arith.mulf %223, %228 : vector<64x1xf32>
    %cst_160 = arith.constant dense<0.000000e+00> : vector<64x1xf32>
    %230 = tpu.matmul %227, %229, %cst_160 {dimension_numbers = #tpu.dot_dimension_numbers<[1], [0], [0], [1], [0, 0, 1, 1], [], []>} : vector<64x64xf32>, vector<64x1xf32>, vector<64x1xf32> -> vector<64x1xf32>
    %c0_161 = arith.constant 0 : index
    %c0_162 = arith.constant 0 : index
    %231 = vector.load %arg7[%c0_161, %c0_162] : memref<64x64xf32, #tpu.memory_space<vmem>>, vector<64x64xf32>
    %cst_163 = arith.constant dense<0.000000e+00> : vector<64x1xf32>
    %232 = tpu.matmul %231, %226, %cst_163 {dimension_numbers = #tpu.dot_dimension_numbers<[1], [0], [0], [1], [0, 0, 1, 1], [], []>} : vector<64x64xf32>, vector<64x1xf32>, vector<64x1xf32> -> vector<64x1xf32>
    %233 = arith.addf %230, %232 : vector<64x1xf32>
    %234 = vector.broadcast %109 : f32 to vector<64x1xf32>
    %235 = arith.addf %233, %234 : vector<64x1xf32>
    %236 = arith.negf %235 : vector<64x1xf32>
    %237 = math.exp %236 : vector<64x1xf32>
    %cst_164 = arith.constant 1.000000e+00 : f32
    %238 = vector.broadcast %cst_164 : f32 to vector<64x1xf32>
    %239 = arith.addf %238, %237 : vector<64x1xf32>
    %240 = arith.divf %238, %239 : vector<64x1xf32>
    %c1_165 = arith.constant 1 : index
    %c0_166 = arith.constant 0 : index
    %c0_167 = arith.constant 0 : index
    %241 = vector.load %arg1[%c1_165, %c0_166, %c0_167] : memref<2x64x2048xf32, #tpu.memory_space<vmem>>, vector<1x64x2048xf32>
    %242 = vector.shape_cast %241 : vector<1x64x2048xf32> to vector<64x2048xf32>
    %243 = vector.broadcast %180 : vector<1x2048xf32> to vector<64x2048xf32>
    %244 = arith.mulf %242, %243 : vector<64x2048xf32>
    %245 = vector.broadcast %240 : vector<64x1xf32> to vector<64x2048xf32>
    %246 = arith.mulf %244, %245 : vector<64x2048xf32>
    %c1_168 = arith.constant 1 : index
    %c0_169 = arith.constant 0 : index
    %c0_170 = arith.constant 0 : index
    %247 = vector.load %arg9[%c1_168, %c0_169, %c0_170] : memref<2x64x2048xf32, #tpu.memory_space<vmem>>, vector<1x64x2048xf32>
    %248 = vector.shape_cast %247 : vector<1x64x2048xf32> to vector<64x2048xf32>
    %249 = vector.shape_cast %246 : vector<64x2048xf32> to vector<1x64x2048xf32>
    tpu.vector_store %arg9[%c1_168, %c0_169, %c0_170], %249 {strides = array<i32>} : memref<2x64x2048xf32, #tpu.memory_space<vmem>>, vector<1x64x2048xf32>,
    return
  }
  func.func @transform_0(%arg0: i32) -> (i32, i32, i32) {
    %c0_i32 = arith.constant 0 : i32
    %c0_i32_0 = arith.constant 0 : i32
    %c0_i32_1 = arith.constant 0 : i32
    return %arg0, %c0_i32, %c0_i32_0 : i32, i32, i32
  }
  func.func @transform_1(%arg0: i32) -> (i32, i32) {
    %c0_i32 = arith.constant 0 : i32
    %c0_i32_0 = arith.constant 0 : i32
    %c0_i32_1 = arith.constant 0 : i32
    return %c0_i32, %c0_i32_0 : i32, i32
  }
  func.func @transform_2(%arg0: i32) -> (i32, i32) {
    %c0_i32 = arith.constant 0 : i32
    %c0_i32_0 = arith.constant 0 : i32
    %c0_i32_1 = arith.constant 0 : i32
    return %c0_i32, %c0_i32_0 : i32, i32
  }
  func.func @transform_3(%arg0: i32) -> (i32, i32) {
    %c0_i32 = arith.constant 0 : i32
    %c0_i32_0 = arith.constant 0 : i32
    %c0_i32_1 = arith.constant 0 : i32
    return %c0_i32, %c0_i32_0 : i32, i32
  }
  func.func @transform_4(%arg0: i32) -> (i32, i32) {
    %c0_i32 = arith.constant 0 : i32
    %c0_i32_0 = arith.constant 0 : i32
    %c0_i32_1 = arith.constant 0 : i32
    return %c0_i32, %c0_i32_0 : i32, i32
  }
  func.func @transform_5(%arg0: i32) -> (i32, i32) {
    %c0_i32 = arith.constant 0 : i32
    %c0_i32_0 = arith.constant 0 : i32
    %c0_i32_1 = arith.constant 0 : i32
    return %c0_i32, %c0_i32_0 : i32, i32
  }
  func.func @transform_6(%arg0: i32) -> (i32, i32) {
    %c0_i32 = arith.constant 0 : i32
    %c0_i32_0 = arith.constant 0 : i32
    %c0_i32_1 = arith.constant 0 : i32
    return %c0_i32, %c0_i32_0 : i32, i32
  }
  func.func @transform_7(%arg0: i32) -> (i32, i32) {
    %c0_i32 = arith.constant 0 : i32
    %c0_i32_0 = arith.constant 0 : i32
    %c0_i32_1 = arith.constant 0 : i32
    return %c0_i32, %c0_i32_0 : i32, i32
  }
  func.func @transform_8(%arg0: i32) -> (i32, i32, i32) {
    %c0_i32 = arith.constant 0 : i32
    %c0_i32_0 = arith.constant 0 : i32
    %c0_i32_1 = arith.constant 0 : i32
    return %arg0, %c0_i32, %c0_i32_0 : i32, i32, i32
  }
}

</mosaic_0001>

<llo_original>
// kernel: tpu_custom_call.1
$region0: #{tpu_custom_call.1}
  #allocation0 [shape = 'u32[]', space=smem, size = 0x4, offset = 0x4, fixed_abs, tag = 'smem constant byte address 0x4 - core index']
  #allocation1 [shape = 'u32[144,128]{1,0:T(1,128)}', space=vmem, size = 0x12000, scoped, tag = 'internal scratch']
  #allocation2 [shape = 'f32[2,2048]{1,0:T(2,128)}', space=vmem, size = 0x4000, scoped, tag = 'scratch operand']
  #allocation3 [shape = 'f32[2,2048]{1,0:T(2,128)}', space=vmem, size = 0x4000, scoped, tag = 'scratch operand']
  #allocation4 [shape = 'f32[1,1]{1,0:T(1,128)S(6)}', space=smem, size = 0x200, scoped, tag = 'scoped memory for tpu_custom_call.1']
  %s0 = inlined_call_operand.hbm [shape: f32[4,64,2048], index: 0, kind: input, shape index: {}]
  %s1 = inlined_call_operand.hbm [shape: f32[2048,128], index: 1, kind: input, shape index: {}]
  %s2 = inlined_call_operand.hbm [shape: f32[1,128], index: 2, kind: input, shape index: {}]
  %s3 = inlined_call_operand.hbm [shape: f32[128,2048], index: 3, kind: input, shape index: {}]
  %s4 = inlined_call_operand.hbm [shape: f32[1,2048], index: 4, kind: input, shape index: {}]
  %s5 = inlined_call_operand.hbm [shape: f32[64,64], index: 5, kind: input, shape index: {}]
  %s6 = inlined_call_operand.hbm [shape: f32[64,64], index: 6, kind: input, shape index: {}]
  %s7 = inlined_call_operand.<no memory space> [shape: f32[1,1], index: 7, kind: input, shape index: {}]
  %s8 = inlined_call_operand.hbm [shape: f32[4,64,2048], index: 8, kind: output, shape index: {}]
  %s9 = sld [smem:[#allocation0]]
  $region93: #{tpu_custom_call.1} parent=0
    _
  %s11 = ssub.s32 1, %s9
  %s12 = scalar_select 0, %s11, %s9
  %13 = sst [smem:[#allocation4]] %s7
  $region1: #{tpu_custom_call.1} parent=0
    #allocation5 [shape = 'u8[2097152]{0}', space=vmem, size = 0x200000, scoped, tag = 'input window, operand 0']
    #allocation6 [shape = 's32[2]{0}', space=sflag, size = 0x8, scoped, tag = 'scoped memory for tpu_custom_call.1']
    #allocation7 [shape = 's32[2]{0}', space=sflag, size = 0x8, scoped, tag = 'scoped memory for tpu_custom_call.1']
    #allocation8 [shape = 'u8[1048576]{0}', space=vmem, size = 0x100000, scoped, tag = 'input window, operand 1, single buffered']
    #allocation9 [shape = 's32[1]{0}', space=sflag, size = 0x4, scoped, tag = 'scoped memory for tpu_custom_call.1']
    #allocation10 [shape = 'u8[512]{0}', space=vmem, size = 0x400, scoped, tag = 'input window, operand 2, single buffered']
    #allocation11 [shape = 'u8[1048576]{0}', space=vmem, size = 0x100000, scoped, tag = 'input window, operand 3, single buffered']
    #allocation12 [shape = 's32[1]{0}', space=sflag, size = 0x4, scoped, tag = 'scoped memory for tpu_custom_call.1']
    #allocation13 [shape = 'u8[8192]{0}', space=vmem, size = 0x2000, scoped, tag = 'input window, operand 4, single buffered']
    #allocation14 [shape = 'u8[32768]{0}', space=vmem, size = 0x8000, scoped, tag = 'input window, operand 5, single buffered']
    #allocation15 [shape = 's32[1]{0}', space=sflag, size = 0x4, scoped, tag = 'scoped memory for tpu_custom_call.1']
    #allocation16 [shape = 'u8[32768]{0}', space=vmem, size = 0x8000, scoped, tag = 'input window, operand 6, single buffered']
    #allocation17 [shape = 'u8[2097152]{0}', space=vmem, size = 0x200000, scoped, tag = 'output window, operand 0']
    %14 = vsyncpa [#allocation6], 0
    %s15 = scalar_lea.sflag [#allocation6], 1
    %16 = vsyncpa %s15, 0
    %17 = vsyncpa [#allocation9], 0
    %18 = vsyncpa [#allocation12], 0
    %19 = vsyncpa [#allocation15], 0
    %20 = vsyncpa [#allocation7], 0
    %s21 = scalar_lea.sflag [#allocation7], 1
    %22 = vsyncpa %s21, 0
    loop: start=0, step=1, limit=4
    $region2: #{tpu_custom_call.1} parent=1 // loop_pre_header
      _
    $region3: #{tpu_custom_call.1} parent=1 // loop_header
      %s24 = sphi 0, %s28
      %p25 = scmp.ge.s32.totalorder %s24, 4
      %s34 = sphi 0, %s36
      %s37 = sphi 0, %s34
      %s38 = sphi 0, %s37
      %s54 = sphi 0, %s38
      %s58 = sphi 0, %s58
      %s60 = sphi 0, %s58
      %s61 = sphi 0, %s60
      %s75 = sphi 0, %s61
      %s79 = sphi 0, %s79
      %s81 = sphi 0, %s79
      %s82 = sphi 0, %s81
      %s96 = sphi 0, %s82
      %s100 = sphi 0, %s100
      %s102 = sphi 0, %s100
      %s103 = sphi 0, %s102
      %s117 = sphi 0, %s103
      %s121 = sphi 0, %s121
      %s123 = sphi 0, %s121
      %s124 = sphi 0, %s123
      %s138 = sphi 0, %s124
      %s142 = sphi 0, %s142
      %s144 = sphi 0, %s142
      %s145 = sphi 0, %s144
      %s159 = sphi 0, %s145
      %s163 = sphi 0, %s163
      %s165 = sphi 0, %s163
      %s166 = sphi 0, %s165
      %s180 = sphi 0, %s166
      %s184 = sphi 0, %s184
      %s186 = sphi 0, %s184
      %s187 = sphi 0, %s186
      %s201 = sphi 0, %s187
      %s207 = sphi 0, %s209
      %s210 = sphi 0, %s207
      %s211 = sphi 0, %s210
      %s227 = sphi 0, %s211
    $region4: #{tpu_custom_call.1} parent=1 // loop_header_branch
      %27 = sbr.rel (%p25) target = $region8
    $region5: #{tpu_custom_call.1} parent=1 // loop_body
      %s29 = ssub.s32 %s24, 1
      %s30 = ssub.s32 %s24, 2
      %s31 = sadd.s32 %s24, 1
      %s32 = ssub.s32 %s24, %s31
      %p33 = scmp.eq.s32.totalorder %s32, 0
      %s35 = sadd.s32 %s34, 1
      %s36 = scalar_select %p33, %s34, %s35
      %p39 = pneg %p33
      %p40 = scmp.eq.s32.totalorder %s24, 1
      %p41 = por %p39, %p40
      %p42 = scmp.ne.s32.totalorder %s34, %s37
      %p43 = scmp.eq.s32.totalorder %s24, 0
      %p44 = por %p42, %p43
      %p45 = scmp.ne.s32.totalorder %s34, %s37
      %p46 = scmp.eq.s32.totalorder %s29, 1
      %p47 = por %p45, %p46
      %p48 = scmp.ne.s32.totalorder %s37, %s38
      %p49 = scmp.eq.s32.totalorder %s29, 0
      %p50 = por %p48, %p49
      %p51 = scmp.ne.s32.totalorder %s37, %s38
      %p52 = scmp.eq.s32.totalorder %s30, 1
      %p53 = por %p51, %p52
      %p55 = scmp.ne.s32.totalorder %s38, %s54
      %p56 = scmp.eq.s32.totalorder %s30, 0
      %p57 = por %p55, %p56
      %s59 = sadd.s32 %s58, 1
      %p62 = scmp.eq.s32.totalorder %s24, 1
      %p63 = scmp.ne.s32.totalorder %s58, %s60
      %p64 = scmp.eq.s32.totalorder %s24, 0
      %p65 = por %p63, %p64
      %p66 = scmp.ne.s32.totalorder %s58, %s60
      %p67 = scmp.eq.s32.totalorder %s29, 1
      %p68 = por %p66, %p67
      %p69 = scmp.ne.s32.totalorder %s60, %s61
      %p70 = scmp.eq.s32.totalorder %s29, 0
      %p71 = por %p69, %p70
      %p72 = scmp.ne.s32.totalorder %s60, %s61
      %p73 = scmp.eq.s32.totalorder %s30, 1
      %p74 = por %p72, %p73
      %p76 = scmp.ne.s32.totalorder %s61, %s75
      %p77 = scmp.eq.s32.totalorder %s30, 0
      %p78 = por %p76, %p77
      %s80 = sadd.s32 %s79, 1
      %p83 = scmp.eq.s32.totalorder %s24, 1
      %p84 = scmp.ne.s32.totalorder %s79, %s81
      %p85 = scmp.eq.s32.totalorder %s24, 0
      %p86 = por %p84, %p85
      %p87 = scmp.ne.s32.totalorder %s79, %s81
      %p88 = scmp.eq.s32.totalorder %s29, 1
      %p89 = por %p87, %p88
      %p90 = scmp.ne.s32.totalorder %s81, %s82
      %p91 = scmp.eq.s32.totalorder %s29, 0
      %p92 = por %p90, %p91
      %p93 = scmp.ne.s32.totalorder %s81, %s82
      %p94 = scmp.eq.s32.totalorder %s30, 1
      %p95 = por %p93, %p94
      %p97 = scmp.ne.s32.totalorder %s82, %s96
      %p98 = scmp.eq.s32.totalorder %s30, 0
      %p99 = por %p97, %p98
      %s101 = sadd.s32 %s100, 1
      %p104 = scmp.eq.s32.totalorder %s24, 1
      %p105 = scmp.ne.s32.totalorder %s100, %s102
      %p106 = scmp.eq.s32.totalorder %s24, 0
      %p107 = por %p105, %p106
      %p108 = scmp.ne.s32.totalorder %s100, %s102
      %p109 = scmp.eq.s32.totalorder %s29, 1
      %p110 = por %p108, %p109
      %p111 = scmp.ne.s32.totalorder %s102, %s103
      %p112 = scmp.eq.s32.totalorder %s29, 0
      %p113 = por %p111, %p112
      %p114 = scmp.ne.s32.totalorder %s102, %s103
      %p115 = scmp.eq.s32.totalorder %s30, 1
      %p116 = por %p114, %p115
      %p118 = scmp.ne.s32.totalorder %s103, %s117
      %p119 = scmp.eq.s32.totalorder %s30, 0
      %p120 = por %p118, %p119
      %s122 = sadd.s32 %s121, 1
      %p125 = scmp.eq.s32.totalorder %s24, 1
      %p126 = scmp.ne.s32.totalorder %s121, %s123
      %p127 = scmp.eq.s32.totalorder %s24, 0
      %p128 = por %p126, %p127
      %p129 = scmp.ne.s32.totalorder %s121, %s123
      %p130 = scmp.eq.s32.totalorder %s29, 1
      %p131 = por %p129, %p130
      %p132 = scmp.ne.s32.totalorder %s123, %s124
      %p133 = scmp.eq.s32.totalorder %s29, 0
      %p134 = por %p132, %p133
      %p135 = scmp.ne.s32.totalorder %s123, %s124
      %p136 = scmp.eq.s32.totalorder %s30, 1
      %p137 = por %p135, %p136
      %p139 = scmp.ne.s32.totalorder %s124, %s138
      %p140 = scmp.eq.s32.totalorder %s30, 0
      %p141 = por %p139, %p140
      %s143 = sadd.s32 %s142, 1
      %p146 = scmp.eq.s32.totalorder %s24, 1
      %p147 = scmp.ne.s32.totalorder %s142, %s144
      %p148 = scmp.eq.s32.totalorder %s24, 0
      %p149 = por %p147, %p148
      %p150 = scmp.ne.s32.totalorder %s142, %s144
      %p151 = scmp.eq.s32.totalorder %s29, 1
      %p152 = por %p150, %p151
      %p153 = scmp.ne.s32.totalorder %s144, %s145
      %p154 = scmp.eq.s32.totalorder %s29, 0
      %p155 = por %p153, %p154
      %p156 = scmp.ne.s32.totalorder %s144, %s145
      %p157 = scmp.eq.s32.totalorder %s30, 1
      %p158 = por %p156, %p157
      %p160 = scmp.ne.s32.totalorder %s145, %s159
      %p161 = scmp.eq.s32.totalorder %s30, 0
      %p162 = por %p160, %p161
      %s164 = sadd.s32 %s163, 1
      %p167 = scmp.eq.s32.totalorder %s24, 1
      %p168 = scmp.ne.s32.totalorder %s163, %s165
      %p169 = scmp.eq.s32.totalorder %s24, 0
      %p170 = por %p168, %p169
      %p171 = scmp.ne.s32.totalorder %s163, %s165
      %p172 = scmp.eq.s32.totalorder %s29, 1
      %p173 = por %p171, %p172
      %p174 = scmp.ne.s32.totalorder %s165, %s166
      %p175 = scmp.eq.s32.totalorder %s29, 0
      %p176 = por %p174, %p175
      %p177 = scmp.ne.s32.totalorder %s165, %s166
      %p178 = scmp.eq.s32.totalorder %s30, 1
      %p179 = por %p177, %p178
      %p181 = scmp.ne.s32.totalorder %s166, %s180
      %p182 = scmp.eq.s32.totalorder %s30, 0
      %p183 = por %p181, %p182
      %s185 = sadd.s32 %s184, 1
      %p188 = scmp.eq.s32.totalorder %s24, 1
      %p189 = scmp.ne.s32.totalorder %s184, %s186
      %p190 = scmp.eq.s32.totalorder %s24, 0
      %p191 = por %p189, %p190
      %p192 = scmp.ne.s32.totalorder %s184, %s186
      %p193 = scmp.eq.s32.totalorder %s29, 1
      %p194 = por %p192, %p193
      %p195 = scmp.ne.s32.totalorder %s186, %s187
      %p196 = scmp.eq.s32.totalorder %s29, 0
      %p197 = por %p195, %p196
      %p198 = scmp.ne.s32.totalorder %s186, %s187
      %p199 = scmp.eq.s32.totalorder %s30, 1
      %p200 = por %p198, %p199
      %p202 = scmp.ne.s32.totalorder %s187, %s201
      %p203 = scmp.eq.s32.totalorder %s30, 0
      %p204 = por %p202, %p203
      %s205 = ssub.s32 %s24, %s31
      %p206 = scmp.eq.s32.totalorder %s205, 0
      %s208 = sadd.s32 %s207, 1
      %s209 = scalar_select %p206, %s207, %s208
      %p212 = pneg %p206
      %p213 = scmp.eq.s32.totalorder %s24, 1
      %p214 = por %p212, %p213
      %p215 = scmp.ne.s32.totalorder %s207, %s210
      %p216 = scmp.eq.s32.totalorder %s24, 0
      %p217 = por %p215, %p216
      %p218 = scmp.ne.s32.totalorder %s207, %s210
      %p219 = scmp.eq.s32.totalorder %s29, 1
      %p220 = por %p218, %p219
      %p221 = scmp.ne.s32.totalorder %s210, %s211
      %p222 = scmp.eq.s32.totalorder %s29, 0
      %p223 = por %p221, %p222
      %p224 = scmp.ne.s32.totalorder %s210, %s211
      %p225 = scmp.eq.s32.totalorder %s30, 1
      %p226 = por %p224, %p225
      %p228 = scmp.ne.s32.totalorder %s211, %s227
      %p229 = scmp.eq.s32.totalorder %s30, 0
      %p230 = por %p228, %p229
      %p231 = scmp.le.s32.totalorder 1, %s24
      %p232 = scmp.lt.s32.totalorder %s24, 3
      %p233 = pnand %p231, %p232
      %p234 = pneg %p233
      // Predicated region
      $region9: #{tpu_custom_call.1} parent=5 // pred_check
        _
      $region10: #{tpu_custom_call.1} parent=5 // pred_check_branch
        %236 = sbr.rel (%p233) target = $region12
      $region11: #{tpu_custom_call.1} parent=5 // pred_region
        %s237 = ssub.s32 %s24, 1
        // Predicated region
        $region13: #{tpu_custom_call.1} parent=11 // pred_check
          %p238 = pneg %p71
        $region14: #{tpu_custom_call.1} parent=11 // pred_check_branch
          %240 = sbr.rel (%p238) target = $region16
        $region15: #{tpu_custom_call.1} parent=11 // pred_region
          %s242 = ssub.s32 32768, 32768
          %243 = vsyncadd [#allocation9], %s242
          %s244 = sshll.u32 [#allocation8], 4
          %s245 = int_to_ptr.vmem [resolvable:$true] %s244
          %250 = dma.hbm_to_vmem [thread:$0]  %s1, 32768, %s245, [#allocation9], 128, 128, 8
        $region16: #{tpu_custom_call.1} parent=11 // pred_fallthru
          _
        // Predicated region
        $region17: #{tpu_custom_call.1} parent=11 // pred_check
          %p251 = pneg %p92
        $region18: #{tpu_custom_call.1} parent=11 // pred_check_branch
          %253 = sbr.rel (%p251) target = $region20
        $region19: #{tpu_custom_call.1} parent=11 // pred_region
          %s255 = ssub.s32 16, 16
          %256 = vsyncadd [#allocation9], %s255
          %s258 = sshll.u32 [#allocation10], 4
          %s259 = int_to_ptr.vmem [resolvable:$true] %s258
          %261 = dma.hbm_to_vmem [thread:$0]  %s2, 16, %s259, [#allocation9]
        $region20: #{tpu_custom_call.1} parent=11 // pred_fallthru
          _
        // Predicated region
        $region21: #{tpu_custom_call.1} parent=11 // pred_check
          %p262 = pneg %p113
        $region22: #{tpu_custom_call.1} parent=11 // pred_check_branch
          %264 = sbr.rel (%p262) target = $region24
        $region23: #{tpu_custom_call.1} parent=11 // pred_region
          %s266 = ssub.s32 32768, 32768
          %267 = vsyncadd [#allocation12], %s266
          %s268 = sshll.u32 [#allocation11], 4
          %s269 = int_to_ptr.vmem [resolvable:$true] %s268
          %274 = dma.hbm_to_vmem [thread:$0]  %s3, 32768, %s269, [#allocation12], 2048, 2048, 128
        $region24: #{tpu_custom_call.1} parent=11 // pred_fallthru
          _
        // Predicated region
        $region25: #{tpu_custom_call.1} parent=11 // pred_check
          %p275 = pneg %p134
        $region26: #{tpu_custom_call.1} parent=11 // pred_check_branch
          %277 = sbr.rel (%p275) target = $region28
        $region27: #{tpu_custom_call.1} parent=11 // pred_region
          %s279 = ssub.s32 256, 256
          %280 = vsyncadd [#allocation12], %s279
          %s282 = sshll.u32 [#allocation13], 4
          %s283 = int_to_ptr.vmem [resolvable:$true] %s282
          %285 = dma.hbm_to_vmem [thread:$0]  %s4, 256, %s283, [#allocation12]
        $region28: #{tpu_custom_call.1} parent=11 // pred_fallthru
          _
        // Predicated region
        $region29: #{tpu_custom_call.1} parent=11 // pred_check
          %p286 = pneg %p155
        $region30: #{tpu_custom_call.1} parent=11 // pred_check_branch
          %288 = sbr.rel (%p286) target = $region32
        $region31: #{tpu_custom_call.1} parent=11 // pred_region
          %s290 = ssub.s32 1024, 1024
          %291 = vsyncadd [#allocation15], %s290
          %s292 = sshll.u32 [#allocation14], 4
          %s293 = int_to_ptr.vmem [resolvable:$true] %s292
          %298 = dma.hbm_to_vmem [thread:$0]  %s5, 1024, %s293, [#allocation15], 128, 128, 8
        $region32: #{tpu_custom_call.1} parent=11 // pred_fallthru
          _
        // Predicated region
        $region33: #{tpu_custom_call.1} parent=11 // pred_check
          %p299 = pneg %p176
        $region34: #{tpu_custom_call.1} parent=11 // pred_check_branch
          %301 = sbr.rel (%p299) target = $region36
        $region35: #{tpu_custom_call.1} parent=11 // pred_region
          %s303 = ssub.s32 1024, 1024
          %304 = vsyncadd [#allocation15], %s303
          %s305 = sshll.u32 [#allocation16], 4
          %s306 = int_to_ptr.vmem [resolvable:$true] %s305
          %311 = dma.hbm_to_vmem [thread:$0]  %s6, 1024, %s306, [#allocation15], 128, 128, 8
        $region36: #{tpu_custom_call.1} parent=11 // pred_fallthru
          _
        // Predicated region
        $region37: #{tpu_custom_call.1} parent=11 // pred_check
          %p312 = pneg %p197
        $region38: #{tpu_custom_call.1} parent=11 // pred_check_branch
          %314 = sbr.rel (%p312) target = $region40
        $region39: #{tpu_custom_call.1} parent=11 // pred_region
          _
        $region40: #{tpu_custom_call.1} parent=11 // pred_fallthru
          _
      $region12: #{tpu_custom_call.1} parent=5 // pred_fallthru
        _
      %p315 = scmp.lt.s32.totalorder %s24, 2
      // Predicated region
      $region41: #{tpu_custom_call.1} parent=5 // pred_check
        %p316 = pneg %p315
      $region42: #{tpu_custom_call.1} parent=5 // pred_check_branch
        %318 = sbr.rel (%p316) target = $region44
      $region43: #{tpu_custom_call.1} parent=5 // pred_region
        // Predicated region
        $region45: #{tpu_custom_call.1} parent=43 // pred_check
          %p319 = pneg %p44
        $region46: #{tpu_custom_call.1} parent=43 // pred_check_branch
          %321 = sbr.rel (%p319) target = $region48
        $region47: #{tpu_custom_call.1} parent=43 // pred_region
          %s322 = sand.u32 %s34, 1
          %s323 = scalar_lea.sflag [#allocation6], %s322
          %s324 = sand.u32 %s34, 1
          %s325 = smul.addr %s324, 2048
          %s326 = scalar_lea.vmem [#allocation5], %s325
          %s327 = smul.u32 2, %s24
          %s329 = ssub.s32 32768, 32768
          %330 = vsyncadd %s323, %s329
          %s331 = smul.addr %s327, 128
          %s332 = smul.addr %s331, 128
          %s333 = scalar_lea.hbm %s0, %s332
          %s334 = sshll.u32 %s326, 4
          %s335 = int_to_ptr.vmem [resolvable:$true] %s334
          %340 = dma.hbm_to_vmem [thread:$0]  %s333, 32768, %s335, %s323, 2048, 2048, 128
        $region48: #{tpu_custom_call.1} parent=43 // pred_fallthru
          _
      $region44: #{tpu_custom_call.1} parent=5 // pred_fallthru
        _
      %p341 = scmp.le.s32.totalorder 1, %s24
      %p342 = scmp.lt.s32.totalorder %s24, 3
      %p343 = pnand %p341, %p342
      %p344 = pneg %p343
      // Predicated region
      $region49: #{tpu_custom_call.1} parent=5 // pred_check
        _
      $region50: #{tpu_custom_call.1} parent=5 // pred_check_branch
        %346 = sbr.rel (%p343) target = $region52
      $region51: #{tpu_custom_call.1} parent=5 // pred_region
        %s347 = ssub.s32 %s24, 1
        %s348 = sand.u32 %s37, 1
        %s349 = scalar_lea.sflag [#allocation6], %s348
        %s350 = sand.u32 %s37, 1
        %s351 = smul.addr %s350, 2048
        %s352 = scalar_lea.vmem [#allocation5], %s351
        // Predicated region
        $region53: #{tpu_custom_call.1} parent=51 // pred_check
          %p353 = pneg %p50
        $region54: #{tpu_custom_call.1} parent=51 // pred_check_branch
          %355 = sbr.rel (%p353) target = $region56
        $region55: #{tpu_custom_call.1} parent=51 // pred_region
          %356 = dma.done %s349, 32768
        $region56: #{tpu_custom_call.1} parent=51 // pred_fallthru
          _
        // Predicated region
        $region57: #{tpu_custom_call.1} parent=51 // pred_check
          %p357 = pneg %p71
        $region58: #{tpu_custom_call.1} parent=51 // pred_check_branch
          %359 = sbr.rel (%p357) target = $region60
        $region59: #{tpu_custom_call.1} parent=51 // pred_region
          %360 = dma.done [#allocation9], 32768
        $region60: #{tpu_custom_call.1} parent=51 // pred_fallthru
          _
        // Predicated region
        $region61: #{tpu_custom_call.1} parent=51 // pred_check
          %p361 = pneg %p92
        $region62: #{tpu_custom_call.1} parent=51 // pred_check_branch
          %363 = sbr.rel (%p361) target = $region64
        $region63: #{tpu_custom_call.1} parent=51 // pred_region
          %364 = dma.done [#allocation9], 16
        $region64: #{tpu_custom_call.1} parent=51 // pred_fallthru
          _
        // Predicated region
        $region65: #{tpu_custom_call.1} parent=51 // pred_check
          %p365 = pneg %p113
        $region66: #{tpu_custom_call.1} parent=51 // pred_check_branch
          %367 = sbr.rel (%p365) target = $region68
        $region67: #{tpu_custom_call.1} parent=51 // pred_region
          %368 = dma.done [#allocation12], 32768
        $region68: #{tpu_custom_call.1} parent=51 // pred_fallthru
          _
        // Predicated region
        $region69: #{tpu_custom_call.1} parent=51 // pred_check
          %p369 = pneg %p134
        $region70: #{tpu_custom_call.1} parent=51 // pred_check_branch
          %371 = sbr.rel (%p369) target = $region72
        $region71: #{tpu_custom_call.1} parent=51 // pred_region
          %372 = dma.done [#allocation12], 256
        $region72: #{tpu_custom_call.1} parent=51 // pred_fallthru
          _
        // Predicated region
        $region73: #{tpu_custom_call.1} parent=51 // pred_check
          %p373 = pneg %p155
        $region74: #{tpu_custom_call.1} parent=51 // pred_check_branch
          %375 = sbr.rel (%p373) target = $region76
        $region75: #{tpu_custom_call.1} parent=51 // pred_region
          %376 = dma.done [#allocation15], 1024
        $region76: #{tpu_custom_call.1} parent=51 // pred_fallthru
          _
        // Predicated region
        $region77: #{tpu_custom_call.1} parent=51 // pred_check
          %p377 = pneg %p176
        $region78: #{tpu_custom_call.1} parent=51 // pred_check_branch
          %379 = sbr.rel (%p377) target = $region80
        $region79: #{tpu_custom_call.1} parent=51 // pred_region
          %380 = dma.done [#allocation15], 1024
        $region80: #{tpu_custom_call.1} parent=51 // pred_fallthru
          _
        %s381 = sand.u32 %s37, 1
        %s382 = scalar_lea.sflag [#allocation6], %s381
        %s383 = sand.u32 %s37, 1
        %s384 = smul.addr %s383, 2048
        %s385 = scalar_lea.vmem [#allocation5], %s384
        %p386 = pneg %p50
        %p387 = pneg %p47
        %p388 = pneg %p71
        %p389 = pneg %p68
        %p390 = pneg %p92
        %p391 = pneg %p89
        %p392 = pneg %p113
        %p393 = pneg %p110
        %p394 = pneg %p134
        %p395 = pneg %p131
        %p396 = pneg %p155
        %p397 = pneg %p152
        %p398 = pneg %p176
        %p399 = pneg %p173
        %p400 = pneg %p197
        %p401 = pneg %p194
        %p402 = pneg %p223
        %p403 = pneg %p220
        %s404 = sand.u32 %s210, 1
        %s405 = scalar_lea.sflag [#allocation7], %s404
        %s406 = sand.u32 %s210, 1
        %s407 = smul.addr %s406, 2048
        %s408 = scalar_lea.vmem [#allocation17], %s407
        %s409 = smul.u32 2, %s29
        %s410 = smul.u32 2, %s29
        %v411 = vld [vmem:[%s352] sm:$0xff]
        %v412 = vld [vmem:[%s352 + $0x8] sm:$0xff]
        %v413 = vld [vmem:[%s352 + $0x10] sm:$0xff]
        %v414 = vld [vmem:[%s352 + $0x18] sm:$0xff]
        %v415 = vld [vmem:[%s352 + $0x80] sm:$0xff]
        %v416 = vld [vmem:[%s352 + $0x88] sm:$0xff]
        %v417 = vld [vmem:[%s352 + $0x90] sm:$0xff]
        %v418 = vld [vmem:[%s352 + $0x98] sm:$0xff]
        %v419 = vld [vmem:[%s352 + $0x100] sm:$0xff]
        %v420 = vld [vmem:[%s352 + $0x108] sm:$0xff]
        %v421 = vld [vmem:[%s352 + $0x110] sm:$0xff]
        %v422 = vld [vmem:[%s352 + $0x118] sm:$0xff]
        %v423 = vld [vmem:[%s352 + $0x180] sm:$0xff]
        %v424 = vld [vmem:[%s352 + $0x188] sm:$0xff]
        %v425 = vld [vmem:[%s352 + $0x190] sm:$0xff]
        %v426 = vld [vmem:[%s352 + $0x198] sm:$0xff]
        %v427 = vld [vmem:[%s352 + $0x200] sm:$0xff]
        %v428 = vld [vmem:[%s352 + $0x208] sm:$0xff]
        %v429 = vld [vmem:[%s352 + $0x210] sm:$0xff]
        %v430 = vld [vmem:[%s352 + $0x218] sm:$0xff]
        %v431 = vld [vmem:[%s352 + $0x280] sm:$0xff]
        %v432 = vld [vmem:[%s352 + $0x288] sm:$0xff]
        %v433 = vld [vmem:[%s352 + $0x290] sm:$0xff]
        %v434 = vld [vmem:[%s352 + $0x298] sm:$0xff]
        %v435 = vld [vmem:[%s352 + $0x300] sm:$0xff]
        %v436 = vld [vmem:[%s352 + $0x308] sm:$0xff]
        %v437 = vld [vmem:[%s352 + $0x310] sm:$0xff]
        %v438 = vld [vmem:[%s352 + $0x318] sm:$0xff]
        %v439 = vld [vmem:[%s352 + $0x380] sm:$0xff]
        %v440 = vld [vmem:[%s352 + $0x388] sm:$0xff]
        %v441 = vld [vmem:[%s352 + $0x390] sm:$0xff]
        %v442 = vld [vmem:[%s352 + $0x398] sm:$0xff]
        %v443 = vadd.f32 %v411, %v415
        %v444 = vadd.f32 %v443, %v419
        %v445 = vadd.f32 %v444, %v423
        %v446 = vadd.f32 %v445, %v427
        %v447 = vadd.f32 %v446, %v431
        %v448 = vadd.f32 %v447, %v435
        %v449 = vadd.f32 %v448, %v439
        %v450 = vrot.slane %v449, 4
        %v451 = vadd.f32 %v449, %v450
        %v452 = vrot.slane %v451, 2
        %v453 = vadd.f32 %v451, %v452
        %v454 = vrot.slane %v453, 1
        %v455 = vadd.f32 %v453, %v454
        %v456 = vadd.f32 %v412, %v416
        %v457 = vadd.f32 %v456, %v420
        %v458 = vadd.f32 %v457, %v424
        %v459 = vadd.f32 %v458, %v428
        %v460 = vadd.f32 %v459, %v432
        %v461 = vadd.f32 %v460, %v436
        %v462 = vadd.f32 %v461, %v440
        %v463 = vrot.slane %v462, 4
        %v464 = vadd.f32 %v462, %v463
        %v465 = vrot.slane %v464, 2
        %v466 = vadd.f32 %v464, %v465
        %v467 = vrot.slane %v466, 1
        %v468 = vadd.f32 %v466, %v467
        %v469 = vadd.f32 %v413, %v417
        %v470 = vadd.f32 %v469, %v421
        %v471 = vadd.f32 %v470, %v425
        %v472 = vadd.f32 %v471, %v429
        %v473 = vadd.f32 %v472, %v433
        %v474 = vadd.f32 %v473, %v437
        %v475 = vadd.f32 %v474, %v441
        %v476 = vrot.slane %v475, 4
        %v477 = vadd.f32 %v475, %v476
        %v478 = vrot.slane %v477, 2
        %v479 = vadd.f32 %v477, %v478
        %v480 = vrot.slane %v479, 1
        %v481 = vadd.f32 %v479, %v480
        %v482 = vadd.f32 %v414, %v418
        %v483 = vadd.f32 %v482, %v422
        %v484 = vadd.f32 %v483, %v426
        %v485 = vadd.f32 %v484, %v430
        %v486 = vadd.f32 %v485, %v434
        %v487 = vadd.f32 %v486, %v438
        %v488 = vadd.f32 %v487, %v442
        %v489 = vrot.slane %v488, 4
        %v490 = vadd.f32 %v488, %v489
        %v491 = vrot.slane %v490, 2
        %v492 = vadd.f32 %v490, %v491
        %v493 = vrot.slane %v492, 1
        %v494 = vadd.f32 %v492, %v493
        %v495 = vrcp.pop 64.0
        %v496 = vmul.f32 %v455, %v495
        %v497 = vmul.f32 %v468, %v495
        %v498 = vmul.f32 %v481, %v495
        %v499 = vmul.f32 %v494, %v495
        %v504 = vcombine.low %v496, %v497
        %v505 = vcombine.low %v498, %v499
        %v507 = vunpack.c.l.s4 1966171168
        %v508 = vunpack.c.0.s8 %v507
        %v509 = vlaneseq
        %v510 = vshrl.u32 %v509, 7
        %v511 = vsub.s32 %v508, %v510
        %v512 = vrot.slane %v504, %v511
        %v514 = vunpack.c.l.s4 1966171168
        %v515 = vunpack.c.0.s8 %v514
        %v516 = vlaneseq
        %v517 = vshrl.u32 %v516, 7
        %v518 = vsub.s32 %v515, %v517
        %v519 = vrot.slane %v505, %v518
        %v520 = vcombine.low %v512, %v519
        %v522 = vunpack.c.l.s4 1966171168
        %v523 = vunpack.c.0.s8 %v522
        %v524 = vlaneseq
        %v525 = vshrl.u32 %v524, 7
        %v526 = vsub.s32 %v523, %v525
        %v527 = vrot.slane %v520, %v526
        %v529 = vlaneseq
        %vm530 = vcmp.ge.s32.totalorder %v529, 0
        %vm531 = vcmp.lt.s32.totalorder %v529, 512
        %vm532 = vmand %vm530, %vm531
        %533 = vst.msk [vmem:[#allocation2] ss:$2 sm:$0xf] %vm532, %v527
        %v534 = vmax.f32 %v411, %v415
        %v535 = vmax.f32 %v534, %v419
        %v536 = vmax.f32 %v535, %v423
        %v537 = vmax.f32 %v536, %v427
        %v538 = vmax.f32 %v537, %v431
        %v539 = vmax.f32 %v538, %v435
        %v540 = vmax.f32 %v539, %v439
        %v541 = vrot.slane %v540, 4
        %v542 = vmax.f32 %v540, %v541
        %v543 = vrot.slane %v542, 2
        %v544 = vmax.f32 %v542, %v543
        %v545 = vrot.slane %v544, 1
        %v546 = vmax.f32 %v544, %v545
        %v547 = vmax.f32 %v412, %v416
        %v548 = vmax.f32 %v547, %v420
        %v549 = vmax.f32 %v548, %v424
        %v550 = vmax.f32 %v549, %v428
        %v551 = vmax.f32 %v550, %v432
        %v552 = vmax.f32 %v551, %v436
        %v553 = vmax.f32 %v552, %v440
        %v554 = vrot.slane %v553, 4
        %v555 = vmax.f32 %v553, %v554
        %v556 = vrot.slane %v555, 2
        %v557 = vmax.f32 %v555, %v556
        %v558 = vrot.slane %v557, 1
        %v559 = vmax.f32 %v557, %v558
        %v560 = vmax.f32 %v413, %v417
        %v561 = vmax.f32 %v560, %v421
        %v562 = vmax.f32 %v561, %v425
        %v563 = vmax.f32 %v562, %v429
        %v564 = vmax.f32 %v563, %v433
        %v565 = vmax.f32 %v564, %v437
        %v566 = vmax.f32 %v565, %v441
        %v567 = vrot.slane %v566, 4
        %v568 = vmax.f32 %v566, %v567
        %v569 = vrot.slane %v568, 2
        %v570 = vmax.f32 %v568, %v569
        %v571 = vrot.slane %v570, 1
        %v572 = vmax.f32 %v570, %v571
        %v573 = vmax.f32 %v414, %v418
        %v574 = vmax.f32 %v573, %v422
        %v575 = vmax.f32 %v574, %v426
        %v576 = vmax.f32 %v575, %v430
        %v577 = vmax.f32 %v576, %v434
        %v578 = vmax.f32 %v577, %v438
        %v579 = vmax.f32 %v578, %v442
        %v580 = vrot.slane %v579, 4
        %v581 = vmax.f32 %v579, %v580
        %v582 = vrot.slane %v581, 2
        %v583 = vmax.f32 %v581, %v582
        %v584 = vrot.slane %v583, 1
        %v585 = vmax.f32 %v583, %v584
        %v590 = vcombine.low %v546, %v559
        %v591 = vcombine.low %v572, %v585
        %v593 = vunpack.c.l.s4 1966171168
        %v594 = vunpack.c.0.s8 %v593
        %v595 = vlaneseq
        %v596 = vshrl.u32 %v595, 7
        %v597 = vsub.s32 %v594, %v596
        %v598 = vrot.slane %v590, %v597
        %v600 = vunpack.c.l.s4 1966171168
        %v601 = vunpack.c.0.s8 %v600
        %v602 = vlaneseq
        %v603 = vshrl.u32 %v602, 7
        %v604 = vsub.s32 %v601, %v603
        %v605 = vrot.slane %v591, %v604
        %v606 = vcombine.low %v598, %v605
        %v608 = vunpack.c.l.s4 1966171168
        %v609 = vunpack.c.0.s8 %v608
        %v610 = vlaneseq
        %v611 = vshrl.u32 %v610, 7
        %v612 = vsub.s32 %v609, %v611
        %v613 = vrot.slane %v606, %v612
        %615 = vst.msk [vmem:[#allocation3] ss:$2 sm:$0xf] %vm532, %v613
        %v616 = vld [vmem:[%s352 + $0x20] sm:$0xff]
        %v617 = vld [vmem:[%s352 + $0x28] sm:$0xff]
        %v618 = vld [vmem:[%s352 + $0x30] sm:$0xff]
        %v619 = vld [vmem:[%s352 + $0x38] sm:$0xff]
        %v620 = vld [vmem:[%s352 + $0xa0] sm:$0xff]
        %v621 = vld [vmem:[%s352 + $0xa8] sm:$0xff]
        %v622 = vld [vmem:[%s352 + $0xb0] sm:$0xff]
        %v623 = vld [vmem:[%s352 + $0xb8] sm:$0xff]
        %v624 = vld [vmem:[%s352 + $0x120] sm:$0xff]
        %v625 = vld [vmem:[%s352 + $0x128] sm:$0xff]
        %v626 = vld [vmem:[%s352 + $0x130] sm:$0xff]
        %v627 = vld [vmem:[%s352 + $0x138] sm:$0xff]
        %v628 = vld [vmem:[%s352 + $0x1a0] sm:$0xff]
        %v629 = vld [vmem:[%s352 + $0x1a8] sm:$0xff]
        %v630 = vld [vmem:[%s352 + $0x1b0] sm:$0xff]
        %v631 = vld [vmem:[%s352 + $0x1b8] sm:$0xff]
        %v632 = vld [vmem:[%s352 + $0x220] sm:$0xff]
        %v633 = vld [vmem:[%s352 + $0x228] sm:$0xff]
        %v634 = vld [vmem:[%s352 + $0x230] sm:$0xff]
        %v635 = vld [vmem:[%s352 + $0x238] sm:$0xff]
        %v636 = vld [vmem:[%s352 + $0x2a0] sm:$0xff]
        %v637 = vld [vmem:[%s352 + $0x2a8] sm:$0xff]
        %v638 = vld [vmem:[%s352 + $0x2b0] sm:$0xff]
        %v639 = vld [vmem:[%s352 + $0x2b8] sm:$0xff]
        %v640 = vld [vmem:[%s352 + $0x320] sm:$0xff]
        %v641 = vld [vmem:[%s352 + $0x328] sm:$0xff]
        %v642 = vld [vmem:[%s352 + $0x330] sm:$0xff]
        %v643 = vld [vmem:[%s352 + $0x338] sm:$0xff]
        %v644 = vld [vmem:[%s352 + $0x3a0] sm:$0xff]
        %v645 = vld [vmem:[%s352 + $0x3a8] sm:$0xff]
        %v646 = vld [vmem:[%s352 + $0x3b0] sm:$0xff]
        %v647 = vld [vmem:[%s352 + $0x3b8] sm:$0xff]
        %v648 = vadd.f32 %v616, %v620
        %v649 = vadd.f32 %v648, %v624
        %v650 = vadd.f32 %v649, %v628
        %v651 = vadd.f32 %v650, %v632
        %v652 = vadd.f32 %v651, %v636
        %v653 = vadd.f32 %v652, %v640
        %v654 = vadd.f32 %v653, %v644
        %v655 = vrot.slane %v654, 4
        %v656 = vadd.f32 %v654, %v655
        %v657 = vrot.slane %v656, 2
        %v658 = vadd.f32 %v656, %v657
        %v659 = vrot.slane %v658, 1
        %v660 = vadd.f32 %v658, %v659
        %v661 = vadd.f32 %v617, %v621
        %v662 = vadd.f32 %v661, %v625
        %v663 = vadd.f32 %v662, %v629
        %v664 = vadd.f32 %v663, %v633
        %v665 = vadd.f32 %v664, %v637
        %v666 = vadd.f32 %v665, %v641
        %v667 = vadd.f32 %v666, %v645
        %v668 = vrot.slane %v667, 4
        %v669 = vadd.f32 %v667, %v668
        %v670 = vrot.slane %v669, 2
        %v671 = vadd.f32 %v669, %v670
        %v672 = vrot.slane %v671, 1
        %v673 = vadd.f32 %v671, %v672
        %v674 = vadd.f32 %v618, %v622
        %v675 = vadd.f32 %v674, %v626
        %v676 = vadd.f32 %v675, %v630
        %v677 = vadd.f32 %v676, %v634
        %v678 = vadd.f32 %v677, %v638
        %v679 = vadd.f32 %v678, %v642
        %v680 = vadd.f32 %v679, %v646
        %v681 = vrot.slane %v680, 4
        %v682 = vadd.f32 %v680, %v681
        %v683 = vrot.slane %v682, 2
        %v684 = vadd.f32 %v682, %v683
        %v685 = vrot.slane %v684, 1
        %v686 = vadd.f32 %v684, %v685
        %v687 = vadd.f32 %v619, %v623
        %v688 = vadd.f32 %v687, %v627
        %v689 = vadd.f32 %v688, %v631
        %v690 = vadd.f32 %v689, %v635
        %v691 = vadd.f32 %v690, %v639
        %v692 = vadd.f32 %v691, %v643
        %v693 = vadd.f32 %v692, %v647
        %v694 = vrot.slane %v693, 4
        %v695 = vadd.f32 %v693, %v694
        %v696 = vrot.slane %v695, 2
        %v697 = vadd.f32 %v695, %v696
        %v698 = vrot.slane %v697, 1
        %v699 = vadd.f32 %v697, %v698
        %v700 = vmul.f32 %v660, %v495
        %v701 = vmul.f32 %v673, %v495
        %v702 = vmul.f32 %v686, %v495
        %v703 = vmul.f32 %v699, %v495
        %v708 = vcombine.low %v700, %v701
        %v709 = vcombine.low %v702, %v703
        %v711 = vunpack.c.l.s4 1966171168
        %v712 = vunpack.c.0.s8 %v711
        %v713 = vlaneseq
        %v714 = vshrl.u32 %v713, 7
        %v715 = vsub.s32 %v712, %v714
        %v716 = vrot.slane %v708, %v715
        %v718 = vunpack.c.l.s4 1966171168
        %v719 = vunpack.c.0.s8 %v718
        %v720 = vlaneseq
        %v721 = vshrl.u32 %v720, 7
        %v722 = vsub.s32 %v719, %v721
        %v723 = vrot.slane %v709, %v722
        %v724 = vcombine.low %v716, %v723
        %v726 = vunpack.c.l.s4 1966171168
        %v727 = vunpack.c.0.s8 %v726
        %v728 = vlaneseq
        %v729 = vshrl.u32 %v728, 7
        %v730 = vsub.s32 %v727, %v729
        %v731 = vrot.slane %v724, %v730
        %s733 = scalar_lea.vmem [#allocation2], 8
        %734 = vst.msk [vmem:[%s733] ss:$2 sm:$0xf] %vm532, %v731
        %v735 = vmax.f32 %v616, %v620
        %v736 = vmax.f32 %v735, %v624
        %v737 = vmax.f32 %v736, %v628
        %v738 = vmax.f32 %v737, %v632
        %v739 = vmax.f32 %v738, %v636
        %v740 = vmax.f32 %v739, %v640
        %v741 = vmax.f32 %v740, %v644
        %v742 = vrot.slane %v741, 4
        %v743 = vmax.f32 %v741, %v742
        %v744 = vrot.slane %v743, 2
        %v745 = vmax.f32 %v743, %v744
        %v746 = vrot.slane %v745, 1
        %v747 = vmax.f32 %v745, %v746
        %v748 = vmax.f32 %v617, %v621
        %v749 = vmax.f32 %v748, %v625
        %v750 = vmax.f32 %v749, %v629
        %v751 = vmax.f32 %v750, %v633
        %v752 = vmax.f32 %v751, %v637
        %v753 = vmax.f32 %v752, %v641
        %v754 = vmax.f32 %v753, %v645
        %v755 = vrot.slane %v754, 4
        %v756 = vmax.f32 %v754, %v755
        %v757 = vrot.slane %v756, 2
        %v758 = vmax.f32 %v756, %v757
        %v759 = vrot.slane %v758, 1
        %v760 = vmax.f32 %v758, %v759
        %v761 = vmax.f32 %v618, %v622
        %v762 = vmax.f32 %v761, %v626
        %v763 = vmax.f32 %v762, %v630
        %v764 = vmax.f32 %v763, %v634
        %v765 = vmax.f32 %v764, %v638
        %v766 = vmax.f32 %v765, %v642
        %v767 = vmax.f32 %v766, %v646
        %v768 = vrot.slane %v767, 4
        %v769 = vmax.f32 %v767, %v768
        %v770 = vrot.slane %v769, 2
        %v771 = vmax.f32 %v769, %v770
        %v772 = vrot.slane %v771, 1
        %v773 = vmax.f32 %v771, %v772
        %v774 = vmax.f32 %v619, %v623
        %v775 = vmax.f32 %v774, %v627
        %v776 = vmax.f32 %v775, %v631
        %v777 = vmax.f32 %v776, %v635
        %v778 = vmax.f32 %v777, %v639
        %v779 = vmax.f32 %v778, %v643
        %v780 = vmax.f32 %v779, %v647
        %v781 = vrot.slane %v780, 4
        %v782 = vmax.f32 %v780, %v781
        %v783 = vrot.slane %v782, 2
        %v784 = vmax.f32 %v782, %v783
        %v785 = vrot.slane %v784, 1
        %v786 = vmax.f32 %v784, %v785
        %v791 = vcombine.low %v747, %v760
        %v792 = vcombine.low %v773, %v786
        %v794 = vunpack.c.l.s4 1966171168
        %v795 = vunpack.c.0.s8 %v794
        %v796 = vlaneseq
        %v797 = vshrl.u32 %v796, 7
        %v798 = vsub.s32 %v795, %v797
        %v799 = vrot.slane %v791, %v798
        %v801 = vunpack.c.l.s4 1966171168
        %v802 = vunpack.c.0.s8 %v801
        %v803 = vlaneseq
        %v804 = vshrl.u32 %v803, 7
        %v805 = vsub.s32 %v802, %v804
        %v806 = vrot.slane %v792, %v805
        %v807 = vcombine.low %v799, %v806
        %v809 = vunpack.c.l.s4 1966171168
        %v810 = vunpack.c.0.s8 %v809
        %v811 = vlaneseq
        %v812 = vshrl.u32 %v811, 7
        %v813 = vsub.s32 %v810, %v812
        %v814 = vrot.slane %v807, %v813
        %s816 = scalar_lea.vmem [#allocation3], 8
        %817 = vst.msk [vmem:[%s816] ss:$2 sm:$0xf] %vm532, %v814
        %v818 = vld [vmem:[%s352 + $0x40] sm:$0xff]
        %v819 = vld [vmem:[%s352 + $0x48] sm:$0xff]
        %v820 = vld [vmem:[%s352 + $0x50] sm:$0xff]
        %v821 = vld [vmem:[%s352 + $0x58] sm:$0xff]
        %v822 = vld [vmem:[%s352 + $0xc0] sm:$0xff]
        %v823 = vld [vmem:[%s352 + $0xc8] sm:$0xff]
        %v824 = vld [vmem:[%s352 + $0xd0] sm:$0xff]
        %v825 = vld [vmem:[%s352 + $0xd8] sm:$0xff]
        %v826 = vld [vmem:[%s352 + $0x140] sm:$0xff]
        %v827 = vld [vmem:[%s352 + $0x148] sm:$0xff]
        %v828 = vld [vmem:[%s352 + $0x150] sm:$0xff]
        %v829 = vld [vmem:[%s352 + $0x158] sm:$0xff]
        %v830 = vld [vmem:[%s352 + $0x1c0] sm:$0xff]
        %v831 = vld [vmem:[%s352 + $0x1c8] sm:$0xff]
        %v832 = vld [vmem:[%s352 + $0x1d0] sm:$0xff]
        %v833 = vld [vmem:[%s352 + $0x1d8] sm:$0xff]
        %v834 = vld [vmem:[%s352 + $0x240] sm:$0xff]
        %v835 = vld [vmem:[%s352 + $0x248] sm:$0xff]
        %v836 = vld [vmem:[%s352 + $0x250] sm:$0xff]
        %v837 = vld [vmem:[%s352 + $0x258] sm:$0xff]
        %v838 = vld [vmem:[%s352 + $0x2c0] sm:$0xff]
        %v839 = vld [vmem:[%s352 + $0x2c8] sm:$0xff]
        %v840 = vld [vmem:[%s352 + $0x2d0] sm:$0xff]
        %v841 = vld [vmem:[%s352 + $0x2d8] sm:$0xff]
        %v842 = vld [vmem:[%s352 + $0x340] sm:$0xff]
        %v843 = vld [vmem:[%s352 + $0x348] sm:$0xff]
        %v844 = vld [vmem:[%s352 + $0x350] sm:$0xff]
        %v845 = vld [vmem:[%s352 + $0x358] sm:$0xff]
        %v846 = vld [vmem:[%s352 + $0x3c0] sm:$0xff]
        %v847 = vld [vmem:[%s352 + $0x3c8] sm:$0xff]
        %v848 = vld [vmem:[%s352 + $0x3d0] sm:$0xff]
        %v849 = vld [vmem:[%s352 + $0x3d8] sm:$0xff]
        %v850 = vadd.f32 %v818, %v822
        %v851 = vadd.f32 %v850, %v826
        %v852 = vadd.f32 %v851, %v830
        %v853 = vadd.f32 %v852, %v834
        %v854 = vadd.f32 %v853, %v838
        %v855 = vadd.f32 %v854, %v842
        %v856 = vadd.f32 %v855, %v846
        %v857 = vrot.slane %v856, 4
        %v858 = vadd.f32 %v856, %v857
        %v859 = vrot.slane %v858, 2
        %v860 = vadd.f32 %v858, %v859
        %v861 = vrot.slane %v860, 1
        %v862 = vadd.f32 %v860, %v861
        %v863 = vadd.f32 %v819, %v823
        %v864 = vadd.f32 %v863, %v827
        %v865 = vadd.f32 %v864, %v831
        %v866 = vadd.f32 %v865, %v835
        %v867 = vadd.f32 %v866, %v839
        %v868 = vadd.f32 %v867, %v843
        %v869 = vadd.f32 %v868, %v847
        %v870 = vrot.slane %v869, 4
        %v871 = vadd.f32 %v869, %v870
        %v872 = vrot.slane %v871, 2
        %v873 = vadd.f32 %v871, %v872
        %v874 = vrot.slane %v873, 1
        %v875 = vadd.f32 %v873, %v874
        %v876 = vadd.f32 %v820, %v824
        %v877 = vadd.f32 %v876, %v828
        %v878 = vadd.f32 %v877, %v832
        %v879 = vadd.f32 %v878, %v836
        %v880 = vadd.f32 %v879, %v840
        %v881 = vadd.f32 %v880, %v844
        %v882 = vadd.f32 %v881, %v848
        %v883 = vrot.slane %v882, 4
        %v884 = vadd.f32 %v882, %v883
        %v885 = vrot.slane %v884, 2
        %v886 = vadd.f32 %v884, %v885
        %v887 = vrot.slane %v886, 1
        %v888 = vadd.f32 %v886, %v887
        %v889 = vadd.f32 %v821, %v825
        %v890 = vadd.f32 %v889, %v829
        %v891 = vadd.f32 %v890, %v833
        %v892 = vadd.f32 %v891, %v837
        %v893 = vadd.f32 %v892, %v841
        %v894 = vadd.f32 %v893, %v845
        %v895 = vadd.f32 %v894, %v849
        %v896 = vrot.slane %v895, 4
        %v897 = vadd.f32 %v895, %v896
        %v898 = vrot.slane %v897, 2
        %v899 = vadd.f32 %v897, %v898
        %v900 = vrot.slane %v899, 1
        %v901 = vadd.f32 %v899, %v900
        %v902 = vmul.f32 %v862, %v495
        %v903 = vmul.f32 %v875, %v495
        %v904 = vmul.f32 %v888, %v495
        %v905 = vmul.f32 %v901, %v495
        %v910 = vcombine.low %v902, %v903
        %v911 = vcombine.low %v904, %v905
        %v913 = vunpack.c.l.s4 1966171168
        %v914 = vunpack.c.0.s8 %v913
        %v915 = vlaneseq
        %v916 = vshrl.u32 %v915, 7
        %v917 = vsub.s32 %v914, %v916
        %v918 = vrot.slane %v910, %v917
        %v920 = vunpack.c.l.s4 1966171168
        %v921 = vunpack.c.0.s8 %v920
        %v922 = vlaneseq
        %v923 = vshrl.u32 %v922, 7
        %v924 = vsub.s32 %v921, %v923
        %v925 = vrot.slane %v911, %v924
        %v926 = vcombine.low %v918, %v925
        %v928 = vunpack.c.l.s4 1966171168
        %v929 = vunpack.c.0.s8 %v928
        %v930 = vlaneseq
        %v931 = vshrl.u32 %v930, 7
        %v932 = vsub.s32 %v929, %v931
        %v933 = vrot.slane %v926, %v932
        %s935 = scalar_lea.vmem [#allocation2], 16
        %936 = vst.msk [vmem:[%s935] ss:$2 sm:$0xf] %vm532, %v933
        %v937 = vmax.f32 %v818, %v822
        %v938 = vmax.f32 %v937, %v826
        %v939 = vmax.f32 %v938, %v830
        %v940 = vmax.f32 %v939, %v834
        %v941 = vmax.f32 %v940, %v838
        %v942 = vmax.f32 %v941, %v842
        %v943 = vmax.f32 %v942, %v846
        %v944 = vrot.slane %v943, 4
        %v945 = vmax.f32 %v943, %v944
        %v946 = vrot.slane %v945, 2
        %v947 = vmax.f32 %v945, %v946
        %v948 = vrot.slane %v947, 1
        %v949 = vmax.f32 %v947, %v948
        %v950 = vmax.f32 %v819, %v823
        %v951 = vmax.f32 %v950, %v827
        %v952 = vmax.f32 %v951, %v831
        %v953 = vmax.f32 %v952, %v835
        %v954 = vmax.f32 %v953, %v839
        %v955 = vmax.f32 %v954, %v843
        %v956 = vmax.f32 %v955, %v847
        %v957 = vrot.slane %v956, 4
        %v958 = vmax.f32 %v956, %v957
        %v959 = vrot.slane %v958, 2
        %v960 = vmax.f32 %v958, %v959
        %v961 = vrot.slane %v960, 1
        %v962 = vmax.f32 %v960, %v961
        %v963 = vmax.f32 %v820, %v824
        %v964 = vmax.f32 %v963, %v828
        %v965 = vmax.f32 %v964, %v832
        %v966 = vmax.f32 %v965, %v836
        %v967 = vmax.f32 %v966, %v840
        %v968 = vmax.f32 %v967, %v844
        %v969 = vmax.f32 %v968, %v848
        %v970 = vrot.slane %v969, 4
        %v971 = vmax.f32 %v969, %v970
        %v972 = vrot.slane %v971, 2
        %v973 = vmax.f32 %v971, %v972
        %v974 = vrot.slane %v973, 1
        %v975 = vmax.f32 %v973, %v974
        %v976 = vmax.f32 %v821, %v825
        %v977 = vmax.f32 %v976, %v829
        %v978 = vmax.f32 %v977, %v833
        %v979 = vmax.f32 %v978, %v837
        %v980 = vmax.f32 %v979, %v841
        %v981 = vmax.f32 %v980, %v845
        %v982 = vmax.f32 %v981, %v849
        %v983 = vrot.slane %v982, 4
        %v984 = vmax.f32 %v982, %v983
        %v985 = vrot.slane %v984, 2
        %v986 = vmax.f32 %v984, %v985
        %v987 = vrot.slane %v986, 1
        %v988 = vmax.f32 %v986, %v987
        %v993 = vcombine.low %v949, %v962
        %v994 = vcombine.low %v975, %v988
        %v996 = vunpack.c.l.s4 1966171168
        %v997 = vunpack.c.0.s8 %v996
        %v998 = vlaneseq
        %v999 = vshrl.u32 %v998, 7
        %v1000 = vsub.s32 %v997, %v999
        %v1001 = vrot.slane %v993, %v1000
        %v1003 = vunpack.c.l.s4 1966171168
        %v1004 = vunpack.c.0.s8 %v1003
        %v1005 = vlaneseq
        %v1006 = vshrl.u32 %v1005, 7
        %v1007 = vsub.s32 %v1004, %v1006
        %v1008 = vrot.slane %v994, %v1007
        %v1009 = vcombine.low %v1001, %v1008
        %v1011 = vunpack.c.l.s4 1966171168
        %v1012 = vunpack.c.0.s8 %v1011
        %v1013 = vlaneseq
        %v1014 = vshrl.u32 %v1013, 7
        %v1015 = vsub.s32 %v1012, %v1014
        %v1016 = vrot.slane %v1009, %v1015
        %s1018 = scalar_lea.vmem [#allocation3], 16
        %1019 = vst.msk [vmem:[%s1018] ss:$2 sm:$0xf] %vm532, %v1016
        %v1020 = vld [vmem:[%s352 + $0x60] sm:$0xff]
        %v1021 = vld [vmem:[%s352 + $0x68] sm:$0xff]
        %v1022 = vld [vmem:[%s352 + $0x70] sm:$0xff]
        %v1023 = vld [vmem:[%s352 + $0x78] sm:$0xff]
        %v1024 = vld [vmem:[%s352 + $0xe0] sm:$0xff]
        %v1025 = vld [vmem:[%s352 + $0xe8] sm:$0xff]
        %v1026 = vld [vmem:[%s352 + $0xf0] sm:$0xff]
        %v1027 = vld [vmem:[%s352 + $0xf8] sm:$0xff]
        %v1028 = vld [vmem:[%s352 + $0x160] sm:$0xff]
        %v1029 = vld [vmem:[%s352 + $0x168] sm:$0xff]
        %v1030 = vld [vmem:[%s352 + $0x170] sm:$0xff]
        %v1031 = vld [vmem:[%s352 + $0x178] sm:$0xff]
        %v1032 = vld [vmem:[%s352 + $0x1e0] sm:$0xff]
        %v1033 = vld [vmem:[%s352 + $0x1e8] sm:$0xff]
        %v1034 = vld [vmem:[%s352 + $0x1f0] sm:$0xff]
        %v1035 = vld [vmem:[%s352 + $0x1f8] sm:$0xff]
        %v1036 = vld [vmem:[%s352 + $0x260] sm:$0xff]
        %v1037 = vld [vmem:[%s352 + $0x268] sm:$0xff]
        %v1038 = vld [vmem:[%s352 + $0x270] sm:$0xff]
        %v1039 = vld [vmem:[%s352 + $0x278] sm:$0xff]
        %v1040 = vld [vmem:[%s352 + $0x2e0] sm:$0xff]
        %v1041 = vld [vmem:[%s352 + $0x2e8] sm:$0xff]
        %v1042 = vld [vmem:[%s352 + $0x2f0] sm:$0xff]
        %v1043 = vld [vmem:[%s352 + $0x2f8] sm:$0xff]
        %v1044 = vld [vmem:[%s352 + $0x360] sm:$0xff]
        %v1045 = vld [vmem:[%s352 + $0x368] sm:$0xff]
        %v1046 = vld [vmem:[%s352 + $0x370] sm:$0xff]
        %v1047 = vld [vmem:[%s352 + $0x378] sm:$0xff]
        %v1048 = vld [vmem:[%s352 + $0x3e0] sm:$0xff]
        %v1049 = vld [vmem:[%s352 + $0x3e8] sm:$0xff]
        %v1050 = vld [vmem:[%s352 + $0x3f0] sm:$0xff]
        %v1051 = vld [vmem:[%s352 + $0x3f8] sm:$0xff]
        %v1052 = vadd.f32 %v1020, %v1024
        %v1053 = vadd.f32 %v1052, %v1028
        %v1054 = vadd.f32 %v1053, %v1032
        %v1055 = vadd.f32 %v1054, %v1036
        %v1056 = vadd.f32 %v1055, %v1040
        %v1057 = vadd.f32 %v1056, %v1044
        %v1058 = vadd.f32 %v1057, %v1048
        %v1059 = vrot.slane %v1058, 4
        %v1060 = vadd.f32 %v1058, %v1059
        %v1061 = vrot.slane %v1060, 2
        %v1062 = vadd.f32 %v1060, %v1061
        %v1063 = vrot.slane %v1062, 1
        %v1064 = vadd.f32 %v1062, %v1063
        %v1065 = vadd.f32 %v1021, %v1025
        %v1066 = vadd.f32 %v1065, %v1029
        %v1067 = vadd.f32 %v1066, %v1033
        %v1068 = vadd.f32 %v1067, %v1037
        %v1069 = vadd.f32 %v1068, %v1041
        %v1070 = vadd.f32 %v1069, %v1045
        %v1071 = vadd.f32 %v1070, %v1049
        %v1072 = vrot.slane %v1071, 4
        %v1073 = vadd.f32 %v1071, %v1072
        %v1074 = vrot.slane %v1073, 2
        %v1075 = vadd.f32 %v1073, %v1074
        %v1076 = vrot.slane %v1075, 1
        %v1077 = vadd.f32 %v1075, %v1076
        %v1078 = vadd.f32 %v1022, %v1026
        %v1079 = vadd.f32 %v1078, %v1030
        %v1080 = vadd.f32 %v1079, %v1034
        %v1081 = vadd.f32 %v1080, %v1038
        %v1082 = vadd.f32 %v1081, %v1042
        %v1083 = vadd.f32 %v1082, %v1046
        %v1084 = vadd.f32 %v1083, %v1050
        %v1085 = vrot.slane %v1084, 4
        %v1086 = vadd.f32 %v1084, %v1085
        %v1087 = vrot.slane %v1086, 2
        %v1088 = vadd.f32 %v1086, %v1087
        %v1089 = vrot.slane %v1088, 1
        %v1090 = vadd.f32 %v1088, %v1089
        %v1091 = vadd.f32 %v1023, %v1027
        %v1092 = vadd.f32 %v1091, %v1031
        %v1093 = vadd.f32 %v1092, %v1035
        %v1094 = vadd.f32 %v1093, %v1039
        %v1095 = vadd.f32 %v1094, %v1043
        %v1096 = vadd.f32 %v1095, %v1047
        %v1097 = vadd.f32 %v1096, %v1051
        %v1098 = vrot.slane %v1097, 4
        %v1099 = vadd.f32 %v1097, %v1098
        %v1100 = vrot.slane %v1099, 2
        %v1101 = vadd.f32 %v1099, %v1100
        %v1102 = vrot.slane %v1101, 1
        %v1103 = vadd.f32 %v1101, %v1102
        %v1104 = vmul.f32 %v1064, %v495
        %v1105 = vmul.f32 %v1077, %v495
        %v1106 = vmul.f32 %v1090, %v495
        %v1107 = vmul.f32 %v1103, %v495
        %v1112 = vcombine.low %v1104, %v1105
        %v1113 = vcombine.low %v1106, %v1107
        %v1115 = vunpack.c.l.s4 1966171168
        %v1116 = vunpack.c.0.s8 %v1115
        %v1117 = vlaneseq
        %v1118 = vshrl.u32 %v1117, 7
        %v1119 = vsub.s32 %v1116, %v1118
        %v1120 = vrot.slane %v1112, %v1119
        %v1122 = vunpack.c.l.s4 1966171168
        %v1123 = vunpack.c.0.s8 %v1122
        %v1124 = vlaneseq
        %v1125 = vshrl.u32 %v1124, 7
        %v1126 = vsub.s32 %v1123, %v1125
        %v1127 = vrot.slane %v1113, %v1126
        %v1128 = vcombine.low %v1120, %v1127
        %v1130 = vunpack.c.l.s4 1966171168
        %v1131 = vunpack.c.0.s8 %v1130
        %v1132 = vlaneseq
        %v1133 = vshrl.u32 %v1132, 7
        %v1134 = vsub.s32 %v1131, %v1133
        %v1135 = vrot.slane %v1128, %v1134
        %s1137 = scalar_lea.vmem [#allocation2], 24
        %1138 = vst.msk [vmem:[%s1137] ss:$2 sm:$0xf] %vm532, %v1135
        %v1139 = vmax.f32 %v1020, %v1024
        %v1140 = vmax.f32 %v1139, %v1028
        %v1141 = vmax.f32 %v1140, %v1032
        %v1142 = vmax.f32 %v1141, %v1036
        %v1143 = vmax.f32 %v1142, %v1040
        %v1144 = vmax.f32 %v1143, %v1044
        %v1145 = vmax.f32 %v1144, %v1048
        %v1146 = vrot.slane %v1145, 4
        %v1147 = vmax.f32 %v1145, %v1146
        %v1148 = vrot.slane %v1147, 2
        %v1149 = vmax.f32 %v1147, %v1148
        %v1150 = vrot.slane %v1149, 1
        %v1151 = vmax.f32 %v1149, %v1150
        %v1152 = vmax.f32 %v1021, %v1025
        %v1153 = vmax.f32 %v1152, %v1029
        %v1154 = vmax.f32 %v1153, %v1033
        %v1155 = vmax.f32 %v1154, %v1037
        %v1156 = vmax.f32 %v1155, %v1041
        %v1157 = vmax.f32 %v1156, %v1045
        %v1158 = vmax.f32 %v1157, %v1049
        %v1159 = vrot.slane %v1158, 4
        %v1160 = vmax.f32 %v1158, %v1159
        %v1161 = vrot.slane %v1160, 2
        %v1162 = vmax.f32 %v1160, %v1161
        %v1163 = vrot.slane %v1162, 1
        %v1164 = vmax.f32 %v1162, %v1163
        %v1165 = vmax.f32 %v1022, %v1026
        %v1166 = vmax.f32 %v1165, %v1030
        %v1167 = vmax.f32 %v1166, %v1034
        %v1168 = vmax.f32 %v1167, %v1038
        %v1169 = vmax.f32 %v1168, %v1042
        %v1170 = vmax.f32 %v1169, %v1046
        %v1171 = vmax.f32 %v1170, %v1050
        %v1172 = vrot.slane %v1171, 4
        %v1173 = vmax.f32 %v1171, %v1172
        %v1174 = vrot.slane %v1173, 2
        %v1175 = vmax.f32 %v1173, %v1174
        %v1176 = vrot.slane %v1175, 1
        %v1177 = vmax.f32 %v1175, %v1176
        %v1178 = vmax.f32 %v1023, %v1027
        %v1179 = vmax.f32 %v1178, %v1031
        %v1180 = vmax.f32 %v1179, %v1035
        %v1181 = vmax.f32 %v1180, %v1039
        %v1182 = vmax.f32 %v1181, %v1043
        %v1183 = vmax.f32 %v1182, %v1047
        %v1184 = vmax.f32 %v1183, %v1051
        %v1185 = vrot.slane %v1184, 4
        %v1186 = vmax.f32 %v1184, %v1185
        %v1187 = vrot.slane %v1186, 2
        %v1188 = vmax.f32 %v1186, %v1187
        %v1189 = vrot.slane %v1188, 1
        %v1190 = vmax.f32 %v1188, %v1189
        %v1195 = vcombine.low %v1151, %v1164
        %v1196 = vcombine.low %v1177, %v1190
        %v1198 = vunpack.c.l.s4 1966171168
        %v1199 = vunpack.c.0.s8 %v1198
        %v1200 = vlaneseq
        %v1201 = vshrl.u32 %v1200, 7
        %v1202 = vsub.s32 %v1199, %v1201
        %v1203 = vrot.slane %v1195, %v1202
        %v1205 = vunpack.c.l.s4 1966171168
        %v1206 = vunpack.c.0.s8 %v1205
        %v1207 = vlaneseq
        %v1208 = vshrl.u32 %v1207, 7
        %v1209 = vsub.s32 %v1206, %v1208
        %v1210 = vrot.slane %v1196, %v1209
        %v1211 = vcombine.low %v1203, %v1210
        %v1213 = vunpack.c.l.s4 1966171168
        %v1214 = vunpack.c.0.s8 %v1213
        %v1215 = vlaneseq
        %v1216 = vshrl.u32 %v1215, 7
        %v1217 = vsub.s32 %v1214, %v1216
        %v1218 = vrot.slane %v1211, %v1217
        %s1220 = scalar_lea.vmem [#allocation3], 24
        %1221 = vst.msk [vmem:[%s1220] ss:$2 sm:$0xf] %vm532, %v1218
        %s1222 = scalar_lea.vmem %s352, 1024 [#allocation5]
        %v1223 = vld [vmem:[%s1222] sm:$0xff]
        %v1224 = vld [vmem:[%s1222 + $0x8] sm:$0xff]
        %v1225 = vld [vmem:[%s1222 + $0x10] sm:$0xff]
        %v1226 = vld [vmem:[%s1222 + $0x18] sm:$0xff]
        %v1227 = vld [vmem:[%s1222 + $0x80] sm:$0xff]
        %v1228 = vld [vmem:[%s1222 + $0x88] sm:$0xff]
        %v1229 = vld [vmem:[%s1222 + $0x90] sm:$0xff]
        %v1230 = vld [vmem:[%s1222 + $0x98] sm:$0xff]
        %v1231 = vld [vmem:[%s1222 + $0x100] sm:$0xff]
        %v1232 = vld [vmem:[%s1222 + $0x108] sm:$0xff]
        %v1233 = vld [vmem:[%s1222 + $0x110] sm:$0xff]
        %v1234 = vld [vmem:[%s1222 + $0x118] sm:$0xff]
        %v1235 = vld [vmem:[%s1222 + $0x180] sm:$0xff]
        %v1236 = vld [vmem:[%s1222 + $0x188] sm:$0xff]
        %v1237 = vld [vmem:[%s1222 + $0x190] sm:$0xff]
        %v1238 = vld [vmem:[%s1222 + $0x198] sm:$0xff]
        %v1239 = vld [vmem:[%s1222 + $0x200] sm:$0xff]
        %v1240 = vld [vmem:[%s1222 + $0x208] sm:$0xff]
        %v1241 = vld [vmem:[%s1222 + $0x210] sm:$0xff]
        %v1242 = vld [vmem:[%s1222 + $0x218] sm:$0xff]
        %v1243 = vld [vmem:[%s1222 + $0x280] sm:$0xff]
        %v1244 = vld [vmem:[%s1222 + $0x288] sm:$0xff]
        %v1245 = vld [vmem:[%s1222 + $0x290] sm:$0xff]
        %v1246 = vld [vmem:[%s1222 + $0x298] sm:$0xff]
        %v1247 = vld [vmem:[%s1222 + $0x300] sm:$0xff]
        %v1248 = vld [vmem:[%s1222 + $0x308] sm:$0xff]
        %v1249 = vld [vmem:[%s1222 + $0x310] sm:$0xff]
        %v1250 = vld [vmem:[%s1222 + $0x318] sm:$0xff]
        %v1251 = vld [vmem:[%s1222 + $0x380] sm:$0xff]
        %v1252 = vld [vmem:[%s1222 + $0x388] sm:$0xff]
        %v1253 = vld [vmem:[%s1222 + $0x390] sm:$0xff]
        %v1254 = vld [vmem:[%s1222 + $0x398] sm:$0xff]
        %v1255 = vadd.f32 %v1223, %v1227
        %v1256 = vadd.f32 %v1255, %v1231
        %v1257 = vadd.f32 %v1256, %v1235
        %v1258 = vadd.f32 %v1257, %v1239
        %v1259 = vadd.f32 %v1258, %v1243
        %v1260 = vadd.f32 %v1259, %v1247
        %v1261 = vadd.f32 %v1260, %v1251
        %v1262 = vrot.slane %v1261, 4
        %v1263 = vadd.f32 %v1261, %v1262
        %v1264 = vrot.slane %v1263, 2
        %v1265 = vadd.f32 %v1263, %v1264
        %v1266 = vrot.slane %v1265, 1
        %v1267 = vadd.f32 %v1265, %v1266
        %v1268 = vadd.f32 %v1224, %v1228
        %v1269 = vadd.f32 %v1268, %v1232
        %v1270 = vadd.f32 %v1269, %v1236
        %v1271 = vadd.f32 %v1270, %v1240
        %v1272 = vadd.f32 %v1271, %v1244
        %v1273 = vadd.f32 %v1272, %v1248
        %v1274 = vadd.f32 %v1273, %v1252
        %v1275 = vrot.slane %v1274, 4
        %v1276 = vadd.f32 %v1274, %v1275
        %v1277 = vrot.slane %v1276, 2
        %v1278 = vadd.f32 %v1276, %v1277
        %v1279 = vrot.slane %v1278, 1
        %v1280 = vadd.f32 %v1278, %v1279
        %v1281 = vadd.f32 %v1225, %v1229
        %v1282 = vadd.f32 %v1281, %v1233
        %v1283 = vadd.f32 %v1282, %v1237
        %v1284 = vadd.f32 %v1283, %v1241
        %v1285 = vadd.f32 %v1284, %v1245
        %v1286 = vadd.f32 %v1285, %v1249
        %v1287 = vadd.f32 %v1286, %v1253
        %v1288 = vrot.slane %v1287, 4
        %v1289 = vadd.f32 %v1287, %v1288
        %v1290 = vrot.slane %v1289, 2
        %v1291 = vadd.f32 %v1289, %v1290
        %v1292 = vrot.slane %v1291, 1
        %v1293 = vadd.f32 %v1291, %v1292
        %v1294 = vadd.f32 %v1226, %v1230
        %v1295 = vadd.f32 %v1294, %v1234
        %v1296 = vadd.f32 %v1295, %v1238
        %v1297 = vadd.f32 %v1296, %v1242
        %v1298 = vadd.f32 %v1297, %v1246
        %v1299 = vadd.f32 %v1298, %v1250
        %v1300 = vadd.f32 %v1299, %v1254
        %v1301 = vrot.slane %v1300, 4
        %v1302 = vadd.f32 %v1300, %v1301
        %v1303 = vrot.slane %v1302, 2
        %v1304 = vadd.f32 %v1302, %v1303
        %v1305 = vrot.slane %v1304, 1
        %v1306 = vadd.f32 %v1304, %v1305
        %v1307 = vmul.f32 %v1267, %v495
        %v1308 = vmul.f32 %v1280, %v495
        %v1309 = vmul.f32 %v1293, %v495
        %v1310 = vmul.f32 %v1306, %v495
        %v1315 = vcombine.low %v1307, %v1308
        %v1316 = vcombine.low %v1309, %v1310
        %v1318 = vunpack.c.l.s4 1966171168
        %v1319 = vunpack.c.0.s8 %v1318
        %v1320 = vlaneseq
        %v1321 = vshrl.u32 %v1320, 7
        %v1322 = vsub.s32 %v1319, %v1321
        %v1323 = vrot.slane %v1315, %v1322
        %v1325 = vunpack.c.l.s4 1966171168
        %v1326 = vunpack.c.0.s8 %v1325
        %v1327 = vlaneseq
        %v1328 = vshrl.u32 %v1327, 7
        %v1329 = vsub.s32 %v1326, %v1328
        %v1330 = vrot.slane %v1316, %v1329
        %v1331 = vcombine.low %v1323, %v1330
        %v1333 = vunpack.c.l.s4 1966171168
        %v1334 = vunpack.c.0.s8 %v1333
        %v1335 = vlaneseq
        %v1336 = vshrl.u32 %v1335, 7
        %v1337 = vsub.s32 %v1334, %v1336
        %v1338 = vrot.slane %v1331, %v1337
        %s1340 = scalar_lea.vmem [#allocation2], 1
        %1341 = vst.msk [vmem:[%s1340] ss:$2 sm:$0xf] %vm532, %v1338
        %v1342 = vmax.f32 %v1223, %v1227
        %v1343 = vmax.f32 %v1342, %v1231
        %v1344 = vmax.f32 %v1343, %v1235
        %v1345 = vmax.f32 %v1344, %v1239
        %v1346 = vmax.f32 %v1345, %v1243
        %v1347 = vmax.f32 %v1346, %v1247
        %v1348 = vmax.f32 %v1347, %v1251
        %v1349 = vrot.slane %v1348, 4
        %v1350 = vmax.f32 %v1348, %v1349
        %v1351 = vrot.slane %v1350, 2
        %v1352 = vmax.f32 %v1350, %v1351
        %v1353 = vrot.slane %v1352, 1
        %v1354 = vmax.f32 %v1352, %v1353
        %v1355 = vmax.f32 %v1224, %v1228
        %v1356 = vmax.f32 %v1355, %v1232
        %v1357 = vmax.f32 %v1356, %v1236
        %v1358 = vmax.f32 %v1357, %v1240
        %v1359 = vmax.f32 %v1358, %v1244
        %v1360 = vmax.f32 %v1359, %v1248
        %v1361 = vmax.f32 %v1360, %v1252
        %v1362 = vrot.slane %v1361, 4
        %v1363 = vmax.f32 %v1361, %v1362
        %v1364 = vrot.slane %v1363, 2
        %v1365 = vmax.f32 %v1363, %v1364
        %v1366 = vrot.slane %v1365, 1
        %v1367 = vmax.f32 %v1365, %v1366
        %v1368 = vmax.f32 %v1225, %v1229
        %v1369 = vmax.f32 %v1368, %v1233
        %v1370 = vmax.f32 %v1369, %v1237
        %v1371 = vmax.f32 %v1370, %v1241
        %v1372 = vmax.f32 %v1371, %v1245
        %v1373 = vmax.f32 %v1372, %v1249
        %v1374 = vmax.f32 %v1373, %v1253
        %v1375 = vrot.slane %v1374, 4
        %v1376 = vmax.f32 %v1374, %v1375
        %v1377 = vrot.slane %v1376, 2
        %v1378 = vmax.f32 %v1376, %v1377
        %v1379 = vrot.slane %v1378, 1
        %v1380 = vmax.f32 %v1378, %v1379
        %v1381 = vmax.f32 %v1226, %v1230
        %v1382 = vmax.f32 %v1381, %v1234
        %v1383 = vmax.f32 %v1382, %v1238
        %v1384 = vmax.f32 %v1383, %v1242
        %v1385 = vmax.f32 %v1384, %v1246
        %v1386 = vmax.f32 %v1385, %v1250
        %v1387 = vmax.f32 %v1386, %v1254
        %v1388 = vrot.slane %v1387, 4
        %v1389 = vmax.f32 %v1387, %v1388
        %v1390 = vrot.slane %v1389, 2
        %v1391 = vmax.f32 %v1389, %v1390
        %v1392 = vrot.slane %v1391, 1
        %v1393 = vmax.f32 %v1391, %v1392
        %v1398 = vcombine.low %v1354, %v1367
        %v1399 = vcombine.low %v1380, %v1393
        %v1401 = vunpack.c.l.s4 1966171168
        %v1402 = vunpack.c.0.s8 %v1401
        %v1403 = vlaneseq
        %v1404 = vshrl.u32 %v1403, 7
        %v1405 = vsub.s32 %v1402, %v1404
        %v1406 = vrot.slane %v1398, %v1405
        %v1408 = vunpack.c.l.s4 1966171168
        %v1409 = vunpack.c.0.s8 %v1408
        %v1410 = vlaneseq
        %v1411 = vshrl.u32 %v1410, 7
        %v1412 = vsub.s32 %v1409, %v1411
        %v1413 = vrot.slane %v1399, %v1412
        %v1414 = vcombine.low %v1406, %v1413
        %v1416 = vunpack.c.l.s4 1966171168
        %v1417 = vunpack.c.0.s8 %v1416
        %v1418 = vlaneseq
        %v1419 = vshrl.u32 %v1418, 7
        %v1420 = vsub.s32 %v1417, %v1419
        %v1421 = vrot.slane %v1414, %v1420
        %s1423 = scalar_lea.vmem [#allocation3], 1
        %1424 = vst.msk [vmem:[%s1423] ss:$2 sm:$0xf] %vm532, %v1421
        %v1425 = vld [vmem:[%s1222 + $0x20] sm:$0xff]
        %v1426 = vld [vmem:[%s1222 + $0x28] sm:$0xff]
        %v1427 = vld [vmem:[%s1222 + $0x30] sm:$0xff]
        %v1428 = vld [vmem:[%s1222 + $0x38] sm:$0xff]
        %v1429 = vld [vmem:[%s1222 + $0xa0] sm:$0xff]
        %v1430 = vld [vmem:[%s1222 + $0xa8] sm:$0xff]
        %v1431 = vld [vmem:[%s1222 + $0xb0] sm:$0xff]
        %v1432 = vld [vmem:[%s1222 + $0xb8] sm:$0xff]
        %v1433 = vld [vmem:[%s1222 + $0x120] sm:$0xff]
        %v1434 = vld [vmem:[%s1222 + $0x128] sm:$0xff]
        %v1435 = vld [vmem:[%s1222 + $0x130] sm:$0xff]
        %v1436 = vld [vmem:[%s1222 + $0x138] sm:$0xff]
        %v1437 = vld [vmem:[%s1222 + $0x1a0] sm:$0xff]
        %v1438 = vld [vmem:[%s1222 + $0x1a8] sm:$0xff]
        %v1439 = vld [vmem:[%s1222 + $0x1b0] sm:$0xff]
        %v1440 = vld [vmem:[%s1222 + $0x1b8] sm:$0xff]
        %v1441 = vld [vmem:[%s1222 + $0x220] sm:$0xff]
        %v1442 = vld [vmem:[%s1222 + $0x228] sm:$0xff]
        %v1443 = vld [vmem:[%s1222 + $0x230] sm:$0xff]
        %v1444 = vld [vmem:[%s1222 + $0x238] sm:$0xff]
        %v1445 = vld [vmem:[%s1222 + $0x2a0] sm:$0xff]
        %v1446 = vld [vmem:[%s1222 + $0x2a8] sm:$0xff]
        %v1447 = vld [vmem:[%s1222 + $0x2b0] sm:$0xff]
        %v1448 = vld [vmem:[%s1222 + $0x2b8] sm:$0xff]
        %v1449 = vld [vmem:[%s1222 + $0x320] sm:$0xff]
        %v1450 = vld [vmem:[%s1222 + $0x328] sm:$0xff]
        %v1451 = vld [vmem:[%s1222 + $0x330] sm:$0xff]
        %v1452 = vld [vmem:[%s1222 + $0x338] sm:$0xff]
        %v1453 = vld [vmem:[%s1222 + $0x3a0] sm:$0xff]
        %v1454 = vld [vmem:[%s1222 + $0x3a8] sm:$0xff]
        %v1455 = vld [vmem:[%s1222 + $0x3b0] sm:$0xff]
        %v1456 = vld [vmem:[%s1222 + $0x3b8] sm:$0xff]
        %v1457 = vadd.f32 %v1425, %v1429
        %v1458 = vadd.f32 %v1457, %v1433
        %v1459 = vadd.f32 %v1458, %v1437
        %v1460 = vadd.f32 %v1459, %v1441
        %v1461 = vadd.f32 %v1460, %v1445
        %v1462 = vadd.f32 %v1461, %v1449
        %v1463 = vadd.f32 %v1462, %v1453
        %v1464 = vrot.slane %v1463, 4
        %v1465 = vadd.f32 %v1463, %v1464
        %v1466 = vrot.slane %v1465, 2
        %v1467 = vadd.f32 %v1465, %v1466
        %v1468 = vrot.slane %v1467, 1
        %v1469 = vadd.f32 %v1467, %v1468
        %v1470 = vadd.f32 %v1426, %v1430
        %v1471 = vadd.f32 %v1470, %v1434
        %v1472 = vadd.f32 %v1471, %v1438
        %v1473 = vadd.f32 %v1472, %v1442
        %v1474 = vadd.f32 %v1473, %v1446
        %v1475 = vadd.f32 %v1474, %v1450
        %v1476 = vadd.f32 %v1475, %v1454
        %v1477 = vrot.slane %v1476, 4
        %v1478 = vadd.f32 %v1476, %v1477
        %v1479 = vrot.slane %v1478, 2
        %v1480 = vadd.f32 %v1478, %v1479
        %v1481 = vrot.slane %v1480, 1
        %v1482 = vadd.f32 %v1480, %v1481
        %v1483 = vadd.f32 %v1427, %v1431
        %v1484 = vadd.f32 %v1483, %v1435
        %v1485 = vadd.f32 %v1484, %v1439
        %v1486 = vadd.f32 %v1485, %v1443
        %v1487 = vadd.f32 %v1486, %v1447
        %v1488 = vadd.f32 %v1487, %v1451
        %v1489 = vadd.f32 %v1488, %v1455
        %v1490 = vrot.slane %v1489, 4
        %v1491 = vadd.f32 %v1489, %v1490
        %v1492 = vrot.slane %v1491, 2
        %v1493 = vadd.f32 %v1491, %v1492
        %v1494 = vrot.slane %v1493, 1
        %v1495 = vadd.f32 %v1493, %v1494
        %v1496 = vadd.f32 %v1428, %v1432
        %v1497 = vadd.f32 %v1496, %v1436
        %v1498 = vadd.f32 %v1497, %v1440
        %v1499 = vadd.f32 %v1498, %v1444
        %v1500 = vadd.f32 %v1499, %v1448
        %v1501 = vadd.f32 %v1500, %v1452
        %v1502 = vadd.f32 %v1501, %v1456
        %v1503 = vrot.slane %v1502, 4
        %v1504 = vadd.f32 %v1502, %v1503
        %v1505 = vrot.slane %v1504, 2
        %v1506 = vadd.f32 %v1504, %v1505
        %v1507 = vrot.slane %v1506, 1
        %v1508 = vadd.f32 %v1506, %v1507
        %v1509 = vmul.f32 %v1469, %v495
        %v1510 = vmul.f32 %v1482, %v495
        %v1511 = vmul.f32 %v1495, %v495
        %v1512 = vmul.f32 %v1508, %v495
        %v1517 = vcombine.low %v1509, %v1510
        %v1518 = vcombine.low %v1511, %v1512
        %v1520 = vunpack.c.l.s4 1966171168
        %v1521 = vunpack.c.0.s8 %v1520
        %v1522 = vlaneseq
        %v1523 = vshrl.u32 %v1522, 7
        %v1524 = vsub.s32 %v1521, %v1523
        %v1525 = vrot.slane %v1517, %v1524
        %v1527 = vunpack.c.l.s4 1966171168
        %v1528 = vunpack.c.0.s8 %v1527
        %v1529 = vlaneseq
        %v1530 = vshrl.u32 %v1529, 7
        %v1531 = vsub.s32 %v1528, %v1530
        %v1532 = vrot.slane %v1518, %v1531
        %v1533 = vcombine.low %v1525, %v1532
        %v1535 = vunpack.c.l.s4 1966171168
        %v1536 = vunpack.c.0.s8 %v1535
        %v1537 = vlaneseq
        %v1538 = vshrl.u32 %v1537, 7
        %v1539 = vsub.s32 %v1536, %v1538
        %v1540 = vrot.slane %v1533, %v1539
        %s1542 = scalar_lea.vmem [#allocation2], 9
        %1543 = vst.msk [vmem:[%s1542] ss:$2 sm:$0xf] %vm532, %v1540
        %v1544 = vmax.f32 %v1425, %v1429
        %v1545 = vmax.f32 %v1544, %v1433
        %v1546 = vmax.f32 %v1545, %v1437
        %v1547 = vmax.f32 %v1546, %v1441
        %v1548 = vmax.f32 %v1547, %v1445
        %v1549 = vmax.f32 %v1548, %v1449
        %v1550 = vmax.f32 %v1549, %v1453
        %v1551 = vrot.slane %v1550, 4
        %v1552 = vmax.f32 %v1550, %v1551
        %v1553 = vrot.slane %v1552, 2
        %v1554 = vmax.f32 %v1552, %v1553
        %v1555 = vrot.slane %v1554, 1
        %v1556 = vmax.f32 %v1554, %v1555
        %v1557 = vmax.f32 %v1426, %v1430
        %v1558 = vmax.f32 %v1557, %v1434
        %v1559 = vmax.f32 %v1558, %v1438
        %v1560 = vmax.f32 %v1559, %v1442
        %v1561 = vmax.f32 %v1560, %v1446
        %v1562 = vmax.f32 %v1561, %v1450
        %v1563 = vmax.f32 %v1562, %v1454
        %v1564 = vrot.slane %v1563, 4
        %v1565 = vmax.f32 %v1563, %v1564
        %v1566 = vrot.slane %v1565, 2
        %v1567 = vmax.f32 %v1565, %v1566
        %v1568 = vrot.slane %v1567, 1
        %v1569 = vmax.f32 %v1567, %v1568
        %v1570 = vmax.f32 %v1427, %v1431
        %v1571 = vmax.f32 %v1570, %v1435
        %v1572 = vmax.f32 %v1571, %v1439
        %v1573 = vmax.f32 %v1572, %v1443
        %v1574 = vmax.f32 %v1573, %v1447
        %v1575 = vmax.f32 %v1574, %v1451
        %v1576 = vmax.f32 %v1575, %v1455
        %v1577 = vrot.slane %v1576, 4
        %v1578 = vmax.f32 %v1576, %v1577
        %v1579 = vrot.slane %v1578, 2
        %v1580 = vmax.f32 %v1578, %v1579
        %v1581 = vrot.slane %v1580, 1
        %v1582 = vmax.f32 %v1580, %v1581
        %v1583 = vmax.f32 %v1428, %v1432
        %v1584 = vmax.f32 %v1583, %v1436
        %v1585 = vmax.f32 %v1584, %v1440
        %v1586 = vmax.f32 %v1585, %v1444
        %v1587 = vmax.f32 %v1586, %v1448
        %v1588 = vmax.f32 %v1587, %v1452
        %v1589 = vmax.f32 %v1588, %v1456
        %v1590 = vrot.slane %v1589, 4
        %v1591 = vmax.f32 %v1589, %v1590
        %v1592 = vrot.slane %v1591, 2
        %v1593 = vmax.f32 %v1591, %v1592
        %v1594 = vrot.slane %v1593, 1
        %v1595 = vmax.f32 %v1593, %v1594
        %v1600 = vcombine.low %v1556, %v1569
        %v1601 = vcombine.low %v1582, %v1595
        %v1603 = vunpack.c.l.s4 1966171168
        %v1604 = vunpack.c.0.s8 %v1603
        %v1605 = vlaneseq
        %v1606 = vshrl.u32 %v1605, 7
        %v1607 = vsub.s32 %v1604, %v1606
        %v1608 = vrot.slane %v1600, %v1607
        %v1610 = vunpack.c.l.s4 1966171168
        %v1611 = vunpack.c.0.s8 %v1610
        %v1612 = vlaneseq
        %v1613 = vshrl.u32 %v1612, 7
        %v1614 = vsub.s32 %v1611, %v1613
        %v1615 = vrot.slane %v1601, %v1614
        %v1616 = vcombine.low %v1608, %v1615
        %v1618 = vunpack.c.l.s4 1966171168
        %v1619 = vunpack.c.0.s8 %v1618
        %v1620 = vlaneseq
        %v1621 = vshrl.u32 %v1620, 7
        %v1622 = vsub.s32 %v1619, %v1621
        %v1623 = vrot.slane %v1616, %v1622
        %s1625 = scalar_lea.vmem [#allocation3], 9
        %1626 = vst.msk [vmem:[%s1625] ss:$2 sm:$0xf] %vm532, %v1623
        %v1627 = vld [vmem:[%s1222 + $0x40] sm:$0xff]
        %v1628 = vld [vmem:[%s1222 + $0x48] sm:$0xff]
        %v1629 = vld [vmem:[%s1222 + $0x50] sm:$0xff]
        %v1630 = vld [vmem:[%s1222 + $0x58] sm:$0xff]
        %v1631 = vld [vmem:[%s1222 + $0xc0] sm:$0xff]
        %v1632 = vld [vmem:[%s1222 + $0xc8] sm:$0xff]
        %v1633 = vld [vmem:[%s1222 + $0xd0] sm:$0xff]
        %v1634 = vld [vmem:[%s1222 + $0xd8] sm:$0xff]
        %v1635 = vld [vmem:[%s1222 + $0x140] sm:$0xff]
        %v1636 = vld [vmem:[%s1222 + $0x148] sm:$0xff]
        %v1637 = vld [vmem:[%s1222 + $0x150] sm:$0xff]
        %v1638 = vld [vmem:[%s1222 + $0x158] sm:$0xff]
        %v1639 = vld [vmem:[%s1222 + $0x1c0] sm:$0xff]
        %v1640 = vld [vmem:[%s1222 + $0x1c8] sm:$0xff]
        %v1641 = vld [vmem:[%s1222 + $0x1d0] sm:$0xff]
        %v1642 = vld [vmem:[%s1222 + $0x1d8] sm:$0xff]
        %v1643 = vld [vmem:[%s1222 + $0x240] sm:$0xff]
        %v1644 = vld [vmem:[%s1222 + $0x248] sm:$0xff]
        %v1645 = vld [vmem:[%s1222 + $0x250] sm:$0xff]
        %v1646 = vld [vmem:[%s1222 + $0x258] sm:$0xff]
        %v1647 = vld [vmem:[%s1222 + $0x2c0] sm:$0xff]
        %v1648 = vld [vmem:[%s1222 + $0x2c8] sm:$0xff]
        %v1649 = vld [vmem:[%s1222 + $0x2d0] sm:$0xff]
        %v1650 = vld [vmem:[%s1222 + $0x2d8] sm:$0xff]
        %v1651 = vld [vmem:[%s1222 + $0x340] sm:$0xff]
        %v1652 = vld [vmem:[%s1222 + $0x348] sm:$0xff]
        %v1653 = vld [vmem:[%s1222 + $0x350] sm:$0xff]
        %v1654 = vld [vmem:[%s1222 + $0x358] sm:$0xff]
        %v1655 = vld [vmem:[%s1222 + $0x3c0] sm:$0xff]
        %v1656 = vld [vmem:[%s1222 + $0x3c8] sm:$0xff]
        %v1657 = vld [vmem:[%s1222 + $0x3d0] sm:$0xff]
        %v1658 = vld [vmem:[%s1222 + $0x3d8] sm:$0xff]
        %v1659 = vadd.f32 %v1627, %v1631
        %v1660 = vadd.f32 %v1659, %v1635
        %v1661 = vadd.f32 %v1660, %v1639
        %v1662 = vadd.f32 %v1661, %v1643
        %v1663 = vadd.f32 %v1662, %v1647
        %v1664 = vadd.f32 %v1663, %v1651
        %v1665 = vadd.f32 %v1664, %v1655
        %v1666 = vrot.slane %v1665, 4
        %v1667 = vadd.f32 %v1665, %v1666
        %v1668 = vrot.slane %v1667, 2
        %v1669 = vadd.f32 %v1667, %v1668
        %v1670 = vrot.slane %v1669, 1
        %v1671 = vadd.f32 %v1669, %v1670
        %v1672 = vadd.f32 %v1628, %v1632
        %v1673 = vadd.f32 %v1672, %v1636
        %v1674 = vadd.f32 %v1673, %v1640
        %v1675 = vadd.f32 %v1674, %v1644
        %v1676 = vadd.f32 %v1675, %v1648
        %v1677 = vadd.f32 %v1676, %v1652
        %v1678 = vadd.f32 %v1677, %v1656
        %v1679 = vrot.slane %v1678, 4
        %v1680 = vadd.f32 %v1678, %v1679
        %v1681 = vrot.slane %v1680, 2
        %v1682 = vadd.f32 %v1680, %v1681
        %v1683 = vrot.slane %v1682, 1
        %v1684 = vadd.f32 %v1682, %v1683
        %v1685 = vadd.f32 %v1629, %v1633
        %v1686 = vadd.f32 %v1685, %v1637
        %v1687 = vadd.f32 %v1686, %v1641
        %v1688 = vadd.f32 %v1687, %v1645
        %v1689 = vadd.f32 %v1688, %v1649
        %v1690 = vadd.f32 %v1689, %v1653
        %v1691 = vadd.f32 %v1690, %v1657
        %v1692 = vrot.slane %v1691, 4
        %v1693 = vadd.f32 %v1691, %v1692
        %v1694 = vrot.slane %v1693, 2
        %v1695 = vadd.f32 %v1693, %v1694
        %v1696 = vrot.slane %v1695, 1
        %v1697 = vadd.f32 %v1695, %v1696
        %v1698 = vadd.f32 %v1630, %v1634
        %v1699 = vadd.f32 %v1698, %v1638
        %v1700 = vadd.f32 %v1699, %v1642
        %v1701 = vadd.f32 %v1700, %v1646
        %v1702 = vadd.f32 %v1701, %v1650
        %v1703 = vadd.f32 %v1702, %v1654
        %v1704 = vadd.f32 %v1703, %v1658
        %v1705 = vrot.slane %v1704, 4
        %v1706 = vadd.f32 %v1704, %v1705
        %v1707 = vrot.slane %v1706, 2
        %v1708 = vadd.f32 %v1706, %v1707
        %v1709 = vrot.slane %v1708, 1
        %v1710 = vadd.f32 %v1708, %v1709
        %v1711 = vmul.f32 %v1671, %v495
        %v1712 = vmul.f32 %v1684, %v495
        %v1713 = vmul.f32 %v1697, %v495
        %v1714 = vmul.f32 %v1710, %v495
        %v1719 = vcombine.low %v1711, %v1712
        %v1720 = vcombine.low %v1713, %v1714
        %v1722 = vunpack.c.l.s4 1966171168
        %v1723 = vunpack.c.0.s8 %v1722
        %v1724 = vlaneseq
        %v1725 = vshrl.u32 %v1724, 7
        %v1726 = vsub.s32 %v1723, %v1725
        %v1727 = vrot.slane %v1719, %v1726
        %v1729 = vunpack.c.l.s4 1966171168
        %v1730 = vunpack.c.0.s8 %v1729
        %v1731 = vlaneseq
        %v1732 = vshrl.u32 %v1731, 7
        %v1733 = vsub.s32 %v1730, %v1732
        %v1734 = vrot.slane %v1720, %v1733
        %v1735 = vcombine.low %v1727, %v1734
        %v1737 = vunpack.c.l.s4 1966171168
        %v1738 = vunpack.c.0.s8 %v1737
        %v1739 = vlaneseq
        %v1740 = vshrl.u32 %v1739, 7
        %v1741 = vsub.s32 %v1738, %v1740
        %v1742 = vrot.slane %v1735, %v1741
        %s1744 = scalar_lea.vmem [#allocation2], 17
        %1745 = vst.msk [vmem:[%s1744] ss:$2 sm:$0xf] %vm532, %v1742
        %v1746 = vmax.f32 %v1627, %v1631
        %v1747 = vmax.f32 %v1746, %v1635
        %v1748 = vmax.f32 %v1747, %v1639
        %v1749 = vmax.f32 %v1748, %v1643
        %v1750 = vmax.f32 %v1749, %v1647
        %v1751 = vmax.f32 %v1750, %v1651
        %v1752 = vmax.f32 %v1751, %v1655
        %v1753 = vrot.slane %v1752, 4
        %v1754 = vmax.f32 %v1752, %v1753
        %v1755 = vrot.slane %v1754, 2
        %v1756 = vmax.f32 %v1754, %v1755
        %v1757 = vrot.slane %v1756, 1
        %v1758 = vmax.f32 %v1756, %v1757
        %v1759 = vmax.f32 %v1628, %v1632
        %v1760 = vmax.f32 %v1759, %v1636
        %v1761 = vmax.f32 %v1760, %v1640
        %v1762 = vmax.f32 %v1761, %v1644
        %v1763 = vmax.f32 %v1762, %v1648
        %v1764 = vmax.f32 %v1763, %v1652
        %v1765 = vmax.f32 %v1764, %v1656
        %v1766 = vrot.slane %v1765, 4
        %v1767 = vmax.f32 %v1765, %v1766
        %v1768 = vrot.slane %v1767, 2
        %v1769 = vmax.f32 %v1767, %v1768
        %v1770 = vrot.slane %v1769, 1
        %v1771 = vmax.f32 %v1769, %v1770
        %v1772 = vmax.f32 %v1629, %v1633
        %v1773 = vmax.f32 %v1772, %v1637
        %v1774 = vmax.f32 %v1773, %v1641
        %v1775 = vmax.f32 %v1774, %v1645
        %v1776 = vmax.f32 %v1775, %v1649
        %v1777 = vmax.f32 %v1776, %v1653
        %v1778 = vmax.f32 %v1777, %v1657
        %v1779 = vrot.slane %v1778, 4
        %v1780 = vmax.f32 %v1778, %v1779
        %v1781 = vrot.slane %v1780, 2
        %v1782 = vmax.f32 %v1780, %v1781
        %v1783 = vrot.slane %v1782, 1
        %v1784 = vmax.f32 %v1782, %v1783
        %v1785 = vmax.f32 %v1630, %v1634
        %v1786 = vmax.f32 %v1785, %v1638
        %v1787 = vmax.f32 %v1786, %v1642
        %v1788 = vmax.f32 %v1787, %v1646
        %v1789 = vmax.f32 %v1788, %v1650
        %v1790 = vmax.f32 %v1789, %v1654
        %v1791 = vmax.f32 %v1790, %v1658
        %v1792 = vrot.slane %v1791, 4
        %v1793 = vmax.f32 %v1791, %v1792
        %v1794 = vrot.slane %v1793, 2
        %v1795 = vmax.f32 %v1793, %v1794
        %v1796 = vrot.slane %v1795, 1
        %v1797 = vmax.f32 %v1795, %v1796
        %v1802 = vcombine.low %v1758, %v1771
        %v1803 = vcombine.low %v1784, %v1797
        %v1805 = vunpack.c.l.s4 1966171168
        %v1806 = vunpack.c.0.s8 %v1805
        %v1807 = vlaneseq
        %v1808 = vshrl.u32 %v1807, 7
        %v1809 = vsub.s32 %v1806, %v1808
        %v1810 = vrot.slane %v1802, %v1809
        %v1812 = vunpack.c.l.s4 1966171168
        %v1813 = vunpack.c.0.s8 %v1812
        %v1814 = vlaneseq
        %v1815 = vshrl.u32 %v1814, 7
        %v1816 = vsub.s32 %v1813, %v1815
        %v1817 = vrot.slane %v1803, %v1816
        %v1818 = vcombine.low %v1810, %v1817
        %v1820 = vunpack.c.l.s4 1966171168
        %v1821 = vunpack.c.0.s8 %v1820
        %v1822 = vlaneseq
        %v1823 = vshrl.u32 %v1822, 7
        %v1824 = vsub.s32 %v1821, %v1823
        %v1825 = vrot.slane %v1818, %v1824
        %s1827 = scalar_lea.vmem [#allocation3], 17
        %1828 = vst.msk [vmem:[%s1827] ss:$2 sm:$0xf] %vm532, %v1825
        %v1829 = vld [vmem:[%s1222 + $0x60] sm:$0xff]
        %v1830 = vld [vmem:[%s1222 + $0x68] sm:$0xff]
        %v1831 = vld [vmem:[%s1222 + $0x70] sm:$0xff]
        %v1832 = vld [vmem:[%s1222 + $0x78] sm:$0xff]
        %v1833 = vld [vmem:[%s1222 + $0xe0] sm:$0xff]
        %v1834 = vld [vmem:[%s1222 + $0xe8] sm:$0xff]
        %v1835 = vld [vmem:[%s1222 + $0xf0] sm:$0xff]
        %v1836 = vld [vmem:[%s1222 + $0xf8] sm:$0xff]
        %v1837 = vld [vmem:[%s1222 + $0x160] sm:$0xff]
        %v1838 = vld [vmem:[%s1222 + $0x168] sm:$0xff]
        %v1839 = vld [vmem:[%s1222 + $0x170] sm:$0xff]
        %v1840 = vld [vmem:[%s1222 + $0x178] sm:$0xff]
        %v1841 = vld [vmem:[%s1222 + $0x1e0] sm:$0xff]
        %v1842 = vld [vmem:[%s1222 + $0x1e8] sm:$0xff]
        %v1843 = vld [vmem:[%s1222 + $0x1f0] sm:$0xff]
        %v1844 = vld [vmem:[%s1222 + $0x1f8] sm:$0xff]
        %v1845 = vld [vmem:[%s1222 + $0x260] sm:$0xff]
        %v1846 = vld [vmem:[%s1222 + $0x268] sm:$0xff]
        %v1847 = vld [vmem:[%s1222 + $0x270] sm:$0xff]
        %v1848 = vld [vmem:[%s1222 + $0x278] sm:$0xff]
        %v1849 = vld [vmem:[%s1222 + $0x2e0] sm:$0xff]
        %v1850 = vld [vmem:[%s1222 + $0x2e8] sm:$0xff]
        %v1851 = vld [vmem:[%s1222 + $0x2f0] sm:$0xff]
        %v1852 = vld [vmem:[%s1222 + $0x2f8] sm:$0xff]
        %v1853 = vld [vmem:[%s1222 + $0x360] sm:$0xff]
        %v1854 = vld [vmem:[%s1222 + $0x368] sm:$0xff]
        %v1855 = vld [vmem:[%s1222 + $0x370] sm:$0xff]
        %v1856 = vld [vmem:[%s1222 + $0x378] sm:$0xff]
        %v1857 = vld [vmem:[%s1222 + $0x3e0] sm:$0xff]
        %v1858 = vld [vmem:[%s1222 + $0x3e8] sm:$0xff]
        %v1859 = vld [vmem:[%s1222 + $0x3f0] sm:$0xff]
        %v1860 = vld [vmem:[%s1222 + $0x3f8] sm:$0xff]
        %v1861 = vadd.f32 %v1829, %v1833
        %v1862 = vadd.f32 %v1861, %v1837
        %v1863 = vadd.f32 %v1862, %v1841
        %v1864 = vadd.f32 %v1863, %v1845
        %v1865 = vadd.f32 %v1864, %v1849
        %v1866 = vadd.f32 %v1865, %v1853
        %v1867 = vadd.f32 %v1866, %v1857
        %v1868 = vrot.slane %v1867, 4
        %v1869 = vadd.f32 %v1867, %v1868
        %v1870 = vrot.slane %v1869, 2
        %v1871 = vadd.f32 %v1869, %v1870
        %v1872 = vrot.slane %v1871, 1
        %v1873 = vadd.f32 %v1871, %v1872
        %v1874 = vadd.f32 %v1830, %v1834
        %v1875 = vadd.f32 %v1874, %v1838
        %v1876 = vadd.f32 %v1875, %v1842
        %v1877 = vadd.f32 %v1876, %v1846
        %v1878 = vadd.f32 %v1877, %v1850
        %v1879 = vadd.f32 %v1878, %v1854
        %v1880 = vadd.f32 %v1879, %v1858
        %v1881 = vrot.slane %v1880, 4
        %v1882 = vadd.f32 %v1880, %v1881
        %v1883 = vrot.slane %v1882, 2
        %v1884 = vadd.f32 %v1882, %v1883
        %v1885 = vrot.slane %v1884, 1
        %v1886 = vadd.f32 %v1884, %v1885
        %v1887 = vadd.f32 %v1831, %v1835
        %v1888 = vadd.f32 %v1887, %v1839
        %v1889 = vadd.f32 %v1888, %v1843
        %v1890 = vadd.f32 %v1889, %v1847
        %v1891 = vadd.f32 %v1890, %v1851
        %v1892 = vadd.f32 %v1891, %v1855
        %v1893 = vadd.f32 %v1892, %v1859
        %v1894 = vrot.slane %v1893, 4
        %v1895 = vadd.f32 %v1893, %v1894
        %v1896 = vrot.slane %v1895, 2
        %v1897 = vadd.f32 %v1895, %v1896
        %v1898 = vrot.slane %v1897, 1
        %v1899 = vadd.f32 %v1897, %v1898
        %v1900 = vadd.f32 %v1832, %v1836
        %v1901 = vadd.f32 %v1900, %v1840
        %v1902 = vadd.f32 %v1901, %v1844
        %v1903 = vadd.f32 %v1902, %v1848
        %v1904 = vadd.f32 %v1903, %v1852
        %v1905 = vadd.f32 %v1904, %v1856
        %v1906 = vadd.f32 %v1905, %v1860
        %v1907 = vrot.slane %v1906, 4
        %v1908 = vadd.f32 %v1906, %v1907
        %v1909 = vrot.slane %v1908, 2
        %v1910 = vadd.f32 %v1908, %v1909
        %v1911 = vrot.slane %v1910, 1
        %v1912 = vadd.f32 %v1910, %v1911
        %v1913 = vmul.f32 %v1873, %v495
        %v1914 = vmul.f32 %v1886, %v495
        %v1915 = vmul.f32 %v1899, %v495
        %v1916 = vmul.f32 %v1912, %v495
        %v1921 = vcombine.low %v1913, %v1914
        %v1922 = vcombine.low %v1915, %v1916
        %v1924 = vunpack.c.l.s4 1966171168
        %v1925 = vunpack.c.0.s8 %v1924
        %v1926 = vlaneseq
        %v1927 = vshrl.u32 %v1926, 7
        %v1928 = vsub.s32 %v1925, %v1927
        %v1929 = vrot.slane %v1921, %v1928
        %v1931 = vunpack.c.l.s4 1966171168
        %v1932 = vunpack.c.0.s8 %v1931
        %v1933 = vlaneseq
        %v1934 = vshrl.u32 %v1933, 7
        %v1935 = vsub.s32 %v1932, %v1934
        %v1936 = vrot.slane %v1922, %v1935
        %v1937 = vcombine.low %v1929, %v1936
        %v1939 = vunpack.c.l.s4 1966171168
        %v1940 = vunpack.c.0.s8 %v1939
        %v1941 = vlaneseq
        %v1942 = vshrl.u32 %v1941, 7
        %v1943 = vsub.s32 %v1940, %v1942
        %v1944 = vrot.slane %v1937, %v1943
        %s1946 = scalar_lea.vmem [#allocation2], 25
        %1947 = vst.msk [vmem:[%s1946] ss:$2 sm:$0xf] %vm532, %v1944
        %v1948 = vmax.f32 %v1829, %v1833
        %v1949 = vmax.f32 %v1948, %v1837
        %v1950 = vmax.f32 %v1949, %v1841
        %v1951 = vmax.f32 %v1950, %v1845
        %v1952 = vmax.f32 %v1951, %v1849
        %v1953 = vmax.f32 %v1952, %v1853
        %v1954 = vmax.f32 %v1953, %v1857
        %v1955 = vrot.slane %v1954, 4
        %v1956 = vmax.f32 %v1954, %v1955
        %v1957 = vrot.slane %v1956, 2
        %v1958 = vmax.f32 %v1956, %v1957
        %v1959 = vrot.slane %v1958, 1
        %v1960 = vmax.f32 %v1958, %v1959
        %v1961 = vmax.f32 %v1830, %v1834
        %v1962 = vmax.f32 %v1961, %v1838
        %v1963 = vmax.f32 %v1962, %v1842
        %v1964 = vmax.f32 %v1963, %v1846
        %v1965 = vmax.f32 %v1964, %v1850
        %v1966 = vmax.f32 %v1965, %v1854
        %v1967 = vmax.f32 %v1966, %v1858
        %v1968 = vrot.slane %v1967, 4
        %v1969 = vmax.f32 %v1967, %v1968
        %v1970 = vrot.slane %v1969, 2
        %v1971 = vmax.f32 %v1969, %v1970
        %v1972 = vrot.slane %v1971, 1
        %v1973 = vmax.f32 %v1971, %v1972
        %v1974 = vmax.f32 %v1831, %v1835
        %v1975 = vmax.f32 %v1974, %v1839
        %v1976 = vmax.f32 %v1975, %v1843
        %v1977 = vmax.f32 %v1976, %v1847
        %v1978 = vmax.f32 %v1977, %v1851
        %v1979 = vmax.f32 %v1978, %v1855
        %v1980 = vmax.f32 %v1979, %v1859
        %v1981 = vrot.slane %v1980, 4
        %v1982 = vmax.f32 %v1980, %v1981
        %v1983 = vrot.slane %v1982, 2
        %v1984 = vmax.f32 %v1982, %v1983
        %v1985 = vrot.slane %v1984, 1
        %v1986 = vmax.f32 %v1984, %v1985
        %v1987 = vmax.f32 %v1832, %v1836
        %v1988 = vmax.f32 %v1987, %v1840
        %v1989 = vmax.f32 %v1988, %v1844
        %v1990 = vmax.f32 %v1989, %v1848
        %v1991 = vmax.f32 %v1990, %v1852
        %v1992 = vmax.f32 %v1991, %v1856
        %v1993 = vmax.f32 %v1992, %v1860
        %v1994 = vrot.slane %v1993, 4
        %v1995 = vmax.f32 %v1993, %v1994
        %v1996 = vrot.slane %v1995, 2
        %v1997 = vmax.f32 %v1995, %v1996
        %v1998 = vrot.slane %v1997, 1
        %v1999 = vmax.f32 %v1997, %v1998
        %v2004 = vcombine.low %v1960, %v1973
        %v2005 = vcombine.low %v1986, %v1999
        %v2007 = vunpack.c.l.s4 1966171168
        %v2008 = vunpack.c.0.s8 %v2007
        %v2009 = vlaneseq
        %v2010 = vshrl.u32 %v2009, 7
        %v2011 = vsub.s32 %v2008, %v2010
        %v2012 = vrot.slane %v2004, %v2011
        %v2014 = vunpack.c.l.s4 1966171168
        %v2015 = vunpack.c.0.s8 %v2014
        %v2016 = vlaneseq
        %v2017 = vshrl.u32 %v2016, 7
        %v2018 = vsub.s32 %v2015, %v2017
        %v2019 = vrot.slane %v2005, %v2018
        %v2020 = vcombine.low %v2012, %v2019
        %v2022 = vunpack.c.l.s4 1966171168
        %v2023 = vunpack.c.0.s8 %v2022
        %v2024 = vlaneseq
        %v2025 = vshrl.u32 %v2024, 7
        %v2026 = vsub.s32 %v2023, %v2025
        %v2027 = vrot.slane %v2020, %v2026
        %s2029 = scalar_lea.vmem [#allocation3], 25
        %2030 = vst.msk [vmem:[%s2029] ss:$2 sm:$0xf] %vm532, %v2027
        %v2031 = vld [vmem:[#allocation2] sm:$0xff]
        %v2032 = vld [vmem:[#allocation2 + $0x8] sm:$0xff]
        %v2033 = vld [vmem:[#allocation2 + $0x10] sm:$0xff]
        %v2034 = vld [vmem:[#allocation2 + $0x18] sm:$0xff]
        %v2035 = vld [vmem:[#allocation8] sm:$0xff]
        %v2036 = vld [vmem:[#allocation8 + $0x8] sm:$0xff]
        %v2037 = vld [vmem:[#allocation8 + $0x10] sm:$0xff]
        %v2038 = vld [vmem:[#allocation8 + $0x18] sm:$0xff]
        %v2039 = vld [vmem:[#allocation8 + $0x20] sm:$0xff]
        %v2040 = vld [vmem:[#allocation8 + $0x28] sm:$0xff]
        %v2041 = vld [vmem:[#allocation8 + $0x30] sm:$0xff]
        %v2042 = vld [vmem:[#allocation8 + $0x38] sm:$0xff]
        %v2043 = vld [vmem:[#allocation8 + $0x40] sm:$0xff]
        %v2044 = vld [vmem:[#allocation8 + $0x48] sm:$0xff]
        %v2045 = vld [vmem:[#allocation8 + $0x50] sm:$0xff]
        %v2046 = vld [vmem:[#allocation8 + $0x58] sm:$0xff]
        %v2047 = vld [vmem:[#allocation8 + $0x60] sm:$0xff]
        %v2048 = vld [vmem:[#allocation8 + $0x68] sm:$0xff]
        %v2049 = vld [vmem:[#allocation8 + $0x70] sm:$0xff]
        %v2050 = vld [vmem:[#allocation8 + $0x78] sm:$0xff]
        %v2051 = vld [vmem:[#allocation8 + $0x80] sm:$0xff]
        %v2052 = vld [vmem:[#allocation8 + $0x88] sm:$0xff]
        %v2053 = vld [vmem:[#allocation8 + $0x90] sm:$0xff]
        %v2054 = vld [vmem:[#allocation8 + $0x98] sm:$0xff]
        %v2055 = vld [vmem:[#allocation8 + $0xa0] sm:$0xff]
        %v2056 = vld [vmem:[#allocation8 + $0xa8] sm:$0xff]
        %v2057 = vld [vmem:[#allocation8 + $0xb0] sm:$0xff]
        %v2058 = vld [vmem:[#allocation8 + $0xb8] sm:$0xff]
        %v2059 = vld [vmem:[#allocation8 + $0xc0] sm:$0xff]
        %v2060 = vld [vmem:[#allocation8 + $0xc8] sm:$0xff]
        %v2061 = vld [vmem:[#allocation8 + $0xd0] sm:$0xff]
        %v2062 = vld [vmem:[#allocation8 + $0xd8] sm:$0xff]
        %v2063 = vld [vmem:[#allocation8 + $0xe0] sm:$0xff]
        %v2064 = vld [vmem:[#allocation8 + $0xe8] sm:$0xff]
        %v2065 = vld [vmem:[#allocation8 + $0xf0] sm:$0xff]
        %v2066 = vld [vmem:[#allocation8 + $0xf8] sm:$0xff]
        %v2067 = vld [vmem:[#allocation8 + $0x100] sm:$0xff]
        %v2068 = vld [vmem:[#allocation8 + $0x108] sm:$0xff]
        %v2069 = vld [vmem:[#allocation8 + $0x110] sm:$0xff]
        %v2070 = vld [vmem:[#allocation8 + $0x118] sm:$0xff]
        %v2071 = vld [vmem:[#allocation8 + $0x120] sm:$0xff]
        %v2072 = vld [vmem:[#allocation8 + $0x128] sm:$0xff]
        %v2073 = vld [vmem:[#allocation8 + $0x130] sm:$0xff]
        %v2074 = vld [vmem:[#allocation8 + $0x138] sm:$0xff]
        %v2075 = vld [vmem:[#allocation8 + $0x140] sm:$0xff]
        %v2076 = vld [vmem:[#allocation8 + $0x148] sm:$0xff]
        %v2077 = vld [vmem:[#allocation8 + $0x150] sm:$0xff]
        %v2078 = vld [vmem:[#allocation8 + $0x158] sm:$0xff]
        %v2079 = vld [vmem:[#allocation8 + $0x160] sm:$0xff]
        %v2080 = vld [vmem:[#allocation8 + $0x168] sm:$0xff]
        %v2081 = vld [vmem:[#allocation8 + $0x170] sm:$0xff]
        %v2082 = vld [vmem:[#allocation8 + $0x178] sm:$0xff]
        %v2083 = vld [vmem:[#allocation8 + $0x180] sm:$0xff]
        %v2084 = vld [vmem:[#allocation8 + $0x188] sm:$0xff]
        %v2085 = vld [vmem:[#allocation8 + $0x190] sm:$0xff]
        %v2086 = vld [vmem:[#allocation8 + $0x198] sm:$0xff]
        %v2087 = vld [vmem:[#allocation8 + $0x1a0] sm:$0xff]
        %v2088 = vld [vmem:[#allocation8 + $0x1a8] sm:$0xff]
        %v2089 = vld [vmem:[#allocation8 + $0x1b0] sm:$0xff]
        %v2090 = vld [vmem:[#allocation8 + $0x1b8] sm:$0xff]
        %v2091 = vld [vmem:[#allocation8 + $0x1c0] sm:$0xff]
        %v2092 = vld [vmem:[#allocation8 + $0x1c8] sm:$0xff]
        %v2093 = vld [vmem:[#allocation8 + $0x1d0] sm:$0xff]
        %v2094 = vld [vmem:[#allocation8 + $0x1d8] sm:$0xff]
        %v2095 = vld [vmem:[#allocation8 + $0x1e0] sm:$0xff]
        %v2096 = vld [vmem:[#allocation8 + $0x1e8] sm:$0xff]
        %v2097 = vld [vmem:[#allocation8 + $0x1f0] sm:$0xff]
        %v2098 = vld [vmem:[#allocation8 + $0x1f8] sm:$0xff]
        %v2099 = vld [vmem:[#allocation8 + $0x200] sm:$0xff]
        %v2100 = vld [vmem:[#allocation8 + $0x208] sm:$0xff]
        %v2101 = vld [vmem:[#allocation8 + $0x210] sm:$0xff]
        %v2102 = vld [vmem:[#allocation8 + $0x218] sm:$0xff]
        %v2103 = vld [vmem:[#allocation8 + $0x220] sm:$0xff]
        %v2104 = vld [vmem:[#allocation8 + $0x228] sm:$0xff]
        %v2105 = vld [vmem:[#allocation8 + $0x230] sm:$0xff]
        %v2106 = vld [vmem:[#allocation8 + $0x238] sm:$0xff]
        %v2107 = vld [vmem:[#allocation8 + $0x240] sm:$0xff]
        %v2108 = vld [vmem:[#allocation8 + $0x248] sm:$0xff]
        %v2109 = vld [vmem:[#allocation8 + $0x250] sm:$0xff]
        %v2110 = vld [vmem:[#allocation8 + $0x258] sm:$0xff]
        %v2111 = vld [vmem:[#allocation8 + $0x260] sm:$0xff]
        %v2112 = vld [vmem:[#allocation8 + $0x268] sm:$0xff]
        %v2113 = vld [vmem:[#allocation8 + $0x270] sm:$0xff]
        %v2114 = vld [vmem:[#allocation8 + $0x278] sm:$0xff]
        %v2115 = vld [vmem:[#allocation8 + $0x280] sm:$0xff]
        %v2116 = vld [vmem:[#allocation8 + $0x288] sm:$0xff]
        %v2117 = vld [vmem:[#allocation8 + $0x290] sm:$0xff]
        %v2118 = vld [vmem:[#allocation8 + $0x298] sm:$0xff]
        %v2119 = vld [vmem:[#allocation8 + $0x2a0] sm:$0xff]
        %v2120 = vld [vmem:[#allocation8 + $0x2a8] sm:$0xff]
        %v2121 = vld [vmem:[#allocation8 + $0x2b0] sm:$0xff]
        %v2122 = vld [vmem:[#allocation8 + $0x2b8] sm:$0xff]
        %v2123 = vld [vmem:[#allocation8 + $0x2c0] sm:$0xff]
        %v2124 = vld [vmem:[#allocation8 + $0x2c8] sm:$0xff]
        %v2125 = vld [vmem:[#allocation8 + $0x2d0] sm:$0xff]
        %v2126 = vld [vmem:[#allocation8 + $0x2d8] sm:$0xff]
        %v2127 = vld [vmem:[#allocation8 + $0x2e0] sm:$0xff]
        %v2128 = vld [vmem:[#allocation8 + $0x2e8] sm:$0xff]
        %v2129 = vld [vmem:[#allocation8 + $0x2f0] sm:$0xff]
        %v2130 = vld [vmem:[#allocation8 + $0x2f8] sm:$0xff]
        %v2131 = vld [vmem:[#allocation8 + $0x300] sm:$0xff]
        %v2132 = vld [vmem:[#allocation8 + $0x308] sm:$0xff]
        %v2133 = vld [vmem:[#allocation8 + $0x310] sm:$0xff]
        %v2134 = vld [vmem:[#allocation8 + $0x318] sm:$0xff]
        %v2135 = vld [vmem:[#allocation8 + $0x320] sm:$0xff]
        %v2136 = vld [vmem:[#allocation8 + $0x328] sm:$0xff]
        %v2137 = vld [vmem:[#allocation8 + $0x330] sm:$0xff]
        %v2138 = vld [vmem:[#allocation8 + $0x338] sm:$0xff]
        %v2139 = vld [vmem:[#allocation8 + $0x340] sm:$0xff]
        %v2140 = vld [vmem:[#allocation8 + $0x348] sm:$0xff]
        %v2141 = vld [vmem:[#allocation8 + $0x350] sm:$0xff]
        %v2142 = vld [vmem:[#allocation8 + $0x358] sm:$0xff]
        %v2143 = vld [vmem:[#allocation8 + $0x360] sm:$0xff]
        %v2144 = vld [vmem:[#allocation8 + $0x368] sm:$0xff]
        %v2145 = vld [vmem:[#allocation8 + $0x370] sm:$0xff]
        %v2146 = vld [vmem:[#allocation8 + $0x378] sm:$0xff]
        %v2147 = vld [vmem:[#allocation8 + $0x380] sm:$0xff]
        %v2148 = vld [vmem:[#allocation8 + $0x388] sm:$0xff]
        %v2149 = vld [vmem:[#allocation8 + $0x390] sm:$0xff]
        %v2150 = vld [vmem:[#allocation8 + $0x398] sm:$0xff]
        %v2151 = vld [vmem:[#allocation8 + $0x3a0] sm:$0xff]
        %v2152 = vld [vmem:[#allocation8 + $0x3a8] sm:$0xff]
        %v2153 = vld [vmem:[#allocation8 + $0x3b0] sm:$0xff]
        %v2154 = vld [vmem:[#allocation8 + $0x3b8] sm:$0xff]
        %v2155 = vld [vmem:[#allocation8 + $0x3c0] sm:$0xff]
        %v2156 = vld [vmem:[#allocation8 + $0x3c8] sm:$0xff]
        %v2157 = vld [vmem:[#allocation8 + $0x3d0] sm:$0xff]
        %v2158 = vld [vmem:[#allocation8 + $0x3d8] sm:$0xff]
        %v2159 = vld [vmem:[#allocation8 + $0x3e0] sm:$0xff]
        %v2160 = vld [vmem:[#allocation8 + $0x3e8] sm:$0xff]
        %v2161 = vld [vmem:[#allocation8 + $0x3f0] sm:$0xff]
        %v2162 = vld [vmem:[#allocation8 + $0x3f8] sm:$0xff]
        %v2163 = vld [vmem:[#allocation8 + $0x400] sm:$0xff]
        %v2164 = vld [vmem:[#allocation8 + $0x408] sm:$0xff]
        %v2165 = vld [vmem:[#allocation8 + $0x410] sm:$0xff]
        %v2166 = vld [vmem:[#allocation8 + $0x418] sm:$0xff]
        %v2167 = vld [vmem:[#allocation8 + $0x420] sm:$0xff]
        %v2168 = vld [vmem:[#allocation8 + $0x428] sm:$0xff]
        %v2169 = vld [vmem:[#allocation8 + $0x430] sm:$0xff]
        %v2170 = vld [vmem:[#allocation8 + $0x438] sm:$0xff]
        %v2171 = vld [vmem:[#allocation8 + $0x440] sm:$0xff]
        %v2172 = vld [vmem:[#allocation8 + $0x448] sm:$0xff]
        %v2173 = vld [vmem:[#allocation8 + $0x450] sm:$0xff]
        %v2174 = vld [vmem:[#allocation8 + $0x458] sm:$0xff]
        %v2175 = vld [vmem:[#allocation8 + $0x460] sm:$0xff]
        %v2176 = vld [vmem:[#allocation8 + $0x468] sm:$0xff]
        %v2177 = vld [vmem:[#allocation8 + $0x470] sm:$0xff]
        %v2178 = vld [vmem:[#allocation8 + $0x478] sm:$0xff]
        %v2179 = vld [vmem:[#allocation8 + $0x480] sm:$0xff]
        %v2180 = vld [vmem:[#allocation8 + $0x488] sm:$0xff]
        %v2181 = vld [vmem:[#allocation8 + $0x490] sm:$0xff]
        %v2182 = vld [vmem:[#allocation8 + $0x498] sm:$0xff]
        %v2183 = vld [vmem:[#allocation8 + $0x4a0] sm:$0xff]
        %v2184 = vld [vmem:[#allocation8 + $0x4a8] sm:$0xff]
        %v2185 = vld [vmem:[#allocation8 + $0x4b0] sm:$0xff]
        %v2186 = vld [vmem:[#allocation8 + $0x4b8] sm:$0xff]
        %v2187 = vld [vmem:[#allocation8 + $0x4c0] sm:$0xff]
        %v2188 = vld [vmem:[#allocation8 + $0x4c8] sm:$0xff]
        %v2189 = vld [vmem:[#allocation8 + $0x4d0] sm:$0xff]
        %v2190 = vld [vmem:[#allocation8 + $0x4d8] sm:$0xff]
        %v2191 = vld [vmem:[#allocation8 + $0x4e0] sm:$0xff]
        %v2192 = vld [vmem:[#allocation8 + $0x4e8] sm:$0xff]
        %v2193 = vld [vmem:[#allocation8 + $0x4f0] sm:$0xff]
        %v2194 = vld [vmem:[#allocation8 + $0x4f8] sm:$0xff]
        %v2195 = vld [vmem:[#allocation8 + $0x500] sm:$0xff]
        %v2196 = vld [vmem:[#allocation8 + $0x508] sm:$0xff]
        %v2197 = vld [vmem:[#allocation8 + $0x510] sm:$0xff]
        %v2198 = vld [vmem:[#allocation8 + $0x518] sm:$0xff]
        %v2199 = vld [vmem:[#allocation8 + $0x520] sm:$0xff]
        %v2200 = vld [vmem:[#allocation8 + $0x528] sm:$0xff]
        %v2201 = vld [vmem:[#allocation8 + $0x530] sm:$0xff]
        %v2202 = vld [vmem:[#allocation8 + $0x538] sm:$0xff]
        %v2203 = vld [vmem:[#allocation8 + $0x540] sm:$0xff]
        %v2204 = vld [vmem:[#allocation8 + $0x548] sm:$0xff]
        %v2205 = vld [vmem:[#allocation8 + $0x550] sm:$0xff]
        %v2206 = vld [vmem:[#allocation8 + $0x558] sm:$0xff]
        %v2207 = vld [vmem:[#allocation8 + $0x560] sm:$0xff]
        %v2208 = vld [vmem:[#allocation8 + $0x568] sm:$0xff]
        %v2209 = vld [vmem:[#allocation8 + $0x570] sm:$0xff]
        %v2210 = vld [vmem:[#allocation8 + $0x578] sm:$0xff]
        %v2211 = vld [vmem:[#allocation8 + $0x580] sm:$0xff]
        %v2212 = vld [vmem:[#allocation8 + $0x588] sm:$0xff]
        %v2213 = vld [vmem:[#allocation8 + $0x590] sm:$0xff]
        %v2214 = vld [vmem:[#allocation8 + $0x598] sm:$0xff]
        %v2215 = vld [vmem:[#allocation8 + $0x5a0] sm:$0xff]
        %v2216 = vld [vmem:[#allocation8 + $0x5a8] sm:$0xff]
        %v2217 = vld [vmem:[#allocation8 + $0x5b0] sm:$0xff]
        %v2218 = vld [vmem:[#allocation8 + $0x5b8] sm:$0xff]
        %v2219 = vld [vmem:[#allocation8 + $0x5c0] sm:$0xff]
        %v2220 = vld [vmem:[#allocation8 + $0x5c8] sm:$0xff]
        %v2221 = vld [vmem:[#allocation8 + $0x5d0] sm:$0xff]
        %v2222 = vld [vmem:[#allocation8 + $0x5d8] sm:$0xff]
        %v2223 = vld [vmem:[#allocation8 + $0x5e0] sm:$0xff]
        %v2224 = vld [vmem:[#allocation8 + $0x5e8] sm:$0xff]
        %v2225 = vld [vmem:[#allocation8 + $0x5f0] sm:$0xff]
        %v2226 = vld [vmem:[#allocation8 + $0x5f8] sm:$0xff]
        %v2227 = vld [vmem:[#allocation8 + $0x600] sm:$0xff]
        %v2228 = vld [vmem:[#allocation8 + $0x608] sm:$0xff]
        %v2229 = vld [vmem:[#allocation8 + $0x610] sm:$0xff]
        %v2230 = vld [vmem:[#allocation8 + $0x618] sm:$0xff]
        %v2231 = vld [vmem:[#allocation8 + $0x620] sm:$0xff]
        %v2232 = vld [vmem:[#allocation8 + $0x628] sm:$0xff]
        %v2233 = vld [vmem:[#allocation8 + $0x630] sm:$0xff]
        %v2234 = vld [vmem:[#allocation8 + $0x638] sm:$0xff]
        %v2235 = vld [vmem:[#allocation8 + $0x640] sm:$0xff]
        %v2236 = vld [vmem:[#allocation8 + $0x648] sm:$0xff]
        %v2237 = vld [vmem:[#allocation8 + $0x650] sm:$0xff]
        %v2238 = vld [vmem:[#allocation8 + $0x658] sm:$0xff]
        %v2239 = vld [vmem:[#allocation8 + $0x660] sm:$0xff]
        %v2240 = vld [vmem:[#allocation8 + $0x668] sm:$0xff]
        %v2241 = vld [vmem:[#allocation8 + $0x670] sm:$0xff]
        %v2242 = vld [vmem:[#allocation8 + $0x678] sm:$0xff]
        %v2243 = vld [vmem:[#allocation8 + $0x680] sm:$0xff]
        %v2244 = vld [vmem:[#allocation8 + $0x688] sm:$0xff]
        %v2245 = vld [vmem:[#allocation8 + $0x690] sm:$0xff]
        %v2246 = vld [vmem:[#allocation8 + $0x698] sm:$0xff]
        %v2247 = vld [vmem:[#allocation8 + $0x6a0] sm:$0xff]
        %v2248 = vld [vmem:[#allocation8 + $0x6a8] sm:$0xff]
        %v2249 = vld [vmem:[#allocation8 + $0x6b0] sm:$0xff]
        %v2250 = vld [vmem:[#allocation8 + $0x6b8] sm:$0xff]
        %v2251 = vld [vmem:[#allocation8 + $0x6c0] sm:$0xff]
        %v2252 = vld [vmem:[#allocation8 + $0x6c8] sm:$0xff]
        %v2253 = vld [vmem:[#allocation8 + $0x6d0] sm:$0xff]
        %v2254 = vld [vmem:[#allocation8 + $0x6d8] sm:$0xff]
        %v2255 = vld [vmem:[#allocation8 + $0x6e0] sm:$0xff]
        %v2256 = vld [vmem:[#allocation8 + $0x6e8] sm:$0xff]
        %v2257 = vld [vmem:[#allocation8 + $0x6f0] sm:$0xff]
        %v2258 = vld [vmem:[#allocation8 + $0x6f8] sm:$0xff]
        %v2259 = vld [vmem:[#allocation8 + $0x700] sm:$0xff]
        %v2260 = vld [vmem:[#allocation8 + $0x708] sm:$0xff]
        %v2261 = vld [vmem:[#allocation8 + $0x710] sm:$0xff]
        %v2262 = vld [vmem:[#allocation8 + $0x718] sm:$0xff]
        %v2263 = vld [vmem:[#allocation8 + $0x720] sm:$0xff]
        %v2264 = vld [vmem:[#allocation8 + $0x728] sm:$0xff]
        %v2265 = vld [vmem:[#allocation8 + $0x730] sm:$0xff]
        %v2266 = vld [vmem:[#allocation8 + $0x738] sm:$0xff]
        %v2267 = vld [vmem:[#allocation8 + $0x740] sm:$0xff]
        %v2268 = vld [vmem:[#allocation8 + $0x748] sm:$0xff]
        %v2269 = vld [vmem:[#allocation8 + $0x750] sm:$0xff]
        %v2270 = vld [vmem:[#allocation8 + $0x758] sm:$0xff]
        %v2271 = vld [vmem:[#allocation8 + $0x760] sm:$0xff]
        %v2272 = vld [vmem:[#allocation8 + $0x768] sm:$0xff]
        %v2273 = vld [vmem:[#allocation8 + $0x770] sm:$0xff]
        %v2274 = vld [vmem:[#allocation8 + $0x778] sm:$0xff]
        %v2275 = vld [vmem:[#allocation8 + $0x780] sm:$0xff]
        %v2276 = vld [vmem:[#allocation8 + $0x788] sm:$0xff]
        %v2277 = vld [vmem:[#allocation8 + $0x790] sm:$0xff]
        %v2278 = vld [vmem:[#allocation8 + $0x798] sm:$0xff]
        %v2279 = vld [vmem:[#allocation8 + $0x7a0] sm:$0xff]
        %v2280 = vld [vmem:[#allocation8 + $0x7a8] sm:$0xff]
        %v2281 = vld [vmem:[#allocation8 + $0x7b0] sm:$0xff]
        %v2282 = vld [vmem:[#allocation8 + $0x7b8] sm:$0xff]
        %v2283 = vld [vmem:[#allocation8 + $0x7c0] sm:$0xff]
        %v2284 = vld [vmem:[#allocation8 + $0x7c8] sm:$0xff]
        %v2285 = vld [vmem:[#allocation8 + $0x7d0] sm:$0xff]
        %v2286 = vld [vmem:[#allocation8 + $0x7d8] sm:$0xff]
        %v2287 = vld [vmem:[#allocation8 + $0x7e0] sm:$0xff]
        %v2288 = vld [vmem:[#allocation8 + $0x7e8] sm:$0xff]
        %v2289 = vld [vmem:[#allocation8 + $0x7f0] sm:$0xff]
        %v2290 = vld [vmem:[#allocation8 + $0x7f8] sm:$0xff]
        %v2291 = vld [vmem:[#allocation10] sm:$0x1]
        %v2293 = vlaneseq
        %v2294 = vshrl.u32 %v2293, 7
        %v2295 = vsub.s32 0, %v2294
        %v2296 = vrot.slane %v2291, %v2295
        %v2302 = vcombine.high %v2031, %v2031
        %v2304 = vunpack.c.l.s4 1983009808
        %v2305 = vunpack.c.0.s8 %v2304
        %v2306 = vlaneseq
        %v2307 = vshrl.u32 %v2306, 7
        %v2308 = vsub.s32 %v2305, %v2307
        %v2309 = vrot.slane %v2031, %v2308
        %v2311 = vunpack.c.l.s4 1983009808
        %v2312 = vunpack.c.0.s8 %v2311
        %v2313 = vlaneseq
        %v2314 = vshrl.u32 %v2313, 7
        %v2315 = vsub.s32 %v2312, %v2314
        %v2316 = vrot.slane %v2302, %v2315
        %v2317 = vcombine.high %v2309, %v2309
        %v2318 = vcombine.high %v2316, %v2316
        %v2319 = vcombine.high %v2032, %v2032
        %v2321 = vunpack.c.l.s4 1983009808
        %v2322 = vunpack.c.0.s8 %v2321
        %v2323 = vlaneseq
        %v2324 = vshrl.u32 %v2323, 7
        %v2325 = vsub.s32 %v2322, %v2324
        %v2326 = vrot.slane %v2032, %v2325
        %v2328 = vunpack.c.l.s4 1983009808
        %v2329 = vunpack.c.0.s8 %v2328
        %v2330 = vlaneseq
        %v2331 = vshrl.u32 %v2330, 7
        %v2332 = vsub.s32 %v2329, %v2331
        %v2333 = vrot.slane %v2319, %v2332
        %v2334 = vcombine.high %v2326, %v2326
        %v2335 = vcombine.high %v2333, %v2333
        %v2336 = vcombine.high %v2033, %v2033
        %v2338 = vunpack.c.l.s4 1983009808
        %v2339 = vunpack.c.0.s8 %v2338
        %v2340 = vlaneseq
        %v2341 = vshrl.u32 %v2340, 7
        %v2342 = vsub.s32 %v2339, %v2341
        %v2343 = vrot.slane %v2033, %v2342
        %v2345 = vunpack.c.l.s4 1983009808
        %v2346 = vunpack.c.0.s8 %v2345
        %v2347 = vlaneseq
        %v2348 = vshrl.u32 %v2347, 7
        %v2349 = vsub.s32 %v2346, %v2348
        %v2350 = vrot.slane %v2336, %v2349
        %v2351 = vcombine.high %v2343, %v2343
        %v2352 = vcombine.high %v2350, %v2350
        %v2353 = vcombine.high %v2034, %v2034
        %v2355 = vunpack.c.l.s4 1983009808
        %v2356 = vunpack.c.0.s8 %v2355
        %v2357 = vlaneseq
        %v2358 = vshrl.u32 %v2357, 7
        %v2359 = vsub.s32 %v2356, %v2358
        %v2360 = vrot.slane %v2034, %v2359
        %v2362 = vunpack.c.l.s4 1983009808
        %v2363 = vunpack.c.0.s8 %v2362
        %v2364 = vlaneseq
        %v2365 = vshrl.u32 %v2364, 7
        %v2366 = vsub.s32 %v2363, %v2365
        %v2367 = vrot.slane %v2353, %v2366
        %v2368 = vcombine.high %v2360, %v2360
        %v2369 = vcombine.high %v2367, %v2367
        %2386 = vmatprep.subr.mxu0 0.0
        %2387 = vmatpush1.msra.mxu0 %v2035
        %2388 = vmatprep.subr.mxu0 0.0
        %2389 = vmatpush1.msra.mxu0 %v2036
        %2390 = vmatprep.subr.mxu0 0.0
        %2391 = vmatpush1.msra.mxu0 %v2037
        %2392 = vmatprep.subr.mxu0 0.0
        %2393 = vmatpush1.msra.mxu0 %v2038
        %2394 = vmatprep.subr.mxu0 0.0
        %2395 = vmatpush1.msra.mxu0 %v2039
        %2396 = vmatprep.subr.mxu0 0.0
        %2397 = vmatpush1.msra.mxu0 %v2040
        %2398 = vmatprep.subr.mxu0 0.0
        %2399 = vmatpush1.msra.mxu0 %v2041
        %2400 = vmatprep.subr.mxu0 0.0
        %2401 = vmatpush1.msra.mxu0 %v2042
        %2402 = vmatprep.subr.mxu0 0.0
        %2403 = vmatpush1.msra.mxu0 %v2043
        %2404 = vmatprep.subr.mxu0 0.0
        %2405 = vmatpush1.msra.mxu0 %v2044
        %2406 = vmatprep.subr.mxu0 0.0
        %2407 = vmatpush1.msra.mxu0 %v2045
        %2408 = vmatprep.subr.mxu0 0.0
        %2409 = vmatpush1.msra.mxu0 %v2046
        %2410 = vmatprep.subr.mxu0 0.0
        %2411 = vmatpush1.msra.mxu0 %v2047
        %2412 = vmatprep.subr.mxu0 0.0
        %2413 = vmatpush1.msra.mxu0 %v2048
        %2414 = vmatprep.subr.mxu0 0.0
        %2415 = vmatpush1.msra.mxu0 %v2049
        %2416 = vmatprep.subr.mxu0 0.0
        %2417 = vmatpush1.msra.mxu0 %v2050
        %2418 = vmatprep.subr.mxu0 0.0
        %2419 = vmatpush1.msra.mxu0 %v2051
        %2420 = vmatprep.subr.mxu0 0.0
        %2421 = vmatpush1.msra.mxu0 %v2052
        %2422 = vmatprep.subr.mxu0 0.0
        %2423 = vmatpush1.msra.mxu0 %v2053
        %2424 = vmatprep.subr.mxu0 0.0
        %2425 = vmatpush1.msra.mxu0 %v2054
        %2426 = vmatprep.subr.mxu0 0.0
        %2427 = vmatpush1.msra.mxu0 %v2055
        %2428 = vmatprep.subr.mxu0 0.0
        %2429 = vmatpush1.msra.mxu0 %v2056
        %2430 = vmatprep.subr.mxu0 0.0
        %2431 = vmatpush1.msra.mxu0 %v2057
        %2432 = vmatprep.subr.mxu0 0.0
        %2433 = vmatpush1.msra.mxu0 %v2058
        %2434 = vmatprep.subr.mxu0 0.0
        %2435 = vmatpush1.msra.mxu0 %v2059
        %2436 = vmatprep.subr.mxu0 0.0
        %2437 = vmatpush1.msra.mxu0 %v2060
        %2438 = vmatprep.subr.mxu0 0.0
        %2439 = vmatpush1.msra.mxu0 %v2061
        %2440 = vmatprep.subr.mxu0 0.0
        %2441 = vmatpush1.msra.mxu0 %v2062
        %2442 = vmatprep.subr.mxu0 0.0
        %2443 = vmatpush1.msra.mxu0 %v2063
        %2444 = vmatprep.subr.mxu0 0.0
        %2445 = vmatpush1.msra.mxu0 %v2064
        %2446 = vmatprep.subr.mxu0 0.0
        %2447 = vmatpush1.msra.mxu0 %v2065
        %2448 = vmatprep.subr.mxu0 0.0
        %2449 = vmatpush1.msra.mxu0 %v2066
        %2450 = vmatprep.mubr.f32.mxu0 %v2317
        %2451 = vmatmul.mubr.f32.gmra.mrb[0].mxu0 %v2309
        %v2452 = vpop.f32.mrb[0].mxu0
        %v2453 = vadd.f32 %v2296, %v2452
        %v2454 = vpop.f32.mrb[0].mxu0
        %2455 = vdwg.mxu0
        %2456 = vmatprep.subr.mxu0 0.0
        %2457 = vmatpush1.msra.mxu0 %v2067
        %2458 = vmatprep.subr.mxu0 0.0
        %2459 = vmatpush1.msra.mxu0 %v2068
        %2460 = vmatprep.subr.mxu0 0.0
        %2461 = vmatpush1.msra.mxu0 %v2069
        %2462 = vmatprep.subr.mxu0 0.0
        %2463 = vmatpush1.msra.mxu0 %v2070
        %2464 = vmatprep.subr.mxu0 0.0
        %2465 = vmatpush1.msra.mxu0 %v2071
        %2466 = vmatprep.subr.mxu0 0.0
        %2467 = vmatpush1.msra.mxu0 %v2072
        %2468 = vmatprep.subr.mxu0 0.0
        %2469 = vmatpush1.msra.mxu0 %v2073
        %2470 = vmatprep.subr.mxu0 0.0
        %2471 = vmatpush1.msra.mxu0 %v2074
        %2472 = vmatprep.subr.mxu0 0.0
        %2473 = vmatpush1.msra.mxu0 %v2075
        %2474 = vmatprep.subr.mxu0 0.0
        %2475 = vmatpush1.msra.mxu0 %v2076
        %2476 = vmatprep.subr.mxu0 0.0
        %2477 = vmatpush1.msra.mxu0 %v2077
        %2478 = vmatprep.subr.mxu0 0.0
        %2479 = vmatpush1.msra.mxu0 %v2078
        %2480 = vmatprep.subr.mxu0 0.0
        %2481 = vmatpush1.msra.mxu0 %v2079
        %2482 = vmatprep.subr.mxu0 0.0
        %2483 = vmatpush1.msra.mxu0 %v2080
        %2484 = vmatprep.subr.mxu0 0.0
        %2485 = vmatpush1.msra.mxu0 %v2081
        %2486 = vmatprep.subr.mxu0 0.0
        %2487 = vmatpush1.msra.mxu0 %v2082
        %2488 = vmatprep.subr.mxu0 0.0
        %2489 = vmatpush1.msra.mxu0 %v2083
        %2490 = vmatprep.subr.mxu0 0.0
        %2491 = vmatpush1.msra.mxu0 %v2084
        %2492 = vmatprep.subr.mxu0 0.0
        %2493 = vmatpush1.msra.mxu0 %v2085
        %2494 = vmatprep.subr.mxu0 0.0
        %2495 = vmatpush1.msra.mxu0 %v2086
        %2496 = vmatprep.subr.mxu0 0.0
        %2497 = vmatpush1.msra.mxu0 %v2087
        %2498 = vmatprep.subr.mxu0 0.0
        %2499 = vmatpush1.msra.mxu0 %v2088
        %2500 = vmatprep.subr.mxu0 0.0
        %2501 = vmatpush1.msra.mxu0 %v2089
        %2502 = vmatprep.subr.mxu0 0.0
        %2503 = vmatpush1.msra.mxu0 %v2090
        %2504 = vmatprep.subr.mxu0 0.0
        %2505 = vmatpush1.msra.mxu0 %v2091
        %2506 = vmatprep.subr.mxu0 0.0
        %2507 = vmatpush1.msra.mxu0 %v2092
        %2508 = vmatprep.subr.mxu0 0.0
        %2509 = vmatpush1.msra.mxu0 %v2093
        %2510 = vmatprep.subr.mxu0 0.0
        %2511 = vmatpush1.msra.mxu0 %v2094
        %2512 = vmatprep.subr.mxu0 0.0
        %2513 = vmatpush1.msra.mxu0 %v2095
        %2514 = vmatprep.subr.mxu0 0.0
        %2515 = vmatpush1.msra.mxu0 %v2096
        %2516 = vmatprep.subr.mxu0 0.0
        %2517 = vmatpush1.msra.mxu0 %v2097
        %2518 = vmatprep.subr.mxu0 0.0
        %2519 = vmatpush1.msra.mxu0 %v2098
        %2520 = vmatprep.mubr.f32.mxu0 %v2318
        %2521 = vmatmul.mubr.f32.gmra.mrb[0].mxu0 %v2316
        %v2522 = vpop.f32.mrb[0].mxu0
        %v2523 = vadd.f32 %v2453, %v2522
        %v2524 = vpop.f32.mrb[0].mxu0
        %2525 = vdwg.mxu0
        %2526 = vmatprep.subr.mxu0 0.0
        %2527 = vmatpush1.msra.mxu0 %v2099
        %2528 = vmatprep.subr.mxu0 0.0
        %2529 = vmatpush1.msra.mxu0 %v2100
        %2530 = vmatprep.subr.mxu0 0.0
        %2531 = vmatpush1.msra.mxu0 %v2101
        %2532 = vmatprep.subr.mxu0 0.0
        %2533 = vmatpush1.msra.mxu0 %v2102
        %2534 = vmatprep.subr.mxu0 0.0
        %2535 = vmatpush1.msra.mxu0 %v2103
        %2536 = vmatprep.subr.mxu0 0.0
        %2537 = vmatpush1.msra.mxu0 %v2104
        %2538 = vmatprep.subr.mxu0 0.0
        %2539 = vmatpush1.msra.mxu0 %v2105
        %2540 = vmatprep.subr.mxu0 0.0
        %2541 = vmatpush1.msra.mxu0 %v2106
        %2542 = vmatprep.subr.mxu0 0.0
        %2543 = vmatpush1.msra.mxu0 %v2107
        %2544 = vmatprep.subr.mxu0 0.0
        %2545 = vmatpush1.msra.mxu0 %v2108
        %2546 = vmatprep.subr.mxu0 0.0
        %2547 = vmatpush1.msra.mxu0 %v2109
        %2548 = vmatprep.subr.mxu0 0.0
        %2549 = vmatpush1.msra.mxu0 %v2110
        %2550 = vmatprep.subr.mxu0 0.0
        %2551 = vmatpush1.msra.mxu0 %v2111
        %2552 = vmatprep.subr.mxu0 0.0
        %2553 = vmatpush1.msra.mxu0 %v2112
        %2554 = vmatprep.subr.mxu0 0.0
        %2555 = vmatpush1.msra.mxu0 %v2113
        %2556 = vmatprep.subr.mxu0 0.0
        %2557 = vmatpush1.msra.mxu0 %v2114
        %2558 = vmatprep.subr.mxu0 0.0
        %2559 = vmatpush1.msra.mxu0 %v2115
        %2560 = vmatprep.subr.mxu0 0.0
        %2561 = vmatpush1.msra.mxu0 %v2116
        %2562 = vmatprep.subr.mxu0 0.0
        %2563 = vmatpush1.msra.mxu0 %v2117
        %2564 = vmatprep.subr.mxu0 0.0
        %2565 = vmatpush1.msra.mxu0 %v2118
        %2566 = vmatprep.subr.mxu0 0.0
        %2567 = vmatpush1.msra.mxu0 %v2119
        %2568 = vmatprep.subr.mxu0 0.0
        %2569 = vmatpush1.msra.mxu0 %v2120
        %2570 = vmatprep.subr.mxu0 0.0
        %2571 = vmatpush1.msra.mxu0 %v2121
        %2572 = vmatprep.subr.mxu0 0.0
        %2573 = vmatpush1.msra.mxu0 %v2122
        %2574 = vmatprep.subr.mxu0 0.0
        %2575 = vmatpush1.msra.mxu0 %v2123
        %2576 = vmatprep.subr.mxu0 0.0
        %2577 = vmatpush1.msra.mxu0 %v2124
        %2578 = vmatprep.subr.mxu0 0.0
        %2579 = vmatpush1.msra.mxu0 %v2125
        %2580 = vmatprep.subr.mxu0 0.0
        %2581 = vmatpush1.msra.mxu0 %v2126
        %2582 = vmatprep.subr.mxu0 0.0
        %2583 = vmatpush1.msra.mxu0 %v2127
        %2584 = vmatprep.subr.mxu0 0.0
        %2585 = vmatpush1.msra.mxu0 %v2128
        %2586 = vmatprep.subr.mxu0 0.0
        %2587 = vmatpush1.msra.mxu0 %v2129
        %2588 = vmatprep.subr.mxu0 0.0
        %2589 = vmatpush1.msra.mxu0 %v2130
        %2590 = vmatprep.mubr.f32.mxu0 %v2334
        %2591 = vmatmul.mubr.f32.gmra.mrb[0].mxu0 %v2326
        %v2592 = vpop.f32.mrb[0].mxu0
        %v2593 = vadd.f32 %v2523, %v2592
        %v2594 = vpop.f32.mrb[0].mxu0
        %2595 = vdwg.mxu0
        %2596 = vmatprep.subr.mxu0 0.0
        %2597 = vmatpush1.msra.mxu0 %v2131
        %2598 = vmatprep.subr.mxu0 0.0
        %2599 = vmatpush1.msra.mxu0 %v2132
        %2600 = vmatprep.subr.mxu0 0.0
        %2601 = vmatpush1.msra.mxu0 %v2133
        %2602 = vmatprep.subr.mxu0 0.0
        %2603 = vmatpush1.msra.mxu0 %v2134
        %2604 = vmatprep.subr.mxu0 0.0
        %2605 = vmatpush1.msra.mxu0 %v2135
        %2606 = vmatprep.subr.mxu0 0.0
        %2607 = vmatpush1.msra.mxu0 %v2136
        %2608 = vmatprep.subr.mxu0 0.0
        %2609 = vmatpush1.msra.mxu0 %v2137
        %2610 = vmatprep.subr.mxu0 0.0
        %2611 = vmatpush1.msra.mxu0 %v2138
        %2612 = vmatprep.subr.mxu0 0.0
        %2613 = vmatpush1.msra.mxu0 %v2139
        %2614 = vmatprep.subr.mxu0 0.0
        %2615 = vmatpush1.msra.mxu0 %v2140
        %2616 = vmatprep.subr.mxu0 0.0
        %2617 = vmatpush1.msra.mxu0 %v2141
        %2618 = vmatprep.subr.mxu0 0.0
        %2619 = vmatpush1.msra.mxu0 %v2142
        %2620 = vmatprep.subr.mxu0 0.0
        %2621 = vmatpush1.msra.mxu0 %v2143
        %2622 = vmatprep.subr.mxu0 0.0
        %2623 = vmatpush1.msra.mxu0 %v2144
        %2624 = vmatprep.subr.mxu0 0.0
        %2625 = vmatpush1.msra.mxu0 %v2145
        %2626 = vmatprep.subr.mxu0 0.0
        %2627 = vmatpush1.msra.mxu0 %v2146
        %2628 = vmatprep.subr.mxu0 0.0
        %2629 = vmatpush1.msra.mxu0 %v2147
        %2630 = vmatprep.subr.mxu0 0.0
        %2631 = vmatpush1.msra.mxu0 %v2148
        %2632 = vmatprep.subr.mxu0 0.0
        %2633 = vmatpush1.msra.mxu0 %v2149
        %2634 = vmatprep.subr.mxu0 0.0
        %2635 = vmatpush1.msra.mxu0 %v2150
        %2636 = vmatprep.subr.mxu0 0.0
        %2637 = vmatpush1.msra.mxu0 %v2151
        %2638 = vmatprep.subr.mxu0 0.0
        %2639 = vmatpush1.msra.mxu0 %v2152
        %2640 = vmatprep.subr.mxu0 0.0
        %2641 = vmatpush1.msra.mxu0 %v2153
        %2642 = vmatprep.subr.mxu0 0.0
        %2643 = vmatpush1.msra.mxu0 %v2154
        %2644 = vmatprep.subr.mxu0 0.0
        %2645 = vmatpush1.msra.mxu0 %v2155
        %2646 = vmatprep.subr.mxu0 0.0
        %2647 = vmatpush1.msra.mxu0 %v2156
        %2648 = vmatprep.subr.mxu0 0.0
        %2649 = vmatpush1.msra.mxu0 %v2157
        %2650 = vmatprep.subr.mxu0 0.0
        %2651 = vmatpush1.msra.mxu0 %v2158
        %2652 = vmatprep.subr.mxu0 0.0
        %2653 = vmatpush1.msra.mxu0 %v2159
        %2654 = vmatprep.subr.mxu0 0.0
        %2655 = vmatpush1.msra.mxu0 %v2160
        %2656 = vmatprep.subr.mxu0 0.0
        %2657 = vmatpush1.msra.mxu0 %v2161
        %2658 = vmatprep.subr.mxu0 0.0
        %2659 = vmatpush1.msra.mxu0 %v2162
        %2660 = vmatprep.mubr.f32.mxu0 %v2335
        %2661 = vmatmul.mubr.f32.gmra.mrb[0].mxu0 %v2333
        %v2662 = vpop.f32.mrb[0].mxu0
        %v2663 = vadd.f32 %v2593, %v2662
        %v2664 = vpop.f32.mrb[0].mxu0
        %2665 = vdwg.mxu0
        %2666 = vmatprep.subr.mxu0 0.0
        %2667 = vmatpush1.msra.mxu0 %v2163
        %2668 = vmatprep.subr.mxu0 0.0
        %2669 = vmatpush1.msra.mxu0 %v2164
        %2670 = vmatprep.subr.mxu0 0.0
        %2671 = vmatpush1.msra.mxu0 %v2165
        %2672 = vmatprep.subr.mxu0 0.0
        %2673 = vmatpush1.msra.mxu0 %v2166
        %2674 = vmatprep.subr.mxu0 0.0
        %2675 = vmatpush1.msra.mxu0 %v2167
        %2676 = vmatprep.subr.mxu0 0.0
        %2677 = vmatpush1.msra.mxu0 %v2168
        %2678 = vmatprep.subr.mxu0 0.0
        %2679 = vmatpush1.msra.mxu0 %v2169
        %2680 = vmatprep.subr.mxu0 0.0
        %2681 = vmatpush1.msra.mxu0 %v2170
        %2682 = vmatprep.subr.mxu0 0.0
        %2683 = vmatpush1.msra.mxu0 %v2171
        %2684 = vmatprep.subr.mxu0 0.0
        %2685 = vmatpush1.msra.mxu0 %v2172
        %2686 = vmatprep.subr.mxu0 0.0
        %2687 = vmatpush1.msra.mxu0 %v2173
        %2688 = vmatprep.subr.mxu0 0.0
        %2689 = vmatpush1.msra.mxu0 %v2174
        %2690 = vmatprep.subr.mxu0 0.0
        %2691 = vmatpush1.msra.mxu0 %v2175
        %2692 = vmatprep.subr.mxu0 0.0
        %2693 = vmatpush1.msra.mxu0 %v2176
        %2694 = vmatprep.subr.mxu0 0.0
        %2695 = vmatpush1.msra.mxu0 %v2177
        %2696 = vmatprep.subr.mxu0 0.0
        %2697 = vmatpush1.msra.mxu0 %v2178
        %2698 = vmatprep.subr.mxu0 0.0
        %2699 = vmatpush1.msra.mxu0 %v2179
        %2700 = vmatprep.subr.mxu0 0.0
        %2701 = vmatpush1.msra.mxu0 %v2180
        %2702 = vmatprep.subr.mxu0 0.0
        %2703 = vmatpush1.msra.mxu0 %v2181
        %2704 = vmatprep.subr.mxu0 0.0
        %2705 = vmatpush1.msra.mxu0 %v2182
        %2706 = vmatprep.subr.mxu0 0.0
        %2707 = vmatpush1.msra.mxu0 %v2183
        %2708 = vmatprep.subr.mxu0 0.0
        %2709 = vmatpush1.msra.mxu0 %v2184
        %2710 = vmatprep.subr.mxu0 0.0
        %2711 = vmatpush1.msra.mxu0 %v2185
        %2712 = vmatprep.subr.mxu0 0.0
        %2713 = vmatpush1.msra.mxu0 %v2186
        %2714 = vmatprep.subr.mxu0 0.0
        %2715 = vmatpush1.msra.mxu0 %v2187
        %2716 = vmatprep.subr.mxu0 0.0
        %2717 = vmatpush1.msra.mxu0 %v2188
        %2718 = vmatprep.subr.mxu0 0.0
        %2719 = vmatpush1.msra.mxu0 %v2189
        %2720 = vmatprep.subr.mxu0 0.0
        %2721 = vmatpush1.msra.mxu0 %v2190
        %2722 = vmatprep.subr.mxu0 0.0
        %2723 = vmatpush1.msra.mxu0 %v2191
        %2724 = vmatprep.subr.mxu0 0.0
        %2725 = vmatpush1.msra.mxu0 %v2192
        %2726 = vmatprep.subr.mxu0 0.0
        %2727 = vmatpush1.msra.mxu0 %v2193
        %2728 = vmatprep.subr.mxu0 0.0
        %2729 = vmatpush1.msra.mxu0 %v2194
        %2730 = vmatprep.mubr.f32.mxu0 %v2351
        %2731 = vmatmul.mubr.f32.gmra.mrb[0].mxu0 %v2343
        %v2732 = vpop.f32.mrb[0].mxu0
        %v2733 = vadd.f32 %v2663, %v2732
        %v2734 = vpop.f32.mrb[0].mxu0
        %2735 = vdwg.mxu0
        %2736 = vmatprep.subr.mxu0 0.0
        %2737 = vmatpush1.msra.mxu0 %v2195
        %2738 = vmatprep.subr.mxu0 0.0
        %2739 = vmatpush1.msra.mxu0 %v2196
        %2740 = vmatprep.subr.mxu0 0.0
        %2741 = vmatpush1.msra.mxu0 %v2197
        %2742 = vmatprep.subr.mxu0 0.0
        %2743 = vmatpush1.msra.mxu0 %v2198
        %2744 = vmatprep.subr.mxu0 0.0
        %2745 = vmatpush1.msra.mxu0 %v2199
        %2746 = vmatprep.subr.mxu0 0.0
        %2747 = vmatpush1.msra.mxu0 %v2200
        %2748 = vmatprep.subr.mxu0 0.0
        %2749 = vmatpush1.msra.mxu0 %v2201
        %2750 = vmatprep.subr.mxu0 0.0
        %2751 = vmatpush1.msra.mxu0 %v2202
        %2752 = vmatprep.subr.mxu0 0.0
        %2753 = vmatpush1.msra.mxu0 %v2203
        %2754 = vmatprep.subr.mxu0 0.0
        %2755 = vmatpush1.msra.mxu0 %v2204
        %2756 = vmatprep.subr.mxu0 0.0
        %2757 = vmatpush1.msra.mxu0 %v2205
        %2758 = vmatprep.subr.mxu0 0.0
        %2759 = vmatpush1.msra.mxu0 %v2206
        %2760 = vmatprep.subr.mxu0 0.0
        %2761 = vmatpush1.msra.mxu0 %v2207
        %2762 = vmatprep.subr.mxu0 0.0
        %2763 = vmatpush1.msra.mxu0 %v2208
        %2764 = vmatprep.subr.mxu0 0.0
        %2765 = vmatpush1.msra.mxu0 %v2209
        %2766 = vmatprep.subr.mxu0 0.0
        %2767 = vmatpush1.msra.mxu0 %v2210
        %2768 = vmatprep.subr.mxu0 0.0
        %2769 = vmatpush1.msra.mxu0 %v2211
        %2770 = vmatprep.subr.mxu0 0.0
        %2771 = vmatpush1.msra.mxu0 %v2212
        %2772 = vmatprep.subr.mxu0 0.0
        %2773 = vmatpush1.msra.mxu0 %v2213
        %2774 = vmatprep.subr.mxu0 0.0
        %2775 = vmatpush1.msra.mxu0 %v2214
        %2776 = vmatprep.subr.mxu0 0.0
        %2777 = vmatpush1.msra.mxu0 %v2215
        %2778 = vmatprep.subr.mxu0 0.0
        %2779 = vmatpush1.msra.mxu0 %v2216
        %2780 = vmatprep.subr.mxu0 0.0
        %2781 = vmatpush1.msra.mxu0 %v2217
        %2782 = vmatprep.subr.mxu0 0.0
        %2783 = vmatpush1.msra.mxu0 %v2218
        %2784 = vmatprep.subr.mxu0 0.0
        %2785 = vmatpush1.msra.mxu0 %v2219
        %2786 = vmatprep.subr.mxu0 0.0
        %2787 = vmatpush1.msra.mxu0 %v2220
        %2788 = vmatprep.subr.mxu0 0.0
        %2789 = vmatpush1.msra.mxu0 %v2221
        %2790 = vmatprep.subr.mxu0 0.0
        %2791 = vmatpush1.msra.mxu0 %v2222
        %2792 = vmatprep.subr.mxu0 0.0
        %2793 = vmatpush1.msra.mxu0 %v2223
        %2794 = vmatprep.subr.mxu0 0.0
        %2795 = vmatpush1.msra.mxu0 %v2224
        %2796 = vmatprep.subr.mxu0 0.0
        %2797 = vmatpush1.msra.mxu0 %v2225
        %2798 = vmatprep.subr.mxu0 0.0
        %2799 = vmatpush1.msra.mxu0 %v2226
        %2800 = vmatprep.mubr.f32.mxu0 %v2352
        %2801 = vmatmul.mubr.f32.gmra.mrb[0].mxu0 %v2350
        %v2802 = vpop.f32.mrb[0].mxu0
        %v2803 = vadd.f32 %v2733, %v2802
        %v2804 = vpop.f32.mrb[0].mxu0
        %2805 = vdwg.mxu0
        %2806 = vmatprep.subr.mxu0 0.0
        %2807 = vmatpush1.msra.mxu0 %v2227
        %2808 = vmatprep.subr.mxu0 0.0
        %2809 = vmatpush1.msra.mxu0 %v2228
        %2810 = vmatprep.subr.mxu0 0.0
        %2811 = vmatpush1.msra.mxu0 %v2229
        %2812 = vmatprep.subr.mxu0 0.0
        %2813 = vmatpush1.msra.mxu0 %v2230
        %2814 = vmatprep.subr.mxu0 0.0
        %2815 = vmatpush1.msra.mxu0 %v2231
        %2816 = vmatprep.subr.mxu0 0.0
        %2817 = vmatpush1.msra.mxu0 %v2232
        %2818 = vmatprep.subr.mxu0 0.0
        %2819 = vmatpush1.msra.mxu0 %v2233
        %2820 = vmatprep.subr.mxu0 0.0
        %2821 = vmatpush1.msra.mxu0 %v2234
        %2822 = vmatprep.subr.mxu0 0.0
        %2823 = vmatpush1.msra.mxu0 %v2235
        %2824 = vmatprep.subr.mxu0 0.0
        %2825 = vmatpush1.msra.mxu0 %v2236
        %2826 = vmatprep.subr.mxu0 0.0
        %2827 = vmatpush1.msra.mxu0 %v2237
        %2828 = vmatprep.subr.mxu0 0.0
        %2829 = vmatpush1.msra.mxu0 %v2238
        %2830 = vmatprep.subr.mxu0 0.0
        %2831 = vmatpush1.msra.mxu0 %v2239
        %2832 = vmatprep.subr.mxu0 0.0
        %2833 = vmatpush1.msra.mxu0 %v2240
        %2834 = vmatprep.subr.mxu0 0.0
        %2835 = vmatpush1.msra.mxu0 %v2241
        %2836 = vmatprep.subr.mxu0 0.0
        %2837 = vmatpush1.msra.mxu0 %v2242
        %2838 = vmatprep.subr.mxu0 0.0
        %2839 = vmatpush1.msra.mxu0 %v2243
        %2840 = vmatprep.subr.mxu0 0.0
        %2841 = vmatpush1.msra.mxu0 %v2244
        %2842 = vmatprep.subr.mxu0 0.0
        %2843 = vmatpush1.msra.mxu0 %v2245
        %2844 = vmatprep.subr.mxu0 0.0
        %2845 = vmatpush1.msra.mxu0 %v2246
        %2846 = vmatprep.subr.mxu0 0.0
        %2847 = vmatpush1.msra.mxu0 %v2247
        %2848 = vmatprep.subr.mxu0 0.0
        %2849 = vmatpush1.msra.mxu0 %v2248
        %2850 = vmatprep.subr.mxu0 0.0
        %2851 = vmatpush1.msra.mxu0 %v2249
        %2852 = vmatprep.subr.mxu0 0.0
        %2853 = vmatpush1.msra.mxu0 %v2250
        %2854 = vmatprep.subr.mxu0 0.0
        %2855 = vmatpush1.msra.mxu0 %v2251
        %2856 = vmatprep.subr.mxu0 0.0
        %2857 = vmatpush1.msra.mxu0 %v2252
        %2858 = vmatprep.subr.mxu0 0.0
        %2859 = vmatpush1.msra.mxu0 %v2253
        %2860 = vmatprep.subr.mxu0 0.0
        %2861 = vmatpush1.msra.mxu0 %v2254
        %2862 = vmatprep.subr.mxu0 0.0
        %2863 = vmatpush1.msra.mxu0 %v2255
        %2864 = vmatprep.subr.mxu0 0.0
        %2865 = vmatpush1.msra.mxu0 %v2256
        %2866 = vmatprep.subr.mxu0 0.0
        %2867 = vmatpush1.msra.mxu0 %v2257
        %2868 = vmatprep.subr.mxu0 0.0
        %2869 = vmatpush1.msra.mxu0 %v2258
        %2870 = vmatprep.mubr.f32.mxu0 %v2368
        %2871 = vmatmul.mubr.f32.gmra.mrb[0].mxu0 %v2360
        %v2872 = vpop.f32.mrb[0].mxu0
        %v2873 = vadd.f32 %v2803, %v2872
        %v2874 = vpop.f32.mrb[0].mxu0
        %2875 = vdwg.mxu0
        %2876 = vmatprep.subr.mxu0 0.0
        %2877 = vmatpush1.msra.mxu0 %v2259
        %2878 = vmatprep.subr.mxu0 0.0
        %2879 = vmatpush1.msra.mxu0 %v2260
        %2880 = vmatprep.subr.mxu0 0.0
        %2881 = vmatpush1.msra.mxu0 %v2261
        %2882 = vmatprep.subr.mxu0 0.0
        %2883 = vmatpush1.msra.mxu0 %v2262
        %2884 = vmatprep.subr.mxu0 0.0
        %2885 = vmatpush1.msra.mxu0 %v2263
        %2886 = vmatprep.subr.mxu0 0.0
        %2887 = vmatpush1.msra.mxu0 %v2264
        %2888 = vmatprep.subr.mxu0 0.0
        %2889 = vmatpush1.msra.mxu0 %v2265
        %2890 = vmatprep.subr.mxu0 0.0
        %2891 = vmatpush1.msra.mxu0 %v2266
        %2892 = vmatprep.subr.mxu0 0.0
        %2893 = vmatpush1.msra.mxu0 %v2267
        %2894 = vmatprep.subr.mxu0 0.0
        %2895 = vmatpush1.msra.mxu0 %v2268
        %2896 = vmatprep.subr.mxu0 0.0
        %2897 = vmatpush1.msra.mxu0 %v2269
        %2898 = vmatprep.subr.mxu0 0.0
        %2899 = vmatpush1.msra.mxu0 %v2270
        %2900 = vmatprep.subr.mxu0 0.0
        %2901 = vmatpush1.msra.mxu0 %v2271
        %2902 = vmatprep.subr.mxu0 0.0
        %2903 = vmatpush1.msra.mxu0 %v2272
        %2904 = vmatprep.subr.mxu0 0.0
        %2905 = vmatpush1.msra.mxu0 %v2273
        %2906 = vmatprep.subr.mxu0 0.0
        %2907 = vmatpush1.msra.mxu0 %v2274
        %2908 = vmatprep.subr.mxu0 0.0
        %2909 = vmatpush1.msra.mxu0 %v2275
        %2910 = vmatprep.subr.mxu0 0.0
        %2911 = vmatpush1.msra.mxu0 %v2276
        %2912 = vmatprep.subr.mxu0 0.0
        %2913 = vmatpush1.msra.mxu0 %v2277
        %2914 = vmatprep.subr.mxu0 0.0
        %2915 = vmatpush1.msra.mxu0 %v2278
        %2916 = vmatprep.subr.mxu0 0.0
        %2917 = vmatpush1.msra.mxu0 %v2279
        %2918 = vmatprep.subr.mxu0 0.0
        %2919 = vmatpush1.msra.mxu0 %v2280
        %2920 = vmatprep.subr.mxu0 0.0
        %2921 = vmatpush1.msra.mxu0 %v2281
        %2922 = vmatprep.subr.mxu0 0.0
        %2923 = vmatpush1.msra.mxu0 %v2282
        %2924 = vmatprep.subr.mxu0 0.0
        %2925 = vmatpush1.msra.mxu0 %v2283
        %2926 = vmatprep.subr.mxu0 0.0
        %2927 = vmatpush1.msra.mxu0 %v2284
        %2928 = vmatprep.subr.mxu0 0.0
        %2929 = vmatpush1.msra.mxu0 %v2285
        %2930 = vmatprep.subr.mxu0 0.0
        %2931 = vmatpush1.msra.mxu0 %v2286
        %2932 = vmatprep.subr.mxu0 0.0
        %2933 = vmatpush1.msra.mxu0 %v2287
        %2934 = vmatprep.subr.mxu0 0.0
        %2935 = vmatpush1.msra.mxu0 %v2288
        %2936 = vmatprep.subr.mxu0 0.0
        %2937 = vmatpush1.msra.mxu0 %v2289
        %2938 = vmatprep.subr.mxu0 0.0
        %2939 = vmatpush1.msra.mxu0 %v2290
        %2940 = vmatprep.mubr.f32.mxu0 %v2369
        %2941 = vmatmul.mubr.f32.gmra.mrb[0].mxu0 %v2367
        %v2942 = vpop.f32.mrb[0].mxu0
        %v2943 = vadd.f32 %v2873, %v2942
        %v2944 = vpop.f32.mrb[0].mxu0
        %2945 = vdwg.mxu0
        %v2946 = vmax.f32 %v2943, 0.0
        %v2947 = vld [vmem:[#allocation3] sm:$0xff]
        %v2948 = vld [vmem:[#allocation3 + $0x8] sm:$0xff]
        %v2949 = vld [vmem:[#allocation3 + $0x10] sm:$0xff]
        %v2950 = vld [vmem:[#allocation3 + $0x18] sm:$0xff]
        %v2955 = vcombine.high %v2947, %v2947
        %v2957 = vunpack.c.l.s4 1983009808
        %v2958 = vunpack.c.0.s8 %v2957
        %v2959 = vlaneseq
        %v2960 = vshrl.u32 %v2959, 7
        %v2961 = vsub.s32 %v2958, %v2960
        %v2962 = vrot.slane %v2947, %v2961
        %v2964 = vunpack.c.l.s4 1983009808
        %v2965 = vunpack.c.0.s8 %v2964
        %v2966 = vlaneseq
        %v2967 = vshrl.u32 %v2966, 7
        %v2968 = vsub.s32 %v2965, %v2967
        %v2969 = vrot.slane %v2955, %v2968
        %v2970 = vcombine.high %v2962, %v2962
        %v2971 = vcombine.high %v2969, %v2969
        %v2972 = vcombine.high %v2948, %v2948
        %v2974 = vunpack.c.l.s4 1983009808
        %v2975 = vunpack.c.0.s8 %v2974
        %v2976 = vlaneseq
        %v2977 = vshrl.u32 %v2976, 7
        %v2978 = vsub.s32 %v2975, %v2977
        %v2979 = vrot.slane %v2948, %v2978
        %v2981 = vunpack.c.l.s4 1983009808
        %v2982 = vunpack.c.0.s8 %v2981
        %v2983 = vlaneseq
        %v2984 = vshrl.u32 %v2983, 7
        %v2985 = vsub.s32 %v2982, %v2984
        %v2986 = vrot.slane %v2972, %v2985
        %v2987 = vcombine.high %v2979, %v2979
        %v2988 = vcombine.high %v2986, %v2986
        %v2989 = vcombine.high %v2949, %v2949
        %v2991 = vunpack.c.l.s4 1983009808
        %v2992 = vunpack.c.0.s8 %v2991
        %v2993 = vlaneseq
        %v2994 = vshrl.u32 %v2993, 7
        %v2995 = vsub.s32 %v2992, %v2994
        %v2996 = vrot.slane %v2949, %v2995
        %v2998 = vunpack.c.l.s4 1983009808
        %v2999 = vunpack.c.0.s8 %v2998
        %v3000 = vlaneseq
        %v3001 = vshrl.u32 %v3000, 7
        %v3002 = vsub.s32 %v2999, %v3001
        %v3003 = vrot.slane %v2989, %v3002
        %v3004 = vcombine.high %v2996, %v2996
        %v3005 = vcombine.high %v3003, %v3003
        %v3006 = vcombine.high %v2950, %v2950
        %v3008 = vunpack.c.l.s4 1983009808
        %v3009 = vunpack.c.0.s8 %v3008
        %v3010 = vlaneseq
        %v3011 = vshrl.u32 %v3010, 7
        %v3012 = vsub.s32 %v3009, %v3011
        %v3013 = vrot.slane %v2950, %v3012
        %v3015 = vunpack.c.l.s4 1983009808
        %v3016 = vunpack.c.0.s8 %v3015
        %v3017 = vlaneseq
        %v3018 = vshrl.u32 %v3017, 7
        %v3019 = vsub.s32 %v3016, %v3018
        %v3020 = vrot.slane %v3006, %v3019
        %v3021 = vcombine.high %v3013, %v3013
        %v3022 = vcombine.high %v3020, %v3020
        %3039 = vmatprep.subr.mxu0 0.0
        %3040 = vmatpush1.msra.mxu0 %v2035
        %3041 = vmatprep.subr.mxu0 0.0
        %3042 = vmatpush1.msra.mxu0 %v2036
        %3043 = vmatprep.subr.mxu0 0.0
        %3044 = vmatpush1.msra.mxu0 %v2037
        %3045 = vmatprep.subr.mxu0 0.0
        %3046 = vmatpush1.msra.mxu0 %v2038
        %3047 = vmatprep.subr.mxu0 0.0
        %3048 = vmatpush1.msra.mxu0 %v2039
        %3049 = vmatprep.subr.mxu0 0.0
        %3050 = vmatpush1.msra.mxu0 %v2040
        %3051 = vmatprep.subr.mxu0 0.0
        %3052 = vmatpush1.msra.mxu0 %v2041
        %3053 = vmatprep.subr.mxu0 0.0
        %3054 = vmatpush1.msra.mxu0 %v2042
        %3055 = vmatprep.subr.mxu0 0.0
        %3056 = vmatpush1.msra.mxu0 %v2043
        %3057 = vmatprep.subr.mxu0 0.0
        %3058 = vmatpush1.msra.mxu0 %v2044
        %3059 = vmatprep.subr.mxu0 0.0
        %3060 = vmatpush1.msra.mxu0 %v2045
        %3061 = vmatprep.subr.mxu0 0.0
        %3062 = vmatpush1.msra.mxu0 %v2046
        %3063 = vmatprep.subr.mxu0 0.0
        %3064 = vmatpush1.msra.mxu0 %v2047
        %3065 = vmatprep.subr.mxu0 0.0
        %3066 = vmatpush1.msra.mxu0 %v2048
        %3067 = vmatprep.subr.mxu0 0.0
        %3068 = vmatpush1.msra.mxu0 %v2049
        %3069 = vmatprep.subr.mxu0 0.0
        %3070 = vmatpush1.msra.mxu0 %v2050
        %3071 = vmatprep.subr.mxu0 0.0
        %3072 = vmatpush1.msra.mxu0 %v2051
        %3073 = vmatprep.subr.mxu0 0.0
        %3074 = vmatpush1.msra.mxu0 %v2052
        %3075 = vmatprep.subr.mxu0 0.0
        %3076 = vmatpush1.msra.mxu0 %v2053
        %3077 = vmatprep.subr.mxu0 0.0
        %3078 = vmatpush1.msra.mxu0 %v2054
        %3079 = vmatprep.subr.mxu0 0.0
        %3080 = vmatpush1.msra.mxu0 %v2055
        %3081 = vmatprep.subr.mxu0 0.0
        %3082 = vmatpush1.msra.mxu0 %v2056
        %3083 = vmatprep.subr.mxu0 0.0
        %3084 = vmatpush1.msra.mxu0 %v2057
        %3085 = vmatprep.subr.mxu0 0.0
        %3086 = vmatpush1.msra.mxu0 %v2058
        %3087 = vmatprep.subr.mxu0 0.0
        %3088 = vmatpush1.msra.mxu0 %v2059
        %3089 = vmatprep.subr.mxu0 0.0
        %3090 = vmatpush1.msra.mxu0 %v2060
        %3091 = vmatprep.subr.mxu0 0.0
        %3092 = vmatpush1.msra.mxu0 %v2061
        %3093 = vmatprep.subr.mxu0 0.0
        %3094 = vmatpush1.msra.mxu0 %v2062
        %3095 = vmatprep.subr.mxu0 0.0
        %3096 = vmatpush1.msra.mxu0 %v2063
        %3097 = vmatprep.subr.mxu0 0.0
        %3098 = vmatpush1.msra.mxu0 %v2064
        %3099 = vmatprep.subr.mxu0 0.0
        %3100 = vmatpush1.msra.mxu0 %v2065
        %3101 = vmatprep.subr.mxu0 0.0
        %3102 = vmatpush1.msra.mxu0 %v2066
        %3103 = vmatprep.mubr.f32.mxu0 %v2970
        %3104 = vmatmul.mubr.f32.gmra.mrb[0].mxu0 %v2962
        %v3105 = vpop.f32.mrb[0].mxu0
        %v3106 = vadd.f32 %v2296, %v3105
        %v3107 = vpop.f32.mrb[0].mxu0
        %3108 = vdwg.mxu0
        %3109 = vmatprep.subr.mxu0 0.0
        %3110 = vmatpush1.msra.mxu0 %v2067
        %3111 = vmatprep.subr.mxu0 0.0
        %3112 = vmatpush1.msra.mxu0 %v2068
        %3113 = vmatprep.subr.mxu0 0.0
        %3114 = vmatpush1.msra.mxu0 %v2069
        %3115 = vmatprep.subr.mxu0 0.0
        %3116 = vmatpush1.msra.mxu0 %v2070
        %3117 = vmatprep.subr.mxu0 0.0
        %3118 = vmatpush1.msra.mxu0 %v2071
        %3119 = vmatprep.subr.mxu0 0.0
        %3120 = vmatpush1.msra.mxu0 %v2072
        %3121 = vmatprep.subr.mxu0 0.0
        %3122 = vmatpush1.msra.mxu0 %v2073
        %3123 = vmatprep.subr.mxu0 0.0
        %3124 = vmatpush1.msra.mxu0 %v2074
        %3125 = vmatprep.subr.mxu0 0.0
        %3126 = vmatpush1.msra.mxu0 %v2075
        %3127 = vmatprep.subr.mxu0 0.0
        %3128 = vmatpush1.msra.mxu0 %v2076
        %3129 = vmatprep.subr.mxu0 0.0
        %3130 = vmatpush1.msra.mxu0 %v2077
        %3131 = vmatprep.subr.mxu0 0.0
        %3132 = vmatpush1.msra.mxu0 %v2078
        %3133 = vmatprep.subr.mxu0 0.0
        %3134 = vmatpush1.msra.mxu0 %v2079
        %3135 = vmatprep.subr.mxu0 0.0
        %3136 = vmatpush1.msra.mxu0 %v2080
        %3137 = vmatprep.subr.mxu0 0.0
        %3138 = vmatpush1.msra.mxu0 %v2081
        %3139 = vmatprep.subr.mxu0 0.0
        %3140 = vmatpush1.msra.mxu0 %v2082
        %3141 = vmatprep.subr.mxu0 0.0
        %3142 = vmatpush1.msra.mxu0 %v2083
        %3143 = vmatprep.subr.mxu0 0.0
        %3144 = vmatpush1.msra.mxu0 %v2084
        %3145 = vmatprep.subr.mxu0 0.0
        %3146 = vmatpush1.msra.mxu0 %v2085
        %3147 = vmatprep.subr.mxu0 0.0
        %3148 = vmatpush1.msra.mxu0 %v2086
        %3149 = vmatprep.subr.mxu0 0.0
        %3150 = vmatpush1.msra.mxu0 %v2087
        %3151 = vmatprep.subr.mxu0 0.0
        %3152 = vmatpush1.msra.mxu0 %v2088
        %3153 = vmatprep.subr.mxu0 0.0
        %3154 = vmatpush1.msra.mxu0 %v2089
        %3155 = vmatprep.subr.mxu0 0.0
        %3156 = vmatpush1.msra.mxu0 %v2090
        %3157 = vmatprep.subr.mxu0 0.0
        %3158 = vmatpush1.msra.mxu0 %v2091
        %3159 = vmatprep.subr.mxu0 0.0
        %3160 = vmatpush1.msra.mxu0 %v2092
        %3161 = vmatprep.subr.mxu0 0.0
        %3162 = vmatpush1.msra.mxu0 %v2093
        %3163 = vmatprep.subr.mxu0 0.0
        %3164 = vmatpush1.msra.mxu0 %v2094
        %3165 = vmatprep.subr.mxu0 0.0
        %3166 = vmatpush1.msra.mxu0 %v2095
        %3167 = vmatprep.subr.mxu0 0.0
        %3168 = vmatpush1.msra.mxu0 %v2096
        %3169 = vmatprep.subr.mxu0 0.0
        %3170 = vmatpush1.msra.mxu0 %v2097
        %3171 = vmatprep.subr.mxu0 0.0
        %3172 = vmatpush1.msra.mxu0 %v2098
        %3173 = vmatprep.mubr.f32.mxu0 %v2971
        %3174 = vmatmul.mubr.f32.gmra.mrb[0].mxu0 %v2969
        %v3175 = vpop.f32.mrb[0].mxu0
        %v3176 = vadd.f32 %v3106, %v3175
        %v3177 = vpop.f32.mrb[0].mxu0
        %3178 = vdwg.mxu0
        %3179 = vmatprep.subr.mxu0 0.0
        %3180 = vmatpush1.msra.mxu0 %v2099
        %3181 = vmatprep.subr.mxu0 0.0
        %3182 = vmatpush1.msra.mxu0 %v2100
        %3183 = vmatprep.subr.mxu0 0.0
        %3184 = vmatpush1.msra.mxu0 %v2101
        %3185 = vmatprep.subr.mxu0 0.0
        %3186 = vmatpush1.msra.mxu0 %v2102
        %3187 = vmatprep.subr.mxu0 0.0
        %3188 = vmatpush1.msra.mxu0 %v2103
        %3189 = vmatprep.subr.mxu0 0.0
        %3190 = vmatpush1.msra.mxu0 %v2104
        %3191 = vmatprep.subr.mxu0 0.0
        %3192 = vmatpush1.msra.mxu0 %v2105
        %3193 = vmatprep.subr.mxu0 0.0
        %3194 = vmatpush1.msra.mxu0 %v2106
        %3195 = vmatprep.subr.mxu0 0.0
        %3196 = vmatpush1.msra.mxu0 %v2107
        %3197 = vmatprep.subr.mxu0 0.0
        %3198 = vmatpush1.msra.mxu0 %v2108
        %3199 = vmatprep.subr.mxu0 0.0
        %3200 = vmatpush1.msra.mxu0 %v2109
        %3201 = vmatprep.subr.mxu0 0.0
        %3202 = vmatpush1.msra.mxu0 %v2110
        %3203 = vmatprep.subr.mxu0 0.0
        %3204 = vmatpush1.msra.mxu0 %v2111
        %3205 = vmatprep.subr.mxu0 0.0
        %3206 = vmatpush1.msra.mxu0 %v2112
        %3207 = vmatprep.subr.mxu0 0.0
        %3208 = vmatpush1.msra.mxu0 %v2113
        %3209 = vmatprep.subr.mxu0 0.0
        %3210 = vmatpush1.msra.mxu0 %v2114
        %3211 = vmatprep.subr.mxu0 0.0
        %3212 = vmatpush1.msra.mxu0 %v2115
        %3213 = vmatprep.subr.mxu0 0.0
        %3214 = vmatpush1.msra.mxu0 %v2116
        %3215 = vmatprep.subr.mxu0 0.0
        %3216 = vmatpush1.msra.mxu0 %v2117
        %3217 = vmatprep.subr.mxu0 0.0
        %3218 = vmatpush1.msra.mxu0 %v2118
        %3219 = vmatprep.subr.mxu0 0.0
        %3220 = vmatpush1.msra.mxu0 %v2119
        %3221 = vmatprep.subr.mxu0 0.0
        %3222 = vmatpush1.msra.mxu0 %v2120
        %3223 = vmatprep.subr.mxu0 0.0
        %3224 = vmatpush1.msra.mxu0 %v2121
        %3225 = vmatprep.subr.mxu0 0.0
        %3226 = vmatpush1.msra.mxu0 %v2122
        %3227 = vmatprep.subr.mxu0 0.0
        %3228 = vmatpush1.msra.mxu0 %v2123
        %3229 = vmatprep.subr.mxu0 0.0
        %3230 = vmatpush1.msra.mxu0 %v2124
        %3231 = vmatprep.subr.mxu0 0.0
        %3232 = vmatpush1.msra.mxu0 %v2125
        %3233 = vmatprep.subr.mxu0 0.0
        %3234 = vmatpush1.msra.mxu0 %v2126
        %3235 = vmatprep.subr.mxu0 0.0
        %3236 = vmatpush1.msra.mxu0 %v2127
        %3237 = vmatprep.subr.mxu0 0.0
        %3238 = vmatpush1.msra.mxu0 %v2128
        %3239 = vmatprep.subr.mxu0 0.0
        %3240 = vmatpush1.msra.mxu0 %v2129
        %3241 = vmatprep.subr.mxu0 0.0
        %3242 = vmatpush1.msra.mxu0 %v2130
        %3243 = vmatprep.mubr.f32.mxu0 %v2987
        %3244 = vmatmul.mubr.f32.gmra.mrb[0].mxu0 %v2979
        %v3245 = vpop.f32.mrb[0].mxu0
        %v3246 = vadd.f32 %v3176, %v3245
        %v3247 = vpop.f32.mrb[0].mxu0
        %3248 = vdwg.mxu0
        %3249 = vmatprep.subr.mxu0 0.0
        %3250 = vmatpush1.msra.mxu0 %v2131
        %3251 = vmatprep.subr.mxu0 0.0
        %3252 = vmatpush1.msra.mxu0 %v2132
        %3253 = vmatprep.subr.mxu0 0.0
        %3254 = vmatpush1.msra.mxu0 %v2133
        %3255 = vmatprep.subr.mxu0 0.0
        %3256 = vmatpush1.msra.mxu0 %v2134
        %3257 = vmatprep.subr.mxu0 0.0
        %3258 = vmatpush1.msra.mxu0 %v2135
        %3259 = vmatprep.subr.mxu0 0.0
        %3260 = vmatpush1.msra.mxu0 %v2136
        %3261 = vmatprep.subr.mxu0 0.0
        %3262 = vmatpush1.msra.mxu0 %v2137
        %3263 = vmatprep.subr.mxu0 0.0
        %3264 = vmatpush1.msra.mxu0 %v2138
        %3265 = vmatprep.subr.mxu0 0.0
        %3266 = vmatpush1.msra.mxu0 %v2139
        %3267 = vmatprep.subr.mxu0 0.0
        %3268 = vmatpush1.msra.mxu0 %v2140
        %3269 = vmatprep.subr.mxu0 0.0
        %3270 = vmatpush1.msra.mxu0 %v2141
        %3271 = vmatprep.subr.mxu0 0.0
        %3272 = vmatpush1.msra.mxu0 %v2142
        %3273 = vmatprep.subr.mxu0 0.0
        %3274 = vmatpush1.msra.mxu0 %v2143
        %3275 = vmatprep.subr.mxu0 0.0
        %3276 = vmatpush1.msra.mxu0 %v2144
        %3277 = vmatprep.subr.mxu0 0.0
        %3278 = vmatpush1.msra.mxu0 %v2145
        %3279 = vmatprep.subr.mxu0 0.0
        %3280 = vmatpush1.msra.mxu0 %v2146
        %3281 = vmatprep.subr.mxu0 0.0
        %3282 = vmatpush1.msra.mxu0 %v2147
        %3283 = vmatprep.subr.mxu0 0.0
        %3284 = vmatpush1.msra.mxu0 %v2148
        %3285 = vmatprep.subr.mxu0 0.0
        %3286 = vmatpush1.msra.mxu0 %v2149
        %3287 = vmatprep.subr.mxu0 0.0
        %3288 = vmatpush1.msra.mxu0 %v2150
        %3289 = vmatprep.subr.mxu0 0.0
        %3290 = vmatpush1.msra.mxu0 %v2151
        %3291 = vmatprep.subr.mxu0 0.0
        %3292 = vmatpush1.msra.mxu0 %v2152
        %3293 = vmatprep.subr.mxu0 0.0
        %3294 = vmatpush1.msra.mxu0 %v2153
        %3295 = vmatprep.subr.mxu0 0.0
        %3296 = vmatpush1.msra.mxu0 %v2154
        %3297 = vmatprep.subr.mxu0 0.0
        %3298 = vmatpush1.msra.mxu0 %v2155
        %3299 = vmatprep.subr.mxu0 0.0
        %3300 = vmatpush1.msra.mxu0 %v2156
        %3301 = vmatprep.subr.mxu0 0.0
        %3302 = vmatpush1.msra.mxu0 %v2157
        %3303 = vmatprep.subr.mxu0 0.0
        %3304 = vmatpush1.msra.mxu0 %v2158
        %3305 = vmatprep.subr.mxu0 0.0
        %3306 = vmatpush1.msra.mxu0 %v2159
        %3307 = vmatprep.subr.mxu0 0.0
        %3308 = vmatpush1.msra.mxu0 %v2160
        %3309 = vmatprep.subr.mxu0 0.0
        %3310 = vmatpush1.msra.mxu0 %v2161
        %3311 = vmatprep.subr.mxu0 0.0
        %3312 = vmatpush1.msra.mxu0 %v2162
        %3313 = vmatprep.mubr.f32.mxu0 %v2988
        %3314 = vmatmul.mubr.f32.gmra.mrb[0].mxu0 %v2986
        %v3315 = vpop.f32.mrb[0].mxu0
        %v3316 = vadd.f32 %v3246, %v3315
        %v3317 = vpop.f32.mrb[0].mxu0
        %3318 = vdwg.mxu0
        %3319 = vmatprep.subr.mxu0 0.0
        %3320 = vmatpush1.msra.mxu0 %v2163
        %3321 = vmatprep.subr.mxu0 0.0
        %3322 = vmatpush1.msra.mxu0 %v2164
        %3323 = vmatprep.subr.mxu0 0.0
        %3324 = vmatpush1.msra.mxu0 %v2165
        %3325 = vmatprep.subr.mxu0 0.0
        %3326 = vmatpush1.msra.mxu0 %v2166
        %3327 = vmatprep.subr.mxu0 0.0
        %3328 = vmatpush1.msra.mxu0 %v2167
        %3329 = vmatprep.subr.mxu0 0.0
        %3330 = vmatpush1.msra.mxu0 %v2168
        %3331 = vmatprep.subr.mxu0 0.0
        %3332 = vmatpush1.msra.mxu0 %v2169
        %3333 = vmatprep.subr.mxu0 0.0
        %3334 = vmatpush1.msra.mxu0 %v2170
        %3335 = vmatprep.subr.mxu0 0.0
        %3336 = vmatpush1.msra.mxu0 %v2171
        %3337 = vmatprep.subr.mxu0 0.0
        %3338 = vmatpush1.msra.mxu0 %v2172
        %3339 = vmatprep.subr.mxu0 0.0
        %3340 = vmatpush1.msra.mxu0 %v2173
        %3341 = vmatprep.subr.mxu0 0.0
        %3342 = vmatpush1.msra.mxu0 %v2174
        %3343 = vmatprep.subr.mxu0 0.0
        %3344 = vmatpush1.msra.mxu0 %v2175
        %3345 = vmatprep.subr.mxu0 0.0
        %3346 = vmatpush1.msra.mxu0 %v2176
        %3347 = vmatprep.subr.mxu0 0.0
        %3348 = vmatpush1.msra.mxu0 %v2177
        %3349 = vmatprep.subr.mxu0 0.0
        %3350 = vmatpush1.msra.mxu0 %v2178
        %3351 = vmatprep.subr.mxu0 0.0
        %3352 = vmatpush1.msra.mxu0 %v2179
        %3353 = vmatprep.subr.mxu0 0.0
        %3354 = vmatpush1.msra.mxu0 %v2180
        %3355 = vmatprep.subr.mxu0 0.0
        %3356 = vmatpush1.msra.mxu0 %v2181
        %3357 = vmatprep.subr.mxu0 0.0
        %3358 = vmatpush1.msra.mxu0 %v2182
        %3359 = vmatprep.subr.mxu0 0.0
        %3360 = vmatpush1.msra.mxu0 %v2183
        %3361 = vmatprep.subr.mxu0 0.0
        %3362 = vmatpush1.msra.mxu0 %v2184
        %3363 = vmatprep.subr.mxu0 0.0
        %3364 = vmatpush1.msra.mxu0 %v2185
        %3365 = vmatprep.subr.mxu0 0.0
        %3366 = vmatpush1.msra.mxu0 %v2186
        %3367 = vmatprep.subr.mxu0 0.0
        %3368 = vmatpush1.msra.mxu0 %v2187
        %3369 = vmatprep.subr.mxu0 0.0
        %3370 = vmatpush1.msra.mxu0 %v2188
        %3371 = vmatprep.subr.mxu0 0.0
        %3372 = vmatpush1.msra.mxu0 %v2189
        %3373 = vmatprep.subr.mxu0 0.0
        %3374 = vmatpush1.msra.mxu0 %v2190
        %3375 = vmatprep.subr.mxu0 0.0
        %3376 = vmatpush1.msra.mxu0 %v2191
        %3377 = vmatprep.subr.mxu0 0.0
        %3378 = vmatpush1.msra.mxu0 %v2192
        %3379 = vmatprep.subr.mxu0 0.0
        %3380 = vmatpush1.msra.mxu0 %v2193
        %3381 = vmatprep.subr.mxu0 0.0
        %3382 = vmatpush1.msra.mxu0 %v2194
        %3383 = vmatprep.mubr.f32.mxu0 %v3004
        %3384 = vmatmul.mubr.f32.gmra.mrb[0].mxu0 %v2996
        %v3385 = vpop.f32.mrb[0].mxu0
        %v3386 = vadd.f32 %v3316, %v3385
        %v3387 = vpop.f32.mrb[0].mxu0
        %3388 = vdwg.mxu0
        %3389 = vmatprep.subr.mxu0 0.0
        %3390 = vmatpush1.msra.mxu0 %v2195
        %3391 = vmatprep.subr.mxu0 0.0
        %3392 = vmatpush1.msra.mxu0 %v2196
        %3393 = vmatprep.subr.mxu0 0.0
        %3394 = vmatpush1.msra.mxu0 %v2197
        %3395 = vmatprep.subr.mxu0 0.0
        %3396 = vmatpush1.msra.mxu0 %v2198
        %3397 = vmatprep.subr.mxu0 0.0
        %3398 = vmatpush1.msra.mxu0 %v2199
        %3399 = vmatprep.subr.mxu0 0.0
        %3400 = vmatpush1.msra.mxu0 %v2200
        %3401 = vmatprep.subr.mxu0 0.0
        %3402 = vmatpush1.msra.mxu0 %v2201
        %3403 = vmatprep.subr.mxu0 0.0
        %3404 = vmatpush1.msra.mxu0 %v2202
        %3405 = vmatprep.subr.mxu0 0.0
        %3406 = vmatpush1.msra.mxu0 %v2203
        %3407 = vmatprep.subr.mxu0 0.0
        %3408 = vmatpush1.msra.mxu0 %v2204
        %3409 = vmatprep.subr.mxu0 0.0
        %3410 = vmatpush1.msra.mxu0 %v2205
        %3411 = vmatprep.subr.mxu0 0.0
        %3412 = vmatpush1.msra.mxu0 %v2206
        %3413 = vmatprep.subr.mxu0 0.0
        %3414 = vmatpush1.msra.mxu0 %v2207
        %3415 = vmatprep.subr.mxu0 0.0
        %3416 = vmatpush1.msra.mxu0 %v2208
        %3417 = vmatprep.subr.mxu0 0.0
        %3418 = vmatpush1.msra.mxu0 %v2209
        %3419 = vmatprep.subr.mxu0 0.0
        %3420 = vmatpush1.msra.mxu0 %v2210
        %3421 = vmatprep.subr.mxu0 0.0
        %3422 = vmatpush1.msra.mxu0 %v2211
        %3423 = vmatprep.subr.mxu0 0.0
        %3424 = vmatpush1.msra.mxu0 %v2212
        %3425 = vmatprep.subr.mxu0 0.0
        %3426 = vmatpush1.msra.mxu0 %v2213
        %3427 = vmatprep.subr.mxu0 0.0
        %3428 = vmatpush1.msra.mxu0 %v2214
        %3429 = vmatprep.subr.mxu0 0.0
        %3430 = vmatpush1.msra.mxu0 %v2215
        %3431 = vmatprep.subr.mxu0 0.0
        %3432 = vmatpush1.msra.mxu0 %v2216
        %3433 = vmatprep.subr.mxu0 0.0
        %3434 = vmatpush1.msra.mxu0 %v2217
        %3435 = vmatprep.subr.mxu0 0.0
        %3436 = vmatpush1.msra.mxu0 %v2218
        %3437 = vmatprep.subr.mxu0 0.0
        %3438 = vmatpush1.msra.mxu0 %v2219
        %3439 = vmatprep.subr.mxu0 0.0
        %3440 = vmatpush1.msra.mxu0 %v2220
        %3441 = vmatprep.subr.mxu0 0.0
        %3442 = vmatpush1.msra.mxu0 %v2221
        %3443 = vmatprep.subr.mxu0 0.0
        %3444 = vmatpush1.msra.mxu0 %v2222
        %3445 = vmatprep.subr.mxu0 0.0
        %3446 = vmatpush1.msra.mxu0 %v2223
        %3447 = vmatprep.subr.mxu0 0.0
        %3448 = vmatpush1.msra.mxu0 %v2224
        %3449 = vmatprep.subr.mxu0 0.0
        %3450 = vmatpush1.msra.mxu0 %v2225
        %3451 = vmatprep.subr.mxu0 0.0
        %3452 = vmatpush1.msra.mxu0 %v2226
        %3453 = vmatprep.mubr.f32.mxu0 %v3005
        %3454 = vmatmul.mubr.f32.gmra.mrb[0].mxu0 %v3003
        %v3455 = vpop.f32.mrb[0].mxu0
        %v3456 = vadd.f32 %v3386, %v3455
        %v3457 = vpop.f32.mrb[0].mxu0
        %3458 = vdwg.mxu0
        %3459 = vmatprep.subr.mxu0 0.0
        %3460 = vmatpush1.msra.mxu0 %v2227
        %3461 = vmatprep.subr.mxu0 0.0
        %3462 = vmatpush1.msra.mxu0 %v2228
        %3463 = vmatprep.subr.mxu0 0.0
        %3464 = vmatpush1.msra.mxu0 %v2229
        %3465 = vmatprep.subr.mxu0 0.0
        %3466 = vmatpush1.msra.mxu0 %v2230
        %3467 = vmatprep.subr.mxu0 0.0
        %3468 = vmatpush1.msra.mxu0 %v2231
        %3469 = vmatprep.subr.mxu0 0.0
        %3470 = vmatpush1.msra.mxu0 %v2232
        %3471 = vmatprep.subr.mxu0 0.0
        %3472 = vmatpush1.msra.mxu0 %v2233
        %3473 = vmatprep.subr.mxu0 0.0
        %3474 = vmatpush1.msra.mxu0 %v2234
        %3475 = vmatprep.subr.mxu0 0.0
        %3476 = vmatpush1.msra.mxu0 %v2235
        %3477 = vmatprep.subr.mxu0 0.0
        %3478 = vmatpush1.msra.mxu0 %v2236
        %3479 = vmatprep.subr.mxu0 0.0
        %3480 = vmatpush1.msra.mxu0 %v2237
        %3481 = vmatprep.subr.mxu0 0.0
        %3482 = vmatpush1.msra.mxu0 %v2238
        %3483 = vmatprep.subr.mxu0 0.0
        %3484 = vmatpush1.msra.mxu0 %v2239
        %3485 = vmatprep.subr.mxu0 0.0
        %3486 = vmatpush1.msra.mxu0 %v2240
        %3487 = vmatprep.subr.mxu0 0.0
        %3488 = vmatpush1.msra.mxu0 %v2241
        %3489 = vmatprep.subr.mxu0 0.0
        %3490 = vmatpush1.msra.mxu0 %v2242
        %3491 = vmatprep.subr.mxu0 0.0
        %3492 = vmatpush1.msra.mxu0 %v2243
        %3493 = vmatprep.subr.mxu0 0.0
        %3494 = vmatpush1.msra.mxu0 %v2244
        %3495 = vmatprep.subr.mxu0 0.0
        %3496 = vmatpush1.msra.mxu0 %v2245
        %3497 = vmatprep.subr.mxu0 0.0
        %3498 = vmatpush1.msra.mxu0 %v2246
        %3499 = vmatprep.subr.mxu0 0.0
        %3500 = vmatpush1.msra.mxu0 %v2247
        %3501 = vmatprep.subr.mxu0 0.0
        %3502 = vmatpush1.msra.mxu0 %v2248
        %3503 = vmatprep.subr.mxu0 0.0
        %3504 = vmatpush1.msra.mxu0 %v2249
        %3505 = vmatprep.subr.mxu0 0.0
        %3506 = vmatpush1.msra.mxu0 %v2250
        %3507 = vmatprep.subr.mxu0 0.0
        %3508 = vmatpush1.msra.mxu0 %v2251
        %3509 = vmatprep.subr.mxu0 0.0
        %3510 = vmatpush1.msra.mxu0 %v2252
        %3511 = vmatprep.subr.mxu0 0.0
        %3512 = vmatpush1.msra.mxu0 %v2253
        %3513 = vmatprep.subr.mxu0 0.0
        %3514 = vmatpush1.msra.mxu0 %v2254
        %3515 = vmatprep.subr.mxu0 0.0
        %3516 = vmatpush1.msra.mxu0 %v2255
        %3517 = vmatprep.subr.mxu0 0.0
        %3518 = vmatpush1.msra.mxu0 %v2256
        %3519 = vmatprep.subr.mxu0 0.0
        %3520 = vmatpush1.msra.mxu0 %v2257
        %3521 = vmatprep.subr.mxu0 0.0
        %3522 = vmatpush1.msra.mxu0 %v2258
        %3523 = vmatprep.mubr.f32.mxu0 %v3021
        %3524 = vmatmul.mubr.f32.gmra.mrb[0].mxu0 %v3013
        %v3525 = vpop.f32.mrb[0].mxu0
        %v3526 = vadd.f32 %v3456, %v3525
        %v3527 = vpop.f32.mrb[0].mxu0
        %3528 = vdwg.mxu0
        %3529 = vmatprep.subr.mxu0 0.0
        %3530 = vmatpush1.msra.mxu0 %v2259
        %3531 = vmatprep.subr.mxu0 0.0
        %3532 = vmatpush1.msra.mxu0 %v2260
        %3533 = vmatprep.subr.mxu0 0.0
        %3534 = vmatpush1.msra.mxu0 %v2261
        %3535 = vmatprep.subr.mxu0 0.0
        %3536 = vmatpush1.msra.mxu0 %v2262
        %3537 = vmatprep.subr.mxu0 0.0
        %3538 = vmatpush1.msra.mxu0 %v2263
        %3539 = vmatprep.subr.mxu0 0.0
        %3540 = vmatpush1.msra.mxu0 %v2264
        %3541 = vmatprep.subr.mxu0 0.0
        %3542 = vmatpush1.msra.mxu0 %v2265
        %3543 = vmatprep.subr.mxu0 0.0
        %3544 = vmatpush1.msra.mxu0 %v2266
        %3545 = vmatprep.subr.mxu0 0.0
        %3546 = vmatpush1.msra.mxu0 %v2267
        %3547 = vmatprep.subr.mxu0 0.0
        %3548 = vmatpush1.msra.mxu0 %v2268
        %3549 = vmatprep.subr.mxu0 0.0
        %3550 = vmatpush1.msra.mxu0 %v2269
        %3551 = vmatprep.subr.mxu0 0.0
        %3552 = vmatpush1.msra.mxu0 %v2270
        %3553 = vmatprep.subr.mxu0 0.0
        %3554 = vmatpush1.msra.mxu0 %v2271
        %3555 = vmatprep.subr.mxu0 0.0
        %3556 = vmatpush1.msra.mxu0 %v2272
        %3557 = vmatprep.subr.mxu0 0.0
        %3558 = vmatpush1.msra.mxu0 %v2273
        %3559 = vmatprep.subr.mxu0 0.0
        %3560 = vmatpush1.msra.mxu0 %v2274
        %3561 = vmatprep.subr.mxu0 0.0
        %3562 = vmatpush1.msra.mxu0 %v2275
        %3563 = vmatprep.subr.mxu0 0.0
        %3564 = vmatpush1.msra.mxu0 %v2276
        %3565 = vmatprep.subr.mxu0 0.0
        %3566 = vmatpush1.msra.mxu0 %v2277
        %3567 = vmatprep.subr.mxu0 0.0
        %3568 = vmatpush1.msra.mxu0 %v2278
        %3569 = vmatprep.subr.mxu0 0.0
        %3570 = vmatpush1.msra.mxu0 %v2279
        %3571 = vmatprep.subr.mxu0 0.0
        %3572 = vmatpush1.msra.mxu0 %v2280
        %3573 = vmatprep.subr.mxu0 0.0
        %3574 = vmatpush1.msra.mxu0 %v2281
        %3575 = vmatprep.subr.mxu0 0.0
        %3576 = vmatpush1.msra.mxu0 %v2282
        %3577 = vmatprep.subr.mxu0 0.0
        %3578 = vmatpush1.msra.mxu0 %v2283
        %3579 = vmatprep.subr.mxu0 0.0
        %3580 = vmatpush1.msra.mxu0 %v2284
        %3581 = vmatprep.subr.mxu0 0.0
        %3582 = vmatpush1.msra.mxu0 %v2285
        %3583 = vmatprep.subr.mxu0 0.0
        %3584 = vmatpush1.msra.mxu0 %v2286
        %3585 = vmatprep.subr.mxu0 0.0
        %3586 = vmatpush1.msra.mxu0 %v2287
        %3587 = vmatprep.subr.mxu0 0.0
        %3588 = vmatpush1.msra.mxu0 %v2288
        %3589 = vmatprep.subr.mxu0 0.0
        %3590 = vmatpush1.msra.mxu0 %v2289
        %3591 = vmatprep.subr.mxu0 0.0
        %3592 = vmatpush1.msra.mxu0 %v2290
        %3593 = vmatprep.mubr.f32.mxu0 %v3022
        %3594 = vmatmul.mubr.f32.gmra.mrb[0].mxu0 %v3020
        %v3595 = vpop.f32.mrb[0].mxu0
        %v3596 = vadd.f32 %v3526, %v3595
        %v3597 = vpop.f32.mrb[0].mxu0
        %3598 = vdwg.mxu0
        %v3599 = vmax.f32 %v3596, 0.0
        %v3600 = vadd.f32 %v2946, %v3599
        %v3601 = vld [vmem:[#allocation11] sm:$0xff]
        %v3602 = vld [vmem:[#allocation11 + $0x8] sm:$0xff]
        %v3603 = vld [vmem:[#allocation11 + $0x10] sm:$0xff]
        %v3604 = vld [vmem:[#allocation11 + $0x18] sm:$0xff]
        %v3605 = vld [vmem:[#allocation11 + $0x20] sm:$0xff]
        %v3606 = vld [vmem:[#allocation11 + $0x28] sm:$0xff]
        %v3607 = vld [vmem:[#allocation11 + $0x30] sm:$0xff]
        %v3608 = vld [vmem:[#allocation11 + $0x38] sm:$0xff]
        %v3609 = vld [vmem:[#allocation11 + $0x40] sm:$0xff]
        %v3610 = vld [vmem:[#allocation11 + $0x48] sm:$0xff]
        %v3611 = vld [vmem:[#allocation11 + $0x50] sm:$0xff]
        %v3612 = vld [vmem:[#allocation11 + $0x58] sm:$0xff]
        %v3613 = vld [vmem:[#allocation11 + $0x60] sm:$0xff]
        %v3614 = vld [vmem:[#allocation11 + $0x68] sm:$0xff]
        %v3615 = vld [vmem:[#allocation11 + $0x70] sm:$0xff]
        %v3616 = vld [vmem:[#allocation11 + $0x78] sm:$0xff]
        %v3617 = vld [vmem:[#allocation11 + $0x80] sm:$0xff]
        %v3618 = vld [vmem:[#allocation11 + $0x88] sm:$0xff]
        %v3619 = vld [vmem:[#allocation11 + $0x90] sm:$0xff]
        %v3620 = vld [vmem:[#allocation11 + $0x98] sm:$0xff]
        %v3621 = vld [vmem:[#allocation11 + $0xa0] sm:$0xff]
        %v3622 = vld [vmem:[#allocation11 + $0xa8] sm:$0xff]
        %v3623 = vld [vmem:[#allocation11 + $0xb0] sm:$0xff]
        %v3624 = vld [vmem:[#allocation11 + $0xb8] sm:$0xff]
        %v3625 = vld [vmem:[#allocation11 + $0xc0] sm:$0xff]
        %v3626 = vld [vmem:[#allocation11 + $0xc8] sm:$0xff]
        %v3627 = vld [vmem:[#allocation11 + $0xd0] sm:$0xff]
        %v3628 = vld [vmem:[#allocation11 + $0xd8] sm:$0xff]
        %v3629 = vld [vmem:[#allocation11 + $0xe0] sm:$0xff]
        %v3630 = vld [vmem:[#allocation11 + $0xe8] sm:$0xff]
        %v3631 = vld [vmem:[#allocation11 + $0xf0] sm:$0xff]
        %v3632 = vld [vmem:[#allocation11 + $0xf8] sm:$0xff]
        %v3633 = vld [vmem:[#allocation11 + $0x100] sm:$0xff]
        %v3634 = vld [vmem:[#allocation11 + $0x108] sm:$0xff]
        %v3635 = vld [vmem:[#allocation11 + $0x110] sm:$0xff]
        %v3636 = vld [vmem:[#allocation11 + $0x118] sm:$0xff]
        %v3637 = vld [vmem:[#allocation11 + $0x120] sm:$0xff]
        %v3638 = vld [vmem:[#allocation11 + $0x128] sm:$0xff]
        %v3639 = vld [vmem:[#allocation11 + $0x130] sm:$0xff]
        %v3640 = vld [vmem:[#allocation11 + $0x138] sm:$0xff]
        %v3641 = vld [vmem:[#allocation11 + $0x140] sm:$0xff]
        %v3642 = vld [vmem:[#allocation11 + $0x148] sm:$0xff]
        %v3643 = vld [vmem:[#allocation11 + $0x150] sm:$0xff]
        %v3644 = vld [vmem:[#allocation11 + $0x158] sm:$0xff]
        %v3645 = vld [vmem:[#allocation11 + $0x160] sm:$0xff]
        %v3646 = vld [vmem:[#allocation11 + $0x168] sm:$0xff]
        %v3647 = vld [vmem:[#allocation11 + $0x170] sm:$0xff]
        %v3648 = vld [vmem:[#allocation11 + $0x178] sm:$0xff]
        %v3649 = vld [vmem:[#allocation11 + $0x180] sm:$0xff]
        %v3650 = vld [vmem:[#allocation11 + $0x188] sm:$0xff]
        %v3651 = vld [vmem:[#allocation11 + $0x190] sm:$0xff]
        %v3652 = vld [vmem:[#allocation11 + $0x198] sm:$0xff]
        %v3653 = vld [vmem:[#allocation11 + $0x1a0] sm:$0xff]
        %v3654 = vld [vmem:[#allocation11 + $0x1a8] sm:$0xff]
        %v3655 = vld [vmem:[#allocation11 + $0x1b0] sm:$0xff]
        %v3656 = vld [vmem:[#allocation11 + $0x1b8] sm:$0xff]
        %v3657 = vld [vmem:[#allocation11 + $0x1c0] sm:$0xff]
        %v3658 = vld [vmem:[#allocation11 + $0x1c8] sm:$0xff]
        %v3659 = vld [vmem:[#allocation11 + $0x1d0] sm:$0xff]
        %v3660 = vld [vmem:[#allocation11 + $0x1d8] sm:$0xff]
        %v3661 = vld [vmem:[#allocation11 + $0x1e0] sm:$0xff]
        %v3662 = vld [vmem:[#allocation11 + $0x1e8] sm:$0xff]
        %v3663 = vld [vmem:[#allocation11 + $0x1f0] sm:$0xff]
        %v3664 = vld [vmem:[#allocation11 + $0x1f8] sm:$0xff]
        %v3665 = vld [vmem:[#allocation11 + $0x200] sm:$0xff]
        %v3666 = vld [vmem:[#allocation11 + $0x208] sm:$0xff]
        %v3667 = vld [vmem:[#allocation11 + $0x210] sm:$0xff]
        %v3668 = vld [vmem:[#allocation11 + $0x218] sm:$0xff]
        %v3669 = vld [vmem:[#allocation11 + $0x220] sm:$0xff]
        %v3670 = vld [vmem:[#allocation11 + $0x228] sm:$0xff]
        %v3671 = vld [vmem:[#allocation11 + $0x230] sm:$0xff]
        %v3672 = vld [vmem:[#allocation11 + $0x238] sm:$0xff]
        %v3673 = vld [vmem:[#allocation11 + $0x240] sm:$0xff]
        %v3674 = vld [vmem:[#allocation11 + $0x248] sm:$0xff]
        %v3675 = vld [vmem:[#allocation11 + $0x250] sm:$0xff]
        %v3676 = vld [vmem:[#allocation11 + $0x258] sm:$0xff]
        %v3677 = vld [vmem:[#allocation11 + $0x260] sm:$0xff]
        %v3678 = vld [vmem:[#allocation11 + $0x268] sm:$0xff]
        %v3679 = vld [vmem:[#allocation11 + $0x270] sm:$0xff]
        %v3680 = vld [vmem:[#allocation11 + $0x278] sm:$0xff]
        %v3681 = vld [vmem:[#allocation11 + $0x280] sm:$0xff]
        %v3682 = vld [vmem:[#allocation11 + $0x288] sm:$0xff]
        %v3683 = vld [vmem:[#allocation11 + $0x290] sm:$0xff]
        %v3684 = vld [vmem:[#allocation11 + $0x298] sm:$0xff]
        %v3685 = vld [vmem:[#allocation11 + $0x2a0] sm:$0xff]
        %v3686 = vld [vmem:[#allocation11 + $0x2a8] sm:$0xff]
        %v3687 = vld [vmem:[#allocation11 + $0x2b0] sm:$0xff]
        %v3688 = vld [vmem:[#allocation11 + $0x2b8] sm:$0xff]
        %v3689 = vld [vmem:[#allocation11 + $0x2c0] sm:$0xff]
        %v3690 = vld [vmem:[#allocation11 + $0x2c8] sm:$0xff]
        %v3691 = vld [vmem:[#allocation11 + $0x2d0] sm:$0xff]
        %v3692 = vld [vmem:[#allocation11 + $0x2d8] sm:$0xff]
        %v3693 = vld [vmem:[#allocation11 + $0x2e0] sm:$0xff]
        %v3694 = vld [vmem:[#allocation11 + $0x2e8] sm:$0xff]
        %v3695 = vld [vmem:[#allocation11 + $0x2f0] sm:$0xff]
        %v3696 = vld [vmem:[#allocation11 + $0x2f8] sm:$0xff]
        %v3697 = vld [vmem:[#allocation11 + $0x300] sm:$0xff]
        %v3698 = vld [vmem:[#allocation11 + $0x308] sm:$0xff]
        %v3699 = vld [vmem:[#allocation11 + $0x310] sm:$0xff]
        %v3700 = vld [vmem:[#allocation11 + $0x318] sm:$0xff]
        %v3701 = vld [vmem:[#allocation11 + $0x320] sm:$0xff]
        %v3702 = vld [vmem:[#allocation11 + $0x328] sm:$0xff]
        %v3703 = vld [vmem:[#allocation11 + $0x330] sm:$0xff]
        %v3704 = vld [vmem:[#allocation11 + $0x338] sm:$0xff]
        %v3705 = vld [vmem:[#allocation11 + $0x340] sm:$0xff]
        %v3706 = vld [vmem:[#allocation11 + $0x348] sm:$0xff]
        %v3707 = vld [vmem:[#allocation11 + $0x350] sm:$0xff]
        %v3708 = vld [vmem:[#allocation11 + $0x358] sm:$0xff]
        %v3709 = vld [vmem:[#allocation11 + $0x360] sm:$0xff]
        %v3710 = vld [vmem:[#allocation11 + $0x368] sm:$0xff]
        %v3711 = vld [vmem:[#allocation11 + $0x370] sm:$0xff]
        %v3712 = vld [vmem:[#allocation11 + $0x378] sm:$0xff]
        %v3713 = vld [vmem:[#allocation11 + $0x380] sm:$0xff]
        %v3714 = vld [vmem:[#allocation11 + $0x388] sm:$0xff]
        %v3715 = vld [vmem:[#allocation11 + $0x390] sm:$0xff]
        %v3716 = vld [vmem:[#allocation11 + $0x398] sm:$0xff]
        %v3717 = vld [vmem:[#allocation11 + $0x3a0] sm:$0xff]
        %v3718 = vld [vmem:[#allocation11 + $0x3a8] sm:$0xff]
        %v3719 = vld [vmem:[#allocation11 + $0x3b0] sm:$0xff]
        %v3720 = vld [vmem:[#allocation11 + $0x3b8] sm:$0xff]
        %v3721 = vld [vmem:[#allocation11 + $0x3c0] sm:$0xff]
        %v3722 = vld [vmem:[#allocation11 + $0x3c8] sm:$0xff]
        %v3723 = vld [vmem:[#allocation11 + $0x3d0] sm:$0xff]
        %v3724 = vld [vmem:[#allocation11 + $0x3d8] sm:$0xff]
        %v3725 = vld [vmem:[#allocation11 + $0x3e0] sm:$0xff]
        %v3726 = vld [vmem:[#allocation11 + $0x3e8] sm:$0xff]
        %v3727 = vld [vmem:[#allocation11 + $0x3f0] sm:$0xff]
        %v3728 = vld [vmem:[#allocation11 + $0x3f8] sm:$0xff]
        %v3729 = vld [vmem:[#allocation11 + $0x400] sm:$0xff]
        %v3730 = vld [vmem:[#allocation11 + $0x408] sm:$0xff]
        %v3731 = vld [vmem:[#allocation11 + $0x410] sm:$0xff]
        %v3732 = vld [vmem:[#allocation11 + $0x418] sm:$0xff]
        %v3733 = vld [vmem:[#allocation11 + $0x420] sm:$0xff]
        %v3734 = vld [vmem:[#allocation11 + $0x428] sm:$0xff]
        %v3735 = vld [vmem:[#allocation11 + $0x430] sm:$0xff]
        %v3736 = vld [vmem:[#allocation11 + $0x438] sm:$0xff]
        %v3737 = vld [vmem:[#allocation11 + $0x440] sm:$0xff]
        %v3738 = vld [vmem:[#allocation11 + $0x448] sm:$0xff]
        %v3739 = vld [vmem:[#allocation11 + $0x450] sm:$0xff]
        %v3740 = vld [vmem:[#allocation11 + $0x458] sm:$0xff]
        %v3741 = vld [vmem:[#allocation11 + $0x460] sm:$0xff]
        %v3742 = vld [vmem:[#allocation11 + $0x468] sm:$0xff]
        %v3743 = vld [vmem:[#allocation11 + $0x470] sm:$0xff]
        %v3744 = vld [vmem:[#allocation11 + $0x478] sm:$0xff]
        %v3745 = vld [vmem:[#allocation11 + $0x480] sm:$0xff]
        %v3746 = vld [vmem:[#allocation11 + $0x488] sm:$0xff]
        %v3747 = vld [vmem:[#allocation11 + $0x490] sm:$0xff]
        %v3748 = vld [vmem:[#allocation11 + $0x498] sm:$0xff]
        %v3749 = vld [vmem:[#allocation11 + $0x4a0] sm:$0xff]
        %v3750 = vld [vmem:[#allocation11 + $0x4a8] sm:$0xff]
        %v3751 = vld [vmem:[#allocation11 + $0x4b0] sm:$0xff]
        %v3752 = vld [vmem:[#allocation11 + $0x4b8] sm:$0xff]
        %v3753 = vld [vmem:[#allocation11 + $0x4c0] sm:$0xff]
        %v3754 = vld [vmem:[#allocation11 + $0x4c8] sm:$0xff]
        %v3755 = vld [vmem:[#allocation11 + $0x4d0] sm:$0xff]
        %v3756 = vld [vmem:[#allocation11 + $0x4d8] sm:$0xff]
        %v3757 = vld [vmem:[#allocation11 + $0x4e0] sm:$0xff]
        %v3758 = vld [vmem:[#allocation11 + $0x4e8] sm:$0xff]
        %v3759 = vld [vmem:[#allocation11 + $0x4f0] sm:$0xff]
        %v3760 = vld [vmem:[#allocation11 + $0x4f8] sm:$0xff]
        %v3761 = vld [vmem:[#allocation11 + $0x500] sm:$0xff]
        %v3762 = vld [vmem:[#allocation11 + $0x508] sm:$0xff]
        %v3763 = vld [vmem:[#allocation11 + $0x510] sm:$0xff]
        %v3764 = vld [vmem:[#allocation11 + $0x518] sm:$0xff]
        %v3765 = vld [vmem:[#allocation11 + $0x520] sm:$0xff]
        %v3766 = vld [vmem:[#allocation11 + $0x528] sm:$0xff]
        %v3767 = vld [vmem:[#allocation11 + $0x530] sm:$0xff]
        %v3768 = vld [vmem:[#allocation11 + $0x538] sm:$0xff]
        %v3769 = vld [vmem:[#allocation11 + $0x540] sm:$0xff]
        %v3770 = vld [vmem:[#allocation11 + $0x548] sm:$0xff]
        %v3771 = vld [vmem:[#allocation11 + $0x550] sm:$0xff]
        %v3772 = vld [vmem:[#allocation11 + $0x558] sm:$0xff]
        %v3773 = vld [vmem:[#allocation11 + $0x560] sm:$0xff]
        %v3774 = vld [vmem:[#allocation11 + $0x568] sm:$0xff]
        %v3775 = vld [vmem:[#allocation11 + $0x570] sm:$0xff]
        %v3776 = vld [vmem:[#allocation11 + $0x578] sm:$0xff]
        %v3777 = vld [vmem:[#allocation11 + $0x580] sm:$0xff]
        %v3778 = vld [vmem:[#allocation11 + $0x588] sm:$0xff]
        %v3779 = vld [vmem:[#allocation11 + $0x590] sm:$0xff]
        %v3780 = vld [vmem:[#allocation11 + $0x598] sm:$0xff]
        %v3781 = vld [vmem:[#allocation11 + $0x5a0] sm:$0xff]
        %v3782 = vld [vmem:[#allocation11 + $0x5a8] sm:$0xff]
        %v3783 = vld [vmem:[#allocation11 + $0x5b0] sm:$0xff]
        %v3784 = vld [vmem:[#allocation11 + $0x5b8] sm:$0xff]
        %v3785 = vld [vmem:[#allocation11 + $0x5c0] sm:$0xff]
        %v3786 = vld [vmem:[#allocation11 + $0x5c8] sm:$0xff]
        %v3787 = vld [vmem:[#allocation11 + $0x5d0] sm:$0xff]
        %v3788 = vld [vmem:[#allocation11 + $0x5d8] sm:$0xff]
        %v3789 = vld [vmem:[#allocation11 + $0x5e0] sm:$0xff]
        %v3790 = vld [vmem:[#allocation11 + $0x5e8] sm:$0xff]
        %v3791 = vld [vmem:[#allocation11 + $0x5f0] sm:$0xff]
        %v3792 = vld [vmem:[#allocation11 + $0x5f8] sm:$0xff]
        %v3793 = vld [vmem:[#allocation11 + $0x600] sm:$0xff]
        %v3794 = vld [vmem:[#allocation11 + $0x608] sm:$0xff]
        %v3795 = vld [vmem:[#allocation11 + $0x610] sm:$0xff]
        %v3796 = vld [vmem:[#allocation11 + $0x618] sm:$0xff]
        %v3797 = vld [vmem:[#allocation11 + $0x620] sm:$0xff]
        %v3798 = vld [vmem:[#allocation11 + $0x628] sm:$0xff]
        %v3799 = vld [vmem:[#allocation11 + $0x630] sm:$0xff]
        %v3800 = vld [vmem:[#allocation11 + $0x638] sm:$0xff]
        %v3801 = vld [vmem:[#allocation11 + $0x640] sm:$0xff]
        %v3802 = vld [vmem:[#allocation11 + $0x648] sm:$0xff]
        %v3803 = vld [vmem:[#allocation11 + $0x650] sm:$0xff]
        %v3804 = vld [vmem:[#allocation11 + $0x658] sm:$0xff]
        %v3805 = vld [vmem:[#allocation11 + $0x660] sm:$0xff]
        %v3806 = vld [vmem:[#allocation11 + $0x668] sm:$0xff]
        %v3807 = vld [vmem:[#allocation11 + $0x670] sm:$0xff]
        %v3808 = vld [vmem:[#allocation11 + $0x678] sm:$0xff]
        %v3809 = vld [vmem:[#allocation11 + $0x680] sm:$0xff]
        %v3810 = vld [vmem:[#allocation11 + $0x688] sm:$0xff]
        %v3811 = vld [vmem:[#allocation11 + $0x690] sm:$0xff]
        %v3812 = vld [vmem:[#allocation11 + $0x698] sm:$0xff]
        %v3813 = vld [vmem:[#allocation11 + $0x6a0] sm:$0xff]
        %v3814 = vld [vmem:[#allocation11 + $0x6a8] sm:$0xff]
        %v3815 = vld [vmem:[#allocation11 + $0x6b0] sm:$0xff]
        %v3816 = vld [vmem:[#allocation11 + $0x6b8] sm:$0xff]
        %v3817 = vld [vmem:[#allocation11 + $0x6c0] sm:$0xff]
        %v3818 = vld [vmem:[#allocation11 + $0x6c8] sm:$0xff]
        %v3819 = vld [vmem:[#allocation11 + $0x6d0] sm:$0xff]
        %v3820 = vld [vmem:[#allocation11 + $0x6d8] sm:$0xff]
        %v3821 = vld [vmem:[#allocation11 + $0x6e0] sm:$0xff]
        %v3822 = vld [vmem:[#allocation11 + $0x6e8] sm:$0xff]
        %v3823 = vld [vmem:[#allocation11 + $0x6f0] sm:$0xff]
        %v3824 = vld [vmem:[#allocation11 + $0x6f8] sm:$0xff]
        %v3825 = vld [vmem:[#allocation11 + $0x700] sm:$0xff]
        %v3826 = vld [vmem:[#allocation11 + $0x708] sm:$0xff]
        %v3827 = vld [vmem:[#allocation11 + $0x710] sm:$0xff]
        %v3828 = vld [vmem:[#allocation11 + $0x718] sm:$0xff]
        %v3829 = vld [vmem:[#allocation11 + $0x720] sm:$0xff]
        %v3830 = vld [vmem:[#allocation11 + $0x728] sm:$0xff]
        %v3831 = vld [vmem:[#allocation11 + $0x730] sm:$0xff]
        %v3832 = vld [vmem:[#allocation11 + $0x738] sm:$0xff]
        %v3833 = vld [vmem:[#allocation11 + $0x740] sm:$0xff]
        %v3834 = vld [vmem:[#allocation11 + $0x748] sm:$0xff]
        %v3835 = vld [vmem:[#allocation11 + $0x750] sm:$0xff]
        %v3836 = vld [vmem:[#allocation11 + $0x758] sm:$0xff]
        %v3837 = vld [vmem:[#allocation11 + $0x760] sm:$0xff]
        %v3838 = vld [vmem:[#allocation11 + $0x768] sm:$0xff]
        %v3839 = vld [vmem:[#allocation11 + $0x770] sm:$0xff]
        %v3840 = vld [vmem:[#allocation11 + $0x778] sm:$0xff]
        %v3841 = vld [vmem:[#allocation11 + $0x780] sm:$0xff]
        %v3842 = vld [vmem:[#allocation11 + $0x788] sm:$0xff]
        %v3843 = vld [vmem:[#allocation11 + $0x790] sm:$0xff]
        %v3844 = vld [vmem:[#allocation11 + $0x798] sm:$0xff]
        %v3845 = vld [vmem:[#allocation11 + $0x7a0] sm:$0xff]
        %v3846 = vld [vmem:[#allocation11 + $0x7a8] sm:$0xff]
        %v3847 = vld [vmem:[#allocation11 + $0x7b0] sm:$0xff]
        %v3848 = vld [vmem:[#allocation11 + $0x7b8] sm:$0xff]
        %v3849 = vld [vmem:[#allocation11 + $0x7c0] sm:$0xff]
        %v3850 = vld [vmem:[#allocation11 + $0x7c8] sm:$0xff]
        %v3851 = vld [vmem:[#allocation11 + $0x7d0] sm:$0xff]
        %v3852 = vld [vmem:[#allocation11 + $0x7d8] sm:$0xff]
        %v3853 = vld [vmem:[#allocation11 + $0x7e0] sm:$0xff]
        %v3854 = vld [vmem:[#allocation11 + $0x7e8] sm:$0xff]
        %v3855 = vld [vmem:[#allocation11 + $0x7f0] sm:$0xff]
        %v3856 = vld [vmem:[#allocation11 + $0x7f8] sm:$0xff]
        %v3857 = vld [vmem:[#allocation13] sm:$0xff]
        %v3858 = vld [vmem:[#allocation13 + $0x8] sm:$0xff]
        %v3859 = vmul.f32 %v3857, 2.0
        %v3860 = vmul.f32 %v3858, 2.0
        %v3863 = vlaneseq
        %v3864 = vshrl.u32 %v3863, 7
        %v3865 = vsub.s32 0, %v3864
        %v3866 = vrot.slane %v3859, %v3865
        %v3867 = vlaneseq
        %v3868 = vshrl.u32 %v3867, 7
        %v3869 = vsub.s32 1, %v3868
        %v3870 = vrot.slane %v3859, %v3869
        %v3871 = vlaneseq
        %v3872 = vshrl.u32 %v3871, 7
        %v3873 = vsub.s32 2, %v3872
        %v3874 = vrot.slane %v3859, %v3873
        %v3875 = vlaneseq
        %v3876 = vshrl.u32 %v3875, 7
        %v3877 = vsub.s32 3, %v3876
        %v3878 = vrot.slane %v3859, %v3877
        %v3879 = vlaneseq
        %v3880 = vshrl.u32 %v3879, 7
        %v3881 = vsub.s32 4, %v3880
        %v3882 = vrot.slane %v3859, %v3881
        %v3883 = vlaneseq
        %v3884 = vshrl.u32 %v3883, 7
        %v3885 = vsub.s32 5, %v3884
        %v3886 = vrot.slane %v3859, %v3885
        %v3887 = vlaneseq
        %v3888 = vshrl.u32 %v3887, 7
        %v3889 = vsub.s32 6, %v3888
        %v3890 = vrot.slane %v3859, %v3889
        %v3891 = vlaneseq
        %v3892 = vshrl.u32 %v3891, 7
        %v3893 = vsub.s32 7, %v3892
        %v3894 = vrot.slane %v3859, %v3893
        %v3895 = vlaneseq
        %v3896 = vshrl.u32 %v3895, 7
        %v3897 = vsub.s32 0, %v3896
        %v3898 = vrot.slane %v3860, %v3897
        %v3899 = vlaneseq
        %v3900 = vshrl.u32 %v3899, 7
        %v3901 = vsub.s32 1, %v3900
        %v3902 = vrot.slane %v3860, %v3901
        %v3903 = vlaneseq
        %v3904 = vshrl.u32 %v3903, 7
        %v3905 = vsub.s32 2, %v3904
        %v3906 = vrot.slane %v3860, %v3905
        %v3907 = vlaneseq
        %v3908 = vshrl.u32 %v3907, 7
        %v3909 = vsub.s32 3, %v3908
        %v3910 = vrot.slane %v3860, %v3909
        %v3911 = vlaneseq
        %v3912 = vshrl.u32 %v3911, 7
        %v3913 = vsub.s32 4, %v3912
        %v3914 = vrot.slane %v3860, %v3913
        %v3915 = vlaneseq
        %v3916 = vshrl.u32 %v3915, 7
        %v3917 = vsub.s32 5, %v3916
        %v3918 = vrot.slane %v3860, %v3917
        %v3919 = vlaneseq
        %v3920 = vshrl.u32 %v3919, 7
        %v3921 = vsub.s32 6, %v3920
        %v3922 = vrot.slane %v3860, %v3921
        %v3923 = vlaneseq
        %v3924 = vshrl.u32 %v3923, 7
        %v3925 = vsub.s32 7, %v3924
        %v3926 = vrot.slane %v3860, %v3925
        %3943 = vmatprep.subr.mxu0 %v3602
        %3944 = vmatpush1.msra.mxu0 %v3601
        %3945 = vmatprep.subr.mxu0 %v3618
        %3946 = vmatpush1.msra.mxu0 %v3617
        %3947 = vmatprep.subr.mxu0 %v3634
        %3948 = vmatpush1.msra.mxu0 %v3633
        %3949 = vmatprep.subr.mxu0 %v3650
        %3950 = vmatpush1.msra.mxu0 %v3649
        %3951 = vmatprep.subr.mxu0 %v3666
        %3952 = vmatpush1.msra.mxu0 %v3665
        %3953 = vmatprep.subr.mxu0 %v3682
        %3954 = vmatpush1.msra.mxu0 %v3681
        %3955 = vmatprep.subr.mxu0 %v3698
        %3956 = vmatpush1.msra.mxu0 %v3697
        %3957 = vmatprep.subr.mxu0 %v3714
        %3958 = vmatpush1.msra.mxu0 %v3713
        %3959 = vmatprep.subr.mxu0 %v3730
        %3960 = vmatpush1.msra.mxu0 %v3729
        %3961 = vmatprep.subr.mxu0 %v3746
        %3962 = vmatpush1.msra.mxu0 %v3745
        %3963 = vmatprep.subr.mxu0 %v3762
        %3964 = vmatpush1.msra.mxu0 %v3761
        %3965 = vmatprep.subr.mxu0 %v3778
        %3966 = vmatpush1.msra.mxu0 %v3777
        %3967 = vmatprep.subr.mxu0 %v3794
        %3968 = vmatpush1.msra.mxu0 %v3793
        %3969 = vmatprep.subr.mxu0 %v3810
        %3970 = vmatpush1.msra.mxu0 %v3809
        %3971 = vmatprep.subr.mxu0 %v3826
        %3972 = vmatpush1.msra.mxu0 %v3825
        %3973 = vmatprep.subr.mxu0 %v3842
        %3974 = vmatpush1.msra.mxu0 %v3841
        %3975 = vmatprep.subr.mxu0 0.0
        %3976 = vmatpush1.msra.mxu0 0.0
        %3977 = vmatprep.subr.mxu0 0.0
        %3978 = vmatpush1.msra.mxu0 0.0
        %3979 = vmatprep.subr.mxu0 0.0
        %3980 = vmatpush1.msra.mxu0 0.0
        %3981 = vmatprep.subr.mxu0 0.0
        %3982 = vmatpush1.msra.mxu0 0.0
        %3983 = vmatprep.subr.mxu0 0.0
        %3984 = vmatpush1.msra.mxu0 0.0
        %3985 = vmatprep.subr.mxu0 0.0
        %3986 = vmatpush1.msra.mxu0 0.0
        %3987 = vmatprep.subr.mxu0 0.0
        %3988 = vmatpush1.msra.mxu0 0.0
        %3989 = vmatprep.subr.mxu0 0.0
        %3990 = vmatpush1.msra.mxu0 0.0
        %3991 = vmatprep.subr.mxu0 0.0
        %3992 = vmatpush1.msra.mxu0 0.0
        %3993 = vmatprep.subr.mxu0 0.0
        %3994 = vmatpush1.msra.mxu0 0.0
        %3995 = vmatprep.subr.mxu0 0.0
        %3996 = vmatpush1.msra.mxu0 0.0
        %3997 = vmatprep.subr.mxu0 0.0
        %3998 = vmatpush1.msra.mxu0 0.0
        %3999 = vmatprep.subr.mxu0 0.0
        %4000 = vmatpush1.msra.mxu0 0.0
        %4001 = vmatprep.subr.mxu0 0.0
        %4002 = vmatpush1.msra.mxu0 0.0
        %4003 = vmatprep.subr.mxu0 0.0
        %4004 = vmatpush1.msra.mxu0 0.0
        %4005 = vmatprep.subr.mxu0 0.0
        %4006 = vmatpush1.msra.mxu0 0.0
        %4007 = vmatprep.mubr.f32.mxu0 0.0
        %4008 = vmatmul.mubr.f32.gmra.mrb[0].mxu0 %v3600
        %v4009 = vpop.f32.mrb[0].mxu0
        %v4010 = vadd.f32 %v3866, %v4009
        %v4011 = vpop.f32.mrb[0].mxu0
        %v4012 = vadd.f32 %v3870, %v4011
        %4013 = vdwg.mxu0
        %4014 = vmatprep.subr.mxu0 %v3604
        %4015 = vmatpush1.msra.mxu0 %v3603
        %4016 = vmatprep.subr.mxu0 %v3620
        %4017 = vmatpush1.msra.mxu0 %v3619
        %4018 = vmatprep.subr.mxu0 %v3636
        %4019 = vmatpush1.msra.mxu0 %v3635
        %4020 = vmatprep.subr.mxu0 %v3652
        %4021 = vmatpush1.msra.mxu0 %v3651
        %4022 = vmatprep.subr.mxu0 %v3668
        %4023 = vmatpush1.msra.mxu0 %v3667
        %4024 = vmatprep.subr.mxu0 %v3684
        %4025 = vmatpush1.msra.mxu0 %v3683
        %4026 = vmatprep.subr.mxu0 %v3700
        %4027 = vmatpush1.msra.mxu0 %v3699
        %4028 = vmatprep.subr.mxu0 %v3716
        %4029 = vmatpush1.msra.mxu0 %v3715
        %4030 = vmatprep.subr.mxu0 %v3732
        %4031 = vmatpush1.msra.mxu0 %v3731
        %4032 = vmatprep.subr.mxu0 %v3748
        %4033 = vmatpush1.msra.mxu0 %v3747
        %4034 = vmatprep.subr.mxu0 %v3764
        %4035 = vmatpush1.msra.mxu0 %v3763
        %4036 = vmatprep.subr.mxu0 %v3780
        %4037 = vmatpush1.msra.mxu0 %v3779
        %4038 = vmatprep.subr.mxu0 %v3796
        %4039 = vmatpush1.msra.mxu0 %v3795
        %4040 = vmatprep.subr.mxu0 %v3812
        %4041 = vmatpush1.msra.mxu0 %v3811
        %4042 = vmatprep.subr.mxu0 %v3828
        %4043 = vmatpush1.msra.mxu0 %v3827
        %4044 = vmatprep.subr.mxu0 %v3844
        %4045 = vmatpush1.msra.mxu0 %v3843
        %4046 = vmatprep.subr.mxu0 0.0
        %4047 = vmatpush1.msra.mxu0 0.0
        %4048 = vmatprep.subr.mxu0 0.0
        %4049 = vmatpush1.msra.mxu0 0.0
        %4050 = vmatprep.subr.mxu0 0.0
        %4051 = vmatpush1.msra.mxu0 0.0
        %4052 = vmatprep.subr.mxu0 0.0
        %4053 = vmatpush1.msra.mxu0 0.0
        %4054 = vmatprep.subr.mxu0 0.0
        %4055 = vmatpush1.msra.mxu0 0.0
        %4056 = vmatprep.subr.mxu0 0.0
        %4057 = vmatpush1.msra.mxu0 0.0
        %4058 = vmatprep.subr.mxu0 0.0
        %4059 = vmatpush1.msra.mxu0 0.0
        %4060 = vmatprep.subr.mxu0 0.0
        %4061 = vmatpush1.msra.mxu0 0.0
        %4062 = vmatprep.subr.mxu0 0.0
        %4063 = vmatpush1.msra.mxu0 0.0
        %4064 = vmatprep.subr.mxu0 0.0
        %4065 = vmatpush1.msra.mxu0 0.0
        %4066 = vmatprep.subr.mxu0 0.0
        %4067 = vmatpush1.msra.mxu0 0.0
        %4068 = vmatprep.subr.mxu0 0.0
        %4069 = vmatpush1.msra.mxu0 0.0
        %4070 = vmatprep.subr.mxu0 0.0
        %4071 = vmatpush1.msra.mxu0 0.0
        %4072 = vmatprep.subr.mxu0 0.0
        %4073 = vmatpush1.msra.mxu0 0.0
        %4074 = vmatprep.subr.mxu0 0.0
        %4075 = vmatpush1.msra.mxu0 0.0
        %4076 = vmatprep.subr.mxu0 0.0
        %4077 = vmatpush1.msra.mxu0 0.0
        %4078 = vmatprep.mubr.f32.mxu0 0.0
        %4079 = vmatmul.mubr.f32.gmra.mrb[0].mxu0 %v3600
        %v4080 = vpop.f32.mrb[0].mxu0
        %v4081 = vadd.f32 %v3874, %v4080
        %v4082 = vpop.f32.mrb[0].mxu0
        %v4083 = vadd.f32 %v3878, %v4082
        %4084 = vdwg.mxu0
        %4085 = vmatprep.subr.mxu0 %v3606
        %4086 = vmatpush1.msra.mxu0 %v3605
        %4087 = vmatprep.subr.mxu0 %v3622
        %4088 = vmatpush1.msra.mxu0 %v3621
        %4089 = vmatprep.subr.mxu0 %v3638
        %4090 = vmatpush1.msra.mxu0 %v3637
        %4091 = vmatprep.subr.mxu0 %v3654
        %4092 = vmatpush1.msra.mxu0 %v3653
        %4093 = vmatprep.subr.mxu0 %v3670
        %4094 = vmatpush1.msra.mxu0 %v3669
        %4095 = vmatprep.subr.mxu0 %v3686
        %4096 = vmatpush1.msra.mxu0 %v3685
        %4097 = vmatprep.subr.mxu0 %v3702
        %4098 = vmatpush1.msra.mxu0 %v3701
        %4099 = vmatprep.subr.mxu0 %v3718
        %4100 = vmatpush1.msra.mxu0 %v3717
        %4101 = vmatprep.subr.mxu0 %v3734
        %4102 = vmatpush1.msra.mxu0 %v3733
        %4103 = vmatprep.subr.mxu0 %v3750
        %4104 = vmatpush1.msra.mxu0 %v3749
        %4105 = vmatprep.subr.mxu0 %v3766
        %4106 = vmatpush1.msra.mxu0 %v3765
        %4107 = vmatprep.subr.mxu0 %v3782
        %4108 = vmatpush1.msra.mxu0 %v3781
        %4109 = vmatprep.subr.mxu0 %v3798
        %4110 = vmatpush1.msra.mxu0 %v3797
        %4111 = vmatprep.subr.mxu0 %v3814
        %4112 = vmatpush1.msra.mxu0 %v3813
        %4113 = vmatprep.subr.mxu0 %v3830
        %4114 = vmatpush1.msra.mxu0 %v3829
        %4115 = vmatprep.subr.mxu0 %v3846
        %4116 = vmatpush1.msra.mxu0 %v3845
        %4117 = vmatprep.subr.mxu0 0.0
        %4118 = vmatpush1.msra.mxu0 0.0
        %4119 = vmatprep.subr.mxu0 0.0
        %4120 = vmatpush1.msra.mxu0 0.0
        %4121 = vmatprep.subr.mxu0 0.0
        %4122 = vmatpush1.msra.mxu0 0.0
        %4123 = vmatprep.subr.mxu0 0.0
        %4124 = vmatpush1.msra.mxu0 0.0
        %4125 = vmatprep.subr.mxu0 0.0
        %4126 = vmatpush1.msra.mxu0 0.0
        %4127 = vmatprep.subr.mxu0 0.0
        %4128 = vmatpush1.msra.mxu0 0.0
        %4129 = vmatprep.subr.mxu0 0.0
        %4130 = vmatpush1.msra.mxu0 0.0
        %4131 = vmatprep.subr.mxu0 0.0
        %4132 = vmatpush1.msra.mxu0 0.0
        %4133 = vmatprep.subr.mxu0 0.0
        %4134 = vmatpush1.msra.mxu0 0.0
        %4135 = vmatprep.subr.mxu0 0.0
        %4136 = vmatpush1.msra.mxu0 0.0
        %4137 = vmatprep.subr.mxu0 0.0
        %4138 = vmatpush1.msra.mxu0 0.0
        %4139 = vmatprep.subr.mxu0 0.0
        %4140 = vmatpush1.msra.mxu0 0.0
        %4141 = vmatprep.subr.mxu0 0.0
        %4142 = vmatpush1.msra.mxu0 0.0
        %4143 = vmatprep.subr.mxu0 0.0
        %4144 = vmatpush1.msra.mxu0 0.0
        %4145 = vmatprep.subr.mxu0 0.0
        %4146 = vmatpush1.msra.mxu0 0.0
        %4147 = vmatprep.subr.mxu0 0.0
        %4148 = vmatpush1.msra.mxu0 0.0
        %4149 = vmatprep.mubr.f32.mxu0 0.0
        %4150 = vmatmul.mubr.f32.gmra.mrb[0].mxu0 %v3600
        %v4151 = vpop.f32.mrb[0].mxu0
        %v4152 = vadd.f32 %v3882, %v4151
        %v4153 = vpop.f32.mrb[0].mxu0
        %v4154 = vadd.f32 %v3886, %v4153
        %4155 = vdwg.mxu0
        %4156 = vmatprep.subr.mxu0 %v3608
        %4157 = vmatpush1.msra.mxu0 %v3607
        %4158 = vmatprep.subr.mxu0 %v3624
        %4159 = vmatpush1.msra.mxu0 %v3623
        %4160 = vmatprep.subr.mxu0 %v3640
        %4161 = vmatpush1.msra.mxu0 %v3639
        %4162 = vmatprep.subr.mxu0 %v3656
        %4163 = vmatpush1.msra.mxu0 %v3655
        %4164 = vmatprep.subr.mxu0 %v3672
        %4165 = vmatpush1.msra.mxu0 %v3671
        %4166 = vmatprep.subr.mxu0 %v3688
        %4167 = vmatpush1.msra.mxu0 %v3687
        %4168 = vmatprep.subr.mxu0 %v3704
        %4169 = vmatpush1.msra.mxu0 %v3703
        %4170 = vmatprep.subr.mxu0 %v3720
        %4171 = vmatpush1.msra.mxu0 %v3719
        %4172 = vmatprep.subr.mxu0 %v3736
        %4173 = vmatpush1.msra.mxu0 %v3735
        %4174 = vmatprep.subr.mxu0 %v3752
        %4175 = vmatpush1.msra.mxu0 %v3751
        %4176 = vmatprep.subr.mxu0 %v3768
        %4177 = vmatpush1.msra.mxu0 %v3767
        %4178 = vmatprep.subr.mxu0 %v3784
        %4179 = vmatpush1.msra.mxu0 %v3783
        %4180 = vmatprep.subr.mxu0 %v3800
        %4181 = vmatpush1.msra.mxu0 %v3799
        %4182 = vmatprep.subr.mxu0 %v3816
        %4183 = vmatpush1.msra.mxu0 %v3815
        %4184 = vmatprep.subr.mxu0 %v3832
        %4185 = vmatpush1.msra.mxu0 %v3831
        %4186 = vmatprep.subr.mxu0 %v3848
        %4187 = vmatpush1.msra.mxu0 %v3847
        %4188 = vmatprep.subr.mxu0 0.0
        %4189 = vmatpush1.msra.mxu0 0.0
        %4190 = vmatprep.subr.mxu0 0.0
        %4191 = vmatpush1.msra.mxu0 0.0
        %4192 = vmatprep.subr.mxu0 0.0
        %4193 = vmatpush1.msra.mxu0 0.0
        %4194 = vmatprep.subr.mxu0 0.0
        %4195 = vmatpush1.msra.mxu0 0.0
        %4196 = vmatprep.subr.mxu0 0.0
        %4197 = vmatpush1.msra.mxu0 0.0
        %4198 = vmatprep.subr.mxu0 0.0
        %4199 = vmatpush1.msra.mxu0 0.0
        %4200 = vmatprep.subr.mxu0 0.0
        %4201 = vmatpush1.msra.mxu0 0.0
        %4202 = vmatprep.subr.mxu0 0.0
        %4203 = vmatpush1.msra.mxu0 0.0
        %4204 = vmatprep.subr.mxu0 0.0
        %4205 = vmatpush1.msra.mxu0 0.0
        %4206 = vmatprep.subr.mxu0 0.0
        %4207 = vmatpush1.msra.mxu0 0.0
        %4208 = vmatprep.subr.mxu0 0.0
        %4209 = vmatpush1.msra.mxu0 0.0
        %4210 = vmatprep.subr.mxu0 0.0
        %4211 = vmatpush1.msra.mxu0 0.0
        %4212 = vmatprep.subr.mxu0 0.0
        %4213 = vmatpush1.msra.mxu0 0.0
        %4214 = vmatprep.subr.mxu0 0.0
        %4215 = vmatpush1.msra.mxu0 0.0
        %4216 = vmatprep.subr.mxu0 0.0
        %4217 = vmatpush1.msra.mxu0 0.0
        %4218 = vmatprep.subr.mxu0 0.0
        %4219 = vmatpush1.msra.mxu0 0.0
        %4220 = vmatprep.mubr.f32.mxu0 0.0
        %4221 = vmatmul.mubr.f32.gmra.mrb[0].mxu0 %v3600
        %v4222 = vpop.f32.mrb[0].mxu0
        %v4223 = vadd.f32 %v3890, %v4222
        %v4224 = vpop.f32.mrb[0].mxu0
        %v4225 = vadd.f32 %v3894, %v4224
        %4226 = vdwg.mxu0
        %4227 = vmatprep.subr.mxu0 %v3610
        %4228 = vmatpush1.msra.mxu0 %v3609
        %4229 = vmatprep.subr.mxu0 %v3626
        %4230 = vmatpush1.msra.mxu0 %v3625
        %4231 = vmatprep.subr.mxu0 %v3642
        %4232 = vmatpush1.msra.mxu0 %v3641
        %4233 = vmatprep.subr.mxu0 %v3658
        %4234 = vmatpush1.msra.mxu0 %v3657
        %4235 = vmatprep.subr.mxu0 %v3674
        %4236 = vmatpush1.msra.mxu0 %v3673
        %4237 = vmatprep.subr.mxu0 %v3690
        %4238 = vmatpush1.msra.mxu0 %v3689
        %4239 = vmatprep.subr.mxu0 %v3706
        %4240 = vmatpush1.msra.mxu0 %v3705
        %4241 = vmatprep.subr.mxu0 %v3722
        %4242 = vmatpush1.msra.mxu0 %v3721
        %4243 = vmatprep.subr.mxu0 %v3738
        %4244 = vmatpush1.msra.mxu0 %v3737
        %4245 = vmatprep.subr.mxu0 %v3754
        %4246 = vmatpush1.msra.mxu0 %v3753
        %4247 = vmatprep.subr.mxu0 %v3770
        %4248 = vmatpush1.msra.mxu0 %v3769
        %4249 = vmatprep.subr.mxu0 %v3786
        %4250 = vmatpush1.msra.mxu0 %v3785
        %4251 = vmatprep.subr.mxu0 %v3802
        %4252 = vmatpush1.msra.mxu0 %v3801
        %4253 = vmatprep.subr.mxu0 %v3818
        %4254 = vmatpush1.msra.mxu0 %v3817
        %4255 = vmatprep.subr.mxu0 %v3834
        %4256 = vmatpush1.msra.mxu0 %v3833
        %4257 = vmatprep.subr.mxu0 %v3850
        %4258 = vmatpush1.msra.mxu0 %v3849
        %4259 = vmatprep.subr.mxu0 0.0
        %4260 = vmatpush1.msra.mxu0 0.0
        %4261 = vmatprep.subr.mxu0 0.0
        %4262 = vmatpush1.msra.mxu0 0.0
        %4263 = vmatprep.subr.mxu0 0.0
        %4264 = vmatpush1.msra.mxu0 0.0
        %4265 = vmatprep.subr.mxu0 0.0
        %4266 = vmatpush1.msra.mxu0 0.0
        %4267 = vmatprep.subr.mxu0 0.0
        %4268 = vmatpush1.msra.mxu0 0.0
        %4269 = vmatprep.subr.mxu0 0.0
        %4270 = vmatpush1.msra.mxu0 0.0
        %4271 = vmatprep.subr.mxu0 0.0
        %4272 = vmatpush1.msra.mxu0 0.0
        %4273 = vmatprep.subr.mxu0 0.0
        %4274 = vmatpush1.msra.mxu0 0.0
        %4275 = vmatprep.subr.mxu0 0.0
        %4276 = vmatpush1.msra.mxu0 0.0
        %4277 = vmatprep.subr.mxu0 0.0
        %4278 = vmatpush1.msra.mxu0 0.0
        %4279 = vmatprep.subr.mxu0 0.0
        %4280 = vmatpush1.msra.mxu0 0.0
        %4281 = vmatprep.subr.mxu0 0.0
        %4282 = vmatpush1.msra.mxu0 0.0
        %4283 = vmatprep.subr.mxu0 0.0
        %4284 = vmatpush1.msra.mxu0 0.0
        %4285 = vmatprep.subr.mxu0 0.0
        %4286 = vmatpush1.msra.mxu0 0.0
        %4287 = vmatprep.subr.mxu0 0.0
        %4288 = vmatpush1.msra.mxu0 0.0
        %4289 = vmatprep.subr.mxu0 0.0
        %4290 = vmatpush1.msra.mxu0 0.0
        %4291 = vmatprep.mubr.f32.mxu0 0.0
        %4292 = vmatmul.mubr.f32.gmra.mrb[0].mxu0 %v3600
        %v4293 = vpop.f32.mrb[0].mxu0
        %v4294 = vadd.f32 %v3898, %v4293
        %v4295 = vpop.f32.mrb[0].mxu0
        %v4296 = vadd.f32 %v3902, %v4295
        %4297 = vdwg.mxu0
        %4298 = vmatprep.subr.mxu0 %v3612
        %4299 = vmatpush1.msra.mxu0 %v3611
        %4300 = vmatprep.subr.mxu0 %v3628
        %4301 = vmatpush1.msra.mxu0 %v3627
        %4302 = vmatprep.subr.mxu0 %v3644
        %4303 = vmatpush1.msra.mxu0 %v3643
        %4304 = vmatprep.subr.mxu0 %v3660
        %4305 = vmatpush1.msra.mxu0 %v3659
        %4306 = vmatprep.subr.mxu0 %v3676
        %4307 = vmatpush1.msra.mxu0 %v3675
        %4308 = vmatprep.subr.mxu0 %v3692
        %4309 = vmatpush1.msra.mxu0 %v3691
        %4310 = vmatprep.subr.mxu0 %v3708
        %4311 = vmatpush1.msra.mxu0 %v3707
        %4312 = vmatprep.subr.mxu0 %v3724
        %4313 = vmatpush1.msra.mxu0 %v3723
        %4314 = vmatprep.subr.mxu0 %v3740
        %4315 = vmatpush1.msra.mxu0 %v3739
        %4316 = vmatprep.subr.mxu0 %v3756
        %4317 = vmatpush1.msra.mxu0 %v3755
        %4318 = vmatprep.subr.mxu0 %v3772
        %4319 = vmatpush1.msra.mxu0 %v3771
        %4320 = vmatprep.subr.mxu0 %v3788
        %4321 = vmatpush1.msra.mxu0 %v3787
        %4322 = vmatprep.subr.mxu0 %v3804
        %4323 = vmatpush1.msra.mxu0 %v3803
        %4324 = vmatprep.subr.mxu0 %v3820
        %4325 = vmatpush1.msra.mxu0 %v3819
        %4326 = vmatprep.subr.mxu0 %v3836
        %4327 = vmatpush1.msra.mxu0 %v3835
        %4328 = vmatprep.subr.mxu0 %v3852
        %4329 = vmatpush1.msra.mxu0 %v3851
        %4330 = vmatprep.subr.mxu0 0.0
        %4331 = vmatpush1.msra.mxu0 0.0
        %4332 = vmatprep.subr.mxu0 0.0
        %4333 = vmatpush1.msra.mxu0 0.0
        %4334 = vmatprep.subr.mxu0 0.0
        %4335 = vmatpush1.msra.mxu0 0.0
        %4336 = vmatprep.subr.mxu0 0.0
        %4337 = vmatpush1.msra.mxu0 0.0
        %4338 = vmatprep.subr.mxu0 0.0
        %4339 = vmatpush1.msra.mxu0 0.0
        %4340 = vmatprep.subr.mxu0 0.0
        %4341 = vmatpush1.msra.mxu0 0.0
        %4342 = vmatprep.subr.mxu0 0.0
        %4343 = vmatpush1.msra.mxu0 0.0
        %4344 = vmatprep.subr.mxu0 0.0
        %4345 = vmatpush1.msra.mxu0 0.0
        %4346 = vmatprep.subr.mxu0 0.0
        %4347 = vmatpush1.msra.mxu0 0.0
        %4348 = vmatprep.subr.mxu0 0.0
        %4349 = vmatpush1.msra.mxu0 0.0
        %4350 = vmatprep.subr.mxu0 0.0
        %4351 = vmatpush1.msra.mxu0 0.0
        %4352 = vmatprep.subr.mxu0 0.0
        %4353 = vmatpush1.msra.mxu0 0.0
        %4354 = vmatprep.subr.mxu0 0.0
        %4355 = vmatpush1.msra.mxu0 0.0
        %4356 = vmatprep.subr.mxu0 0.0
        %4357 = vmatpush1.msra.mxu0 0.0
        %4358 = vmatprep.subr.mxu0 0.0
        %4359 = vmatpush1.msra.mxu0 0.0
        %4360 = vmatprep.subr.mxu0 0.0
        %4361 = vmatpush1.msra.mxu0 0.0
        %4362 = vmatprep.mubr.f32.mxu0 0.0
        %4363 = vmatmul.mubr.f32.gmra.mrb[0].mxu0 %v3600
        %v4364 = vpop.f32.mrb[0].mxu0
        %v4365 = vadd.f32 %v3906, %v4364
        %v4366 = vpop.f32.mrb[0].mxu0
        %v4367 = vadd.f32 %v3910, %v4366
        %4368 = vdwg.mxu0
        %4369 = vmatprep.subr.mxu0 %v3614
        %4370 = vmatpush1.msra.mxu0 %v3613
        %4371 = vmatprep.subr.mxu0 %v3630
        %4372 = vmatpush1.msra.mxu0 %v3629
        %4373 = vmatprep.subr.mxu0 %v3646
        %4374 = vmatpush1.msra.mxu0 %v3645
        %4375 = vmatprep.subr.mxu0 %v3662
        %4376 = vmatpush1.msra.mxu0 %v3661
        %4377 = vmatprep.subr.mxu0 %v3678
        %4378 = vmatpush1.msra.mxu0 %v3677
        %4379 = vmatprep.subr.mxu0 %v3694
        %4380 = vmatpush1.msra.mxu0 %v3693
        %4381 = vmatprep.subr.mxu0 %v3710
        %4382 = vmatpush1.msra.mxu0 %v3709
        %4383 = vmatprep.subr.mxu0 %v3726
        %4384 = vmatpush1.msra.mxu0 %v3725
        %4385 = vmatprep.subr.mxu0 %v3742
        %4386 = vmatpush1.msra.mxu0 %v3741
        %4387 = vmatprep.subr.mxu0 %v3758
        %4388 = vmatpush1.msra.mxu0 %v3757
        %4389 = vmatprep.subr.mxu0 %v3774
        %4390 = vmatpush1.msra.mxu0 %v3773
        %4391 = vmatprep.subr.mxu0 %v3790
        %4392 = vmatpush1.msra.mxu0 %v3789
        %4393 = vmatprep.subr.mxu0 %v3806
        %4394 = vmatpush1.msra.mxu0 %v3805
        %4395 = vmatprep.subr.mxu0 %v3822
        %4396 = vmatpush1.msra.mxu0 %v3821
        %4397 = vmatprep.subr.mxu0 %v3838
        %4398 = vmatpush1.msra.mxu0 %v3837
        %4399 = vmatprep.subr.mxu0 %v3854
        %4400 = vmatpush1.msra.mxu0 %v3853
        %4401 = vmatprep.subr.mxu0 0.0
        %4402 = vmatpush1.msra.mxu0 0.0
        %4403 = vmatprep.subr.mxu0 0.0
        %4404 = vmatpush1.msra.mxu0 0.0
        %4405 = vmatprep.subr.mxu0 0.0
        %4406 = vmatpush1.msra.mxu0 0.0
        %4407 = vmatprep.subr.mxu0 0.0
        %4408 = vmatpush1.msra.mxu0 0.0
        %4409 = vmatprep.subr.mxu0 0.0
        %4410 = vmatpush1.msra.mxu0 0.0
        %4411 = vmatprep.subr.mxu0 0.0
        %4412 = vmatpush1.msra.mxu0 0.0
        %4413 = vmatprep.subr.mxu0 0.0
        %4414 = vmatpush1.msra.mxu0 0.0
        %4415 = vmatprep.subr.mxu0 0.0
        %4416 = vmatpush1.msra.mxu0 0.0
        %4417 = vmatprep.subr.mxu0 0.0
        %4418 = vmatpush1.msra.mxu0 0.0
        %4419 = vmatprep.subr.mxu0 0.0
        %4420 = vmatpush1.msra.mxu0 0.0
        %4421 = vmatprep.subr.mxu0 0.0
        %4422 = vmatpush1.msra.mxu0 0.0
        %4423 = vmatprep.subr.mxu0 0.0
        %4424 = vmatpush1.msra.mxu0 0.0
        %4425 = vmatprep.subr.mxu0 0.0
        %4426 = vmatpush1.msra.mxu0 0.0
        %4427 = vmatprep.subr.mxu0 0.0
        %4428 = vmatpush1.msra.mxu0 0.0
        %4429 = vmatprep.subr.mxu0 0.0
        %4430 = vmatpush1.msra.mxu0 0.0
        %4431 = vmatprep.subr.mxu0 0.0
        %4432 = vmatpush1.msra.mxu0 0.0
        %4433 = vmatprep.mubr.f32.mxu0 0.0
        %4434 = vmatmul.mubr.f32.gmra.mrb[0].mxu0 %v3600
        %v4435 = vpop.f32.mrb[0].mxu0
        %v4436 = vadd.f32 %v3914, %v4435
        %v4437 = vpop.f32.mrb[0].mxu0
        %v4438 = vadd.f32 %v3918, %v4437
        %4439 = vdwg.mxu0
        %4440 = vmatprep.subr.mxu0 %v3616
        %4441 = vmatpush1.msra.mxu0 %v3615
        %4442 = vmatprep.subr.mxu0 %v3632
        %4443 = vmatpush1.msra.mxu0 %v3631
        %4444 = vmatprep.subr.mxu0 %v3648
        %4445 = vmatpush1.msra.mxu0 %v3647
        %4446 = vmatprep.subr.mxu0 %v3664
        %4447 = vmatpush1.msra.mxu0 %v3663
        %4448 = vmatprep.subr.mxu0 %v3680
        %4449 = vmatpush1.msra.mxu0 %v3679
        %4450 = vmatprep.subr.mxu0 %v3696
        %4451 = vmatpush1.msra.mxu0 %v3695
        %4452 = vmatprep.subr.mxu0 %v3712
        %4453 = vmatpush1.msra.mxu0 %v3711
        %4454 = vmatprep.subr.mxu0 %v3728
        %4455 = vmatpush1.msra.mxu0 %v3727
        %4456 = vmatprep.subr.mxu0 %v3744
        %4457 = vmatpush1.msra.mxu0 %v3743
        %4458 = vmatprep.subr.mxu0 %v3760
        %4459 = vmatpush1.msra.mxu0 %v3759
        %4460 = vmatprep.subr.mxu0 %v3776
        %4461 = vmatpush1.msra.mxu0 %v3775
        %4462 = vmatprep.subr.mxu0 %v3792
        %4463 = vmatpush1.msra.mxu0 %v3791
        %4464 = vmatprep.subr.mxu0 %v3808
        %4465 = vmatpush1.msra.mxu0 %v3807
        %4466 = vmatprep.subr.mxu0 %v3824
        %4467 = vmatpush1.msra.mxu0 %v3823
        %4468 = vmatprep.subr.mxu0 %v3840
        %4469 = vmatpush1.msra.mxu0 %v3839
        %4470 = vmatprep.subr.mxu0 %v3856
        %4471 = vmatpush1.msra.mxu0 %v3855
        %4472 = vmatprep.subr.mxu0 0.0
        %4473 = vmatpush1.msra.mxu0 0.0
        %4474 = vmatprep.subr.mxu0 0.0
        %4475 = vmatpush1.msra.mxu0 0.0
        %4476 = vmatprep.subr.mxu0 0.0
        %4477 = vmatpush1.msra.mxu0 0.0
        %4478 = vmatprep.subr.mxu0 0.0
        %4479 = vmatpush1.msra.mxu0 0.0
        %4480 = vmatprep.subr.mxu0 0.0
        %4481 = vmatpush1.msra.mxu0 0.0
        %4482 = vmatprep.subr.mxu0 0.0
        %4483 = vmatpush1.msra.mxu0 0.0
        %4484 = vmatprep.subr.mxu0 0.0
        %4485 = vmatpush1.msra.mxu0 0.0
        %4486 = vmatprep.subr.mxu0 0.0
        %4487 = vmatpush1.msra.mxu0 0.0
        %4488 = vmatprep.subr.mxu0 0.0
        %4489 = vmatpush1.msra.mxu0 0.0
        %4490 = vmatprep.subr.mxu0 0.0
        %4491 = vmatpush1.msra.mxu0 0.0
        %4492 = vmatprep.subr.mxu0 0.0
        %4493 = vmatpush1.msra.mxu0 0.0
        %4494 = vmatprep.subr.mxu0 0.0
        %4495 = vmatpush1.msra.mxu0 0.0
        %4496 = vmatprep.subr.mxu0 0.0
        %4497 = vmatpush1.msra.mxu0 0.0
        %4498 = vmatprep.subr.mxu0 0.0
        %4499 = vmatpush1.msra.mxu0 0.0
        %4500 = vmatprep.subr.mxu0 0.0
        %4501 = vmatpush1.msra.mxu0 0.0
        %4502 = vmatprep.subr.mxu0 0.0
        %4503 = vmatpush1.msra.mxu0 0.0
        %4504 = vmatprep.mubr.f32.mxu0 0.0
        %4505 = vmatmul.mubr.f32.gmra.mrb[0].mxu0 %v3600
        %v4506 = vpop.f32.mrb[0].mxu0
        %v4507 = vadd.f32 %v3922, %v4506
        %v4508 = vpop.f32.mrb[0].mxu0
        %v4509 = vadd.f32 %v3926, %v4508
        %4510 = vdwg.mxu0
        %v4511 = vxor.u32 %v4010, 2147483648
        %v4512 = vxor.u32 %v4012, 2147483648
        %v4513 = vxor.u32 %v4081, 2147483648
        %v4514 = vxor.u32 %v4083, 2147483648
        %v4515 = vxor.u32 %v4152, 2147483648
        %v4516 = vxor.u32 %v4154, 2147483648
        %v4517 = vxor.u32 %v4223, 2147483648
        %v4518 = vxor.u32 %v4225, 2147483648
        %v4519 = vxor.u32 %v4294, 2147483648
        %v4520 = vxor.u32 %v4296, 2147483648
        %v4521 = vxor.u32 %v4365, 2147483648
        %v4522 = vxor.u32 %v4367, 2147483648
        %v4523 = vxor.u32 %v4436, 2147483648
        %v4524 = vxor.u32 %v4438, 2147483648
        %v4525 = vxor.u32 %v4507, 2147483648
        %v4526 = vxor.u32 %v4509, 2147483648
        %v4527 = vmul.f32 %v4511, 1.442695
        %v4528 = vpow.pop %v4527
        %v4529 = vmul.f32 %v4512, 1.442695
        %v4530 = vpow.pop %v4529
        %v4531 = vmul.f32 %v4513, 1.442695
        %v4532 = vpow.pop %v4531
        %v4533 = vmul.f32 %v4514, 1.442695
        %v4534 = vpow.pop %v4533
        %v4535 = vmul.f32 %v4515, 1.442695
        %v4536 = vpow.pop %v4535
        %v4537 = vmul.f32 %v4516, 1.442695
        %v4538 = vpow.pop %v4537
        %v4539 = vmul.f32 %v4517, 1.442695
        %v4540 = vpow.pop %v4539
        %v4541 = vmul.f32 %v4518, 1.442695
        %v4542 = vpow.pop %v4541
        %v4543 = vmul.f32 %v4519, 1.442695
        %v4544 = vpow.pop %v4543
        %v4545 = vmul.f32 %v4520, 1.442695
        %v4546 = vpow.pop %v4545
        %v4547 = vmul.f32 %v4521, 1.442695
        %v4548 = vpow.pop %v4547
        %v4549 = vmul.f32 %v4522, 1.442695
        %v4550 = vpow.pop %v4549
        %v4551 = vmul.f32 %v4523, 1.442695
        %v4552 = vpow.pop %v4551
        %v4553 = vmul.f32 %v4524, 1.442695
        %v4554 = vpow.pop %v4553
        %v4555 = vmul.f32 %v4525, 1.442695
        %v4556 = vpow.pop %v4555
        %v4557 = vmul.f32 %v4526, 1.442695
        %v4558 = vpow.pop %v4557
        %v4559 = vadd.f32 %v4528, 1.0
        %v4560 = vadd.f32 %v4530, 1.0
        %v4561 = vadd.f32 %v4532, 1.0
        %v4562 = vadd.f32 %v4534, 1.0
        %v4563 = vadd.f32 %v4536, 1.0
        %v4564 = vadd.f32 %v4538, 1.0
        %v4565 = vadd.f32 %v4540, 1.0
        %v4566 = vadd.f32 %v4542, 1.0
        %v4567 = vadd.f32 %v4544, 1.0
        %v4568 = vadd.f32 %v4546, 1.0
        %v4569 = vadd.f32 %v4548, 1.0
        %v4570 = vadd.f32 %v4550, 1.0
        %v4571 = vadd.f32 %v4552, 1.0
        %v4572 = vadd.f32 %v4554, 1.0
        %v4573 = vadd.f32 %v4556, 1.0
        %v4574 = vadd.f32 %v4558, 1.0
        %v4575 = vrcp.pop %v4559
        %v4576 = vmul.f32 1.0, %v4575
        %v4577 = vrcp.pop %v4560
        %v4578 = vmul.f32 1.0, %v4577
        %v4579 = vrcp.pop %v4561
        %v4580 = vmul.f32 1.0, %v4579
        %v4581 = vrcp.pop %v4562
        %v4582 = vmul.f32 1.0, %v4581
        %v4583 = vrcp.pop %v4563
        %v4584 = vmul.f32 1.0, %v4583
        %v4585 = vrcp.pop %v4564
        %v4586 = vmul.f32 1.0, %v4585
        %v4587 = vrcp.pop %v4565
        %v4588 = vmul.f32 1.0, %v4587
        %v4589 = vrcp.pop %v4566
        %v4590 = vmul.f32 1.0, %v4589
        %v4591 = vrcp.pop %v4567
        %v4592 = vmul.f32 1.0, %v4591
        %v4593 = vrcp.pop %v4568
        %v4594 = vmul.f32 1.0, %v4593
        %v4595 = vrcp.pop %v4569
        %v4596 = vmul.f32 1.0, %v4595
        %v4597 = vrcp.pop %v4570
        %v4598 = vmul.f32 1.0, %v4597
        %v4599 = vrcp.pop %v4571
        %v4600 = vmul.f32 1.0, %v4599
        %v4601 = vrcp.pop %v4572
        %v4602 = vmul.f32 1.0, %v4601
        %v4603 = vrcp.pop %v4573
        %v4604 = vmul.f32 1.0, %v4603
        %v4605 = vrcp.pop %v4574
        %v4606 = vmul.f32 1.0, %v4605
        %s4607 = sld [smem:[#allocation4]]
        %v4608 = vld [vmem:[%s352] sm:$0xff]
        %v4609 = vld [vmem:[%s352 + $0x8] sm:$0xff]
        %v4610 = vld [vmem:[%s352 + $0x10] sm:$0xff]
        %v4611 = vld [vmem:[%s352 + $0x18] sm:$0xff]
        %v4612 = vld [vmem:[%s352 + $0x80] sm:$0xff]
        %v4613 = vld [vmem:[%s352 + $0x88] sm:$0xff]
        %v4614 = vld [vmem:[%s352 + $0x90] sm:$0xff]
        %v4615 = vld [vmem:[%s352 + $0x98] sm:$0xff]
        %v4616 = vld [vmem:[%s352 + $0x100] sm:$0xff]
        %v4617 = vld [vmem:[%s352 + $0x108] sm:$0xff]
        %v4618 = vld [vmem:[%s352 + $0x110] sm:$0xff]
        %v4619 = vld [vmem:[%s352 + $0x118] sm:$0xff]
        %v4620 = vld [vmem:[%s352 + $0x180] sm:$0xff]
        %v4621 = vld [vmem:[%s352 + $0x188] sm:$0xff]
        %v4622 = vld [vmem:[%s352 + $0x190] sm:$0xff]
        %v4623 = vld [vmem:[%s352 + $0x198] sm:$0xff]
        %v4624 = vld [vmem:[%s352 + $0x200] sm:$0xff]
        %v4625 = vld [vmem:[%s352 + $0x208] sm:$0xff]
        %v4626 = vld [vmem:[%s352 + $0x210] sm:$0xff]
        %v4627 = vld [vmem:[%s352 + $0x218] sm:$0xff]
        %v4628 = vld [vmem:[%s352 + $0x280] sm:$0xff]
        %v4629 = vld [vmem:[%s352 + $0x288] sm:$0xff]
        %v4630 = vld [vmem:[%s352 + $0x290] sm:$0xff]
        %v4631 = vld [vmem:[%s352 + $0x298] sm:$0xff]
        %v4632 = vld [vmem:[%s352 + $0x300] sm:$0xff]
        %v4633 = vld [vmem:[%s352 + $0x308] sm:$0xff]
        %v4634 = vld [vmem:[%s352 + $0x310] sm:$0xff]
        %v4635 = vld [vmem:[%s352 + $0x318] sm:$0xff]
        %v4636 = vld [vmem:[%s352 + $0x380] sm:$0xff]
        %v4637 = vld [vmem:[%s352 + $0x388] sm:$0xff]
        %v4638 = vld [vmem:[%s352 + $0x390] sm:$0xff]
        %v4639 = vld [vmem:[%s352 + $0x398] sm:$0xff]
        %v4640 = vlaneseq
        %v4641 = vshrl.u32 %v4640, 7
        %v4642 = vsub.s32 0, %v4641
        %v4643 = vrot.slane %v4576, %v4642
        %v4644 = vlaneseq
        %v4645 = vshrl.u32 %v4644, 7
        %v4646 = vsub.s32 0, %v4645
        %v4647 = vrot.slane %v4578, %v4646
        %v4648 = vlaneseq
        %v4649 = vshrl.u32 %v4648, 7
        %v4650 = vsub.s32 0, %v4649
        %v4651 = vrot.slane %v4580, %v4650
        %v4652 = vlaneseq
        %v4653 = vshrl.u32 %v4652, 7
        %v4654 = vsub.s32 0, %v4653
        %v4655 = vrot.slane %v4582, %v4654
        %v4656 = vmul.f32 %v4608, %v4643
        %v4657 = vmul.f32 %v4609, %v4647
        %v4658 = vmul.f32 %v4610, %v4651
        %v4659 = vmul.f32 %v4611, %v4655
        %v4660 = vmul.f32 %v4612, %v4643
        %v4661 = vmul.f32 %v4613, %v4647
        %v4662 = vmul.f32 %v4614, %v4651
        %v4663 = vmul.f32 %v4615, %v4655
        %v4664 = vmul.f32 %v4616, %v4643
        %v4665 = vmul.f32 %v4617, %v4647
        %v4666 = vmul.f32 %v4618, %v4651
        %v4667 = vmul.f32 %v4619, %v4655
        %v4668 = vmul.f32 %v4620, %v4643
        %v4669 = vmul.f32 %v4621, %v4647
        %v4670 = vmul.f32 %v4622, %v4651
        %v4671 = vmul.f32 %v4623, %v4655
        %v4672 = vmul.f32 %v4624, %v4643
        %v4673 = vmul.f32 %v4625, %v4647
        %v4674 = vmul.f32 %v4626, %v4651
        %v4675 = vmul.f32 %v4627, %v4655
        %v4676 = vmul.f32 %v4628, %v4643
        %v4677 = vmul.f32 %v4629, %v4647
        %v4678 = vmul.f32 %v4630, %v4651
        %v4679 = vmul.f32 %v4631, %v4655
        %v4680 = vmul.f32 %v4632, %v4643
        %v4681 = vmul.f32 %v4633, %v4647
        %v4682 = vmul.f32 %v4634, %v4651
        %v4683 = vmul.f32 %v4635, %v4655
        %v4684 = vmul.f32 %v4636, %v4643
        %v4685 = vmul.f32 %v4637, %v4647
        %v4686 = vmul.f32 %v4638, %v4651
        %v4687 = vmul.f32 %v4639, %v4655
        %v4688 = vadd.f32 %v4656, %v4657
        %v4689 = vadd.f32 %v4688, %v4658
        %v4690 = vadd.f32 %v4689, %v4659
        %4691 = vadd.xlane.f32.xlu0 %v4690
        %v4692 = vpop.xlane.xlu0 %4691
        %v4693 = vadd.f32 %v4660, %v4661
        %v4694 = vadd.f32 %v4693, %v4662
        %v4695 = vadd.f32 %v4694, %v4663
        %4696 = vadd.xlane.f32.xlu0 %v4695
        %v4697 = vpop.xlane.xlu0 %4696
        %v4698 = vadd.f32 %v4664, %v4665
        %v4699 = vadd.f32 %v4698, %v4666
        %v4700 = vadd.f32 %v4699, %v4667
        %4701 = vadd.xlane.f32.xlu0 %v4700
        %v4702 = vpop.xlane.xlu0 %4701
        %v4703 = vadd.f32 %v4668, %v4669
        %v4704 = vadd.f32 %v4703, %v4670
        %v4705 = vadd.f32 %v4704, %v4671
        %4706 = vadd.xlane.f32.xlu0 %v4705
        %v4707 = vpop.xlane.xlu0 %4706
        %v4708 = vadd.f32 %v4672, %v4673
        %v4709 = vadd.f32 %v4708, %v4674
        %v4710 = vadd.f32 %v4709, %v4675
        %4711 = vadd.xlane.f32.xlu0 %v4710
        %v4712 = vpop.xlane.xlu0 %4711
        %v4713 = vadd.f32 %v4676, %v4677
        %v4714 = vadd.f32 %v4713, %v4678
        %v4715 = vadd.f32 %v4714, %v4679
        %4716 = vadd.xlane.f32.xlu0 %v4715
        %v4717 = vpop.xlane.xlu0 %4716
        %v4718 = vadd.f32 %v4680, %v4681
        %v4719 = vadd.f32 %v4718, %v4682
        %v4720 = vadd.f32 %v4719, %v4683
        %4721 = vadd.xlane.f32.xlu0 %v4720
        %v4722 = vpop.xlane.xlu0 %4721
        %v4723 = vadd.f32 %v4684, %v4685
        %v4724 = vadd.f32 %v4723, %v4686
        %v4725 = vadd.f32 %v4724, %v4687
        %4726 = vadd.xlane.f32.xlu0 %v4725
        %v4727 = vpop.xlane.xlu0 %4726
        %v4728 = vadd.f32 %v4692, 0.0
        %v4729 = vadd.f32 %v4697, 0.0
        %v4730 = vadd.f32 %v4702, 0.0
        %v4731 = vadd.f32 %v4707, 0.0
        %v4732 = vadd.f32 %v4712, 0.0
        %v4733 = vadd.f32 %v4717, 0.0
        %v4734 = vadd.f32 %v4722, 0.0
        %v4735 = vadd.f32 %v4727, 0.0
        %v4736 = vmax.f32 %v4656, %v4657
        %v4737 = vmax.f32 %v4736, %v4658
        %v4738 = vmax.f32 %v4737, %v4659
        %4739 = vmax.xlane.f32.xlu0 %v4738
        %v4740 = vpop.xlane.xlu0 %4739
        %v4741 = vmax.f32 %v4660, %v4661
        %v4742 = vmax.f32 %v4741, %v4662
        %v4743 = vmax.f32 %v4742, %v4663
        %4744 = vmax.xlane.f32.xlu0 %v4743
        %v4745 = vpop.xlane.xlu0 %4744
        %v4746 = vmax.f32 %v4664, %v4665
        %v4747 = vmax.f32 %v4746, %v4666
        %v4748 = vmax.f32 %v4747, %v4667
        %4749 = vmax.xlane.f32.xlu0 %v4748
        %v4750 = vpop.xlane.xlu0 %4749
        %v4751 = vmax.f32 %v4668, %v4669
        %v4752 = vmax.f32 %v4751, %v4670
        %v4753 = vmax.f32 %v4752, %v4671
        %4754 = vmax.xlane.f32.xlu0 %v4753
        %v4755 = vpop.xlane.xlu0 %4754
        %v4756 = vmax.f32 %v4672, %v4673
        %v4757 = vmax.f32 %v4756, %v4674
        %v4758 = vmax.f32 %v4757, %v4675
        %4759 = vmax.xlane.f32.xlu0 %v4758
        %v4760 = vpop.xlane.xlu0 %4759
        %v4761 = vmax.f32 %v4676, %v4677
        %v4762 = vmax.f32 %v4761, %v4678
        %v4763 = vmax.f32 %v4762, %v4679
        %4764 = vmax.xlane.f32.xlu0 %v4763
        %v4765 = vpop.xlane.xlu0 %4764
        %v4766 = vmax.f32 %v4680, %v4681
        %v4767 = vmax.f32 %v4766, %v4682
        %v4768 = vmax.f32 %v4767, %v4683
        %4769 = vmax.xlane.f32.xlu0 %v4768
        %v4770 = vpop.xlane.xlu0 %4769
        %v4771 = vmax.f32 %v4684, %v4685
        %v4772 = vmax.f32 %v4771, %v4686
        %v4773 = vmax.f32 %v4772, %v4687
        %4774 = vmax.xlane.f32.xlu0 %v4773
        %v4775 = vpop.xlane.xlu0 %4774
        %v4776 = vld [vmem:[%s352 + $0x20] sm:$0xff]
        %v4777 = vld [vmem:[%s352 + $0x28] sm:$0xff]
        %v4778 = vld [vmem:[%s352 + $0x30] sm:$0xff]
        %v4779 = vld [vmem:[%s352 + $0x38] sm:$0xff]
        %v4780 = vld [vmem:[%s352 + $0xa0] sm:$0xff]
        %v4781 = vld [vmem:[%s352 + $0xa8] sm:$0xff]
        %v4782 = vld [vmem:[%s352 + $0xb0] sm:$0xff]
        %v4783 = vld [vmem:[%s352 + $0xb8] sm:$0xff]
        %v4784 = vld [vmem:[%s352 + $0x120] sm:$0xff]
        %v4785 = vld [vmem:[%s352 + $0x128] sm:$0xff]
        %v4786 = vld [vmem:[%s352 + $0x130] sm:$0xff]
        %v4787 = vld [vmem:[%s352 + $0x138] sm:$0xff]
        %v4788 = vld [vmem:[%s352 + $0x1a0] sm:$0xff]
        %v4789 = vld [vmem:[%s352 + $0x1a8] sm:$0xff]
        %v4790 = vld [vmem:[%s352 + $0x1b0] sm:$0xff]
        %v4791 = vld [vmem:[%s352 + $0x1b8] sm:$0xff]
        %v4792 = vld [vmem:[%s352 + $0x220] sm:$0xff]
        %v4793 = vld [vmem:[%s352 + $0x228] sm:$0xff]
        %v4794 = vld [vmem:[%s352 + $0x230] sm:$0xff]
        %v4795 = vld [vmem:[%s352 + $0x238] sm:$0xff]
        %v4796 = vld [vmem:[%s352 + $0x2a0] sm:$0xff]
        %v4797 = vld [vmem:[%s352 + $0x2a8] sm:$0xff]
        %v4798 = vld [vmem:[%s352 + $0x2b0] sm:$0xff]
        %v4799 = vld [vmem:[%s352 + $0x2b8] sm:$0xff]
        %v4800 = vld [vmem:[%s352 + $0x320] sm:$0xff]
        %v4801 = vld [vmem:[%s352 + $0x328] sm:$0xff]
        %v4802 = vld [vmem:[%s352 + $0x330] sm:$0xff]
        %v4803 = vld [vmem:[%s352 + $0x338] sm:$0xff]
        %v4804 = vld [vmem:[%s352 + $0x3a0] sm:$0xff]
        %v4805 = vld [vmem:[%s352 + $0x3a8] sm:$0xff]
        %v4806 = vld [vmem:[%s352 + $0x3b0] sm:$0xff]
        %v4807 = vld [vmem:[%s352 + $0x3b8] sm:$0xff]
        %v4808 = vlaneseq
        %v4809 = vshrl.u32 %v4808, 7
        %v4810 = vsub.s32 0, %v4809
        %v4811 = vrot.slane %v4584, %v4810
        %v4812 = vlaneseq
        %v4813 = vshrl.u32 %v4812, 7
        %v4814 = vsub.s32 0, %v4813
        %v4815 = vrot.slane %v4586, %v4814
        %v4816 = vlaneseq
        %v4817 = vshrl.u32 %v4816, 7
        %v4818 = vsub.s32 0, %v4817
        %v4819 = vrot.slane %v4588, %v4818
        %v4820 = vlaneseq
        %v4821 = vshrl.u32 %v4820, 7
        %v4822 = vsub.s32 0, %v4821
        %v4823 = vrot.slane %v4590, %v4822
        %v4824 = vmul.f32 %v4776, %v4811
        %v4825 = vmul.f32 %v4777, %v4815
        %v4826 = vmul.f32 %v4778, %v4819
        %v4827 = vmul.f32 %v4779, %v4823
        %v4828 = vmul.f32 %v4780, %v4811
        %v4829 = vmul.f32 %v4781, %v4815
        %v4830 = vmul.f32 %v4782, %v4819
        %v4831 = vmul.f32 %v4783, %v4823
        %v4832 = vmul.f32 %v4784, %v4811
        %v4833 = vmul.f32 %v4785, %v4815
        %v4834 = vmul.f32 %v4786, %v4819
        %v4835 = vmul.f32 %v4787, %v4823
        %v4836 = vmul.f32 %v4788, %v4811
        %v4837 = vmul.f32 %v4789, %v4815
        %v4838 = vmul.f32 %v4790, %v4819
        %v4839 = vmul.f32 %v4791, %v4823
        %v4840 = vmul.f32 %v4792, %v4811
        %v4841 = vmul.f32 %v4793, %v4815
        %v4842 = vmul.f32 %v4794, %v4819
        %v4843 = vmul.f32 %v4795, %v4823
        %v4844 = vmul.f32 %v4796, %v4811
        %v4845 = vmul.f32 %v4797, %v4815
        %v4846 = vmul.f32 %v4798, %v4819
        %v4847 = vmul.f32 %v4799, %v4823
        %v4848 = vmul.f32 %v4800, %v4811
        %v4849 = vmul.f32 %v4801, %v4815
        %v4850 = vmul.f32 %v4802, %v4819
        %v4851 = vmul.f32 %v4803, %v4823
        %v4852 = vmul.f32 %v4804, %v4811
        %v4853 = vmul.f32 %v4805, %v4815
        %v4854 = vmul.f32 %v4806, %v4819
        %v4855 = vmul.f32 %v4807, %v4823
        %v4856 = vadd.f32 %v4824, %v4825
        %v4857 = vadd.f32 %v4856, %v4826
        %v4858 = vadd.f32 %v4857, %v4827
        %4859 = vadd.xlane.f32.xlu0 %v4858
        %v4860 = vpop.xlane.xlu0 %4859
        %v4861 = vadd.f32 %v4828, %v4829
        %v4862 = vadd.f32 %v4861, %v4830
        %v4863 = vadd.f32 %v4862, %v4831
        %4864 = vadd.xlane.f32.xlu0 %v4863
        %v4865 = vpop.xlane.xlu0 %4864
        %v4866 = vadd.f32 %v4832, %v4833
        %v4867 = vadd.f32 %v4866, %v4834
        %v4868 = vadd.f32 %v4867, %v4835
        %4869 = vadd.xlane.f32.xlu0 %v4868
        %v4870 = vpop.xlane.xlu0 %4869
        %v4871 = vadd.f32 %v4836, %v4837
        %v4872 = vadd.f32 %v4871, %v4838
        %v4873 = vadd.f32 %v4872, %v4839
        %4874 = vadd.xlane.f32.xlu0 %v4873
        %v4875 = vpop.xlane.xlu0 %4874
        %v4876 = vadd.f32 %v4840, %v4841
        %v4877 = vadd.f32 %v4876, %v4842
        %v4878 = vadd.f32 %v4877, %v4843
        %4879 = vadd.xlane.f32.xlu0 %v4878
        %v4880 = vpop.xlane.xlu0 %4879
        %v4881 = vadd.f32 %v4844, %v4845
        %v4882 = vadd.f32 %v4881, %v4846
        %v4883 = vadd.f32 %v4882, %v4847
        %4884 = vadd.xlane.f32.xlu0 %v4883
        %v4885 = vpop.xlane.xlu0 %4884
        %v4886 = vadd.f32 %v4848, %v4849
        %v4887 = vadd.f32 %v4886, %v4850
        %v4888 = vadd.f32 %v4887, %v4851
        %4889 = vadd.xlane.f32.xlu0 %v4888
        %v4890 = vpop.xlane.xlu0 %4889
        %v4891 = vadd.f32 %v4852, %v4853
        %v4892 = vadd.f32 %v4891, %v4854
        %v4893 = vadd.f32 %v4892, %v4855
        %4894 = vadd.xlane.f32.xlu0 %v4893
        %v4895 = vpop.xlane.xlu0 %4894
        %v4896 = vadd.f32 %v4728, %v4860
        %v4897 = vadd.f32 %v4729, %v4865
        %v4898 = vadd.f32 %v4730, %v4870
        %v4899 = vadd.f32 %v4731, %v4875
        %v4900 = vadd.f32 %v4732, %v4880
        %v4901 = vadd.f32 %v4733, %v4885
        %v4902 = vadd.f32 %v4734, %v4890
        %v4903 = vadd.f32 %v4735, %v4895
        %v4904 = vmax.f32 %v4824, %v4825
        %v4905 = vmax.f32 %v4904, %v4826
        %v4906 = vmax.f32 %v4905, %v4827
        %4907 = vmax.xlane.f32.xlu0 %v4906
        %v4908 = vpop.xlane.xlu0 %4907
        %v4909 = vmax.f32 %v4828, %v4829
        %v4910 = vmax.f32 %v4909, %v4830
        %v4911 = vmax.f32 %v4910, %v4831
        %4912 = vmax.xlane.f32.xlu0 %v4911
        %v4913 = vpop.xlane.xlu0 %4912
        %v4914 = vmax.f32 %v4832, %v4833
        %v4915 = vmax.f32 %v4914, %v4834
        %v4916 = vmax.f32 %v4915, %v4835
        %4917 = vmax.xlane.f32.xlu0 %v4916
        %v4918 = vpop.xlane.xlu0 %4917
        %v4919 = vmax.f32 %v4836, %v4837
        %v4920 = vmax.f32 %v4919, %v4838
        %v4921 = vmax.f32 %v4920, %v4839
        %4922 = vmax.xlane.f32.xlu0 %v4921
        %v4923 = vpop.xlane.xlu0 %4922
        %v4924 = vmax.f32 %v4840, %v4841
        %v4925 = vmax.f32 %v4924, %v4842
        %v4926 = vmax.f32 %v4925, %v4843
        %4927 = vmax.xlane.f32.xlu0 %v4926
        %v4928 = vpop.xlane.xlu0 %4927
        %v4929 = vmax.f32 %v4844, %v4845
        %v4930 = vmax.f32 %v4929, %v4846
        %v4931 = vmax.f32 %v4930, %v4847
        %4932 = vmax.xlane.f32.xlu0 %v4931
        %v4933 = vpop.xlane.xlu0 %4932
        %v4934 = vmax.f32 %v4848, %v4849
        %v4935 = vmax.f32 %v4934, %v4850
        %v4936 = vmax.f32 %v4935, %v4851
        %4937 = vmax.xlane.f32.xlu0 %v4936
        %v4938 = vpop.xlane.xlu0 %4937
        %v4939 = vmax.f32 %v4852, %v4853
        %v4940 = vmax.f32 %v4939, %v4854
        %v4941 = vmax.f32 %v4940, %v4855
        %4942 = vmax.xlane.f32.xlu0 %v4941
        %v4943 = vpop.xlane.xlu0 %4942
        %v4944 = vmax.f32 %v4740, %v4908
        %v4945 = vmax.f32 %v4745, %v4913
        %v4946 = vmax.f32 %v4750, %v4918
        %v4947 = vmax.f32 %v4755, %v4923
        %v4948 = vmax.f32 %v4760, %v4928
        %v4949 = vmax.f32 %v4765, %v4933
        %v4950 = vmax.f32 %v4770, %v4938
        %v4951 = vmax.f32 %v4775, %v4943
        %v4952 = vld [vmem:[%s352 + $0x40] sm:$0xff]
        %v4953 = vld [vmem:[%s352 + $0x48] sm:$0xff]
        %v4954 = vld [vmem:[%s352 + $0x50] sm:$0xff]
        %v4955 = vld [vmem:[%s352 + $0x58] sm:$0xff]
        %v4956 = vld [vmem:[%s352 + $0xc0] sm:$0xff]
        %v4957 = vld [vmem:[%s352 + $0xc8] sm:$0xff]
        %v4958 = vld [vmem:[%s352 + $0xd0] sm:$0xff]
        %v4959 = vld [vmem:[%s352 + $0xd8] sm:$0xff]
        %v4960 = vld [vmem:[%s352 + $0x140] sm:$0xff]
        %v4961 = vld [vmem:[%s352 + $0x148] sm:$0xff]
        %v4962 = vld [vmem:[%s352 + $0x150] sm:$0xff]
        %v4963 = vld [vmem:[%s352 + $0x158] sm:$0xff]
        %v4964 = vld [vmem:[%s352 + $0x1c0] sm:$0xff]
        %v4965 = vld [vmem:[%s352 + $0x1c8] sm:$0xff]
        %v4966 = vld [vmem:[%s352 + $0x1d0] sm:$0xff]
        %v4967 = vld [vmem:[%s352 + $0x1d8] sm:$0xff]
        %v4968 = vld [vmem:[%s352 + $0x240] sm:$0xff]
        %v4969 = vld [vmem:[%s352 + $0x248] sm:$0xff]
        %v4970 = vld [vmem:[%s352 + $0x250] sm:$0xff]
        %v4971 = vld [vmem:[%s352 + $0x258] sm:$0xff]
        %v4972 = vld [vmem:[%s352 + $0x2c0] sm:$0xff]
        %v4973 = vld [vmem:[%s352 + $0x2c8] sm:$0xff]
        %v4974 = vld [vmem:[%s352 + $0x2d0] sm:$0xff]
        %v4975 = vld [vmem:[%s352 + $0x2d8] sm:$0xff]
        %v4976 = vld [vmem:[%s352 + $0x340] sm:$0xff]
        %v4977 = vld [vmem:[%s352 + $0x348] sm:$0xff]
        %v4978 = vld [vmem:[%s352 + $0x350] sm:$0xff]
        %v4979 = vld [vmem:[%s352 + $0x358] sm:$0xff]
        %v4980 = vld [vmem:[%s352 + $0x3c0] sm:$0xff]
        %v4981 = vld [vmem:[%s352 + $0x3c8] sm:$0xff]
        %v4982 = vld [vmem:[%s352 + $0x3d0] sm:$0xff]
        %v4983 = vld [vmem:[%s352 + $0x3d8] sm:$0xff]
        %v4984 = vlaneseq
        %v4985 = vshrl.u32 %v4984, 7
        %v4986 = vsub.s32 0, %v4985
        %v4987 = vrot.slane %v4592, %v4986
        %v4988 = vlaneseq
        %v4989 = vshrl.u32 %v4988, 7
        %v4990 = vsub.s32 0, %v4989
        %v4991 = vrot.slane %v4594, %v4990
        %v4992 = vlaneseq
        %v4993 = vshrl.u32 %v4992, 7
        %v4994 = vsub.s32 0, %v4993
        %v4995 = vrot.slane %v4596, %v4994
        %v4996 = vlaneseq
        %v4997 = vshrl.u32 %v4996, 7
        %v4998 = vsub.s32 0, %v4997
        %v4999 = vrot.slane %v4598, %v4998
        %v5000 = vmul.f32 %v4952, %v4987
        %v5001 = vmul.f32 %v4953, %v4991
        %v5002 = vmul.f32 %v4954, %v4995
        %v5003 = vmul.f32 %v4955, %v4999
        %v5004 = vmul.f32 %v4956, %v4987
        %v5005 = vmul.f32 %v4957, %v4991
        %v5006 = vmul.f32 %v4958, %v4995
        %v5007 = vmul.f32 %v4959, %v4999
        %v5008 = vmul.f32 %v4960, %v4987
        %v5009 = vmul.f32 %v4961, %v4991
        %v5010 = vmul.f32 %v4962, %v4995
        %v5011 = vmul.f32 %v4963, %v4999
        %v5012 = vmul.f32 %v4964, %v4987
        %v5013 = vmul.f32 %v4965, %v4991
        %v5014 = vmul.f32 %v4966, %v4995
        %v5015 = vmul.f32 %v4967, %v4999
        %v5016 = vmul.f32 %v4968, %v4987
        %v5017 = vmul.f32 %v4969, %v4991
        %v5018 = vmul.f32 %v4970, %v4995
        %v5019 = vmul.f32 %v4971, %v4999
        %v5020 = vmul.f32 %v4972, %v4987
        %v5021 = vmul.f32 %v4973, %v4991
        %v5022 = vmul.f32 %v4974, %v4995
        %v5023 = vmul.f32 %v4975, %v4999
        %v5024 = vmul.f32 %v4976, %v4987
        %v5025 = vmul.f32 %v4977, %v4991
        %v5026 = vmul.f32 %v4978, %v4995
        %v5027 = vmul.f32 %v4979, %v4999
        %v5028 = vmul.f32 %v4980, %v4987
        %v5029 = vmul.f32 %v4981, %v4991
        %v5030 = vmul.f32 %v4982, %v4995
        %v5031 = vmul.f32 %v4983, %v4999
        %v5032 = vadd.f32 %v5000, %v5001
        %v5033 = vadd.f32 %v5032, %v5002
        %v5034 = vadd.f32 %v5033, %v5003
        %5035 = vadd.xlane.f32.xlu0 %v5034
        %v5036 = vpop.xlane.xlu0 %5035
        %v5037 = vadd.f32 %v5004, %v5005
        %v5038 = vadd.f32 %v5037, %v5006
        %v5039 = vadd.f32 %v5038, %v5007
        %5040 = vadd.xlane.f32.xlu0 %v5039
        %v5041 = vpop.xlane.xlu0 %5040
        %v5042 = vadd.f32 %v5008, %v5009
        %v5043 = vadd.f32 %v5042, %v5010
        %v5044 = vadd.f32 %v5043, %v5011
        %5045 = vadd.xlane.f32.xlu0 %v5044
        %v5046 = vpop.xlane.xlu0 %5045
        %v5047 = vadd.f32 %v5012, %v5013
        %v5048 = vadd.f32 %v5047, %v5014
        %v5049 = vadd.f32 %v5048, %v5015
        %5050 = vadd.xlane.f32.xlu0 %v5049
        %v5051 = vpop.xlane.xlu0 %5050
        %v5052 = vadd.f32 %v5016, %v5017
        %v5053 = vadd.f32 %v5052, %v5018
        %v5054 = vadd.f32 %v5053, %v5019
        %5055 = vadd.xlane.f32.xlu0 %v5054
        %v5056 = vpop.xlane.xlu0 %5055
        %v5057 = vadd.f32 %v5020, %v5021
        %v5058 = vadd.f32 %v5057, %v5022
        %v5059 = vadd.f32 %v5058, %v5023
        %5060 = vadd.xlane.f32.xlu0 %v5059
        %v5061 = vpop.xlane.xlu0 %5060
        %v5062 = vadd.f32 %v5024, %v5025
        %v5063 = vadd.f32 %v5062, %v5026
        %v5064 = vadd.f32 %v5063, %v5027
        %5065 = vadd.xlane.f32.xlu0 %v5064
        %v5066 = vpop.xlane.xlu0 %5065
        %v5067 = vadd.f32 %v5028, %v5029
        %v5068 = vadd.f32 %v5067, %v5030
        %v5069 = vadd.f32 %v5068, %v5031
        %5070 = vadd.xlane.f32.xlu0 %v5069
        %v5071 = vpop.xlane.xlu0 %5070
        %v5072 = vadd.f32 %v4896, %v5036
        %v5073 = vadd.f32 %v4897, %v5041
        %v5074 = vadd.f32 %v4898, %v5046
        %v5075 = vadd.f32 %v4899, %v5051
        %v5076 = vadd.f32 %v4900, %v5056
        %v5077 = vadd.f32 %v4901, %v5061
        %v5078 = vadd.f32 %v4902, %v5066
        %v5079 = vadd.f32 %v4903, %v5071
        %v5080 = vmax.f32 %v5000, %v5001
        %v5081 = vmax.f32 %v5080, %v5002
        %v5082 = vmax.f32 %v5081, %v5003
        %5083 = vmax.xlane.f32.xlu0 %v5082
        %v5084 = vpop.xlane.xlu0 %5083
        %v5085 = vmax.f32 %v5004, %v5005
        %v5086 = vmax.f32 %v5085, %v5006
        %v5087 = vmax.f32 %v5086, %v5007
        %5088 = vmax.xlane.f32.xlu0 %v5087
        %v5089 = vpop.xlane.xlu0 %5088
        %v5090 = vmax.f32 %v5008, %v5009
        %v5091 = vmax.f32 %v5090, %v5010
        %v5092 = vmax.f32 %v5091, %v5011
        %5093 = vmax.xlane.f32.xlu0 %v5092
        %v5094 = vpop.xlane.xlu0 %5093
        %v5095 = vmax.f32 %v5012, %v5013
        %v5096 = vmax.f32 %v5095, %v5014
        %v5097 = vmax.f32 %v5096, %v5015
        %5098 = vmax.xlane.f32.xlu0 %v5097
        %v5099 = vpop.xlane.xlu0 %5098
        %v5100 = vmax.f32 %v5016, %v5017
        %v5101 = vmax.f32 %v5100, %v5018
        %v5102 = vmax.f32 %v5101, %v5019
        %5103 = vmax.xlane.f32.xlu0 %v5102
        %v5104 = vpop.xlane.xlu0 %5103
        %v5105 = vmax.f32 %v5020, %v5021
        %v5106 = vmax.f32 %v5105, %v5022
        %v5107 = vmax.f32 %v5106, %v5023
        %5108 = vmax.xlane.f32.xlu0 %v5107
        %v5109 = vpop.xlane.xlu0 %5108
        %v5110 = vmax.f32 %v5024, %v5025
        %v5111 = vmax.f32 %v5110, %v5026
        %v5112 = vmax.f32 %v5111, %v5027
        %5113 = vmax.xlane.f32.xlu0 %v5112
        %v5114 = vpop.xlane.xlu0 %5113
        %v5115 = vmax.f32 %v5028, %v5029
        %v5116 = vmax.f32 %v5115, %v5030
        %v5117 = vmax.f32 %v5116, %v5031
        %5118 = vmax.xlane.f32.xlu0 %v5117
        %v5119 = vpop.xlane.xlu0 %5118
        %v5120 = vmax.f32 %v4944, %v5084
        %v5121 = vmax.f32 %v4945, %v5089
        %v5122 = vmax.f32 %v4946, %v5094
        %v5123 = vmax.f32 %v4947, %v5099
        %v5124 = vmax.f32 %v4948, %v5104
        %v5125 = vmax.f32 %v4949, %v5109
        %v5126 = vmax.f32 %v4950, %v5114
        %v5127 = vmax.f32 %v4951, %v5119
        %v5128 = vld [vmem:[%s352 + $0x60] sm:$0xff]
        %v5129 = vld [vmem:[%s352 + $0x68] sm:$0xff]
        %v5130 = vld [vmem:[%s352 + $0x70] sm:$0xff]
        %v5131 = vld [vmem:[%s352 + $0x78] sm:$0xff]
        %v5132 = vld [vmem:[%s352 + $0xe0] sm:$0xff]
        %v5133 = vld [vmem:[%s352 + $0xe8] sm:$0xff]
        %v5134 = vld [vmem:[%s352 + $0xf0] sm:$0xff]
        %v5135 = vld [vmem:[%s352 + $0xf8] sm:$0xff]
        %v5136 = vld [vmem:[%s352 + $0x160] sm:$0xff]
        %v5137 = vld [vmem:[%s352 + $0x168] sm:$0xff]
        %v5138 = vld [vmem:[%s352 + $0x170] sm:$0xff]
        %v5139 = vld [vmem:[%s352 + $0x178] sm:$0xff]
        %v5140 = vld [vmem:[%s352 + $0x1e0] sm:$0xff]
        %v5141 = vld [vmem:[%s352 + $0x1e8] sm:$0xff]
        %v5142 = vld [vmem:[%s352 + $0x1f0] sm:$0xff]
        %v5143 = vld [vmem:[%s352 + $0x1f8] sm:$0xff]
        %v5144 = vld [vmem:[%s352 + $0x260] sm:$0xff]
        %v5145 = vld [vmem:[%s352 + $0x268] sm:$0xff]
        %v5146 = vld [vmem:[%s352 + $0x270] sm:$0xff]
        %v5147 = vld [vmem:[%s352 + $0x278] sm:$0xff]
        %v5148 = vld [vmem:[%s352 + $0x2e0] sm:$0xff]
        %v5149 = vld [vmem:[%s352 + $0x2e8] sm:$0xff]
        %v5150 = vld [vmem:[%s352 + $0x2f0] sm:$0xff]
        %v5151 = vld [vmem:[%s352 + $0x2f8] sm:$0xff]
        %v5152 = vld [vmem:[%s352 + $0x360] sm:$0xff]
        %v5153 = vld [vmem:[%s352 + $0x368] sm:$0xff]
        %v5154 = vld [vmem:[%s352 + $0x370] sm:$0xff]
        %v5155 = vld [vmem:[%s352 + $0x378] sm:$0xff]
        %v5156 = vld [vmem:[%s352 + $0x3e0] sm:$0xff]
        %v5157 = vld [vmem:[%s352 + $0x3e8] sm:$0xff]
        %v5158 = vld [vmem:[%s352 + $0x3f0] sm:$0xff]
        %v5159 = vld [vmem:[%s352 + $0x3f8] sm:$0xff]
        %v5160 = vlaneseq
        %v5161 = vshrl.u32 %v5160, 7
        %v5162 = vsub.s32 0, %v5161
        %v5163 = vrot.slane %v4600, %v5162
        %v5164 = vlaneseq
        %v5165 = vshrl.u32 %v5164, 7
        %v5166 = vsub.s32 0, %v5165
        %v5167 = vrot.slane %v4602, %v5166
        %v5168 = vlaneseq
        %v5169 = vshrl.u32 %v5168, 7
        %v5170 = vsub.s32 0, %v5169
        %v5171 = vrot.slane %v4604, %v5170
        %v5172 = vlaneseq
        %v5173 = vshrl.u32 %v5172, 7
        %v5174 = vsub.s32 0, %v5173
        %v5175 = vrot.slane %v4606, %v5174
        %v5176 = vmul.f32 %v5128, %v5163
        %v5177 = vmul.f32 %v5129, %v5167
        %v5178 = vmul.f32 %v5130, %v5171
        %v5179 = vmul.f32 %v5131, %v5175
        %v5180 = vmul.f32 %v5132, %v5163
        %v5181 = vmul.f32 %v5133, %v5167
        %v5182 = vmul.f32 %v5134, %v5171
        %v5183 = vmul.f32 %v5135, %v5175
        %v5184 = vmul.f32 %v5136, %v5163
        %v5185 = vmul.f32 %v5137, %v5167
        %v5186 = vmul.f32 %v5138, %v5171
        %v5187 = vmul.f32 %v5139, %v5175
        %v5188 = vmul.f32 %v5140, %v5163
        %v5189 = vmul.f32 %v5141, %v5167
        %v5190 = vmul.f32 %v5142, %v5171
        %v5191 = vmul.f32 %v5143, %v5175
        %v5192 = vmul.f32 %v5144, %v5163
        %v5193 = vmul.f32 %v5145, %v5167
        %v5194 = vmul.f32 %v5146, %v5171
        %v5195 = vmul.f32 %v5147, %v5175
        %v5196 = vmul.f32 %v5148, %v5163
        %v5197 = vmul.f32 %v5149, %v5167
        %v5198 = vmul.f32 %v5150, %v5171
        %v5199 = vmul.f32 %v5151, %v5175
        %v5200 = vmul.f32 %v5152, %v5163
        %v5201 = vmul.f32 %v5153, %v5167
        %v5202 = vmul.f32 %v5154, %v5171
        %v5203 = vmul.f32 %v5155, %v5175
        %v5204 = vmul.f32 %v5156, %v5163
        %v5205 = vmul.f32 %v5157, %v5167
        %v5206 = vmul.f32 %v5158, %v5171
        %v5207 = vmul.f32 %v5159, %v5175
        %v5208 = vadd.f32 %v5176, %v5177
        %v5209 = vadd.f32 %v5208, %v5178
        %v5210 = vadd.f32 %v5209, %v5179
        %5211 = vadd.xlane.f32.xlu0 %v5210
        %v5212 = vpop.xlane.xlu0 %5211
        %v5213 = vadd.f32 %v5180, %v5181
        %v5214 = vadd.f32 %v5213, %v5182
        %v5215 = vadd.f32 %v5214, %v5183
        %5216 = vadd.xlane.f32.xlu0 %v5215
        %v5217 = vpop.xlane.xlu0 %5216
        %v5218 = vadd.f32 %v5184, %v5185
        %v5219 = vadd.f32 %v5218, %v5186
        %v5220 = vadd.f32 %v5219, %v5187
        %5221 = vadd.xlane.f32.xlu0 %v5220
        %v5222 = vpop.xlane.xlu0 %5221
        %v5223 = vadd.f32 %v5188, %v5189
        %v5224 = vadd.f32 %v5223, %v5190
        %v5225 = vadd.f32 %v5224, %v5191
        %5226 = vadd.xlane.f32.xlu0 %v5225
        %v5227 = vpop.xlane.xlu0 %5226
        %v5228 = vadd.f32 %v5192, %v5193
        %v5229 = vadd.f32 %v5228, %v5194
        %v5230 = vadd.f32 %v5229, %v5195
        %5231 = vadd.xlane.f32.xlu0 %v5230
        %v5232 = vpop.xlane.xlu0 %5231
        %v5233 = vadd.f32 %v5196, %v5197
        %v5234 = vadd.f32 %v5233, %v5198
        %v5235 = vadd.f32 %v5234, %v5199
        %5236 = vadd.xlane.f32.xlu0 %v5235
        %v5237 = vpop.xlane.xlu0 %5236
        %v5238 = vadd.f32 %v5200, %v5201
        %v5239 = vadd.f32 %v5238, %v5202
        %v5240 = vadd.f32 %v5239, %v5203
        %5241 = vadd.xlane.f32.xlu0 %v5240
        %v5242 = vpop.xlane.xlu0 %5241
        %v5243 = vadd.f32 %v5204, %v5205
        %v5244 = vadd.f32 %v5243, %v5206
        %v5245 = vadd.f32 %v5244, %v5207
        %5246 = vadd.xlane.f32.xlu0 %v5245
        %v5247 = vpop.xlane.xlu0 %5246
        %v5248 = vadd.f32 %v5072, %v5212
        %v5249 = vadd.f32 %v5073, %v5217
        %v5250 = vadd.f32 %v5074, %v5222
        %v5251 = vadd.f32 %v5075, %v5227
        %v5252 = vadd.f32 %v5076, %v5232
        %v5253 = vadd.f32 %v5077, %v5237
        %v5254 = vadd.f32 %v5078, %v5242
        %v5255 = vadd.f32 %v5079, %v5247
        %v5256 = vmax.f32 %v5176, %v5177
        %v5257 = vmax.f32 %v5256, %v5178
        %v5258 = vmax.f32 %v5257, %v5179
        %5259 = vmax.xlane.f32.xlu0 %v5258
        %v5260 = vpop.xlane.xlu0 %5259
        %v5261 = vmax.f32 %v5180, %v5181
        %v5262 = vmax.f32 %v5261, %v5182
        %v5263 = vmax.f32 %v5262, %v5183
        %5264 = vmax.xlane.f32.xlu0 %v5263
        %v5265 = vpop.xlane.xlu0 %5264
        %v5266 = vmax.f32 %v5184, %v5185
        %v5267 = vmax.f32 %v5266, %v5186
        %v5268 = vmax.f32 %v5267, %v5187
        %5269 = vmax.xlane.f32.xlu0 %v5268
        %v5270 = vpop.xlane.xlu0 %5269
        %v5271 = vmax.f32 %v5188, %v5189
        %v5272 = vmax.f32 %v5271, %v5190
        %v5273 = vmax.f32 %v5272, %v5191
        %5274 = vmax.xlane.f32.xlu0 %v5273
        %v5275 = vpop.xlane.xlu0 %5274
        %v5276 = vmax.f32 %v5192, %v5193
        %v5277 = vmax.f32 %v5276, %v5194
        %v5278 = vmax.f32 %v5277, %v5195
        %5279 = vmax.xlane.f32.xlu0 %v5278
        %v5280 = vpop.xlane.xlu0 %5279
        %v5281 = vmax.f32 %v5196, %v5197
        %v5282 = vmax.f32 %v5281, %v5198
        %v5283 = vmax.f32 %v5282, %v5199
        %5284 = vmax.xlane.f32.xlu0 %v5283
        %v5285 = vpop.xlane.xlu0 %5284
        %v5286 = vmax.f32 %v5200, %v5201
        %v5287 = vmax.f32 %v5286, %v5202
        %v5288 = vmax.f32 %v5287, %v5203
        %5289 = vmax.xlane.f32.xlu0 %v5288
        %v5290 = vpop.xlane.xlu0 %5289
        %v5291 = vmax.f32 %v5204, %v5205
        %v5292 = vmax.f32 %v5291, %v5206
        %v5293 = vmax.f32 %v5292, %v5207
        %5294 = vmax.xlane.f32.xlu0 %v5293
        %v5295 = vpop.xlane.xlu0 %5294
        %v5296 = vmax.f32 %v5120, %v5260
        %v5297 = vmax.f32 %v5121, %v5265
        %v5298 = vmax.f32 %v5122, %v5270
        %v5299 = vmax.f32 %v5123, %v5275
        %v5300 = vmax.f32 %v5124, %v5280
        %v5301 = vmax.f32 %v5125, %v5285
        %v5302 = vmax.f32 %v5126, %v5290
        %v5303 = vmax.f32 %v5127, %v5295
        %v5304 = vld [vmem:[#allocation14] sm:$0xff]
        %v5305 = vld [vmem:[#allocation14 + $0x8] sm:$0xff]
        %v5306 = vld [vmem:[#allocation14 + $0x10] sm:$0xff]
        %v5307 = vld [vmem:[#allocation14 + $0x18] sm:$0xff]
        %v5308 = vld [vmem:[#allocation14 + $0x20] sm:$0xff]
        %v5309 = vld [vmem:[#allocation14 + $0x28] sm:$0xff]
        %v5310 = vld [vmem:[#allocation14 + $0x30] sm:$0xff]
        %v5311 = vld [vmem:[#allocation14 + $0x38] sm:$0xff]
        %v5312 = vmul.f32 %v5248, 0.00048828125
        %v5313 = vmul.f32 %v5249, 0.00048828125
        %v5314 = vmul.f32 %v5250, 0.00048828125
        %v5315 = vmul.f32 %v5251, 0.00048828125
        %v5316 = vmul.f32 %v5252, 0.00048828125
        %v5317 = vmul.f32 %v5253, 0.00048828125
        %v5318 = vmul.f32 %v5254, 0.00048828125
        %v5319 = vmul.f32 %v5255, 0.00048828125
        %v5320 = vld [vmem:[#allocation16] sm:$0xff]
        %v5321 = vld [vmem:[#allocation16 + $0x8] sm:$0xff]
        %v5322 = vld [vmem:[#allocation16 + $0x10] sm:$0xff]
        %v5323 = vld [vmem:[#allocation16 + $0x18] sm:$0xff]
        %v5324 = vld [vmem:[#allocation16 + $0x20] sm:$0xff]
        %v5325 = vld [vmem:[#allocation16 + $0x28] sm:$0xff]
        %v5326 = vld [vmem:[#allocation16 + $0x30] sm:$0xff]
        %v5327 = vld [vmem:[#allocation16 + $0x38] sm:$0xff]
        %vm5328 = vcmask 523264
        %v5330 = vsel %vm5328, %v5320, 0
        %v5333 = vsel %vm5328, %v5321, 0
        %v5336 = vsel %vm5328, %v5322, 0
        %v5339 = vsel %vm5328, %v5323, 0
        %v5342 = vsel %vm5328, %v5324, 0
        %v5345 = vsel %vm5328, %v5325, 0
        %v5348 = vsel %vm5328, %v5326, 0
        %v5351 = vsel %vm5328, %v5327, 0
        %5353 = vmatprep.subr.mxu0 0.0
        %5354 = vmatpush1.msra.mxu0 %v5296
        %5355 = vmatprep.subr.mxu0 0.0
        %5356 = vmatpush1.msra.mxu0 %v5297
        %5357 = vmatprep.subr.mxu0 0.0
        %5358 = vmatpush1.msra.mxu0 %v5298
        %5359 = vmatprep.subr.mxu0 0.0
        %5360 = vmatpush1.msra.mxu0 %v5299
        %5361 = vmatprep.subr.mxu0 0.0
        %5362 = vmatpush1.msra.mxu0 %v5300
        %5363 = vmatprep.subr.mxu0 0.0
        %5364 = vmatpush1.msra.mxu0 %v5301
        %5365 = vmatprep.subr.mxu0 0.0
        %5366 = vmatpush1.msra.mxu0 %v5302
        %5367 = vmatprep.subr.mxu0 0.0
        %5368 = vmatpush1.msra.mxu0 %v5303
        %5369 = vmatprep.subr.mxu0 0.0
        %5370 = vmatpush1.msra.mxu0 0.0
        %5371 = vmatprep.subr.mxu0 0.0
        %5372 = vmatpush1.msra.mxu0 0.0
        %5373 = vmatprep.subr.mxu0 0.0
        %5374 = vmatpush1.msra.mxu0 0.0
        %5375 = vmatprep.subr.mxu0 0.0
        %5376 = vmatpush1.msra.mxu0 0.0
        %5377 = vmatprep.subr.mxu0 0.0
        %5378 = vmatpush1.msra.mxu0 0.0
        %5379 = vmatprep.subr.mxu0 0.0
        %5380 = vmatpush1.msra.mxu0 0.0
        %5381 = vmatprep.subr.mxu0 0.0
        %5382 = vmatpush1.msra.mxu0 0.0
        %5383 = vmatprep.subr.mxu0 0.0
        %5384 = vmatpush1.msra.mxu0 0.0
        %5385 = vmatprep.subr.mxu0 0.0
        %5386 = vmatpush1.msra.mxu0 0.0
        %5387 = vmatprep.subr.mxu0 0.0
        %5388 = vmatpush1.msra.mxu0 0.0
        %5389 = vmatprep.subr.mxu0 0.0
        %5390 = vmatpush1.msra.mxu0 0.0
        %5391 = vmatprep.subr.mxu0 0.0
        %5392 = vmatpush1.msra.mxu0 0.0
        %5393 = vmatprep.subr.mxu0 0.0
        %5394 = vmatpush1.msra.mxu0 0.0
        %5395 = vmatprep.subr.mxu0 0.0
        %5396 = vmatpush1.msra.mxu0 0.0
        %5397 = vmatprep.subr.mxu0 0.0
        %5398 = vmatpush1.msra.mxu0 0.0
        %5399 = vmatprep.subr.mxu0 0.0
        %5400 = vmatpush1.msra.mxu0 0.0
        %5401 = vmatprep.subr.mxu0 0.0
        %5402 = vmatpush1.msra.mxu0 0.0
        %5403 = vmatprep.subr.mxu0 0.0
        %5404 = vmatpush1.msra.mxu0 0.0
        %5405 = vmatprep.subr.mxu0 0.0
        %5406 = vmatpush1.msra.mxu0 0.0
        %5407 = vmatprep.subr.mxu0 0.0
        %5408 = vmatpush1.msra.mxu0 0.0
        %5409 = vmatprep.subr.mxu0 0.0
        %5410 = vmatpush1.msra.mxu0 0.0
        %5411 = vmatprep.subr.mxu0 0.0
        %5412 = vmatpush1.msra.mxu0 0.0
        %5413 = vmatprep.subr.mxu0 0.0
        %5414 = vmatpush1.msra.mxu0 0.0
        %5415 = vmatprep.subr.mxu0 0.0
        %5416 = vmatpush1.msra.mxu0 0.0
        %5417 = vmatprep.mubr.f32.mxu0 0.0
        %5418 = vmatmul.mubr.f32.gmra.mrb[0].mxu0 %v5330
        %v5419 = vpop.f32.mrb[0].mxu0
        %v5420 = vadd.f32 0.0, %v5419
        %v5421 = vpop.f32.mrb[0].mxu0
        %5422 = vmatprep.mubr.f32.mxu0 0.0
        %5423 = vmatmul.mubr.f32.gmra.mrb[0].mxu0 %v5333
        %v5424 = vpop.f32.mrb[0].mxu0
        %v5425 = vadd.f32 0.0, %v5424
        %v5426 = vpop.f32.mrb[0].mxu0
        %5427 = vmatprep.mubr.f32.mxu0 0.0
        %5428 = vmatmul.mubr.f32.gmra.mrb[0].mxu0 %v5336
        %v5429 = vpop.f32.mrb[0].mxu0
        %v5430 = vadd.f32 0.0, %v5429
        %v5431 = vpop.f32.mrb[0].mxu0
        %5432 = vmatprep.mubr.f32.mxu0 0.0
        %5433 = vmatmul.mubr.f32.gmra.mrb[0].mxu0 %v5339
        %v5434 = vpop.f32.mrb[0].mxu0
        %v5435 = vadd.f32 0.0, %v5434
        %v5436 = vpop.f32.mrb[0].mxu0
        %5437 = vmatprep.mubr.f32.mxu0 0.0
        %5438 = vmatmul.mubr.f32.gmra.mrb[0].mxu0 %v5342
        %v5439 = vpop.f32.mrb[0].mxu0
        %v5440 = vadd.f32 0.0, %v5439
        %v5441 = vpop.f32.mrb[0].mxu0
        %5442 = vmatprep.mubr.f32.mxu0 0.0
        %5443 = vmatmul.mubr.f32.gmra.mrb[0].mxu0 %v5345
        %v5444 = vpop.f32.mrb[0].mxu0
        %v5445 = vadd.f32 0.0, %v5444
        %v5446 = vpop.f32.mrb[0].mxu0
        %5447 = vmatprep.mubr.f32.mxu0 0.0
        %5448 = vmatmul.mubr.f32.gmra.mrb[0].mxu0 %v5348
        %v5449 = vpop.f32.mrb[0].mxu0
        %v5450 = vadd.f32 0.0, %v5449
        %v5451 = vpop.f32.mrb[0].mxu0
        %5452 = vmatprep.mubr.f32.mxu0 0.0
        %5453 = vmatmul.mubr.f32.gmra.mrb[0].mxu0 %v5351
        %v5454 = vpop.f32.mrb[0].mxu0
        %v5455 = vadd.f32 0.0, %v5454
        %v5456 = vpop.f32.mrb[0].mxu0
        %5457 = vdwg.mxu0
        %v5459 = vsel %vm5328, %v5304, 0
        %v5462 = vsel %vm5328, %v5305, 0
        %v5465 = vsel %vm5328, %v5306, 0
        %v5468 = vsel %vm5328, %v5307, 0
        %v5471 = vsel %vm5328, %v5308, 0
        %v5474 = vsel %vm5328, %v5309, 0
        %v5477 = vsel %vm5328, %v5310, 0
        %v5480 = vsel %vm5328, %v5311, 0
        %5482 = vmatprep.subr.mxu0 0.0
        %5483 = vmatpush1.msra.mxu0 %v5312
        %5484 = vmatprep.subr.mxu0 0.0
        %5485 = vmatpush1.msra.mxu0 %v5313
        %5486 = vmatprep.subr.mxu0 0.0
        %5487 = vmatpush1.msra.mxu0 %v5314
        %5488 = vmatprep.subr.mxu0 0.0
        %5489 = vmatpush1.msra.mxu0 %v5315
        %5490 = vmatprep.subr.mxu0 0.0
        %5491 = vmatpush1.msra.mxu0 %v5316
        %5492 = vmatprep.subr.mxu0 0.0
        %5493 = vmatpush1.msra.mxu0 %v5317
        %5494 = vmatprep.subr.mxu0 0.0
        %5495 = vmatpush1.msra.mxu0 %v5318
        %5496 = vmatprep.subr.mxu0 0.0
        %5497 = vmatpush1.msra.mxu0 %v5319
        %5498 = vmatprep.subr.mxu0 0.0
        %5499 = vmatpush1.msra.mxu0 0.0
        %5500 = vmatprep.subr.mxu0 0.0
        %5501 = vmatpush1.msra.mxu0 0.0
        %5502 = vmatprep.subr.mxu0 0.0
        %5503 = vmatpush1.msra.mxu0 0.0
        %5504 = vmatprep.subr.mxu0 0.0
        %5505 = vmatpush1.msra.mxu0 0.0
        %5506 = vmatprep.subr.mxu0 0.0
        %5507 = vmatpush1.msra.mxu0 0.0
        %5508 = vmatprep.subr.mxu0 0.0
        %5509 = vmatpush1.msra.mxu0 0.0
        %5510 = vmatprep.subr.mxu0 0.0
        %5511 = vmatpush1.msra.mxu0 0.0
        %5512 = vmatprep.subr.mxu0 0.0
        %5513 = vmatpush1.msra.mxu0 0.0
        %5514 = vmatprep.subr.mxu0 0.0
        %5515 = vmatpush1.msra.mxu0 0.0
        %5516 = vmatprep.subr.mxu0 0.0
        %5517 = vmatpush1.msra.mxu0 0.0
        %5518 = vmatprep.subr.mxu0 0.0
        %5519 = vmatpush1.msra.mxu0 0.0
        %5520 = vmatprep.subr.mxu0 0.0
        %5521 = vmatpush1.msra.mxu0 0.0
        %5522 = vmatprep.subr.mxu0 0.0
        %5523 = vmatpush1.msra.mxu0 0.0
        %5524 = vmatprep.subr.mxu0 0.0
        %5525 = vmatpush1.msra.mxu0 0.0
        %5526 = vmatprep.subr.mxu0 0.0
        %5527 = vmatpush1.msra.mxu0 0.0
        %5528 = vmatprep.subr.mxu0 0.0
        %5529 = vmatpush1.msra.mxu0 0.0
        %5530 = vmatprep.subr.mxu0 0.0
        %5531 = vmatpush1.msra.mxu0 0.0
        %5532 = vmatprep.subr.mxu0 0.0
        %5533 = vmatpush1.msra.mxu0 0.0
        %5534 = vmatprep.subr.mxu0 0.0
        %5535 = vmatpush1.msra.mxu0 0.0
        %5536 = vmatprep.subr.mxu0 0.0
        %5537 = vmatpush1.msra.mxu0 0.0
        %5538 = vmatprep.subr.mxu0 0.0
        %5539 = vmatpush1.msra.mxu0 0.0
        %5540 = vmatprep.subr.mxu0 0.0
        %5541 = vmatpush1.msra.mxu0 0.0
        %5542 = vmatprep.subr.mxu0 0.0
        %5543 = vmatpush1.msra.mxu0 0.0
        %5544 = vmatprep.subr.mxu0 0.0
        %5545 = vmatpush1.msra.mxu0 0.0
        %5546 = vmatprep.mubr.f32.mxu0 0.0
        %5547 = vmatmul.mubr.f32.gmra.mrb[0].mxu0 %v5459
        %v5548 = vpop.f32.mrb[0].mxu0
        %v5549 = vadd.f32 %v5420, %v5548
        %v5550 = vpop.f32.mrb[0].mxu0
        %5551 = vmatprep.mubr.f32.mxu0 0.0
        %5552 = vmatmul.mubr.f32.gmra.mrb[0].mxu0 %v5462
        %v5553 = vpop.f32.mrb[0].mxu0
        %v5554 = vadd.f32 %v5425, %v5553
        %v5555 = vpop.f32.mrb[0].mxu0
        %5556 = vmatprep.mubr.f32.mxu0 0.0
        %5557 = vmatmul.mubr.f32.gmra.mrb[0].mxu0 %v5465
        %v5558 = vpop.f32.mrb[0].mxu0
        %v5559 = vadd.f32 %v5430, %v5558
        %v5560 = vpop.f32.mrb[0].mxu0
        %5561 = vmatprep.mubr.f32.mxu0 0.0
        %5562 = vmatmul.mubr.f32.gmra.mrb[0].mxu0 %v5468
        %v5563 = vpop.f32.mrb[0].mxu0
        %v5564 = vadd.f32 %v5435, %v5563
        %v5565 = vpop.f32.mrb[0].mxu0
        %5566 = vmatprep.mubr.f32.mxu0 0.0
        %5567 = vmatmul.mubr.f32.gmra.mrb[0].mxu0 %v5471
        %v5568 = vpop.f32.mrb[0].mxu0
        %v5569 = vadd.f32 %v5440, %v5568
        %v5570 = vpop.f32.mrb[0].mxu0
        %5571 = vmatprep.mubr.f32.mxu0 0.0
        %5572 = vmatmul.mubr.f32.gmra.mrb[0].mxu0 %v5474
        %v5573 = vpop.f32.mrb[0].mxu0
        %v5574 = vadd.f32 %v5445, %v5573
        %v5575 = vpop.f32.mrb[0].mxu0
        %5576 = vmatprep.mubr.f32.mxu0 0.0
        %5577 = vmatmul.mubr.f32.gmra.mrb[0].mxu0 %v5477
        %v5578 = vpop.f32.mrb[0].mxu0
        %v5579 = vadd.f32 %v5450, %v5578
        %v5580 = vpop.f32.mrb[0].mxu0
        %5581 = vmatprep.mubr.f32.mxu0 0.0
        %5582 = vmatmul.mubr.f32.gmra.mrb[0].mxu0 %v5480
        %v5583 = vpop.f32.mrb[0].mxu0
        %v5584 = vadd.f32 %v5455, %v5583
        %v5585 = vpop.f32.mrb[0].mxu0
        %5586 = vdwg.mxu0
        %v5587 = vstv %s4607
        %v5588 = vadd.f32 %v5549, %v5587
        %v5589 = vadd.f32 %v5554, %v5587
        %v5590 = vadd.f32 %v5559, %v5587
        %v5591 = vadd.f32 %v5564, %v5587
        %v5592 = vadd.f32 %v5569, %v5587
        %v5593 = vadd.f32 %v5574, %v5587
        %v5594 = vadd.f32 %v5579, %v5587
        %v5595 = vadd.f32 %v5584, %v5587
        %v5596 = vxor.u32 %v5588, 2147483648
        %v5597 = vxor.u32 %v5589, 2147483648
        %v5598 = vxor.u32 %v5590, 2147483648
        %v5599 = vxor.u32 %v5591, 2147483648
        %v5600 = vxor.u32 %v5592, 2147483648
        %v5601 = vxor.u32 %v5593, 2147483648
        %v5602 = vxor.u32 %v5594, 2147483648
        %v5603 = vxor.u32 %v5595, 2147483648
        %v5604 = vmul.f32 %v5596, 1.442695
        %v5605 = vpow.pop %v5604
        %v5606 = vmul.f32 %v5597, 1.442695
        %v5607 = vpow.pop %v5606
        %v5608 = vmul.f32 %v5598, 1.442695
        %v5609 = vpow.pop %v5608
        %v5610 = vmul.f32 %v5599, 1.442695
        %v5611 = vpow.pop %v5610
        %v5612 = vmul.f32 %v5600, 1.442695
        %v5613 = vpow.pop %v5612
        %v5614 = vmul.f32 %v5601, 1.442695
        %v5615 = vpow.pop %v5614
        %v5616 = vmul.f32 %v5602, 1.442695
        %v5617 = vpow.pop %v5616
        %v5618 = vmul.f32 %v5603, 1.442695
        %v5619 = vpow.pop %v5618
        %v5620 = vadd.f32 %v5605, 1.0
        %v5621 = vadd.f32 %v5607, 1.0
        %v5622 = vadd.f32 %v5609, 1.0
        %v5623 = vadd.f32 %v5611, 1.0
        %v5624 = vadd.f32 %v5613, 1.0
        %v5625 = vadd.f32 %v5615, 1.0
        %v5626 = vadd.f32 %v5617, 1.0
        %v5627 = vadd.f32 %v5619, 1.0
        %v5628 = vrcp.pop %v5620
        %v5629 = vmul.f32 1.0, %v5628
        %v5630 = vrcp.pop %v5621
        %v5631 = vmul.f32 1.0, %v5630
        %v5632 = vrcp.pop %v5622
        %v5633 = vmul.f32 1.0, %v5632
        %v5634 = vrcp.pop %v5623
        %v5635 = vmul.f32 1.0, %v5634
        %v5636 = vrcp.pop %v5624
        %v5637 = vmul.f32 1.0, %v5636
        %v5638 = vrcp.pop %v5625
        %v5639 = vmul.f32 1.0, %v5638
        %v5640 = vrcp.pop %v5626
        %v5641 = vmul.f32 1.0, %v5640
        %v5642 = vrcp.pop %v5627
        %v5643 = vmul.f32 1.0, %v5642
        %v5644 = vld [vmem:[%s352] sm:$0xff]
        %v5645 = vld [vmem:[%s352 + $0x8] sm:$0xff]
        %v5646 = vld [vmem:[%s352 + $0x10] sm:$0xff]
        %v5647 = vld [vmem:[%s352 + $0x18] sm:$0xff]
        %v5648 = vld [vmem:[%s352 + $0x20] sm:$0xff]
        %v5649 = vld [vmem:[%s352 + $0x28] sm:$0xff]
        %v5650 = vld [vmem:[%s352 + $0x30] sm:$0xff]
        %v5651 = vld [vmem:[%s352 + $0x38] sm:$0xff]
        %v5652 = vld [vmem:[%s352 + $0x40] sm:$0xff]
        %v5653 = vld [vmem:[%s352 + $0x48] sm:$0xff]
        %v5654 = vld [vmem:[%s352 + $0x50] sm:$0xff]
        %v5655 = vld [vmem:[%s352 + $0x58] sm:$0xff]
        %v5656 = vld [vmem:[%s352 + $0x80] sm:$0xff]
        %v5657 = vld [vmem:[%s352 + $0x88] sm:$0xff]
        %v5658 = vld [vmem:[%s352 + $0x90] sm:$0xff]
        %v5659 = vld [vmem:[%s352 + $0x98] sm:$0xff]
        %v5660 = vld [vmem:[%s352 + $0xa0] sm:$0xff]
        %v5661 = vld [vmem:[%s352 + $0xa8] sm:$0xff]
        %v5662 = vld [vmem:[%s352 + $0xb0] sm:$0xff]
        %v5663 = vld [vmem:[%s352 + $0xb8] sm:$0xff]
        %v5664 = vld [vmem:[%s352 + $0xc0] sm:$0xff]
        %v5665 = vld [vmem:[%s352 + $0xc8] sm:$0xff]
        %v5666 = vld [vmem:[%s352 + $0xd0] sm:$0xff]
        %v5667 = vld [vmem:[%s352 + $0xd8] sm:$0xff]
        %v5668 = vld [vmem:[%s352 + $0x100] sm:$0xff]
        %v5669 = vld [vmem:[%s352 + $0x108] sm:$0xff]
        %v5670 = vld [vmem:[%s352 + $0x110] sm:$0xff]
        %v5671 = vld [vmem:[%s352 + $0x118] sm:$0xff]
        %v5672 = vld [vmem:[%s352 + $0x120] sm:$0xff]
        %v5673 = vld [vmem:[%s352 + $0x128] sm:$0xff]
        %v5674 = vld [vmem:[%s352 + $0x130] sm:$0xff]
        %v5675 = vld [vmem:[%s352 + $0x138] sm:$0xff]
        %v5676 = vld [vmem:[%s352 + $0x140] sm:$0xff]
        %v5677 = vld [vmem:[%s352 + $0x148] sm:$0xff]
        %v5678 = vld [vmem:[%s352 + $0x150] sm:$0xff]
        %v5679 = vld [vmem:[%s352 + $0x158] sm:$0xff]
        %v5680 = vld [vmem:[%s352 + $0x180] sm:$0xff]
        %v5681 = vld [vmem:[%s352 + $0x188] sm:$0xff]
        %v5682 = vld [vmem:[%s352 + $0x190] sm:$0xff]
        %v5683 = vld [vmem:[%s352 + $0x198] sm:$0xff]
        %v5684 = vld [vmem:[%s352 + $0x1a0] sm:$0xff]
        %v5685 = vld [vmem:[%s352 + $0x1a8] sm:$0xff]
        %v5686 = vld [vmem:[%s352 + $0x1b0] sm:$0xff]
        %v5687 = vld [vmem:[%s352 + $0x1b8] sm:$0xff]
        %v5688 = vld [vmem:[%s352 + $0x1c0] sm:$0xff]
        %v5689 = vld [vmem:[%s352 + $0x1c8] sm:$0xff]
        %v5690 = vld [vmem:[%s352 + $0x1d0] sm:$0xff]
        %v5691 = vld [vmem:[%s352 + $0x1d8] sm:$0xff]
        %v5692 = vld [vmem:[%s352 + $0x200] sm:$0xff]
        %v5693 = vld [vmem:[%s352 + $0x208] sm:$0xff]
        %v5694 = vld [vmem:[%s352 + $0x210] sm:$0xff]
        %v5695 = vld [vmem:[%s352 + $0x218] sm:$0xff]
        %v5696 = vld [vmem:[%s352 + $0x220] sm:$0xff]
        %v5697 = vld [vmem:[%s352 + $0x228] sm:$0xff]
        %v5698 = vld [vmem:[%s352 + $0x230] sm:$0xff]
        %v5699 = vld [vmem:[%s352 + $0x238] sm:$0xff]
        %v5700 = vld [vmem:[%s352 + $0x240] sm:$0xff]
        %v5701 = vld [vmem:[%s352 + $0x248] sm:$0xff]
        %v5702 = vld [vmem:[%s352 + $0x250] sm:$0xff]
        %v5703 = vld [vmem:[%s352 + $0x258] sm:$0xff]
        %v5704 = vld [vmem:[%s352 + $0x280] sm:$0xff]
        %v5705 = vld [vmem:[%s352 + $0x288] sm:$0xff]
        %v5706 = vld [vmem:[%s352 + $0x290] sm:$0xff]
        %v5707 = vld [vmem:[%s352 + $0x298] sm:$0xff]
        %v5708 = vld [vmem:[%s352 + $0x2a0] sm:$0xff]
        %v5709 = vld [vmem:[%s352 + $0x2a8] sm:$0xff]
        %v5710 = vld [vmem:[%s352 + $0x2b0] sm:$0xff]
        %v5711 = vld [vmem:[%s352 + $0x2b8] sm:$0xff]
        %v5712 = vld [vmem:[%s352 + $0x2c0] sm:$0xff]
        %v5713 = vld [vmem:[%s352 + $0x2c8] sm:$0xff]
        %v5714 = vld [vmem:[%s352 + $0x2d0] sm:$0xff]
        %v5715 = vld [vmem:[%s352 + $0x2d8] sm:$0xff]
        %v5716 = vld [vmem:[%s352 + $0x300] sm:$0xff]
        %v5717 = vld [vmem:[%s352 + $0x308] sm:$0xff]
        %v5718 = vld [vmem:[%s352 + $0x310] sm:$0xff]
        %v5719 = vld [vmem:[%s352 + $0x318] sm:$0xff]
        %v5720 = vld [vmem:[%s352 + $0x320] sm:$0xff]
        %v5721 = vld [vmem:[%s352 + $0x328] sm:$0xff]
        %v5722 = vld [vmem:[%s352 + $0x330] sm:$0xff]
        %v5723 = vld [vmem:[%s352 + $0x338] sm:$0xff]
        %v5724 = vld [vmem:[%s352 + $0x340] sm:$0xff]
        %v5725 = vld [vmem:[%s352 + $0x348] sm:$0xff]
        %v5726 = vld [vmem:[%s352 + $0x350] sm:$0xff]
        %v5727 = vld [vmem:[%s352 + $0x358] sm:$0xff]
        %v5728 = vld [vmem:[%s352 + $0x380] sm:$0xff]
        %v5729 = vld [vmem:[%s352 + $0x388] sm:$0xff]
        %v5730 = vld [vmem:[%s352 + $0x390] sm:$0xff]
        %v5731 = vld [vmem:[%s352 + $0x398] sm:$0xff]
        %v5732 = vld [vmem:[%s352 + $0x3a0] sm:$0xff]
        %v5733 = vld [vmem:[%s352 + $0x3a8] sm:$0xff]
        %v5734 = vld [vmem:[%s352 + $0x3b0] sm:$0xff]
        %v5735 = vld [vmem:[%s352 + $0x3b8] sm:$0xff]
        %v5736 = vld [vmem:[%s352 + $0x3c0] sm:$0xff]
        %v5737 = vld [vmem:[%s352 + $0x3c8] sm:$0xff]
        %v5738 = vld [vmem:[%s352 + $0x3d0] sm:$0xff]
        %v5739 = vld [vmem:[%s352 + $0x3d8] sm:$0xff]
        %v5740 = vmul.f32 %v5644, %v4643
        %v5741 = vmul.f32 %v5645, %v4647
        %v5742 = vmul.f32 %v5646, %v4651
        %v5743 = vmul.f32 %v5647, %v4655
        %v5744 = vmul.f32 %v5648, %v4811
        %v5745 = vmul.f32 %v5649, %v4815
        %v5746 = vmul.f32 %v5650, %v4819
        %v5747 = vmul.f32 %v5651, %v4823
        %v5748 = vmul.f32 %v5652, %v4987
        %v5749 = vmul.f32 %v5653, %v4991
        %v5750 = vmul.f32 %v5654, %v4995
        %v5751 = vmul.f32 %v5655, %v4999
        %v5752 = vmul.f32 %v5656, %v4643
        %v5753 = vmul.f32 %v5657, %v4647
        %v5754 = vmul.f32 %v5658, %v4651
        %v5755 = vmul.f32 %v5659, %v4655
        %v5756 = vmul.f32 %v5660, %v4811
        %v5757 = vmul.f32 %v5661, %v4815
        %v5758 = vmul.f32 %v5662, %v4819
        %v5759 = vmul.f32 %v5663, %v4823
        %v5760 = vmul.f32 %v5664, %v4987
        %v5761 = vmul.f32 %v5665, %v4991
        %v5762 = vmul.f32 %v5666, %v4995
        %v5763 = vmul.f32 %v5667, %v4999
        %v5764 = vmul.f32 %v5668, %v4643
        %v5765 = vmul.f32 %v5669, %v4647
        %v5766 = vmul.f32 %v5670, %v4651
        %v5767 = vmul.f32 %v5671, %v4655
        %v5768 = vmul.f32 %v5672, %v4811
        %v5769 = vmul.f32 %v5673, %v4815
        %v5770 = vmul.f32 %v5674, %v4819
        %v5771 = vmul.f32 %v5675, %v4823
        %v5772 = vmul.f32 %v5676, %v4987
        %v5773 = vmul.f32 %v5677, %v4991
        %v5774 = vmul.f32 %v5678, %v4995
        %v5775 = vmul.f32 %v5679, %v4999
        %v5776 = vmul.f32 %v5680, %v4643
        %v5777 = vmul.f32 %v5681, %v4647
        %v5778 = vmul.f32 %v5682, %v4651
        %v5779 = vmul.f32 %v5683, %v4655
        %v5780 = vmul.f32 %v5684, %v4811
        %v5781 = vmul.f32 %v5685, %v4815
        %v5782 = vmul.f32 %v5686, %v4819
        %v5783 = vmul.f32 %v5687, %v4823
        %v5784 = vmul.f32 %v5688, %v4987
        %v5785 = vmul.f32 %v5689, %v4991
        %v5786 = vmul.f32 %v5690, %v4995
        %v5787 = vmul.f32 %v5691, %v4999
        %v5788 = vmul.f32 %v5692, %v4643
        %v5789 = vmul.f32 %v5693, %v4647
        %v5790 = vmul.f32 %v5694, %v4651
        %v5791 = vmul.f32 %v5695, %v4655
        %v5792 = vmul.f32 %v5696, %v4811
        %v5793 = vmul.f32 %v5697, %v4815
        %v5794 = vmul.f32 %v5698, %v4819
        %v5795 = vmul.f32 %v5699, %v4823
        %v5796 = vmul.f32 %v5700, %v4987
        %v5797 = vmul.f32 %v5701, %v4991
        %v5798 = vmul.f32 %v5702, %v4995
        %v5799 = vmul.f32 %v5703, %v4999
        %v5800 = vmul.f32 %v5704, %v4643
        %v5801 = vmul.f32 %v5705, %v4647
        %v5802 = vmul.f32 %v5706, %v4651
        %v5803 = vmul.f32 %v5707, %v4655
        %v5804 = vmul.f32 %v5708, %v4811
        %v5805 = vmul.f32 %v5709, %v4815
        %v5806 = vmul.f32 %v5710, %v4819
        %v5807 = vmul.f32 %v5711, %v4823
        %v5808 = vmul.f32 %v5712, %v4987
        %v5809 = vmul.f32 %v5713, %v4991
        %v5810 = vmul.f32 %v5714, %v4995
        %v5811 = vmul.f32 %v5715, %v4999
        %v5812 = vmul.f32 %v5716, %v4643
        %v5813 = vmul.f32 %v5717, %v4647
        %v5814 = vmul.f32 %v5718, %v4651
        %v5815 = vmul.f32 %v5719, %v4655
        %v5816 = vmul.f32 %v5720, %v4811
        %v5817 = vmul.f32 %v5721, %v4815
        %v5818 = vmul.f32 %v5722, %v4819
        %v5819 = vmul.f32 %v5723, %v4823
        %v5820 = vmul.f32 %v5724, %v4987
        %v5821 = vmul.f32 %v5725, %v4991
        %v5822 = vmul.f32 %v5726, %v4995
        %v5823 = vmul.f32 %v5727, %v4999
        %v5824 = vmul.f32 %v5728, %v4643
        %v5825 = vmul.f32 %v5729, %v4647
        %v5826 = vmul.f32 %v5730, %v4651
        %v5827 = vmul.f32 %v5731, %v4655
        %v5828 = vmul.f32 %v5732, %v4811
        %v5829 = vmul.f32 %v5733, %v4815
        %v5830 = vmul.f32 %v5734, %v4819
        %v5831 = vmul.f32 %v5735, %v4823
        %v5832 = vmul.f32 %v5736, %v4987
        %v5833 = vmul.f32 %v5737, %v4991
        %v5834 = vmul.f32 %v5738, %v4995
        %v5835 = vmul.f32 %v5739, %v4999
        %5837 = vset.pattern.permute.xlu0 0
        %5838 = vperm.xlu0 %5837, %v5629
        %v5839 = vpop.permute.xlu0 %5838
        %5842 = vset.pattern.permute.xlu0 0
        %5843 = vperm.xlu0 %5842, %v5631
        %v5844 = vpop.permute.xlu0 %5843
        %5847 = vset.pattern.permute.xlu0 0
        %5848 = vperm.xlu0 %5847, %v5633
        %v5849 = vpop.permute.xlu0 %5848
        %5852 = vset.pattern.permute.xlu0 0
        %5853 = vperm.xlu0 %5852, %v5635
        %v5854 = vpop.permute.xlu0 %5853
        %5857 = vset.pattern.permute.xlu0 0
        %5858 = vperm.xlu0 %5857, %v5637
        %v5859 = vpop.permute.xlu0 %5858
        %5862 = vset.pattern.permute.xlu0 0
        %5863 = vperm.xlu0 %5862, %v5639
        %v5864 = vpop.permute.xlu0 %5863
        %5867 = vset.pattern.permute.xlu0 0
        %5868 = vperm.xlu0 %5867, %v5641
        %v5869 = vpop.permute.xlu0 %5868
        %5872 = vset.pattern.permute.xlu0 0
        %5873 = vperm.xlu0 %5872, %v5643
        %v5874 = vpop.permute.xlu0 %5873
        %v5876 = vmul.f32 %v5740, %v5839
        %v5877 = vmul.f32 %v5741, %v5839
        %v5878 = vmul.f32 %v5742, %v5839
        %v5879 = vmul.f32 %v5743, %v5839
        %v5880 = vmul.f32 %v5744, %v5839
        %v5881 = vmul.f32 %v5745, %v5839
        %v5882 = vmul.f32 %v5746, %v5839
        %v5883 = vmul.f32 %v5747, %v5839
        %v5884 = vmul.f32 %v5748, %v5839
        %v5885 = vmul.f32 %v5749, %v5839
        %v5886 = vmul.f32 %v5750, %v5839
        %v5887 = vmul.f32 %v5751, %v5839
        %v5888 = vmul.f32 %v5176, %v5839
        %v5889 = vmul.f32 %v5177, %v5839
        %v5890 = vmul.f32 %v5178, %v5839
        %v5891 = vmul.f32 %v5179, %v5839
        %v5892 = vmul.f32 %v5752, %v5844
        %v5893 = vmul.f32 %v5753, %v5844
        %v5894 = vmul.f32 %v5754, %v5844
        %v5895 = vmul.f32 %v5755, %v5844
        %v5896 = vmul.f32 %v5756, %v5844
        %v5897 = vmul.f32 %v5757, %v5844
        %v5898 = vmul.f32 %v5758, %v5844
        %v5899 = vmul.f32 %v5759, %v5844
        %v5900 = vmul.f32 %v5760, %v5844
        %v5901 = vmul.f32 %v5761, %v5844
        %v5902 = vmul.f32 %v5762, %v5844
        %v5903 = vmul.f32 %v5763, %v5844
        %v5904 = vmul.f32 %v5180, %v5844
        %v5905 = vmul.f32 %v5181, %v5844
        %v5906 = vmul.f32 %v5182, %v5844
        %v5907 = vmul.f32 %v5183, %v5844
        %v5908 = vmul.f32 %v5764, %v5849
        %v5909 = vmul.f32 %v5765, %v5849
        %v5910 = vmul.f32 %v5766, %v5849
        %v5911 = vmul.f32 %v5767, %v5849
        %v5912 = vmul.f32 %v5768, %v5849
        %v5913 = vmul.f32 %v5769, %v5849
        %v5914 = vmul.f32 %v5770, %v5849
        %v5915 = vmul.f32 %v5771, %v5849
        %v5916 = vmul.f32 %v5772, %v5849
        %v5917 = vmul.f32 %v5773, %v5849
        %v5918 = vmul.f32 %v5774, %v5849
        %v5919 = vmul.f32 %v5775, %v5849
        %v5920 = vmul.f32 %v5184, %v5849
        %v5921 = vmul.f32 %v5185, %v5849
        %v5922 = vmul.f32 %v5186, %v5849
        %v5923 = vmul.f32 %v5187, %v5849
        %v5924 = vmul.f32 %v5776, %v5854
        %v5925 = vmul.f32 %v5777, %v5854
        %v5926 = vmul.f32 %v5778, %v5854
        %v5927 = vmul.f32 %v5779, %v5854
        %v5928 = vmul.f32 %v5780, %v5854
        %v5929 = vmul.f32 %v5781, %v5854
        %v5930 = vmul.f32 %v5782, %v5854
        %v5931 = vmul.f32 %v5783, %v5854
        %v5932 = vmul.f32 %v5784, %v5854
        %v5933 = vmul.f32 %v5785, %v5854
        %v5934 = vmul.f32 %v5786, %v5854
        %v5935 = vmul.f32 %v5787, %v5854
        %v5936 = vmul.f32 %v5188, %v5854
        %v5937 = vmul.f32 %v5189, %v5854
        %v5938 = vmul.f32 %v5190, %v5854
        %v5939 = vmul.f32 %v5191, %v5854
        %v5940 = vmul.f32 %v5788, %v5859
        %v5941 = vmul.f32 %v5789, %v5859
        %v5942 = vmul.f32 %v5790, %v5859
        %v5943 = vmul.f32 %v5791, %v5859
        %v5944 = vmul.f32 %v5792, %v5859
        %v5945 = vmul.f32 %v5793, %v5859
        %v5946 = vmul.f32 %v5794, %v5859
        %v5947 = vmul.f32 %v5795, %v5859
        %v5948 = vmul.f32 %v5796, %v5859
        %v5949 = vmul.f32 %v5797, %v5859
        %v5950 = vmul.f32 %v5798, %v5859
        %v5951 = vmul.f32 %v5799, %v5859
        %v5952 = vmul.f32 %v5192, %v5859
        %v5953 = vmul.f32 %v5193, %v5859
        %v5954 = vmul.f32 %v5194, %v5859
        %v5955 = vmul.f32 %v5195, %v5859
        %v5956 = vmul.f32 %v5800, %v5864
        %v5957 = vmul.f32 %v5801, %v5864
        %v5958 = vmul.f32 %v5802, %v5864
        %v5959 = vmul.f32 %v5803, %v5864
        %v5960 = vmul.f32 %v5804, %v5864
        %v5961 = vmul.f32 %v5805, %v5864
        %v5962 = vmul.f32 %v5806, %v5864
        %v5963 = vmul.f32 %v5807, %v5864
        %v5964 = vmul.f32 %v5808, %v5864
        %v5965 = vmul.f32 %v5809, %v5864
        %v5966 = vmul.f32 %v5810, %v5864
        %v5967 = vmul.f32 %v5811, %v5864
        %v5968 = vmul.f32 %v5196, %v5864
        %v5969 = vmul.f32 %v5197, %v5864
        %v5970 = vmul.f32 %v5198, %v5864
        %v5971 = vmul.f32 %v5199, %v5864
        %v5972 = vmul.f32 %v5812, %v5869
        %v5973 = vmul.f32 %v5813, %v5869
        %v5974 = vmul.f32 %v5814, %v5869
        %v5975 = vmul.f32 %v5815, %v5869
        %v5976 = vmul.f32 %v5816, %v5869
        %v5977 = vmul.f32 %v5817, %v5869
        %v5978 = vmul.f32 %v5818, %v5869
        %v5979 = vmul.f32 %v5819, %v5869
        %v5980 = vmul.f32 %v5820, %v5869
        %v5981 = vmul.f32 %v5821, %v5869
        %v5982 = vmul.f32 %v5822, %v5869
        %v5983 = vmul.f32 %v5823, %v5869
        %v5984 = vmul.f32 %v5200, %v5869
        %v5985 = vmul.f32 %v5201, %v5869
        %v5986 = vmul.f32 %v5202, %v5869
        %v5987 = vmul.f32 %v5203, %v5869
        %v5988 = vmul.f32 %v5824, %v5874
        %v5989 = vmul.f32 %v5825, %v5874
        %v5990 = vmul.f32 %v5826, %v5874
        %v5991 = vmul.f32 %v5827, %v5874
        %v5992 = vmul.f32 %v5828, %v5874
        %v5993 = vmul.f32 %v5829, %v5874
        %v5994 = vmul.f32 %v5830, %v5874
        %v5995 = vmul.f32 %v5831, %v5874
        %v5996 = vmul.f32 %v5832, %v5874
        %v5997 = vmul.f32 %v5833, %v5874
        %v5998 = vmul.f32 %v5834, %v5874
        %v5999 = vmul.f32 %v5835, %v5874
        %v6000 = vmul.f32 %v5204, %v5874
        %v6001 = vmul.f32 %v5205, %v5874
        %v6002 = vmul.f32 %v5206, %v5874
        %v6003 = vmul.f32 %v5207, %v5874
        %6004 = vst [vmem:[%s408] sm:$0xff] %v5876
        %6005 = vst [vmem:[%s408 + $0x8] sm:$0xff] %v5877
        %6006 = vst [vmem:[%s408 + $0x10] sm:$0xff] %v5878
        %6007 = vst [vmem:[%s408 + $0x18] sm:$0xff] %v5879
        %6008 = vst [vmem:[%s408 + $0x20] sm:$0xff] %v5880
        %6009 = vst [vmem:[%s408 + $0x28] sm:$0xff] %v5881
        %6010 = vst [vmem:[%s408 + $0x30] sm:$0xff] %v5882
        %6011 = vst [vmem:[%s408 + $0x38] sm:$0xff] %v5883
        %6012 = vst [vmem:[%s408 + $0x40] sm:$0xff] %v5884
        %6013 = vst [vmem:[%s408 + $0x48] sm:$0xff] %v5885
        %6014 = vst [vmem:[%s408 + $0x50] sm:$0xff] %v5886
        %6015 = vst [vmem:[%s408 + $0x58] sm:$0xff] %v5887
        %6016 = vst [vmem:[%s408 + $0x60] sm:$0xff] %v5888
        %6017 = vst [vmem:[%s408 + $0x68] sm:$0xff] %v5889
        %6018 = vst [vmem:[%s408 + $0x70] sm:$0xff] %v5890
        %6019 = vst [vmem:[%s408 + $0x78] sm:$0xff] %v5891
        %6020 = vst [vmem:[%s408 + $0x80] sm:$0xff] %v5892
        %6021 = vst [vmem:[%s408 + $0x88] sm:$0xff] %v5893
        %6022 = vst [vmem:[%s408 + $0x90] sm:$0xff] %v5894
        %6023 = vst [vmem:[%s408 + $0x98] sm:$0xff] %v5895
        %6024 = vst [vmem:[%s408 + $0xa0] sm:$0xff] %v5896
        %6025 = vst [vmem:[%s408 + $0xa8] sm:$0xff] %v5897
        %6026 = vst [vmem:[%s408 + $0xb0] sm:$0xff] %v5898
        %6027 = vst [vmem:[%s408 + $0xb8] sm:$0xff] %v5899
        %6028 = vst [vmem:[%s408 + $0xc0] sm:$0xff] %v5900
        %6029 = vst [vmem:[%s408 + $0xc8] sm:$0xff] %v5901
        %6030 = vst [vmem:[%s408 + $0xd0] sm:$0xff] %v5902
        %6031 = vst [vmem:[%s408 + $0xd8] sm:$0xff] %v5903
        %6032 = vst [vmem:[%s408 + $0xe0] sm:$0xff] %v5904
        %6033 = vst [vmem:[%s408 + $0xe8] sm:$0xff] %v5905
        %6034 = vst [vmem:[%s408 + $0xf0] sm:$0xff] %v5906
        %6035 = vst [vmem:[%s408 + $0xf8] sm:$0xff] %v5907
        %6036 = vst [vmem:[%s408 + $0x100] sm:$0xff] %v5908
        %6037 = vst [vmem:[%s408 + $0x108] sm:$0xff] %v5909
        %6038 = vst [vmem:[%s408 + $0x110] sm:$0xff] %v5910
        %6039 = vst [vmem:[%s408 + $0x118] sm:$0xff] %v5911
        %6040 = vst [vmem:[%s408 + $0x120] sm:$0xff] %v5912
        %6041 = vst [vmem:[%s408 + $0x128] sm:$0xff] %v5913
        %6042 = vst [vmem:[%s408 + $0x130] sm:$0xff] %v5914
        %6043 = vst [vmem:[%s408 + $0x138] sm:$0xff] %v5915
        %6044 = vst [vmem:[%s408 + $0x140] sm:$0xff] %v5916
        %6045 = vst [vmem:[%s408 + $0x148] sm:$0xff] %v5917
        %6046 = vst [vmem:[%s408 + $0x150] sm:$0xff] %v5918
        %6047 = vst [vmem:[%s408 + $0x158] sm:$0xff] %v5919
        %6048 = vst [vmem:[%s408 + $0x160] sm:$0xff] %v5920
        %6049 = vst [vmem:[%s408 + $0x168] sm:$0xff] %v5921
        %6050 = vst [vmem:[%s408 + $0x170] sm:$0xff] %v5922
        %6051 = vst [vmem:[%s408 + $0x178] sm:$0xff] %v5923
        %6052 = vst [vmem:[%s408 + $0x180] sm:$0xff] %v5924
        %6053 = vst [vmem:[%s408 + $0x188] sm:$0xff] %v5925
        %6054 = vst [vmem:[%s408 + $0x190] sm:$0xff] %v5926
        %6055 = vst [vmem:[%s408 + $0x198] sm:$0xff] %v5927
        %6056 = vst [vmem:[%s408 + $0x1a0] sm:$0xff] %v5928
        %6057 = vst [vmem:[%s408 + $0x1a8] sm:$0xff] %v5929
        %6058 = vst [vmem:[%s408 + $0x1b0] sm:$0xff] %v5930
        %6059 = vst [vmem:[%s408 + $0x1b8] sm:$0xff] %v5931
        %6060 = vst [vmem:[%s408 + $0x1c0] sm:$0xff] %v5932
        %6061 = vst [vmem:[%s408 + $0x1c8] sm:$0xff] %v5933
        %6062 = vst [vmem:[%s408 + $0x1d0] sm:$0xff] %v5934
        %6063 = vst [vmem:[%s408 + $0x1d8] sm:$0xff] %v5935
        %6064 = vst [vmem:[%s408 + $0x1e0] sm:$0xff] %v5936
        %6065 = vst [vmem:[%s408 + $0x1e8] sm:$0xff] %v5937
        %6066 = vst [vmem:[%s408 + $0x1f0] sm:$0xff] %v5938
        %6067 = vst [vmem:[%s408 + $0x1f8] sm:$0xff] %v5939
        %6068 = vst [vmem:[%s408 + $0x200] sm:$0xff] %v5940
        %6069 = vst [vmem:[%s408 + $0x208] sm:$0xff] %v5941
        %6070 = vst [vmem:[%s408 + $0x210] sm:$0xff] %v5942
        %6071 = vst [vmem:[%s408 + $0x218] sm:$0xff] %v5943
        %6072 = vst [vmem:[%s408 + $0x220] sm:$0xff] %v5944
        %6073 = vst [vmem:[%s408 + $0x228] sm:$0xff] %v5945
        %6074 = vst [vmem:[%s408 + $0x230] sm:$0xff] %v5946
        %6075 = vst [vmem:[%s408 + $0x238] sm:$0xff] %v5947
        %6076 = vst [vmem:[%s408 + $0x240] sm:$0xff] %v5948
        %6077 = vst [vmem:[%s408 + $0x248] sm:$0xff] %v5949
        %6078 = vst [vmem:[%s408 + $0x250] sm:$0xff] %v5950
        %6079 = vst [vmem:[%s408 + $0x258] sm:$0xff] %v5951
        %6080 = vst [vmem:[%s408 + $0x260] sm:$0xff] %v5952
        %6081 = vst [vmem:[%s408 + $0x268] sm:$0xff] %v5953
        %6082 = vst [vmem:[%s408 + $0x270] sm:$0xff] %v5954
        %6083 = vst [vmem:[%s408 + $0x278] sm:$0xff] %v5955
        %6084 = vst [vmem:[%s408 + $0x280] sm:$0xff] %v5956
        %6085 = vst [vmem:[%s408 + $0x288] sm:$0xff] %v5957
        %6086 = vst [vmem:[%s408 + $0x290] sm:$0xff] %v5958
        %6087 = vst [vmem:[%s408 + $0x298] sm:$0xff] %v5959
        %6088 = vst [vmem:[%s408 + $0x2a0] sm:$0xff] %v5960
        %6089 = vst [vmem:[%s408 + $0x2a8] sm:$0xff] %v5961
        %6090 = vst [vmem:[%s408 + $0x2b0] sm:$0xff] %v5962
        %6091 = vst [vmem:[%s408 + $0x2b8] sm:$0xff] %v5963
        %6092 = vst [vmem:[%s408 + $0x2c0] sm:$0xff] %v5964
        %6093 = vst [vmem:[%s408 + $0x2c8] sm:$0xff] %v5965
        %6094 = vst [vmem:[%s408 + $0x2d0] sm:$0xff] %v5966
        %6095 = vst [vmem:[%s408 + $0x2d8] sm:$0xff] %v5967
        %6096 = vst [vmem:[%s408 + $0x2e0] sm:$0xff] %v5968
        %6097 = vst [vmem:[%s408 + $0x2e8] sm:$0xff] %v5969
        %6098 = vst [vmem:[%s408 + $0x2f0] sm:$0xff] %v5970
        %6099 = vst [vmem:[%s408 + $0x2f8] sm:$0xff] %v5971
        %6100 = vst [vmem:[%s408 + $0x300] sm:$0xff] %v5972
        %6101 = vst [vmem:[%s408 + $0x308] sm:$0xff] %v5973
        %6102 = vst [vmem:[%s408 + $0x310] sm:$0xff] %v5974
        %6103 = vst [vmem:[%s408 + $0x318] sm:$0xff] %v5975
        %6104 = vst [vmem:[%s408 + $0x320] sm:$0xff] %v5976
        %6105 = vst [vmem:[%s408 + $0x328] sm:$0xff] %v5977
        %6106 = vst [vmem:[%s408 + $0x330] sm:$0xff] %v5978
        %6107 = vst [vmem:[%s408 + $0x338] sm:$0xff] %v5979
        %6108 = vst [vmem:[%s408 + $0x340] sm:$0xff] %v5980
        %6109 = vst [vmem:[%s408 + $0x348] sm:$0xff] %v5981
        %6110 = vst [vmem:[%s408 + $0x350] sm:$0xff] %v5982
        %6111 = vst [vmem:[%s408 + $0x358] sm:$0xff] %v5983
        %6112 = vst [vmem:[%s408 + $0x360] sm:$0xff] %v5984
        %6113 = vst [vmem:[%s408 + $0x368] sm:$0xff] %v5985
        %6114 = vst [vmem:[%s408 + $0x370] sm:$0xff] %v5986
        %6115 = vst [vmem:[%s408 + $0x378] sm:$0xff] %v5987
        %6116 = vst [vmem:[%s408 + $0x380] sm:$0xff] %v5988
        %6117 = vst [vmem:[%s408 + $0x388] sm:$0xff] %v5989
        %6118 = vst [vmem:[%s408 + $0x390] sm:$0xff] %v5990
        %6119 = vst [vmem:[%s408 + $0x398] sm:$0xff] %v5991
        %6120 = vst [vmem:[%s408 + $0x3a0] sm:$0xff] %v5992
        %6121 = vst [vmem:[%s408 + $0x3a8] sm:$0xff] %v5993
        %6122 = vst [vmem:[%s408 + $0x3b0] sm:$0xff] %v5994
        %6123 = vst [vmem:[%s408 + $0x3b8] sm:$0xff] %v5995
        %6124 = vst [vmem:[%s408 + $0x3c0] sm:$0xff] %v5996
        %6125 = vst [vmem:[%s408 + $0x3c8] sm:$0xff] %v5997
        %6126 = vst [vmem:[%s408 + $0x3d0] sm:$0xff] %v5998
        %6127 = vst [vmem:[%s408 + $0x3d8] sm:$0xff] %v5999
        %6128 = vst [vmem:[%s408 + $0x3e0] sm:$0xff] %v6000
        %6129 = vst [vmem:[%s408 + $0x3e8] sm:$0xff] %v6001
        %6130 = vst [vmem:[%s408 + $0x3f0] sm:$0xff] %v6002
        %6131 = vst [vmem:[%s408 + $0x3f8] sm:$0xff] %v6003
        %v6132 = vld [vmem:[%s1222] sm:$0xff]
        %v6133 = vld [vmem:[%s1222 + $0x8] sm:$0xff]
        %v6134 = vld [vmem:[%s1222 + $0x10] sm:$0xff]
        %v6135 = vld [vmem:[%s1222 + $0x18] sm:$0xff]
        %v6136 = vld [vmem:[%s1222 + $0x80] sm:$0xff]
        %v6137 = vld [vmem:[%s1222 + $0x88] sm:$0xff]
        %v6138 = vld [vmem:[%s1222 + $0x90] sm:$0xff]
        %v6139 = vld [vmem:[%s1222 + $0x98] sm:$0xff]
        %v6140 = vld [vmem:[%s1222 + $0x100] sm:$0xff]
        %v6141 = vld [vmem:[%s1222 + $0x108] sm:$0xff]
        %v6142 = vld [vmem:[%s1222 + $0x110] sm:$0xff]
        %v6143 = vld [vmem:[%s1222 + $0x118] sm:$0xff]
        %v6144 = vld [vmem:[%s1222 + $0x180] sm:$0xff]
        %v6145 = vld [vmem:[%s1222 + $0x188] sm:$0xff]
        %v6146 = vld [vmem:[%s1222 + $0x190] sm:$0xff]
        %v6147 = vld [vmem:[%s1222 + $0x198] sm:$0xff]
        %v6148 = vld [vmem:[%s1222 + $0x200] sm:$0xff]
        %v6149 = vld [vmem:[%s1222 + $0x208] sm:$0xff]
        %v6150 = vld [vmem:[%s1222 + $0x210] sm:$0xff]
        %v6151 = vld [vmem:[%s1222 + $0x218] sm:$0xff]
        %v6152 = vld [vmem:[%s1222 + $0x280] sm:$0xff]
        %v6153 = vld [vmem:[%s1222 + $0x288] sm:$0xff]
        %v6154 = vld [vmem:[%s1222 + $0x290] sm:$0xff]
        %v6155 = vld [vmem:[%s1222 + $0x298] sm:$0xff]
        %v6156 = vld [vmem:[%s1222 + $0x300] sm:$0xff]
        %v6157 = vld [vmem:[%s1222 + $0x308] sm:$0xff]
        %v6158 = vld [vmem:[%s1222 + $0x310] sm:$0xff]
        %v6159 = vld [vmem:[%s1222 + $0x318] sm:$0xff]
        %v6160 = vld [vmem:[%s1222 + $0x380] sm:$0xff]
        %v6161 = vld [vmem:[%s1222 + $0x388] sm:$0xff]
        %v6162 = vld [vmem:[%s1222 + $0x390] sm:$0xff]
        %v6163 = vld [vmem:[%s1222 + $0x398] sm:$0xff]
        %v6164 = vlaneseq
        %v6165 = vshrl.u32 %v6164, 7
        %v6166 = vsub.s32 1, %v6165
        %v6167 = vrot.slane %v4576, %v6166
        %v6168 = vlaneseq
        %v6169 = vshrl.u32 %v6168, 7
        %v6170 = vsub.s32 1, %v6169
        %v6171 = vrot.slane %v4578, %v6170
        %v6172 = vlaneseq
        %v6173 = vshrl.u32 %v6172, 7
        %v6174 = vsub.s32 1, %v6173
        %v6175 = vrot.slane %v4580, %v6174
        %v6176 = vlaneseq
        %v6177 = vshrl.u32 %v6176, 7
        %v6178 = vsub.s32 1, %v6177
        %v6179 = vrot.slane %v4582, %v6178
        %v6180 = vmul.f32 %v6132, %v6167
        %v6181 = vmul.f32 %v6133, %v6171
        %v6182 = vmul.f32 %v6134, %v6175
        %v6183 = vmul.f32 %v6135, %v6179
        %v6184 = vmul.f32 %v6136, %v6167
        %v6185 = vmul.f32 %v6137, %v6171
        %v6186 = vmul.f32 %v6138, %v6175
        %v6187 = vmul.f32 %v6139, %v6179
        %v6188 = vmul.f32 %v6140, %v6167
        %v6189 = vmul.f32 %v6141, %v6171
        %v6190 = vmul.f32 %v6142, %v6175
        %v6191 = vmul.f32 %v6143, %v6179
        %v6192 = vmul.f32 %v6144, %v6167
        %v6193 = vmul.f32 %v6145, %v6171
        %v6194 = vmul.f32 %v6146, %v6175
        %v6195 = vmul.f32 %v6147, %v6179
        %v6196 = vmul.f32 %v6148, %v6167
        %v6197 = vmul.f32 %v6149, %v6171
        %v6198 = vmul.f32 %v6150, %v6175
        %v6199 = vmul.f32 %v6151, %v6179
        %v6200 = vmul.f32 %v6152, %v6167
        %v6201 = vmul.f32 %v6153, %v6171
        %v6202 = vmul.f32 %v6154, %v6175
        %v6203 = vmul.f32 %v6155, %v6179
        %v6204 = vmul.f32 %v6156, %v6167
        %v6205 = vmul.f32 %v6157, %v6171
        %v6206 = vmul.f32 %v6158, %v6175
        %v6207 = vmul.f32 %v6159, %v6179
        %v6208 = vmul.f32 %v6160, %v6167
        %v6209 = vmul.f32 %v6161, %v6171
        %v6210 = vmul.f32 %v6162, %v6175
        %v6211 = vmul.f32 %v6163, %v6179
        %v6212 = vadd.f32 %v6180, %v6181
        %v6213 = vadd.f32 %v6212, %v6182
        %v6214 = vadd.f32 %v6213, %v6183
        %6215 = vadd.xlane.f32.xlu0 %v6214
        %v6216 = vpop.xlane.xlu0 %6215
        %v6217 = vadd.f32 %v6184, %v6185
        %v6218 = vadd.f32 %v6217, %v6186
        %v6219 = vadd.f32 %v6218, %v6187
        %6220 = vadd.xlane.f32.xlu0 %v6219
        %v6221 = vpop.xlane.xlu0 %6220
        %v6222 = vadd.f32 %v6188, %v6189
        %v6223 = vadd.f32 %v6222, %v6190
        %v6224 = vadd.f32 %v6223, %v6191
        %6225 = vadd.xlane.f32.xlu0 %v6224
        %v6226 = vpop.xlane.xlu0 %6225
        %v6227 = vadd.f32 %v6192, %v6193
        %v6228 = vadd.f32 %v6227, %v6194
        %v6229 = vadd.f32 %v6228, %v6195
        %6230 = vadd.xlane.f32.xlu0 %v6229
        %v6231 = vpop.xlane.xlu0 %6230
        %v6232 = vadd.f32 %v6196, %v6197
        %v6233 = vadd.f32 %v6232, %v6198
        %v6234 = vadd.f32 %v6233, %v6199
        %6235 = vadd.xlane.f32.xlu0 %v6234
        %v6236 = vpop.xlane.xlu0 %6235
        %v6237 = vadd.f32 %v6200, %v6201
        %v6238 = vadd.f32 %v6237, %v6202
        %v6239 = vadd.f32 %v6238, %v6203
        %6240 = vadd.xlane.f32.xlu0 %v6239
        %v6241 = vpop.xlane.xlu0 %6240
        %v6242 = vadd.f32 %v6204, %v6205
        %v6243 = vadd.f32 %v6242, %v6206
        %v6244 = vadd.f32 %v6243, %v6207
        %6245 = vadd.xlane.f32.xlu0 %v6244
        %v6246 = vpop.xlane.xlu0 %6245
        %v6247 = vadd.f32 %v6208, %v6209
        %v6248 = vadd.f32 %v6247, %v6210
        %v6249 = vadd.f32 %v6248, %v6211
        %6250 = vadd.xlane.f32.xlu0 %v6249
        %v6251 = vpop.xlane.xlu0 %6250
        %v6252 = vadd.f32 %v6216, 0.0
        %v6253 = vadd.f32 %v6221, 0.0
        %v6254 = vadd.f32 %v6226, 0.0
        %v6255 = vadd.f32 %v6231, 0.0
        %v6256 = vadd.f32 %v6236, 0.0
        %v6257 = vadd.f32 %v6241, 0.0
        %v6258 = vadd.f32 %v6246, 0.0
        %v6259 = vadd.f32 %v6251, 0.0
        %v6260 = vmax.f32 %v6180, %v6181
        %v6261 = vmax.f32 %v6260, %v6182
        %v6262 = vmax.f32 %v6261, %v6183
        %6263 = vmax.xlane.f32.xlu0 %v6262
        %v6264 = vpop.xlane.xlu0 %6263
        %v6265 = vmax.f32 %v6184, %v6185
        %v6266 = vmax.f32 %v6265, %v6186
        %v6267 = vmax.f32 %v6266, %v6187
        %6268 = vmax.xlane.f32.xlu0 %v6267
        %v6269 = vpop.xlane.xlu0 %6268
        %v6270 = vmax.f32 %v6188, %v6189
        %v6271 = vmax.f32 %v6270, %v6190
        %v6272 = vmax.f32 %v6271, %v6191
        %6273 = vmax.xlane.f32.xlu0 %v6272
        %v6274 = vpop.xlane.xlu0 %6273
        %v6275 = vmax.f32 %v6192, %v6193
        %v6276 = vmax.f32 %v6275, %v6194
        %v6277 = vmax.f32 %v6276, %v6195
        %6278 = vmax.xlane.f32.xlu0 %v6277
        %v6279 = vpop.xlane.xlu0 %6278
        %v6280 = vmax.f32 %v6196, %v6197
        %v6281 = vmax.f32 %v6280, %v6198
        %v6282 = vmax.f32 %v6281, %v6199
        %6283 = vmax.xlane.f32.xlu0 %v6282
        %v6284 = vpop.xlane.xlu0 %6283
        %v6285 = vmax.f32 %v6200, %v6201
        %v6286 = vmax.f32 %v6285, %v6202
        %v6287 = vmax.f32 %v6286, %v6203
        %6288 = vmax.xlane.f32.xlu0 %v6287
        %v6289 = vpop.xlane.xlu0 %6288
        %v6290 = vmax.f32 %v6204, %v6205
        %v6291 = vmax.f32 %v6290, %v6206
        %v6292 = vmax.f32 %v6291, %v6207
        %6293 = vmax.xlane.f32.xlu0 %v6292
        %v6294 = vpop.xlane.xlu0 %6293
        %v6295 = vmax.f32 %v6208, %v6209
        %v6296 = vmax.f32 %v6295, %v6210
        %v6297 = vmax.f32 %v6296, %v6211
        %6298 = vmax.xlane.f32.xlu0 %v6297
        %v6299 = vpop.xlane.xlu0 %6298
        %v6300 = vld [vmem:[%s1222 + $0x20] sm:$0xff]
        %v6301 = vld [vmem:[%s1222 + $0x28] sm:$0xff]
        %v6302 = vld [vmem:[%s1222 + $0x30] sm:$0xff]
        %v6303 = vld [vmem:[%s1222 + $0x38] sm:$0xff]
        %v6304 = vld [vmem:[%s1222 + $0xa0] sm:$0xff]
        %v6305 = vld [vmem:[%s1222 + $0xa8] sm:$0xff]
        %v6306 = vld [vmem:[%s1222 + $0xb0] sm:$0xff]
        %v6307 = vld [vmem:[%s1222 + $0xb8] sm:$0xff]
        %v6308 = vld [vmem:[%s1222 + $0x120] sm:$0xff]
        %v6309 = vld [vmem:[%s1222 + $0x128] sm:$0xff]
        %v6310 = vld [vmem:[%s1222 + $0x130] sm:$0xff]
        %v6311 = vld [vmem:[%s1222 + $0x138] sm:$0xff]
        %v6312 = vld [vmem:[%s1222 + $0x1a0] sm:$0xff]
        %v6313 = vld [vmem:[%s1222 + $0x1a8] sm:$0xff]
        %v6314 = vld [vmem:[%s1222 + $0x1b0] sm:$0xff]
        %v6315 = vld [vmem:[%s1222 + $0x1b8] sm:$0xff]
        %v6316 = vld [vmem:[%s1222 + $0x220] sm:$0xff]
        %v6317 = vld [vmem:[%s1222 + $0x228] sm:$0xff]
        %v6318 = vld [vmem:[%s1222 + $0x230] sm:$0xff]
        %v6319 = vld [vmem:[%s1222 + $0x238] sm:$0xff]
        %v6320 = vld [vmem:[%s1222 + $0x2a0] sm:$0xff]
        %v6321 = vld [vmem:[%s1222 + $0x2a8] sm:$0xff]
        %v6322 = vld [vmem:[%s1222 + $0x2b0] sm:$0xff]
        %v6323 = vld [vmem:[%s1222 + $0x2b8] sm:$0xff]
        %v6324 = vld [vmem:[%s1222 + $0x320] sm:$0xff]
        %v6325 = vld [vmem:[%s1222 + $0x328] sm:$0xff]
        %v6326 = vld [vmem:[%s1222 + $0x330] sm:$0xff]
        %v6327 = vld [vmem:[%s1222 + $0x338] sm:$0xff]
        %v6328 = vld [vmem:[%s1222 + $0x3a0] sm:$0xff]
        %v6329 = vld [vmem:[%s1222 + $0x3a8] sm:$0xff]
        %v6330 = vld [vmem:[%s1222 + $0x3b0] sm:$0xff]
        %v6331 = vld [vmem:[%s1222 + $0x3b8] sm:$0xff]
        %v6332 = vlaneseq
        %v6333 = vshrl.u32 %v6332, 7
        %v6334 = vsub.s32 1, %v6333
        %v6335 = vrot.slane %v4584, %v6334
        %v6336 = vlaneseq
        %v6337 = vshrl.u32 %v6336, 7
        %v6338 = vsub.s32 1, %v6337
        %v6339 = vrot.slane %v4586, %v6338
        %v6340 = vlaneseq
        %v6341 = vshrl.u32 %v6340, 7
        %v6342 = vsub.s32 1, %v6341
        %v6343 = vrot.slane %v4588, %v6342
        %v6344 = vlaneseq
        %v6345 = vshrl.u32 %v6344, 7
        %v6346 = vsub.s32 1, %v6345
        %v6347 = vrot.slane %v4590, %v6346
        %v6348 = vmul.f32 %v6300, %v6335
        %v6349 = vmul.f32 %v6301, %v6339
        %v6350 = vmul.f32 %v6302, %v6343
        %v6351 = vmul.f32 %v6303, %v6347
        %v6352 = vmul.f32 %v6304, %v6335
        %v6353 = vmul.f32 %v6305, %v6339
        %v6354 = vmul.f32 %v6306, %v6343
        %v6355 = vmul.f32 %v6307, %v6347
        %v6356 = vmul.f32 %v6308, %v6335
        %v6357 = vmul.f32 %v6309, %v6339
        %v6358 = vmul.f32 %v6310, %v6343
        %v6359 = vmul.f32 %v6311, %v6347
        %v6360 = vmul.f32 %v6312, %v6335
        %v6361 = vmul.f32 %v6313, %v6339
        %v6362 = vmul.f32 %v6314, %v6343
        %v6363 = vmul.f32 %v6315, %v6347
        %v6364 = vmul.f32 %v6316, %v6335
        %v6365 = vmul.f32 %v6317, %v6339
        %v6366 = vmul.f32 %v6318, %v6343
        %v6367 = vmul.f32 %v6319, %v6347
        %v6368 = vmul.f32 %v6320, %v6335
        %v6369 = vmul.f32 %v6321, %v6339
        %v6370 = vmul.f32 %v6322, %v6343
        %v6371 = vmul.f32 %v6323, %v6347
        %v6372 = vmul.f32 %v6324, %v6335
        %v6373 = vmul.f32 %v6325, %v6339
        %v6374 = vmul.f32 %v6326, %v6343
        %v6375 = vmul.f32 %v6327, %v6347
        %v6376 = vmul.f32 %v6328, %v6335
        %v6377 = vmul.f32 %v6329, %v6339
        %v6378 = vmul.f32 %v6330, %v6343
        %v6379 = vmul.f32 %v6331, %v6347
        %v6380 = vadd.f32 %v6348, %v6349
        %v6381 = vadd.f32 %v6380, %v6350
        %v6382 = vadd.f32 %v6381, %v6351
        %6383 = vadd.xlane.f32.xlu0 %v6382
        %v6384 = vpop.xlane.xlu0 %6383
        %v6385 = vadd.f32 %v6352, %v6353
        %v6386 = vadd.f32 %v6385, %v6354
        %v6387 = vadd.f32 %v6386, %v6355
        %6388 = vadd.xlane.f32.xlu0 %v6387
        %v6389 = vpop.xlane.xlu0 %6388
        %v6390 = vadd.f32 %v6356, %v6357
        %v6391 = vadd.f32 %v6390, %v6358
        %v6392 = vadd.f32 %v6391, %v6359
        %6393 = vadd.xlane.f32.xlu0 %v6392
        %v6394 = vpop.xlane.xlu0 %6393
        %v6395 = vadd.f32 %v6360, %v6361
        %v6396 = vadd.f32 %v6395, %v6362
        %v6397 = vadd.f32 %v6396, %v6363
        %6398 = vadd.xlane.f32.xlu0 %v6397
        %v6399 = vpop.xlane.xlu0 %6398
        %v6400 = vadd.f32 %v6364, %v6365
        %v6401 = vadd.f32 %v6400, %v6366
        %v6402 = vadd.f32 %v6401, %v6367
        %6403 = vadd.xlane.f32.xlu0 %v6402
        %v6404 = vpop.xlane.xlu0 %6403
        %v6405 = vadd.f32 %v6368, %v6369
        %v6406 = vadd.f32 %v6405, %v6370
        %v6407 = vadd.f32 %v6406, %v6371
        %6408 = vadd.xlane.f32.xlu0 %v6407
        %v6409 = vpop.xlane.xlu0 %6408
        %v6410 = vadd.f32 %v6372, %v6373
        %v6411 = vadd.f32 %v6410, %v6374
        %v6412 = vadd.f32 %v6411, %v6375
        %6413 = vadd.xlane.f32.xlu0 %v6412
        %v6414 = vpop.xlane.xlu0 %6413
        %v6415 = vadd.f32 %v6376, %v6377
        %v6416 = vadd.f32 %v6415, %v6378
        %v6417 = vadd.f32 %v6416, %v6379
        %6418 = vadd.xlane.f32.xlu0 %v6417
        %v6419 = vpop.xlane.xlu0 %6418
        %v6420 = vadd.f32 %v6252, %v6384
        %v6421 = vadd.f32 %v6253, %v6389
        %v6422 = vadd.f32 %v6254, %v6394
        %v6423 = vadd.f32 %v6255, %v6399
        %v6424 = vadd.f32 %v6256, %v6404
        %v6425 = vadd.f32 %v6257, %v6409
        %v6426 = vadd.f32 %v6258, %v6414
        %v6427 = vadd.f32 %v6259, %v6419
        %v6428 = vmax.f32 %v6348, %v6349
        %v6429 = vmax.f32 %v6428, %v6350
        %v6430 = vmax.f32 %v6429, %v6351
        %6431 = vmax.xlane.f32.xlu0 %v6430
        %v6432 = vpop.xlane.xlu0 %6431
        %v6433 = vmax.f32 %v6352, %v6353
        %v6434 = vmax.f32 %v6433, %v6354
        %v6435 = vmax.f32 %v6434, %v6355
        %6436 = vmax.xlane.f32.xlu0 %v6435
        %v6437 = vpop.xlane.xlu0 %6436
        %v6438 = vmax.f32 %v6356, %v6357
        %v6439 = vmax.f32 %v6438, %v6358
        %v6440 = vmax.f32 %v6439, %v6359
        %6441 = vmax.xlane.f32.xlu0 %v6440
        %v6442 = vpop.xlane.xlu0 %6441
        %v6443 = vmax.f32 %v6360, %v6361
        %v6444 = vmax.f32 %v6443, %v6362
        %v6445 = vmax.f32 %v6444, %v6363
        %6446 = vmax.xlane.f32.xlu0 %v6445
        %v6447 = vpop.xlane.xlu0 %6446
        %v6448 = vmax.f32 %v6364, %v6365
        %v6449 = vmax.f32 %v6448, %v6366
        %v6450 = vmax.f32 %v6449, %v6367
        %6451 = vmax.xlane.f32.xlu0 %v6450
        %v6452 = vpop.xlane.xlu0 %6451
        %v6453 = vmax.f32 %v6368, %v6369
        %v6454 = vmax.f32 %v6453, %v6370
        %v6455 = vmax.f32 %v6454, %v6371
        %6456 = vmax.xlane.f32.xlu0 %v6455
        %v6457 = vpop.xlane.xlu0 %6456
        %v6458 = vmax.f32 %v6372, %v6373
        %v6459 = vmax.f32 %v6458, %v6374
        %v6460 = vmax.f32 %v6459, %v6375
        %6461 = vmax.xlane.f32.xlu0 %v6460
        %v6462 = vpop.xlane.xlu0 %6461
        %v6463 = vmax.f32 %v6376, %v6377
        %v6464 = vmax.f32 %v6463, %v6378
        %v6465 = vmax.f32 %v6464, %v6379
        %6466 = vmax.xlane.f32.xlu0 %v6465
        %v6467 = vpop.xlane.xlu0 %6466
        %v6468 = vmax.f32 %v6264, %v6432
        %v6469 = vmax.f32 %v6269, %v6437
        %v6470 = vmax.f32 %v6274, %v6442
        %v6471 = vmax.f32 %v6279, %v6447
        %v6472 = vmax.f32 %v6284, %v6452
        %v6473 = vmax.f32 %v6289, %v6457
        %v6474 = vmax.f32 %v6294, %v6462
        %v6475 = vmax.f32 %v6299, %v6467
        %v6476 = vld [vmem:[%s1222 + $0x40] sm:$0xff]
        %v6477 = vld [vmem:[%s1222 + $0x48] sm:$0xff]
        %v6478 = vld [vmem:[%s1222 + $0x50] sm:$0xff]
        %v6479 = vld [vmem:[%s1222 + $0x58] sm:$0xff]
        %v6480 = vld [vmem:[%s1222 + $0xc0] sm:$0xff]
        %v6481 = vld [vmem:[%s1222 + $0xc8] sm:$0xff]
        %v6482 = vld [vmem:[%s1222 + $0xd0] sm:$0xff]
        %v6483 = vld [vmem:[%s1222 + $0xd8] sm:$0xff]
        %v6484 = vld [vmem:[%s1222 + $0x140] sm:$0xff]
        %v6485 = vld [vmem:[%s1222 + $0x148] sm:$0xff]
        %v6486 = vld [vmem:[%s1222 + $0x150] sm:$0xff]
        %v6487 = vld [vmem:[%s1222 + $0x158] sm:$0xff]
        %v6488 = vld [vmem:[%s1222 + $0x1c0] sm:$0xff]
        %v6489 = vld [vmem:[%s1222 + $0x1c8] sm:$0xff]
        %v6490 = vld [vmem:[%s1222 + $0x1d0] sm:$0xff]
        %v6491 = vld [vmem:[%s1222 + $0x1d8] sm:$0xff]
        %v6492 = vld [vmem:[%s1222 + $0x240] sm:$0xff]
        %v6493 = vld [vmem:[%s1222 + $0x248] sm:$0xff]
        %v6494 = vld [vmem:[%s1222 + $0x250] sm:$0xff]
        %v6495 = vld [vmem:[%s1222 + $0x258] sm:$0xff]
        %v6496 = vld [vmem:[%s1222 + $0x2c0] sm:$0xff]
        %v6497 = vld [vmem:[%s1222 + $0x2c8] sm:$0xff]
        %v6498 = vld [vmem:[%s1222 + $0x2d0] sm:$0xff]
        %v6499 = vld [vmem:[%s1222 + $0x2d8] sm:$0xff]
        %v6500 = vld [vmem:[%s1222 + $0x340] sm:$0xff]
        %v6501 = vld [vmem:[%s1222 + $0x348] sm:$0xff]
        %v6502 = vld [vmem:[%s1222 + $0x350] sm:$0xff]
        %v6503 = vld [vmem:[%s1222 + $0x358] sm:$0xff]
        %v6504 = vld [vmem:[%s1222 + $0x3c0] sm:$0xff]
        %v6505 = vld [vmem:[%s1222 + $0x3c8] sm:$0xff]
        %v6506 = vld [vmem:[%s1222 + $0x3d0] sm:$0xff]
        %v6507 = vld [vmem:[%s1222 + $0x3d8] sm:$0xff]
        %v6508 = vlaneseq
        %v6509 = vshrl.u32 %v6508, 7
        %v6510 = vsub.s32 1, %v6509
        %v6511 = vrot.slane %v4592, %v6510
        %v6512 = vlaneseq
        %v6513 = vshrl.u32 %v6512, 7
        %v6514 = vsub.s32 1, %v6513
        %v6515 = vrot.slane %v4594, %v6514
        %v6516 = vlaneseq
        %v6517 = vshrl.u32 %v6516, 7
        %v6518 = vsub.s32 1, %v6517
        %v6519 = vrot.slane %v4596, %v6518
        %v6520 = vlaneseq
        %v6521 = vshrl.u32 %v6520, 7
        %v6522 = vsub.s32 1, %v6521
        %v6523 = vrot.slane %v4598, %v6522
        %v6524 = vmul.f32 %v6476, %v6511
        %v6525 = vmul.f32 %v6477, %v6515
        %v6526 = vmul.f32 %v6478, %v6519
        %v6527 = vmul.f32 %v6479, %v6523
        %v6528 = vmul.f32 %v6480, %v6511
        %v6529 = vmul.f32 %v6481, %v6515
        %v6530 = vmul.f32 %v6482, %v6519
        %v6531 = vmul.f32 %v6483, %v6523
        %v6532 = vmul.f32 %v6484, %v6511
        %v6533 = vmul.f32 %v6485, %v6515
        %v6534 = vmul.f32 %v6486, %v6519
        %v6535 = vmul.f32 %v6487, %v6523
        %v6536 = vmul.f32 %v6488, %v6511
        %v6537 = vmul.f32 %v6489, %v6515
        %v6538 = vmul.f32 %v6490, %v6519
        %v6539 = vmul.f32 %v6491, %v6523
        %v6540 = vmul.f32 %v6492, %v6511
        %v6541 = vmul.f32 %v6493, %v6515
        %v6542 = vmul.f32 %v6494, %v6519
        %v6543 = vmul.f32 %v6495, %v6523
        %v6544 = vmul.f32 %v6496, %v6511
        %v6545 = vmul.f32 %v6497, %v6515
        %v6546 = vmul.f32 %v6498, %v6519
        %v6547 = vmul.f32 %v6499, %v6523
        %v6548 = vmul.f32 %v6500, %v6511
        %v6549 = vmul.f32 %v6501, %v6515
        %v6550 = vmul.f32 %v6502, %v6519
        %v6551 = vmul.f32 %v6503, %v6523
        %v6552 = vmul.f32 %v6504, %v6511
        %v6553 = vmul.f32 %v6505, %v6515
        %v6554 = vmul.f32 %v6506, %v6519
        %v6555 = vmul.f32 %v6507, %v6523
        %v6556 = vadd.f32 %v6524, %v6525
        %v6557 = vadd.f32 %v6556, %v6526
        %v6558 = vadd.f32 %v6557, %v6527
        %6559 = vadd.xlane.f32.xlu0 %v6558
        %v6560 = vpop.xlane.xlu0 %6559
        %v6561 = vadd.f32 %v6528, %v6529
        %v6562 = vadd.f32 %v6561, %v6530
        %v6563 = vadd.f32 %v6562, %v6531
        %6564 = vadd.xlane.f32.xlu0 %v6563
        %v6565 = vpop.xlane.xlu0 %6564
        %v6566 = vadd.f32 %v6532, %v6533
        %v6567 = vadd.f32 %v6566, %v6534
        %v6568 = vadd.f32 %v6567, %v6535
        %6569 = vadd.xlane.f32.xlu0 %v6568
        %v6570 = vpop.xlane.xlu0 %6569
        %v6571 = vadd.f32 %v6536, %v6537
        %v6572 = vadd.f32 %v6571, %v6538
        %v6573 = vadd.f32 %v6572, %v6539
        %6574 = vadd.xlane.f32.xlu0 %v6573
        %v6575 = vpop.xlane.xlu0 %6574
        %v6576 = vadd.f32 %v6540, %v6541
        %v6577 = vadd.f32 %v6576, %v6542
        %v6578 = vadd.f32 %v6577, %v6543
        %6579 = vadd.xlane.f32.xlu0 %v6578
        %v6580 = vpop.xlane.xlu0 %6579
        %v6581 = vadd.f32 %v6544, %v6545
        %v6582 = vadd.f32 %v6581, %v6546
        %v6583 = vadd.f32 %v6582, %v6547
        %6584 = vadd.xlane.f32.xlu0 %v6583
        %v6585 = vpop.xlane.xlu0 %6584
        %v6586 = vadd.f32 %v6548, %v6549
        %v6587 = vadd.f32 %v6586, %v6550
        %v6588 = vadd.f32 %v6587, %v6551
        %6589 = vadd.xlane.f32.xlu0 %v6588
        %v6590 = vpop.xlane.xlu0 %6589
        %v6591 = vadd.f32 %v6552, %v6553
        %v6592 = vadd.f32 %v6591, %v6554
        %v6593 = vadd.f32 %v6592, %v6555
        %6594 = vadd.xlane.f32.xlu0 %v6593
        %v6595 = vpop.xlane.xlu0 %6594
        %v6596 = vadd.f32 %v6420, %v6560
        %v6597 = vadd.f32 %v6421, %v6565
        %v6598 = vadd.f32 %v6422, %v6570
        %v6599 = vadd.f32 %v6423, %v6575
        %v6600 = vadd.f32 %v6424, %v6580
        %v6601 = vadd.f32 %v6425, %v6585
        %v6602 = vadd.f32 %v6426, %v6590
        %v6603 = vadd.f32 %v6427, %v6595
        %v6604 = vmax.f32 %v6524, %v6525
        %v6605 = vmax.f32 %v6604, %v6526
        %v6606 = vmax.f32 %v6605, %v6527
        %6607 = vmax.xlane.f32.xlu0 %v6606
        %v6608 = vpop.xlane.xlu0 %6607
        %v6609 = vmax.f32 %v6528, %v6529
        %v6610 = vmax.f32 %v6609, %v6530
        %v6611 = vmax.f32 %v6610, %v6531
        %6612 = vmax.xlane.f32.xlu0 %v6611
        %v6613 = vpop.xlane.xlu0 %6612
        %v6614 = vmax.f32 %v6532, %v6533
        %v6615 = vmax.f32 %v6614, %v6534
        %v6616 = vmax.f32 %v6615, %v6535
        %6617 = vmax.xlane.f32.xlu0 %v6616
        %v6618 = vpop.xlane.xlu0 %6617
        %v6619 = vmax.f32 %v6536, %v6537
        %v6620 = vmax.f32 %v6619, %v6538
        %v6621 = vmax.f32 %v6620, %v6539
        %6622 = vmax.xlane.f32.xlu0 %v6621
        %v6623 = vpop.xlane.xlu0 %6622
        %v6624 = vmax.f32 %v6540, %v6541
        %v6625 = vmax.f32 %v6624, %v6542
        %v6626 = vmax.f32 %v6625, %v6543
        %6627 = vmax.xlane.f32.xlu0 %v6626
        %v6628 = vpop.xlane.xlu0 %6627
        %v6629 = vmax.f32 %v6544, %v6545
        %v6630 = vmax.f32 %v6629, %v6546
        %v6631 = vmax.f32 %v6630, %v6547
        %6632 = vmax.xlane.f32.xlu0 %v6631
        %v6633 = vpop.xlane.xlu0 %6632
        %v6634 = vmax.f32 %v6548, %v6549
        %v6635 = vmax.f32 %v6634, %v6550
        %v6636 = vmax.f32 %v6635, %v6551
        %6637 = vmax.xlane.f32.xlu0 %v6636
        %v6638 = vpop.xlane.xlu0 %6637
        %v6639 = vmax.f32 %v6552, %v6553
        %v6640 = vmax.f32 %v6639, %v6554
        %v6641 = vmax.f32 %v6640, %v6555
        %6642 = vmax.xlane.f32.xlu0 %v6641
        %v6643 = vpop.xlane.xlu0 %6642
        %v6644 = vmax.f32 %v6468, %v6608
        %v6645 = vmax.f32 %v6469, %v6613
        %v6646 = vmax.f32 %v6470, %v6618
        %v6647 = vmax.f32 %v6471, %v6623
        %v6648 = vmax.f32 %v6472, %v6628
        %v6649 = vmax.f32 %v6473, %v6633
        %v6650 = vmax.f32 %v6474, %v6638
        %v6651 = vmax.f32 %v6475, %v6643
        %v6652 = vld [vmem:[%s1222 + $0x60] sm:$0xff]
        %v6653 = vld [vmem:[%s1222 + $0x68] sm:$0xff]
        %v6654 = vld [vmem:[%s1222 + $0x70] sm:$0xff]
        %v6655 = vld [vmem:[%s1222 + $0x78] sm:$0xff]
        %v6656 = vld [vmem:[%s1222 + $0xe0] sm:$0xff]
        %v6657 = vld [vmem:[%s1222 + $0xe8] sm:$0xff]
        %v6658 = vld [vmem:[%s1222 + $0xf0] sm:$0xff]
        %v6659 = vld [vmem:[%s1222 + $0xf8] sm:$0xff]
        %v6660 = vld [vmem:[%s1222 + $0x160] sm:$0xff]
        %v6661 = vld [vmem:[%s1222 + $0x168] sm:$0xff]
        %v6662 = vld [vmem:[%s1222 + $0x170] sm:$0xff]
        %v6663 = vld [vmem:[%s1222 + $0x178] sm:$0xff]
        %v6664 = vld [vmem:[%s1222 + $0x1e0] sm:$0xff]
        %v6665 = vld [vmem:[%s1222 + $0x1e8] sm:$0xff]
        %v6666 = vld [vmem:[%s1222 + $0x1f0] sm:$0xff]
        %v6667 = vld [vmem:[%s1222 + $0x1f8] sm:$0xff]
        %v6668 = vld [vmem:[%s1222 + $0x260] sm:$0xff]
        %v6669 = vld [vmem:[%s1222 + $0x268] sm:$0xff]
        %v6670 = vld [vmem:[%s1222 + $0x270] sm:$0xff]
        %v6671 = vld [vmem:[%s1222 + $0x278] sm:$0xff]
        %v6672 = vld [vmem:[%s1222 + $0x2e0] sm:$0xff]
        %v6673 = vld [vmem:[%s1222 + $0x2e8] sm:$0xff]
        %v6674 = vld [vmem:[%s1222 + $0x2f0] sm:$0xff]
        %v6675 = vld [vmem:[%s1222 + $0x2f8] sm:$0xff]
        %v6676 = vld [vmem:[%s1222 + $0x360] sm:$0xff]
        %v6677 = vld [vmem:[%s1222 + $0x368] sm:$0xff]
        %v6678 = vld [vmem:[%s1222 + $0x370] sm:$0xff]
        %v6679 = vld [vmem:[%s1222 + $0x378] sm:$0xff]
        %v6680 = vld [vmem:[%s1222 + $0x3e0] sm:$0xff]
        %v6681 = vld [vmem:[%s1222 + $0x3e8] sm:$0xff]
        %v6682 = vld [vmem:[%s1222 + $0x3f0] sm:$0xff]
        %v6683 = vld [vmem:[%s1222 + $0x3f8] sm:$0xff]
        %v6684 = vlaneseq
        %v6685 = vshrl.u32 %v6684, 7
        %v6686 = vsub.s32 1, %v6685
        %v6687 = vrot.slane %v4600, %v6686
        %v6688 = vlaneseq
        %v6689 = vshrl.u32 %v6688, 7
        %v6690 = vsub.s32 1, %v6689
        %v6691 = vrot.slane %v4602, %v6690
        %v6692 = vlaneseq
        %v6693 = vshrl.u32 %v6692, 7
        %v6694 = vsub.s32 1, %v6693
        %v6695 = vrot.slane %v4604, %v6694
        %v6696 = vlaneseq
        %v6697 = vshrl.u32 %v6696, 7
        %v6698 = vsub.s32 1, %v6697
        %v6699 = vrot.slane %v4606, %v6698
        %v6700 = vmul.f32 %v6652, %v6687
        %v6701 = vmul.f32 %v6653, %v6691
        %v6702 = vmul.f32 %v6654, %v6695
        %v6703 = vmul.f32 %v6655, %v6699
        %v6704 = vmul.f32 %v6656, %v6687
        %v6705 = vmul.f32 %v6657, %v6691
        %v6706 = vmul.f32 %v6658, %v6695
        %v6707 = vmul.f32 %v6659, %v6699
        %v6708 = vmul.f32 %v6660, %v6687
        %v6709 = vmul.f32 %v6661, %v6691
        %v6710 = vmul.f32 %v6662, %v6695
        %v6711 = vmul.f32 %v6663, %v6699
        %v6712 = vmul.f32 %v6664, %v6687
        %v6713 = vmul.f32 %v6665, %v6691
        %v6714 = vmul.f32 %v6666, %v6695
        %v6715 = vmul.f32 %v6667, %v6699
        %v6716 = vmul.f32 %v6668, %v6687
        %v6717 = vmul.f32 %v6669, %v6691
        %v6718 = vmul.f32 %v6670, %v6695
        %v6719 = vmul.f32 %v6671, %v6699
        %v6720 = vmul.f32 %v6672, %v6687
        %v6721 = vmul.f32 %v6673, %v6691
        %v6722 = vmul.f32 %v6674, %v6695
        %v6723 = vmul.f32 %v6675, %v6699
        %v6724 = vmul.f32 %v6676, %v6687
        %v6725 = vmul.f32 %v6677, %v6691
        %v6726 = vmul.f32 %v6678, %v6695
        %v6727 = vmul.f32 %v6679, %v6699
        %v6728 = vmul.f32 %v6680, %v6687
        %v6729 = vmul.f32 %v6681, %v6691
        %v6730 = vmul.f32 %v6682, %v6695
        %v6731 = vmul.f32 %v6683, %v6699
        %v6732 = vadd.f32 %v6700, %v6701
        %v6733 = vadd.f32 %v6732, %v6702
        %v6734 = vadd.f32 %v6733, %v6703
        %6735 = vadd.xlane.f32.xlu0 %v6734
        %v6736 = vpop.xlane.xlu0 %6735
        %v6737 = vadd.f32 %v6704, %v6705
        %v6738 = vadd.f32 %v6737, %v6706
        %v6739 = vadd.f32 %v6738, %v6707
        %6740 = vadd.xlane.f32.xlu0 %v6739
        %v6741 = vpop.xlane.xlu0 %6740
        %v6742 = vadd.f32 %v6708, %v6709
        %v6743 = vadd.f32 %v6742, %v6710
        %v6744 = vadd.f32 %v6743, %v6711
        %6745 = vadd.xlane.f32.xlu0 %v6744
        %v6746 = vpop.xlane.xlu0 %6745
        %v6747 = vadd.f32 %v6712, %v6713
        %v6748 = vadd.f32 %v6747, %v6714
        %v6749 = vadd.f32 %v6748, %v6715
        %6750 = vadd.xlane.f32.xlu0 %v6749
        %v6751 = vpop.xlane.xlu0 %6750
        %v6752 = vadd.f32 %v6716, %v6717
        %v6753 = vadd.f32 %v6752, %v6718
        %v6754 = vadd.f32 %v6753, %v6719
        %6755 = vadd.xlane.f32.xlu0 %v6754
        %v6756 = vpop.xlane.xlu0 %6755
        %v6757 = vadd.f32 %v6720, %v6721
        %v6758 = vadd.f32 %v6757, %v6722
        %v6759 = vadd.f32 %v6758, %v6723
        %6760 = vadd.xlane.f32.xlu0 %v6759
        %v6761 = vpop.xlane.xlu0 %6760
        %v6762 = vadd.f32 %v6724, %v6725
        %v6763 = vadd.f32 %v6762, %v6726
        %v6764 = vadd.f32 %v6763, %v6727
        %6765 = vadd.xlane.f32.xlu0 %v6764
        %v6766 = vpop.xlane.xlu0 %6765
        %v6767 = vadd.f32 %v6728, %v6729
        %v6768 = vadd.f32 %v6767, %v6730
        %v6769 = vadd.f32 %v6768, %v6731
        %6770 = vadd.xlane.f32.xlu0 %v6769
        %v6771 = vpop.xlane.xlu0 %6770
        %v6772 = vadd.f32 %v6596, %v6736
        %v6773 = vadd.f32 %v6597, %v6741
        %v6774 = vadd.f32 %v6598, %v6746
        %v6775 = vadd.f32 %v6599, %v6751
        %v6776 = vadd.f32 %v6600, %v6756
        %v6777 = vadd.f32 %v6601, %v6761
        %v6778 = vadd.f32 %v6602, %v6766
        %v6779 = vadd.f32 %v6603, %v6771
        %v6780 = vmax.f32 %v6700, %v6701
        %v6781 = vmax.f32 %v6780, %v6702
        %v6782 = vmax.f32 %v6781, %v6703
        %6783 = vmax.xlane.f32.xlu0 %v6782
        %v6784 = vpop.xlane.xlu0 %6783
        %v6785 = vmax.f32 %v6704, %v6705
        %v6786 = vmax.f32 %v6785, %v6706
        %v6787 = vmax.f32 %v6786, %v6707
        %6788 = vmax.xlane.f32.xlu0 %v6787
        %v6789 = vpop.xlane.xlu0 %6788
        %v6790 = vmax.f32 %v6708, %v6709
        %v6791 = vmax.f32 %v6790, %v6710
        %v6792 = vmax.f32 %v6791, %v6711
        %6793 = vmax.xlane.f32.xlu0 %v6792
        %v6794 = vpop.xlane.xlu0 %6793
        %v6795 = vmax.f32 %v6712, %v6713
        %v6796 = vmax.f32 %v6795, %v6714
        %v6797 = vmax.f32 %v6796, %v6715
        %6798 = vmax.xlane.f32.xlu0 %v6797
        %v6799 = vpop.xlane.xlu0 %6798
        %v6800 = vmax.f32 %v6716, %v6717
        %v6801 = vmax.f32 %v6800, %v6718
        %v6802 = vmax.f32 %v6801, %v6719
        %6803 = vmax.xlane.f32.xlu0 %v6802
        %v6804 = vpop.xlane.xlu0 %6803
        %v6805 = vmax.f32 %v6720, %v6721
        %v6806 = vmax.f32 %v6805, %v6722
        %v6807 = vmax.f32 %v6806, %v6723
        %6808 = vmax.xlane.f32.xlu0 %v6807
        %v6809 = vpop.xlane.xlu0 %6808
        %v6810 = vmax.f32 %v6724, %v6725
        %v6811 = vmax.f32 %v6810, %v6726
        %v6812 = vmax.f32 %v6811, %v6727
        %6813 = vmax.xlane.f32.xlu0 %v6812
        %v6814 = vpop.xlane.xlu0 %6813
        %v6815 = vmax.f32 %v6728, %v6729
        %v6816 = vmax.f32 %v6815, %v6730
        %v6817 = vmax.f32 %v6816, %v6731
        %6818 = vmax.xlane.f32.xlu0 %v6817
        %v6819 = vpop.xlane.xlu0 %6818
        %v6820 = vmax.f32 %v6644, %v6784
        %v6821 = vmax.f32 %v6645, %v6789
        %v6822 = vmax.f32 %v6646, %v6794
        %v6823 = vmax.f32 %v6647, %v6799
        %v6824 = vmax.f32 %v6648, %v6804
        %v6825 = vmax.f32 %v6649, %v6809
        %v6826 = vmax.f32 %v6650, %v6814
        %v6827 = vmax.f32 %v6651, %v6819
        %v6828 = vld [vmem:[#allocation14] sm:$0xff]
        %v6829 = vld [vmem:[#allocation14 + $0x8] sm:$0xff]
        %v6830 = vld [vmem:[#allocation14 + $0x10] sm:$0xff]
        %v6831 = vld [vmem:[#allocation14 + $0x18] sm:$0xff]
        %v6832 = vld [vmem:[#allocation14 + $0x20] sm:$0xff]
        %v6833 = vld [vmem:[#allocation14 + $0x28] sm:$0xff]
        %v6834 = vld [vmem:[#allocation14 + $0x30] sm:$0xff]
        %v6835 = vld [vmem:[#allocation14 + $0x38] sm:$0xff]
        %v6836 = vmul.f32 %v6772, 0.00048828125
        %v6837 = vmul.f32 %v6773, 0.00048828125
        %v6838 = vmul.f32 %v6774, 0.00048828125
        %v6839 = vmul.f32 %v6775, 0.00048828125
        %v6840 = vmul.f32 %v6776, 0.00048828125
        %v6841 = vmul.f32 %v6777, 0.00048828125
        %v6842 = vmul.f32 %v6778, 0.00048828125
        %v6843 = vmul.f32 %v6779, 0.00048828125
        %v6844 = vld [vmem:[#allocation16] sm:$0xff]
        %v6845 = vld [vmem:[#allocation16 + $0x8] sm:$0xff]
        %v6846 = vld [vmem:[#allocation16 + $0x10] sm:$0xff]
        %v6847 = vld [vmem:[#allocation16 + $0x18] sm:$0xff]
        %v6848 = vld [vmem:[#allocation16 + $0x20] sm:$0xff]
        %v6849 = vld [vmem:[#allocation16 + $0x28] sm:$0xff]
        %v6850 = vld [vmem:[#allocation16 + $0x30] sm:$0xff]
        %v6851 = vld [vmem:[#allocation16 + $0x38] sm:$0xff]
        %v6853 = vsel %vm5328, %v6844, 0
        %v6856 = vsel %vm5328, %v6845, 0
        %v6859 = vsel %vm5328, %v6846, 0
        %v6862 = vsel %vm5328, %v6847, 0
        %v6865 = vsel %vm5328, %v6848, 0
        %v6868 = vsel %vm5328, %v6849, 0
        %v6871 = vsel %vm5328, %v6850, 0
        %v6874 = vsel %vm5328, %v6851, 0
        %6876 = vmatprep.subr.mxu0 0.0
        %6877 = vmatpush1.msra.mxu0 %v6820
        %6878 = vmatprep.subr.mxu0 0.0
        %6879 = vmatpush1.msra.mxu0 %v6821
        %6880 = vmatprep.subr.mxu0 0.0
        %6881 = vmatpush1.msra.mxu0 %v6822
        %6882 = vmatprep.subr.mxu0 0.0
        %6883 = vmatpush1.msra.mxu0 %v6823
        %6884 = vmatprep.subr.mxu0 0.0
        %6885 = vmatpush1.msra.mxu0 %v6824
        %6886 = vmatprep.subr.mxu0 0.0
        %6887 = vmatpush1.msra.mxu0 %v6825
        %6888 = vmatprep.subr.mxu0 0.0
        %6889 = vmatpush1.msra.mxu0 %v6826
        %6890 = vmatprep.subr.mxu0 0.0
        %6891 = vmatpush1.msra.mxu0 %v6827
        %6892 = vmatprep.subr.mxu0 0.0
        %6893 = vmatpush1.msra.mxu0 0.0
        %6894 = vmatprep.subr.mxu0 0.0
        %6895 = vmatpush1.msra.mxu0 0.0
        %6896 = vmatprep.subr.mxu0 0.0
        %6897 = vmatpush1.msra.mxu0 0.0
        %6898 = vmatprep.subr.mxu0 0.0
        %6899 = vmatpush1.msra.mxu0 0.0
        %6900 = vmatprep.subr.mxu0 0.0
        %6901 = vmatpush1.msra.mxu0 0.0
        %6902 = vmatprep.subr.mxu0 0.0
        %6903 = vmatpush1.msra.mxu0 0.0
        %6904 = vmatprep.subr.mxu0 0.0
        %6905 = vmatpush1.msra.mxu0 0.0
        %6906 = vmatprep.subr.mxu0 0.0
        %6907 = vmatpush1.msra.mxu0 0.0
        %6908 = vmatprep.subr.mxu0 0.0
        %6909 = vmatpush1.msra.mxu0 0.0
        %6910 = vmatprep.subr.mxu0 0.0
        %6911 = vmatpush1.msra.mxu0 0.0
        %6912 = vmatprep.subr.mxu0 0.0
        %6913 = vmatpush1.msra.mxu0 0.0
        %6914 = vmatprep.subr.mxu0 0.0
        %6915 = vmatpush1.msra.mxu0 0.0
        %6916 = vmatprep.subr.mxu0 0.0
        %6917 = vmatpush1.msra.mxu0 0.0
        %6918 = vmatprep.subr.mxu0 0.0
        %6919 = vmatpush1.msra.mxu0 0.0
        %6920 = vmatprep.subr.mxu0 0.0
        %6921 = vmatpush1.msra.mxu0 0.0
        %6922 = vmatprep.subr.mxu0 0.0
        %6923 = vmatpush1.msra.mxu0 0.0
        %6924 = vmatprep.subr.mxu0 0.0
        %6925 = vmatpush1.msra.mxu0 0.0
        %6926 = vmatprep.subr.mxu0 0.0
        %6927 = vmatpush1.msra.mxu0 0.0
        %6928 = vmatprep.subr.mxu0 0.0
        %6929 = vmatpush1.msra.mxu0 0.0
        %6930 = vmatprep.subr.mxu0 0.0
        %6931 = vmatpush1.msra.mxu0 0.0
        %6932 = vmatprep.subr.mxu0 0.0
        %6933 = vmatpush1.msra.mxu0 0.0
        %6934 = vmatprep.subr.mxu0 0.0
        %6935 = vmatpush1.msra.mxu0 0.0
        %6936 = vmatprep.subr.mxu0 0.0
        %6937 = vmatpush1.msra.mxu0 0.0
        %6938 = vmatprep.subr.mxu0 0.0
        %6939 = vmatpush1.msra.mxu0 0.0
        %6940 = vmatprep.mubr.f32.mxu0 0.0
        %6941 = vmatmul.mubr.f32.gmra.mrb[0].mxu0 %v6853
        %v6942 = vpop.f32.mrb[0].mxu0
        %v6943 = vadd.f32 0.0, %v6942
        %v6944 = vpop.f32.mrb[0].mxu0
        %6945 = vmatprep.mubr.f32.mxu0 0.0
        %6946 = vmatmul.mubr.f32.gmra.mrb[0].mxu0 %v6856
        %v6947 = vpop.f32.mrb[0].mxu0
        %v6948 = vadd.f32 0.0, %v6947
        %v6949 = vpop.f32.mrb[0].mxu0
        %6950 = vmatprep.mubr.f32.mxu0 0.0
        %6951 = vmatmul.mubr.f32.gmra.mrb[0].mxu0 %v6859
        %v6952 = vpop.f32.mrb[0].mxu0
        %v6953 = vadd.f32 0.0, %v6952
        %v6954 = vpop.f32.mrb[0].mxu0
        %6955 = vmatprep.mubr.f32.mxu0 0.0
        %6956 = vmatmul.mubr.f32.gmra.mrb[0].mxu0 %v6862
        %v6957 = vpop.f32.mrb[0].mxu0
        %v6958 = vadd.f32 0.0, %v6957
        %v6959 = vpop.f32.mrb[0].mxu0
        %6960 = vmatprep.mubr.f32.mxu0 0.0
        %6961 = vmatmul.mubr.f32.gmra.mrb[0].mxu0 %v6865
        %v6962 = vpop.f32.mrb[0].mxu0
        %v6963 = vadd.f32 0.0, %v6962
        %v6964 = vpop.f32.mrb[0].mxu0
        %6965 = vmatprep.mubr.f32.mxu0 0.0
        %6966 = vmatmul.mubr.f32.gmra.mrb[0].mxu0 %v6868
        %v6967 = vpop.f32.mrb[0].mxu0
        %v6968 = vadd.f32 0.0, %v6967
        %v6969 = vpop.f32.mrb[0].mxu0
        %6970 = vmatprep.mubr.f32.mxu0 0.0
        %6971 = vmatmul.mubr.f32.gmra.mrb[0].mxu0 %v6871
        %v6972 = vpop.f32.mrb[0].mxu0
        %v6973 = vadd.f32 0.0, %v6972
        %v6974 = vpop.f32.mrb[0].mxu0
        %6975 = vmatprep.mubr.f32.mxu0 0.0
        %6976 = vmatmul.mubr.f32.gmra.mrb[0].mxu0 %v6874
        %v6977 = vpop.f32.mrb[0].mxu0
        %v6978 = vadd.f32 0.0, %v6977
        %v6979 = vpop.f32.mrb[0].mxu0
        %6980 = vdwg.mxu0
        %v6982 = vsel %vm5328, %v6828, 0
        %v6985 = vsel %vm5328, %v6829, 0
        %v6988 = vsel %vm5328, %v6830, 0
        %v6991 = vsel %vm5328, %v6831, 0
        %v6994 = vsel %vm5328, %v6832, 0
        %v6997 = vsel %vm5328, %v6833, 0
        %v7000 = vsel %vm5328, %v6834, 0
        %v7003 = vsel %vm5328, %v6835, 0
        %7005 = vmatprep.subr.mxu0 0.0
        %7006 = vmatpush1.msra.mxu0 %v6836
        %7007 = vmatprep.subr.mxu0 0.0
        %7008 = vmatpush1.msra.mxu0 %v6837
        %7009 = vmatprep.subr.mxu0 0.0
        %7010 = vmatpush1.msra.mxu0 %v6838
        %7011 = vmatprep.subr.mxu0 0.0
        %7012 = vmatpush1.msra.mxu0 %v6839
        %7013 = vmatprep.subr.mxu0 0.0
        %7014 = vmatpush1.msra.mxu0 %v6840
        %7015 = vmatprep.subr.mxu0 0.0
        %7016 = vmatpush1.msra.mxu0 %v6841
        %7017 = vmatprep.subr.mxu0 0.0
        %7018 = vmatpush1.msra.mxu0 %v6842
        %7019 = vmatprep.subr.mxu0 0.0
        %7020 = vmatpush1.msra.mxu0 %v6843
        %7021 = vmatprep.subr.mxu0 0.0
        %7022 = vmatpush1.msra.mxu0 0.0
        %7023 = vmatprep.subr.mxu0 0.0
        %7024 = vmatpush1.msra.mxu0 0.0
        %7025 = vmatprep.subr.mxu0 0.0
        %7026 = vmatpush1.msra.mxu0 0.0
        %7027 = vmatprep.subr.mxu0 0.0
        %7028 = vmatpush1.msra.mxu0 0.0
        %7029 = vmatprep.subr.mxu0 0.0
        %7030 = vmatpush1.msra.mxu0 0.0
        %7031 = vmatprep.subr.mxu0 0.0
        %7032 = vmatpush1.msra.mxu0 0.0
        %7033 = vmatprep.subr.mxu0 0.0
        %7034 = vmatpush1.msra.mxu0 0.0
        %7035 = vmatprep.subr.mxu0 0.0
        %7036 = vmatpush1.msra.mxu0 0.0
        %7037 = vmatprep.subr.mxu0 0.0
        %7038 = vmatpush1.msra.mxu0 0.0
        %7039 = vmatprep.subr.mxu0 0.0
        %7040 = vmatpush1.msra.mxu0 0.0
        %7041 = vmatprep.subr.mxu0 0.0
        %7042 = vmatpush1.msra.mxu0 0.0
        %7043 = vmatprep.subr.mxu0 0.0
        %7044 = vmatpush1.msra.mxu0 0.0
        %7045 = vmatprep.subr.mxu0 0.0
        %7046 = vmatpush1.msra.mxu0 0.0
        %7047 = vmatprep.subr.mxu0 0.0
        %7048 = vmatpush1.msra.mxu0 0.0
        %7049 = vmatprep.subr.mxu0 0.0
        %7050 = vmatpush1.msra.mxu0 0.0
        %7051 = vmatprep.subr.mxu0 0.0
        %7052 = vmatpush1.msra.mxu0 0.0
        %7053 = vmatprep.subr.mxu0 0.0
        %7054 = vmatpush1.msra.mxu0 0.0
        %7055 = vmatprep.subr.mxu0 0.0
        %7056 = vmatpush1.msra.mxu0 0.0
        %7057 = vmatprep.subr.mxu0 0.0
        %7058 = vmatpush1.msra.mxu0 0.0
        %7059 = vmatprep.subr.mxu0 0.0
        %7060 = vmatpush1.msra.mxu0 0.0
        %7061 = vmatprep.subr.mxu0 0.0
        %7062 = vmatpush1.msra.mxu0 0.0
        %7063 = vmatprep.subr.mxu0 0.0
        %7064 = vmatpush1.msra.mxu0 0.0
        %7065 = vmatprep.subr.mxu0 0.0
        %7066 = vmatpush1.msra.mxu0 0.0
        %7067 = vmatprep.subr.mxu0 0.0
        %7068 = vmatpush1.msra.mxu0 0.0
        %7069 = vmatprep.mubr.f32.mxu0 0.0
        %7070 = vmatmul.mubr.f32.gmra.mrb[0].mxu0 %v6982
        %v7071 = vpop.f32.mrb[0].mxu0
        %v7072 = vadd.f32 %v6943, %v7071
        %v7073 = vpop.f32.mrb[0].mxu0
        %7074 = vmatprep.mubr.f32.mxu0 0.0
        %7075 = vmatmul.mubr.f32.gmra.mrb[0].mxu0 %v6985
        %v7076 = vpop.f32.mrb[0].mxu0
        %v7077 = vadd.f32 %v6948, %v7076
        %v7078 = vpop.f32.mrb[0].mxu0
        %7079 = vmatprep.mubr.f32.mxu0 0.0
        %7080 = vmatmul.mubr.f32.gmra.mrb[0].mxu0 %v6988
        %v7081 = vpop.f32.mrb[0].mxu0
        %v7082 = vadd.f32 %v6953, %v7081
        %v7083 = vpop.f32.mrb[0].mxu0
        %7084 = vmatprep.mubr.f32.mxu0 0.0
        %7085 = vmatmul.mubr.f32.gmra.mrb[0].mxu0 %v6991
        %v7086 = vpop.f32.mrb[0].mxu0
        %v7087 = vadd.f32 %v6958, %v7086
        %v7088 = vpop.f32.mrb[0].mxu0
        %7089 = vmatprep.mubr.f32.mxu0 0.0
        %7090 = vmatmul.mubr.f32.gmra.mrb[0].mxu0 %v6994
        %v7091 = vpop.f32.mrb[0].mxu0
        %v7092 = vadd.f32 %v6963, %v7091
        %v7093 = vpop.f32.mrb[0].mxu0
        %7094 = vmatprep.mubr.f32.mxu0 0.0
        %7095 = vmatmul.mubr.f32.gmra.mrb[0].mxu0 %v6997
        %v7096 = vpop.f32.mrb[0].mxu0
        %v7097 = vadd.f32 %v6968, %v7096
        %v7098 = vpop.f32.mrb[0].mxu0
        %7099 = vmatprep.mubr.f32.mxu0 0.0
        %7100 = vmatmul.mubr.f32.gmra.mrb[0].mxu0 %v7000
        %v7101 = vpop.f32.mrb[0].mxu0
        %v7102 = vadd.f32 %v6973, %v7101
        %v7103 = vpop.f32.mrb[0].mxu0
        %7104 = vmatprep.mubr.f32.mxu0 0.0
        %7105 = vmatmul.mubr.f32.gmra.mrb[0].mxu0 %v7003
        %v7106 = vpop.f32.mrb[0].mxu0
        %v7107 = vadd.f32 %v6978, %v7106
        %v7108 = vpop.f32.mrb[0].mxu0
        %7109 = vdwg.mxu0
        %v7110 = vadd.f32 %v7072, %v5587
        %v7111 = vadd.f32 %v7077, %v5587
        %v7112 = vadd.f32 %v7082, %v5587
        %v7113 = vadd.f32 %v7087, %v5587
        %v7114 = vadd.f32 %v7092, %v5587
        %v7115 = vadd.f32 %v7097, %v5587
        %v7116 = vadd.f32 %v7102, %v5587
        %v7117 = vadd.f32 %v7107, %v5587
        %v7118 = vxor.u32 %v7110, 2147483648
        %v7119 = vxor.u32 %v7111, 2147483648
        %v7120 = vxor.u32 %v7112, 2147483648
        %v7121 = vxor.u32 %v7113, 2147483648
        %v7122 = vxor.u32 %v7114, 2147483648
        %v7123 = vxor.u32 %v7115, 2147483648
        %v7124 = vxor.u32 %v7116, 2147483648
        %v7125 = vxor.u32 %v7117, 2147483648
        %v7126 = vmul.f32 %v7118, 1.442695
        %v7127 = vpow.pop %v7126
        %v7128 = vmul.f32 %v7119, 1.442695
        %v7129 = vpow.pop %v7128
        %v7130 = vmul.f32 %v7120, 1.442695
        %v7131 = vpow.pop %v7130
        %v7132 = vmul.f32 %v7121, 1.442695
        %v7133 = vpow.pop %v7132
        %v7134 = vmul.f32 %v7122, 1.442695
        %v7135 = vpow.pop %v7134
        %v7136 = vmul.f32 %v7123, 1.442695
        %v7137 = vpow.pop %v7136
        %v7138 = vmul.f32 %v7124, 1.442695
        %v7139 = vpow.pop %v7138
        %v7140 = vmul.f32 %v7125, 1.442695
        %v7141 = vpow.pop %v7140
        %v7142 = vadd.f32 %v7127, 1.0
        %v7143 = vadd.f32 %v7129, 1.0
        %v7144 = vadd.f32 %v7131, 1.0
        %v7145 = vadd.f32 %v7133, 1.0
        %v7146 = vadd.f32 %v7135, 1.0
        %v7147 = vadd.f32 %v7137, 1.0
        %v7148 = vadd.f32 %v7139, 1.0
        %v7149 = vadd.f32 %v7141, 1.0
        %v7150 = vrcp.pop %v7142
        %v7151 = vmul.f32 1.0, %v7150
        %v7152 = vrcp.pop %v7143
        %v7153 = vmul.f32 1.0, %v7152
        %v7154 = vrcp.pop %v7144
        %v7155 = vmul.f32 1.0, %v7154
        %v7156 = vrcp.pop %v7145
        %v7157 = vmul.f32 1.0, %v7156
        %v7158 = vrcp.pop %v7146
        %v7159 = vmul.f32 1.0, %v7158
        %v7160 = vrcp.pop %v7147
        %v7161 = vmul.f32 1.0, %v7160
        %v7162 = vrcp.pop %v7148
        %v7163 = vmul.f32 1.0, %v7162
        %v7164 = vrcp.pop %v7149
        %v7165 = vmul.f32 1.0, %v7164
        %v7166 = vld [vmem:[%s1222] sm:$0xff]
        %v7167 = vld [vmem:[%s1222 + $0x8] sm:$0xff]
        %v7168 = vld [vmem:[%s1222 + $0x10] sm:$0xff]
        %v7169 = vld [vmem:[%s1222 + $0x18] sm:$0xff]
        %v7170 = vld [vmem:[%s1222 + $0x20] sm:$0xff]
        %v7171 = vld [vmem:[%s1222 + $0x28] sm:$0xff]
        %v7172 = vld [vmem:[%s1222 + $0x30] sm:$0xff]
        %v7173 = vld [vmem:[%s1222 + $0x38] sm:$0xff]
        %v7174 = vld [vmem:[%s1222 + $0x40] sm:$0xff]
        %v7175 = vld [vmem:[%s1222 + $0x48] sm:$0xff]
        %v7176 = vld [vmem:[%s1222 + $0x50] sm:$0xff]
        %v7177 = vld [vmem:[%s1222 + $0x58] sm:$0xff]
        %v7178 = vld [vmem:[%s1222 + $0x80] sm:$0xff]
        %v7179 = vld [vmem:[%s1222 + $0x88] sm:$0xff]
        %v7180 = vld [vmem:[%s1222 + $0x90] sm:$0xff]
        %v7181 = vld [vmem:[%s1222 + $0x98] sm:$0xff]
        %v7182 = vld [vmem:[%s1222 + $0xa0] sm:$0xff]
        %v7183 = vld [vmem:[%s1222 + $0xa8] sm:$0xff]
        %v7184 = vld [vmem:[%s1222 + $0xb0] sm:$0xff]
        %v7185 = vld [vmem:[%s1222 + $0xb8] sm:$0xff]
        %v7186 = vld [vmem:[%s1222 + $0xc0] sm:$0xff]
        %v7187 = vld [vmem:[%s1222 + $0xc8] sm:$0xff]
        %v7188 = vld [vmem:[%s1222 + $0xd0] sm:$0xff]
        %v7189 = vld [vmem:[%s1222 + $0xd8] sm:$0xff]
        %v7190 = vld [vmem:[%s1222 + $0x100] sm:$0xff]
        %v7191 = vld [vmem:[%s1222 + $0x108] sm:$0xff]
        %v7192 = vld [vmem:[%s1222 + $0x110] sm:$0xff]
        %v7193 = vld [vmem:[%s1222 + $0x118] sm:$0xff]
        %v7194 = vld [vmem:[%s1222 + $0x120] sm:$0xff]
        %v7195 = vld [vmem:[%s1222 + $0x128] sm:$0xff]
        %v7196 = vld [vmem:[%s1222 + $0x130] sm:$0xff]
        %v7197 = vld [vmem:[%s1222 + $0x138] sm:$0xff]
        %v7198 = vld [vmem:[%s1222 + $0x140] sm:$0xff]
        %v7199 = vld [vmem:[%s1222 + $0x148] sm:$0xff]
        %v7200 = vld [vmem:[%s1222 + $0x150] sm:$0xff]
        %v7201 = vld [vmem:[%s1222 + $0x158] sm:$0xff]
        %v7202 = vld [vmem:[%s1222 + $0x180] sm:$0xff]
        %v7203 = vld [vmem:[%s1222 + $0x188] sm:$0xff]
        %v7204 = vld [vmem:[%s1222 + $0x190] sm:$0xff]
        %v7205 = vld [vmem:[%s1222 + $0x198] sm:$0xff]
        %v7206 = vld [vmem:[%s1222 + $0x1a0] sm:$0xff]
        %v7207 = vld [vmem:[%s1222 + $0x1a8] sm:$0xff]
        %v7208 = vld [vmem:[%s1222 + $0x1b0] sm:$0xff]
        %v7209 = vld [vmem:[%s1222 + $0x1b8] sm:$0xff]
        %v7210 = vld [vmem:[%s1222 + $0x1c0] sm:$0xff]
        %v7211 = vld [vmem:[%s1222 + $0x1c8] sm:$0xff]
        %v7212 = vld [vmem:[%s1222 + $0x1d0] sm:$0xff]
        %v7213 = vld [vmem:[%s1222 + $0x1d8] sm:$0xff]
        %v7214 = vld [vmem:[%s1222 + $0x200] sm:$0xff]
        %v7215 = vld [vmem:[%s1222 + $0x208] sm:$0xff]
        %v7216 = vld [vmem:[%s1222 + $0x210] sm:$0xff]
        %v7217 = vld [vmem:[%s1222 + $0x218] sm:$0xff]
        %v7218 = vld [vmem:[%s1222 + $0x220] sm:$0xff]
        %v7219 = vld [vmem:[%s1222 + $0x228] sm:$0xff]
        %v7220 = vld [vmem:[%s1222 + $0x230] sm:$0xff]
        %v7221 = vld [vmem:[%s1222 + $0x238] sm:$0xff]
        %v7222 = vld [vmem:[%s1222 + $0x240] sm:$0xff]
        %v7223 = vld [vmem:[%s1222 + $0x248] sm:$0xff]
        %v7224 = vld [vmem:[%s1222 + $0x250] sm:$0xff]
        %v7225 = vld [vmem:[%s1222 + $0x258] sm:$0xff]
        %v7226 = vld [vmem:[%s1222 + $0x280] sm:$0xff]
        %v7227 = vld [vmem:[%s1222 + $0x288] sm:$0xff]
        %v7228 = vld [vmem:[%s1222 + $0x290] sm:$0xff]
        %v7229 = vld [vmem:[%s1222 + $0x298] sm:$0xff]
        %v7230 = vld [vmem:[%s1222 + $0x2a0] sm:$0xff]
        %v7231 = vld [vmem:[%s1222 + $0x2a8] sm:$0xff]
        %v7232 = vld [vmem:[%s1222 + $0x2b0] sm:$0xff]
        %v7233 = vld [vmem:[%s1222 + $0x2b8] sm:$0xff]
        %v7234 = vld [vmem:[%s1222 + $0x2c0] sm:$0xff]
        %v7235 = vld [vmem:[%s1222 + $0x2c8] sm:$0xff]
        %v7236 = vld [vmem:[%s1222 + $0x2d0] sm:$0xff]
        %v7237 = vld [vmem:[%s1222 + $0x2d8] sm:$0xff]
        %v7238 = vld [vmem:[%s1222 + $0x300] sm:$0xff]
        %v7239 = vld [vmem:[%s1222 + $0x308] sm:$0xff]
        %v7240 = vld [vmem:[%s1222 + $0x310] sm:$0xff]
        %v7241 = vld [vmem:[%s1222 + $0x318] sm:$0xff]
        %v7242 = vld [vmem:[%s1222 + $0x320] sm:$0xff]
        %v7243 = vld [vmem:[%s1222 + $0x328] sm:$0xff]
        %v7244 = vld [vmem:[%s1222 + $0x330] sm:$0xff]
        %v7245 = vld [vmem:[%s1222 + $0x338] sm:$0xff]
        %v7246 = vld [vmem:[%s1222 + $0x340] sm:$0xff]
        %v7247 = vld [vmem:[%s1222 + $0x348] sm:$0xff]
        %v7248 = vld [vmem:[%s1222 + $0x350] sm:$0xff]
        %v7249 = vld [vmem:[%s1222 + $0x358] sm:$0xff]
        %v7250 = vld [vmem:[%s1222 + $0x380] sm:$0xff]
        %v7251 = vld [vmem:[%s1222 + $0x388] sm:$0xff]
        %v7252 = vld [vmem:[%s1222 + $0x390] sm:$0xff]
        %v7253 = vld [vmem:[%s1222 + $0x398] sm:$0xff]
        %v7254 = vld [vmem:[%s1222 + $0x3a0] sm:$0xff]
        %v7255 = vld [vmem:[%s1222 + $0x3a8] sm:$0xff]
        %v7256 = vld [vmem:[%s1222 + $0x3b0] sm:$0xff]
        %v7257 = vld [vmem:[%s1222 + $0x3b8] sm:$0xff]
        %v7258 = vld [vmem:[%s1222 + $0x3c0] sm:$0xff]
        %v7259 = vld [vmem:[%s1222 + $0x3c8] sm:$0xff]
        %v7260 = vld [vmem:[%s1222 + $0x3d0] sm:$0xff]
        %v7261 = vld [vmem:[%s1222 + $0x3d8] sm:$0xff]
        %v7262 = vmul.f32 %v7166, %v6167
        %v7263 = vmul.f32 %v7167, %v6171
        %v7264 = vmul.f32 %v7168, %v6175
        %v7265 = vmul.f32 %v7169, %v6179
        %v7266 = vmul.f32 %v7170, %v6335
        %v7267 = vmul.f32 %v7171, %v6339
        %v7268 = vmul.f32 %v7172, %v6343
        %v7269 = vmul.f32 %v7173, %v6347
        %v7270 = vmul.f32 %v7174, %v6511
        %v7271 = vmul.f32 %v7175, %v6515
        %v7272 = vmul.f32 %v7176, %v6519
        %v7273 = vmul.f32 %v7177, %v6523
        %v7274 = vmul.f32 %v7178, %v6167
        %v7275 = vmul.f32 %v7179, %v6171
        %v7276 = vmul.f32 %v7180, %v6175
        %v7277 = vmul.f32 %v7181, %v6179
        %v7278 = vmul.f32 %v7182, %v6335
        %v7279 = vmul.f32 %v7183, %v6339
        %v7280 = vmul.f32 %v7184, %v6343
        %v7281 = vmul.f32 %v7185, %v6347
        %v7282 = vmul.f32 %v7186, %v6511
        %v7283 = vmul.f32 %v7187, %v6515
        %v7284 = vmul.f32 %v7188, %v6519
        %v7285 = vmul.f32 %v7189, %v6523
        %v7286 = vmul.f32 %v7190, %v6167
        %v7287 = vmul.f32 %v7191, %v6171
        %v7288 = vmul.f32 %v7192, %v6175
        %v7289 = vmul.f32 %v7193, %v6179
        %v7290 = vmul.f32 %v7194, %v6335
        %v7291 = vmul.f32 %v7195, %v6339
        %v7292 = vmul.f32 %v7196, %v6343
        %v7293 = vmul.f32 %v7197, %v6347
        %v7294 = vmul.f32 %v7198, %v6511
        %v7295 = vmul.f32 %v7199, %v6515
        %v7296 = vmul.f32 %v7200, %v6519
        %v7297 = vmul.f32 %v7201, %v6523
        %v7298 = vmul.f32 %v7202, %v6167
        %v7299 = vmul.f32 %v7203, %v6171
        %v7300 = vmul.f32 %v7204, %v6175
        %v7301 = vmul.f32 %v7205, %v6179
        %v7302 = vmul.f32 %v7206, %v6335
        %v7303 = vmul.f32 %v7207, %v6339
        %v7304 = vmul.f32 %v7208, %v6343
        %v7305 = vmul.f32 %v7209, %v6347
        %v7306 = vmul.f32 %v7210, %v6511
        %v7307 = vmul.f32 %v7211, %v6515
        %v7308 = vmul.f32 %v7212, %v6519
        %v7309 = vmul.f32 %v7213, %v6523
        %v7310 = vmul.f32 %v7214, %v6167
        %v7311 = vmul.f32 %v7215, %v6171
        %v7312 = vmul.f32 %v7216, %v6175
        %v7313 = vmul.f32 %v7217, %v6179
        %v7314 = vmul.f32 %v7218, %v6335
        %v7315 = vmul.f32 %v7219, %v6339
        %v7316 = vmul.f32 %v7220, %v6343
        %v7317 = vmul.f32 %v7221, %v6347
        %v7318 = vmul.f32 %v7222, %v6511
        %v7319 = vmul.f32 %v7223, %v6515
        %v7320 = vmul.f32 %v7224, %v6519
        %v7321 = vmul.f32 %v7225, %v6523
        %v7322 = vmul.f32 %v7226, %v6167
        %v7323 = vmul.f32 %v7227, %v6171
        %v7324 = vmul.f32 %v7228, %v6175
        %v7325 = vmul.f32 %v7229, %v6179
        %v7326 = vmul.f32 %v7230, %v6335
        %v7327 = vmul.f32 %v7231, %v6339
        %v7328 = vmul.f32 %v7232, %v6343
        %v7329 = vmul.f32 %v7233, %v6347
        %v7330 = vmul.f32 %v7234, %v6511
        %v7331 = vmul.f32 %v7235, %v6515
        %v7332 = vmul.f32 %v7236, %v6519
        %v7333 = vmul.f32 %v7237, %v6523
        %v7334 = vmul.f32 %v7238, %v6167
        %v7335 = vmul.f32 %v7239, %v6171
        %v7336 = vmul.f32 %v7240, %v6175
        %v7337 = vmul.f32 %v7241, %v6179
        %v7338 = vmul.f32 %v7242, %v6335
        %v7339 = vmul.f32 %v7243, %v6339
        %v7340 = vmul.f32 %v7244, %v6343
        %v7341 = vmul.f32 %v7245, %v6347
        %v7342 = vmul.f32 %v7246, %v6511
        %v7343 = vmul.f32 %v7247, %v6515
        %v7344 = vmul.f32 %v7248, %v6519
        %v7345 = vmul.f32 %v7249, %v6523
        %v7346 = vmul.f32 %v7250, %v6167
        %v7347 = vmul.f32 %v7251, %v6171
        %v7348 = vmul.f32 %v7252, %v6175
        %v7349 = vmul.f32 %v7253, %v6179
        %v7350 = vmul.f32 %v7254, %v6335
        %v7351 = vmul.f32 %v7255, %v6339
        %v7352 = vmul.f32 %v7256, %v6343
        %v7353 = vmul.f32 %v7257, %v6347
        %v7354 = vmul.f32 %v7258, %v6511
        %v7355 = vmul.f32 %v7259, %v6515
        %v7356 = vmul.f32 %v7260, %v6519
        %v7357 = vmul.f32 %v7261, %v6523
        %7359 = vset.pattern.permute.xlu0 0
        %7360 = vperm.xlu0 %7359, %v7151
        %v7361 = vpop.permute.xlu0 %7360
        %7364 = vset.pattern.permute.xlu0 0
        %7365 = vperm.xlu0 %7364, %v7153
        %v7366 = vpop.permute.xlu0 %7365
        %7369 = vset.pattern.permute.xlu0 0
        %7370 = vperm.xlu0 %7369, %v7155
        %v7371 = vpop.permute.xlu0 %7370
        %7374 = vset.pattern.permute.xlu0 0
        %7375 = vperm.xlu0 %7374, %v7157
        %v7376 = vpop.permute.xlu0 %7375
        %7379 = vset.pattern.permute.xlu0 0
        %7380 = vperm.xlu0 %7379, %v7159
        %v7381 = vpop.permute.xlu0 %7380
        %7384 = vset.pattern.permute.xlu0 0
        %7385 = vperm.xlu0 %7384, %v7161
        %v7386 = vpop.permute.xlu0 %7385
        %7389 = vset.pattern.permute.xlu0 0
        %7390 = vperm.xlu0 %7389, %v7163
        %v7391 = vpop.permute.xlu0 %7390
        %7394 = vset.pattern.permute.xlu0 0
        %7395 = vperm.xlu0 %7394, %v7165
        %v7396 = vpop.permute.xlu0 %7395
        %v7398 = vmul.f32 %v7262, %v7361
        %v7399 = vmul.f32 %v7263, %v7361
        %v7400 = vmul.f32 %v7264, %v7361
        %v7401 = vmul.f32 %v7265, %v7361
        %v7402 = vmul.f32 %v7266, %v7361
        %v7403 = vmul.f32 %v7267, %v7361
        %v7404 = vmul.f32 %v7268, %v7361
        %v7405 = vmul.f32 %v7269, %v7361
        %v7406 = vmul.f32 %v7270, %v7361
        %v7407 = vmul.f32 %v7271, %v7361
        %v7408 = vmul.f32 %v7272, %v7361
        %v7409 = vmul.f32 %v7273, %v7361
        %v7410 = vmul.f32 %v6700, %v7361
        %v7411 = vmul.f32 %v6701, %v7361
        %v7412 = vmul.f32 %v6702, %v7361
        %v7413 = vmul.f32 %v6703, %v7361
        %v7414 = vmul.f32 %v7274, %v7366
        %v7415 = vmul.f32 %v7275, %v7366
        %v7416 = vmul.f32 %v7276, %v7366
        %v7417 = vmul.f32 %v7277, %v7366
        %v7418 = vmul.f32 %v7278, %v7366
        %v7419 = vmul.f32 %v7279, %v7366
        %v7420 = vmul.f32 %v7280, %v7366
        %v7421 = vmul.f32 %v7281, %v7366
        %v7422 = vmul.f32 %v7282, %v7366
        %v7423 = vmul.f32 %v7283, %v7366
        %v7424 = vmul.f32 %v7284, %v7366
        %v7425 = vmul.f32 %v7285, %v7366
        %v7426 = vmul.f32 %v6704, %v7366
        %v7427 = vmul.f32 %v6705, %v7366
        %v7428 = vmul.f32 %v6706, %v7366
        %v7429 = vmul.f32 %v6707, %v7366
        %v7430 = vmul.f32 %v7286, %v7371
        %v7431 = vmul.f32 %v7287, %v7371
        %v7432 = vmul.f32 %v7288, %v7371
        %v7433 = vmul.f32 %v7289, %v7371
        %v7434 = vmul.f32 %v7290, %v7371
        %v7435 = vmul.f32 %v7291, %v7371
        %v7436 = vmul.f32 %v7292, %v7371
        %v7437 = vmul.f32 %v7293, %v7371
        %v7438 = vmul.f32 %v7294, %v7371
        %v7439 = vmul.f32 %v7295, %v7371
        %v7440 = vmul.f32 %v7296, %v7371
        %v7441 = vmul.f32 %v7297, %v7371
        %v7442 = vmul.f32 %v6708, %v7371
        %v7443 = vmul.f32 %v6709, %v7371
        %v7444 = vmul.f32 %v6710, %v7371
        %v7445 = vmul.f32 %v6711, %v7371
        %v7446 = vmul.f32 %v7298, %v7376
        %v7447 = vmul.f32 %v7299, %v7376
        %v7448 = vmul.f32 %v7300, %v7376
        %v7449 = vmul.f32 %v7301, %v7376
        %v7450 = vmul.f32 %v7302, %v7376
        %v7451 = vmul.f32 %v7303, %v7376
        %v7452 = vmul.f32 %v7304, %v7376
        %v7453 = vmul.f32 %v7305, %v7376
        %v7454 = vmul.f32 %v7306, %v7376
        %v7455 = vmul.f32 %v7307, %v7376
        %v7456 = vmul.f32 %v7308, %v7376
        %v7457 = vmul.f32 %v7309, %v7376
        %v7458 = vmul.f32 %v6712, %v7376
        %v7459 = vmul.f32 %v6713, %v7376
        %v7460 = vmul.f32 %v6714, %v7376
        %v7461 = vmul.f32 %v6715, %v7376
        %v7462 = vmul.f32 %v7310, %v7381
        %v7463 = vmul.f32 %v7311, %v7381
        %v7464 = vmul.f32 %v7312, %v7381
        %v7465 = vmul.f32 %v7313, %v7381
        %v7466 = vmul.f32 %v7314, %v7381
        %v7467 = vmul.f32 %v7315, %v7381
        %v7468 = vmul.f32 %v7316, %v7381
        %v7469 = vmul.f32 %v7317, %v7381
        %v7470 = vmul.f32 %v7318, %v7381
        %v7471 = vmul.f32 %v7319, %v7381
        %v7472 = vmul.f32 %v7320, %v7381
        %v7473 = vmul.f32 %v7321, %v7381
        %v7474 = vmul.f32 %v6716, %v7381
        %v7475 = vmul.f32 %v6717, %v7381
        %v7476 = vmul.f32 %v6718, %v7381
        %v7477 = vmul.f32 %v6719, %v7381
        %v7478 = vmul.f32 %v7322, %v7386
        %v7479 = vmul.f32 %v7323, %v7386
        %v7480 = vmul.f32 %v7324, %v7386
        %v7481 = vmul.f32 %v7325, %v7386
        %v7482 = vmul.f32 %v7326, %v7386
        %v7483 = vmul.f32 %v7327, %v7386
        %v7484 = vmul.f32 %v7328, %v7386
        %v7485 = vmul.f32 %v7329, %v7386
        %v7486 = vmul.f32 %v7330, %v7386
        %v7487 = vmul.f32 %v7331, %v7386
        %v7488 = vmul.f32 %v7332, %v7386
        %v7489 = vmul.f32 %v7333, %v7386
        %v7490 = vmul.f32 %v6720, %v7386
        %v7491 = vmul.f32 %v6721, %v7386
        %v7492 = vmul.f32 %v6722, %v7386
        %v7493 = vmul.f32 %v6723, %v7386
        %v7494 = vmul.f32 %v7334, %v7391
        %v7495 = vmul.f32 %v7335, %v7391
        %v7496 = vmul.f32 %v7336, %v7391
        %v7497 = vmul.f32 %v7337, %v7391
        %v7498 = vmul.f32 %v7338, %v7391
        %v7499 = vmul.f32 %v7339, %v7391
        %v7500 = vmul.f32 %v7340, %v7391
        %v7501 = vmul.f32 %v7341, %v7391
        %v7502 = vmul.f32 %v7342, %v7391
        %v7503 = vmul.f32 %v7343, %v7391
        %v7504 = vmul.f32 %v7344, %v7391
        %v7505 = vmul.f32 %v7345, %v7391
        %v7506 = vmul.f32 %v6724, %v7391
        %v7507 = vmul.f32 %v6725, %v7391
        %v7508 = vmul.f32 %v6726, %v7391
        %v7509 = vmul.f32 %v6727, %v7391
        %v7510 = vmul.f32 %v7346, %v7396
        %v7511 = vmul.f32 %v7347, %v7396
        %v7512 = vmul.f32 %v7348, %v7396
        %v7513 = vmul.f32 %v7349, %v7396
        %v7514 = vmul.f32 %v7350, %v7396
        %v7515 = vmul.f32 %v7351, %v7396
        %v7516 = vmul.f32 %v7352, %v7396
        %v7517 = vmul.f32 %v7353, %v7396
        %v7518 = vmul.f32 %v7354, %v7396
        %v7519 = vmul.f32 %v7355, %v7396
        %v7520 = vmul.f32 %v7356, %v7396
        %v7521 = vmul.f32 %v7357, %v7396
        %v7522 = vmul.f32 %v6728, %v7396
        %v7523 = vmul.f32 %v6729, %v7396
        %v7524 = vmul.f32 %v6730, %v7396
        %v7525 = vmul.f32 %v6731, %v7396
        %s7526 = scalar_lea.vmem %s408, 1024 [#allocation17]
        %7527 = vst [vmem:[%s7526] sm:$0xff] %v7398
        %7528 = vst [vmem:[%s7526 + $0x8] sm:$0xff] %v7399
        %7529 = vst [vmem:[%s7526 + $0x10] sm:$0xff] %v7400
        %7530 = vst [vmem:[%s7526 + $0x18] sm:$0xff] %v7401
        %7531 = vst [vmem:[%s7526 + $0x20] sm:$0xff] %v7402
        %7532 = vst [vmem:[%s7526 + $0x28] sm:$0xff] %v7403
        %7533 = vst [vmem:[%s7526 + $0x30] sm:$0xff] %v7404
        %7534 = vst [vmem:[%s7526 + $0x38] sm:$0xff] %v7405
        %7535 = vst [vmem:[%s7526 + $0x40] sm:$0xff] %v7406
        %7536 = vst [vmem:[%s7526 + $0x48] sm:$0xff] %v7407
        %7537 = vst [vmem:[%s7526 + $0x50] sm:$0xff] %v7408
        %7538 = vst [vmem:[%s7526 + $0x58] sm:$0xff] %v7409
        %7539 = vst [vmem:[%s7526 + $0x60] sm:$0xff] %v7410
        %7540 = vst [vmem:[%s7526 + $0x68] sm:$0xff] %v7411
        %7541 = vst [vmem:[%s7526 + $0x70] sm:$0xff] %v7412
        %7542 = vst [vmem:[%s7526 + $0x78] sm:$0xff] %v7413
        %7543 = vst [vmem:[%s7526 + $0x80] sm:$0xff] %v7414
        %7544 = vst [vmem:[%s7526 + $0x88] sm:$0xff] %v7415
        %7545 = vst [vmem:[%s7526 + $0x90] sm:$0xff] %v7416
        %7546 = vst [vmem:[%s7526 + $0x98] sm:$0xff] %v7417
        %7547 = vst [vmem:[%s7526 + $0xa0] sm:$0xff] %v7418
        %7548 = vst [vmem:[%s7526 + $0xa8] sm:$0xff] %v7419
        %7549 = vst [vmem:[%s7526 + $0xb0] sm:$0xff] %v7420
        %7550 = vst [vmem:[%s7526 + $0xb8] sm:$0xff] %v7421
        %7551 = vst [vmem:[%s7526 + $0xc0] sm:$0xff] %v7422
        %7552 = vst [vmem:[%s7526 + $0xc8] sm:$0xff] %v7423
        %7553 = vst [vmem:[%s7526 + $0xd0] sm:$0xff] %v7424
        %7554 = vst [vmem:[%s7526 + $0xd8] sm:$0xff] %v7425
        %7555 = vst [vmem:[%s7526 + $0xe0] sm:$0xff] %v7426
        %7556 = vst [vmem:[%s7526 + $0xe8] sm:$0xff] %v7427
        %7557 = vst [vmem:[%s7526 + $0xf0] sm:$0xff] %v7428
        %7558 = vst [vmem:[%s7526 + $0xf8] sm:$0xff] %v7429
        %7559 = vst [vmem:[%s7526 + $0x100] sm:$0xff] %v7430
        %7560 = vst [vmem:[%s7526 + $0x108] sm:$0xff] %v7431
        %7561 = vst [vmem:[%s7526 + $0x110] sm:$0xff] %v7432
        %7562 = vst [vmem:[%s7526 + $0x118] sm:$0xff] %v7433
        %7563 = vst [vmem:[%s7526 + $0x120] sm:$0xff] %v7434
        %7564 = vst [vmem:[%s7526 + $0x128] sm:$0xff] %v7435
        %7565 = vst [vmem:[%s7526 + $0x130] sm:$0xff] %v7436
        %7566 = vst [vmem:[%s7526 + $0x138] sm:$0xff] %v7437
        %7567 = vst [vmem:[%s7526 + $0x140] sm:$0xff] %v7438
        %7568 = vst [vmem:[%s7526 + $0x148] sm:$0xff] %v7439
        %7569 = vst [vmem:[%s7526 + $0x150] sm:$0xff] %v7440
        %7570 = vst [vmem:[%s7526 + $0x158] sm:$0xff] %v7441
        %7571 = vst [vmem:[%s7526 + $0x160] sm:$0xff] %v7442
        %7572 = vst [vmem:[%s7526 + $0x168] sm:$0xff] %v7443
        %7573 = vst [vmem:[%s7526 + $0x170] sm:$0xff] %v7444
        %7574 = vst [vmem:[%s7526 + $0x178] sm:$0xff] %v7445
        %7575 = vst [vmem:[%s7526 + $0x180] sm:$0xff] %v7446
        %7576 = vst [vmem:[%s7526 + $0x188] sm:$0xff] %v7447
        %7577 = vst [vmem:[%s7526 + $0x190] sm:$0xff] %v7448
        %7578 = vst [vmem:[%s7526 + $0x198] sm:$0xff] %v7449
        %7579 = vst [vmem:[%s7526 + $0x1a0] sm:$0xff] %v7450
        %7580 = vst [vmem:[%s7526 + $0x1a8] sm:$0xff] %v7451
        %7581 = vst [vmem:[%s7526 + $0x1b0] sm:$0xff] %v7452
        %7582 = vst [vmem:[%s7526 + $0x1b8] sm:$0xff] %v7453
        %7583 = vst [vmem:[%s7526 + $0x1c0] sm:$0xff] %v7454
        %7584 = vst [vmem:[%s7526 + $0x1c8] sm:$0xff] %v7455
        %7585 = vst [vmem:[%s7526 + $0x1d0] sm:$0xff] %v7456
        %7586 = vst [vmem:[%s7526 + $0x1d8] sm:$0xff] %v7457
        %7587 = vst [vmem:[%s7526 + $0x1e0] sm:$0xff] %v7458
        %7588 = vst [vmem:[%s7526 + $0x1e8] sm:$0xff] %v7459
        %7589 = vst [vmem:[%s7526 + $0x1f0] sm:$0xff] %v7460
        %7590 = vst [vmem:[%s7526 + $0x1f8] sm:$0xff] %v7461
        %7591 = vst [vmem:[%s7526 + $0x200] sm:$0xff] %v7462
        %7592 = vst [vmem:[%s7526 + $0x208] sm:$0xff] %v7463
        %7593 = vst [vmem:[%s7526 + $0x210] sm:$0xff] %v7464
        %7594 = vst [vmem:[%s7526 + $0x218] sm:$0xff] %v7465
        %7595 = vst [vmem:[%s7526 + $0x220] sm:$0xff] %v7466
        %7596 = vst [vmem:[%s7526 + $0x228] sm:$0xff] %v7467
        %7597 = vst [vmem:[%s7526 + $0x230] sm:$0xff] %v7468
        %7598 = vst [vmem:[%s7526 + $0x238] sm:$0xff] %v7469
        %7599 = vst [vmem:[%s7526 + $0x240] sm:$0xff] %v7470
        %7600 = vst [vmem:[%s7526 + $0x248] sm:$0xff] %v7471
        %7601 = vst [vmem:[%s7526 + $0x250] sm:$0xff] %v7472
        %7602 = vst [vmem:[%s7526 + $0x258] sm:$0xff] %v7473
        %7603 = vst [vmem:[%s7526 + $0x260] sm:$0xff] %v7474
        %7604 = vst [vmem:[%s7526 + $0x268] sm:$0xff] %v7475
        %7605 = vst [vmem:[%s7526 + $0x270] sm:$0xff] %v7476
        %7606 = vst [vmem:[%s7526 + $0x278] sm:$0xff] %v7477
        %7607 = vst [vmem:[%s7526 + $0x280] sm:$0xff] %v7478
        %7608 = vst [vmem:[%s7526 + $0x288] sm:$0xff] %v7479
        %7609 = vst [vmem:[%s7526 + $0x290] sm:$0xff] %v7480
        %7610 = vst [vmem:[%s7526 + $0x298] sm:$0xff] %v7481
        %7611 = vst [vmem:[%s7526 + $0x2a0] sm:$0xff] %v7482
        %7612 = vst [vmem:[%s7526 + $0x2a8] sm:$0xff] %v7483
        %7613 = vst [vmem:[%s7526 + $0x2b0] sm:$0xff] %v7484
        %7614 = vst [vmem:[%s7526 + $0x2b8] sm:$0xff] %v7485
        %7615 = vst [vmem:[%s7526 + $0x2c0] sm:$0xff] %v7486
        %7616 = vst [vmem:[%s7526 + $0x2c8] sm:$0xff] %v7487
        %7617 = vst [vmem:[%s7526 + $0x2d0] sm:$0xff] %v7488
        %7618 = vst [vmem:[%s7526 + $0x2d8] sm:$0xff] %v7489
        %7619 = vst [vmem:[%s7526 + $0x2e0] sm:$0xff] %v7490
        %7620 = vst [vmem:[%s7526 + $0x2e8] sm:$0xff] %v7491
        %7621 = vst [vmem:[%s7526 + $0x2f0] sm:$0xff] %v7492
        %7622 = vst [vmem:[%s7526 + $0x2f8] sm:$0xff] %v7493
        %7623 = vst [vmem:[%s7526 + $0x300] sm:$0xff] %v7494
        %7624 = vst [vmem:[%s7526 + $0x308] sm:$0xff] %v7495
        %7625 = vst [vmem:[%s7526 + $0x310] sm:$0xff] %v7496
        %7626 = vst [vmem:[%s7526 + $0x318] sm:$0xff] %v7497
        %7627 = vst [vmem:[%s7526 + $0x320] sm:$0xff] %v7498
        %7628 = vst [vmem:[%s7526 + $0x328] sm:$0xff] %v7499
        %7629 = vst [vmem:[%s7526 + $0x330] sm:$0xff] %v7500
        %7630 = vst [vmem:[%s7526 + $0x338] sm:$0xff] %v7501
        %7631 = vst [vmem:[%s7526 + $0x340] sm:$0xff] %v7502
        %7632 = vst [vmem:[%s7526 + $0x348] sm:$0xff] %v7503
        %7633 = vst [vmem:[%s7526 + $0x350] sm:$0xff] %v7504
        %7634 = vst [vmem:[%s7526 + $0x358] sm:$0xff] %v7505
        %7635 = vst [vmem:[%s7526 + $0x360] sm:$0xff] %v7506
        %7636 = vst [vmem:[%s7526 + $0x368] sm:$0xff] %v7507
        %7637 = vst [vmem:[%s7526 + $0x370] sm:$0xff] %v7508
        %7638 = vst [vmem:[%s7526 + $0x378] sm:$0xff] %v7509
        %7639 = vst [vmem:[%s7526 + $0x380] sm:$0xff] %v7510
        %7640 = vst [vmem:[%s7526 + $0x388] sm:$0xff] %v7511
        %7641 = vst [vmem:[%s7526 + $0x390] sm:$0xff] %v7512
        %7642 = vst [vmem:[%s7526 + $0x398] sm:$0xff] %v7513
        %7643 = vst [vmem:[%s7526 + $0x3a0] sm:$0xff] %v7514
        %7644 = vst [vmem:[%s7526 + $0x3a8] sm:$0xff] %v7515
        %7645 = vst [vmem:[%s7526 + $0x3b0] sm:$0xff] %v7516
        %7646 = vst [vmem:[%s7526 + $0x3b8] sm:$0xff] %v7517
        %7647 = vst [vmem:[%s7526 + $0x3c0] sm:$0xff] %v7518
        %7648 = vst [vmem:[%s7526 + $0x3c8] sm:$0xff] %v7519
        %7649 = vst [vmem:[%s7526 + $0x3d0] sm:$0xff] %v7520
        %7650 = vst [vmem:[%s7526 + $0x3d8] sm:$0xff] %v7521
        %7651 = vst [vmem:[%s7526 + $0x3e0] sm:$0xff] %v7522
        %7652 = vst [vmem:[%s7526 + $0x3e8] sm:$0xff] %v7523
        %7653 = vst [vmem:[%s7526 + $0x3f0] sm:$0xff] %v7524
        %7654 = vst [vmem:[%s7526 + $0x3f8] sm:$0xff] %v7525
        %s7655 = sand.u32 %s210, 1
        %s7656 = scalar_lea.sflag [#allocation7], %s7655
        %s7657 = sand.u32 %s210, 1
        %s7658 = smul.addr %s7657, 2048
        %s7659 = scalar_lea.vmem [#allocation17], %s7658
        // Predicated region
        $region81: #{tpu_custom_call.1} parent=51 // pred_check
          %p7660 = pneg %p220
        $region82: #{tpu_custom_call.1} parent=51 // pred_check_branch
          %7662 = sbr.rel (%p7660) target = $region84
        $region83: #{tpu_custom_call.1} parent=51 // pred_region
          %s7663 = smul.u32 2, %s29
          %s7665 = ssub.s32 32768, 32768
          %7666 = vsyncadd %s7656, %s7665
          %s7667 = smul.addr %s7663, 128
          %s7668 = smul.addr %s7667, 128
          %s7669 = scalar_lea.hbm %s8, %s7668
          %s7670 = sshll.u32 %s7659, 4
          %s7671 = int_to_ptr.vmem [resolvable:$true] %s7670
          %7676 = dma.vmem_to_hbm [thread:$0]  %s7671, 32768, %s7669, %s7656, 2048, 2048, 128
        $region84: #{tpu_custom_call.1} parent=51 // pred_fallthru
          _
      $region52: #{tpu_custom_call.1} parent=5 // pred_fallthru
        _
      %p7677 = scmp.le.s32.totalorder 2, %s24
      // Predicated region
      $region85: #{tpu_custom_call.1} parent=5 // pred_check
        %p7678 = pneg %p7677
      $region86: #{tpu_custom_call.1} parent=5 // pred_check_branch
        %7680 = sbr.rel (%p7678) target = $region88
      $region87: #{tpu_custom_call.1} parent=5 // pred_region
        %s7681 = ssub.s32 %s24, 2
        // Predicated region
        $region89: #{tpu_custom_call.1} parent=87 // pred_check
          %p7682 = pneg %p226
        $region90: #{tpu_custom_call.1} parent=87 // pred_check_branch
          %7684 = sbr.rel (%p7682) target = $region92
        $region91: #{tpu_custom_call.1} parent=87 // pred_region
          %s7685 = sand.u32 %s211, 1
          %s7686 = scalar_lea.sflag [#allocation7], %s7685
          %s7687 = sand.u32 %s211, 1
          %s7688 = smul.addr %s7687, 2048
          %s7689 = scalar_lea.vmem [#allocation17], %s7688
          %7690 = dma.done %s7686, 32768
        $region92: #{tpu_custom_call.1} parent=87 // pred_fallthru
          _
      $region88: #{tpu_custom_call.1} parent=5 // pred_fallthru
        _
    $region6: #{tpu_custom_call.1} parent=1 // loop_footer
      %s28 = sadd.s32 1, %s24
    $region7: #{tpu_custom_call.1} parent=1 // loop_footer_branch
      %23 = sbr.rel target = $region3
    $region8: #{tpu_custom_call.1} parent=1 // loop_exit
      _
    %7691 = vsyncpa [#allocation6], 1
    %s7692 = scalar_lea.sflag [#allocation6], 1
    %7693 = vsyncpa %s7692, 1
    %7694 = vsyncpa [#allocation9], 1
    %7695 = vsyncpa [#allocation12], 1
    %7696 = vsyncpa [#allocation15], 1
    %7697 = vsyncpa [#allocation7], 1
    %s7698 = scalar_lea.sflag [#allocation7], 1
    %7699 = vsyncpa %s7698, 1

</llo_original>
